<compile_context>
chip_gen: v7x
topology: tpu7x:2x2x1
jax: 0.10.0
libtpu: 0.0.40
codegen_flags: <defaults>
</compile_context>

<pallas_src>
import jax
import jax.numpy as jnp
from jax.experimental import pallas as pl
from jax.experimental.pallas import tpu as pltpu

# ----------------------------- model sizes (small, consistent with __init__) --
CONTEXT_SIZE = 2
BATCH        = 2
T_SRC        = 8
T_DEC        = 6
VOCAB        = 32          # src_vocab_size == tgt_vocab_size (tie_embedding=True)
EMB          = 16          # src_emb_dim == tgt_emb_dim
ENC_HID      = 32          # enc_hidden_size (== context_input_size)
ENC_DIR      = ENC_HID // 2  # per-direction encoder hidden (bidirectional_enc=True)
CTX_HID      = 32          # context_hidden_size (bidirectional_context=False)
DEC_HID      = 32          # dec_hidden_size (== attention_size == image_out_size)
IMAGE_IN     = 64          # image_in_size (image input is unused in this forward)


def _dot(a, b):
    return jnp.dot(a, b, preferred_element_type=jnp.float32)


def _softmax_lanes(x):
    """Softmax over the last (lane) axis; EUP reciprocal for the denominator."""
    m = jnp.max(x, axis=-1, keepdims=True)
    e = jnp.exp(x - m)
    return e * pl.reciprocal(jnp.sum(e, axis=-1, keepdims=True), approx=True)


def _gru_update(gi, gh, h, hs):
    """GRU update with precomputed gate pre-activations gi (input side, bias
    folded) and gh (hidden side).  Gates are fused along lanes as [r|z|n]."""
    r = jax.nn.sigmoid(gi[:, :hs] + gh[:, :hs])
    z = jax.nn.sigmoid(gi[:, hs:2 * hs] + gh[:, hs:2 * hs])
    n = jnp.tanh(gi[:, 2 * hs:] + r * gh[:, 2 * hs:])
    return (1.0 - z) * n + z * h


# ----------------------------- the single fused kernel -------------------------
def hred_kernel(gi_enc_ref, gi_dec_ref, sel_ref,
                ewh_ref, ebh_ref,
                cwi_ref, cwh_ref, cbi_ref, cbh_ref,
                brw_ref, brb_ref,
                dwf_ref, dwh_ref, dbh_ref,
                wpo_ref, woc_ref, bout_ref, wvoc_ref, bvoc_ref,
                probs_ref,
                ef_sc, eb_sc):
    f32 = jnp.float32
    t_src, cb, _ = gi_enc_ref.shape       # (T_src, CTX*B, 3*ENC_HID)
    t_dec, bsz, _ = gi_dec_ref.shape      # (T_dec, B, 3*DEC_HID)
    n_turns = sel_ref.shape[0]
    henc2 = ewh_ref.shape[0]              # fused fwd+bwd encoder hidden = ENC_HID
    hd = henc2 // 2                       # per-direction encoder hidden
    hctx = cwh_ref.shape[0]
    hdec = wpo_ref.shape[0]

    # ---- load all weights once (loop invariant, VMEM resident) ----------------
    Whe, bhe = ewh_ref[...], ebh_ref[...]
    Wic, Whc, bic, bhc = cwi_ref[...], cwh_ref[...], cbi_ref[...], cbh_ref[...]
    Wbr, bbr = brw_ref[...], brb_ref[...]
    Wfd, Whd, bhd = dwf_ref[...], dwh_ref[...], dbh_ref[...]
    Wpo, Woc, bo = wpo_ref[...], woc_ref[...], bout_ref[...]
    Wv, bv = wvoc_ref[...], bvoc_ref[...]
    sel_last = sel_ref[n_turns - 1]                      # (B, CTX*B) row-select

    # ---- fused bidirectional encoder over all turns at once -------------------
    # hidden = [h_fwd | h_bwd] lanes; gates interleaved [r_f r_b | z_f z_b | n_f n_b]
    h_cat = jnp.zeros((cb, henc2), f32)
    for t in range(t_src):                               # fully unrolled, static
        gh = _dot(h_cat, Whe) + bhe                      # block-diag hidden weights
        h_cat = _gru_update(gi_enc_ref[t], gh, h_cat, henc2)
        h_last = _dot(sel_last, h_cat)                   # last turn's rows (B, 2*hd)
        ef_sc[t] = h_last[:, :hd]                        # fwd output at position t
        eb_sc[t_src - 1 - t] = h_last[:, hd:]            # bwd back to original order

    # BridgeLayer on concat([h_fwd, h_bwd]) (h_cat already lane-concatenated).
    bridged = jnp.tanh(_dot(h_cat, Wbr) + bbr)           # (CTX*B, DEC_HID)

    # ---- context GRU over turns (input projection hoisted over turns) ---------
    gi_ctx = _dot(bridged, Wic) + bic                    # (CTX*B, 3*CTX_HID)
    h_c = jnp.zeros((bsz, hctx), f32)
    for k in range(n_turns):                             # static, tiny
        gh = _dot(h_c, Whc) + bhc
        h_c = _gru_update(_dot(sel_ref[k], gi_ctx), gh, h_c, hctx)
    h = jnp.tanh(_dot(h_c, Wbr) + bbr)                   # context bridge -> init_h

    # ---- attention GRU decoder with input feed (teacher forcing) ---------------
    ef = ef_sc[...]                                      # (T_src, B, hd)
    eb = eb_sc[...]
    feed = jnp.zeros((bsz, hdec), f32)
    for t in range(t_dec):
        gi = gi_dec_ref[t] + _dot(feed, Wfd)             # emb projection precomputed
        gh = _dot(h, Whd) + bhd
        h = _gru_update(gi, gh, h, hdec)

        # Fused [attention-projection | output-h-projection] of the new hidden.
        po = _dot(h, Wpo)                                # (B, ENC_HID + DEC_HID)
        pf = po[:, :hd][None, :, :]
        pb = po[:, hd:henc2][None, :, :]
        oh = po[:, henc2:]

        # Luong (general) attention over last turn's encoder outputs.
        s = (jnp.sum(ef * pf, axis=-1, keepdims=True)
             + jnp.sum(eb * pb, axis=-1, keepdims=True)) # (T_src, B, 1)
        m = jnp.max(s, axis=0, keepdims=True)
        p = jnp.exp(s - m)
        attn = p * pl.reciprocal(jnp.sum(p, axis=0, keepdims=True), approx=True)
        ctx_f = jnp.sum(attn * ef, axis=0)               # (B, hd)
        ctx_b = jnp.sum(attn * eb, axis=0)

        out_h = jnp.tanh(oh + _dot(ctx_f, Woc[:hd, :])
                         + _dot(ctx_b, Woc[hd:, :]) + bo)
        probs_ref[t] = _softmax_lanes(_dot(out_h, Wv) + bv)   # (B, VOCAB)
        feed = out_h


# ----------------------------- parameters --------------------------------------
def init_params(key, initrange=0.1):
    keys = iter(jax.random.split(key, 64))

    def u(shape):
        return jax.random.uniform(next(keys), shape, jnp.float32, -initrange, initrange)

    def gru(din, h):
        return dict(wir=u((din, h)), wiz=u((din, h)), win=u((din, h)),
                    whr=u((h, h)), whz=u((h, h)), whn=u((h, h)),
                    bir=u((1, h)), biz=u((1, h)), bin=u((1, h)),
                    bhr=u((1, h)), bhz=u((1, h)), bhn=u((1, h)))

    p = {}
    p['embedding'] = u((VOCAB, EMB))             # tied src/tgt embedding
    p['enc_fwd'] = gru(EMB, ENC_DIR)
    p['enc_bwd'] = gru(EMB, ENC_DIR)
    p['context'] = gru(ENC_HID, CTX_HID)
    p['bridge_w'] = u((ENC_HID, DEC_HID))        # shared BridgeLayer (enc & context)
    p['bridge_b'] = u((1, DEC_HID))
    p['dec'] = dict(
        wer=u((EMB, DEC_HID)), wez=u((EMB, DEC_HID)), wen=u((EMB, DEC_HID)),
        wfr=u((DEC_HID, DEC_HID)), wfz=u((DEC_HID, DEC_HID)), wfn=u((DEC_HID, DEC_HID)),
        whr=u((DEC_HID, DEC_HID)), whz=u((DEC_HID, DEC_HID)), whn=u((DEC_HID, DEC_HID)),
        bir=u((1, DEC_HID)), biz=u((1, DEC_HID)), bin=u((1, DEC_HID)),
        bhr=u((1, DEC_HID)), bhz=u((1, DEC_HID)), bhn=u((1, DEC_HID)),
        watt=u((DEC_HID, ENC_HID)),
        wout_h=u((DEC_HID, DEC_HID)), wout_c=u((ENC_HID, DEC_HID)), bout=u((1, DEC_HID)),
        wvoc=u((DEC_HID, VOCAB)), bvoc=u((1, VOCAB)))
    return p


# ----------------------------- HRED forward ------------------------------------
def hred_forward(params, text_enc_input, dec_text_input, context_size=CONTEXT_SIZE):
    """text_enc_input: (context_size, B, T_src) int32; dec_text_input: (B, T_dec)."""
    assert text_enc_input.shape[0] == context_size, 'Context size mismatch'
    ctx, B, T = text_enc_input.shape
    T_dec = dec_text_input.shape[1]
    # TODO(synk): text_enc_in_len masking (pack_padded_sequence) not applied;
    #             full-length sequences are processed.
    # TODO(synk): dropout layers are treated as eval-mode (no-ops); KB / aspect /
    #             celeb encoders are disabled (use_kb=False, use_aspect=False).

    emb = params['embedding']
    ef, eb = params['enc_fwd'], params['enc_bwd']
    cgru, dp = params['context'], params['dec']
    H = ENC_DIR

    def cat3(a, b, c):
        return jnp.concatenate([a, b, c], axis=1)

    def interleave(a, b, h):
        # [r_a r_b | z_a z_b | n_a n_b] gate-major interleaving along lanes.
        return jnp.concatenate([a[..., :h], b[..., :h],
                                a[..., h:2 * h], b[..., h:2 * h],
                                a[..., 2 * h:], b[..., 2 * h:]], axis=-1)

    # Input projections folded into projected-embedding tables (gathered by XLA),
    # so no x @ Wi matmuls remain inside the recurrences.
    pif = cat3(emb @ ef['wir'], emb @ ef['wiz'], emb @ ef['win'])   # (V, 3*ENC_DIR)
    pib = cat3(emb @ eb['wir'], emb @ eb['wiz'], emb @ eb['win'])
    pd  = cat3(emb @ dp['wer'], emb @ dp['wez'], emb @ dp['wen'])   # (V, 3*DEC_HID)

    # Stack turns along batch (rows ordered turn-major: row = turn*B + b).
    tok_f = jnp.transpose(text_enc_input, (2, 0, 1)).reshape(T, ctx * B)
    tok_b = jnp.transpose(text_enc_input[:, :, ::-1], (2, 0, 1)).reshape(T, ctx * B)
    bi_cat = interleave(cat3(ef['bir'], ef['biz'], ef['bin']),
                        cat3(eb['bir'], eb['biz'], eb['bin']), H)
    gi_enc = interleave(jnp.take(pif, tok_f, axis=0),
                        jnp.take(pib, tok_b, axis=0), H) + bi_cat   # (T, ctx*B, 3*ENC_HID)

    dbi = cat3(dp['bir'], dp['biz'], dp['bin'])
    gi_dec = jnp.transpose(jnp.take(pd, dec_text_input, axis=0), (1, 0, 2)) + dbi

    # Encoder hidden->gate weights: block-diagonal per gate so one matmul drives
    # both directions of the lane-concatenated hidden state.
    zH = jnp.zeros((H, H), jnp.float32)

    def blk(a, b):
        return jnp.concatenate([jnp.concatenate([a, zH], axis=1),
                                jnp.concatenate([zH, b], axis=1)], axis=0)

    ewh = jnp.concatenate([blk(ef['whr'], eb['whr']),
                           blk(ef['whz'], eb['whz']),
                           blk(ef['whn'], eb['whn'])], axis=1)      # (ENC_HID, 3*ENC_HID)
    ebh = interleave(cat3(ef['bhr'], ef['bhz'], ef['bhn']),
                     cat3(eb['bhr'], eb['bhz'], eb['bhn']), H)

    cwi = cat3(cgru['wir'], cgru['wiz'], cgru['win'])
    cwh = cat3(cgru['whr'], cgru['whz'], cgru['whn'])
    cbi = cat3(cgru['bir'], cgru['biz'], cgru['bin'])
    cbh = cat3(cgru['bhr'], cgru['bhz'], cgru['bhn'])

    dwf = cat3(dp['wfr'], dp['wfz'], dp['wfn'])
    dwh = cat3(dp['whr'], dp['whz'], dp['whn'])
    dbh = cat3(dp['bhr'], dp['bhz'], dp['bhn'])
    wpo = jnp.concatenate([dp['watt'], dp['wout_h']], axis=1)       # (DEC_HID, ENC_HID+DEC_HID)

    # Row-selection matrices (selection by tiny matmul instead of sublane slices).
    sel = jnp.eye(ctx * B, dtype=jnp.float32).reshape(ctx, B, ctx * B)

    probs_t = pl.pallas_call(
        hred_kernel,
        out_shape=jax.ShapeDtypeStruct((T_dec, B, VOCAB), jnp.float32),
        scratch_shapes=[pltpu.VMEM((T, B, ENC_DIR), jnp.float32),   # fwd attn memory
                        pltpu.VMEM((T, B, ENC_DIR), jnp.float32)],  # bwd attn memory
    )(gi_enc, gi_dec, sel,
      ewh, ebh,
      cwi, cwh, cbi, cbh,
      params['bridge_w'], params['bridge_b'],
      dwf, dwh, dbh,
      wpo, dp['wout_c'], dp['bout'], dp['wvoc'], dp['bvoc'])

    return jnp.transpose(probs_t, (1, 0, 2))                        # (B, T_dec, V)


# ----------------------------- main ---------------------------------------------
if __name__ == "__main__":
    key = jax.random.PRNGKey(0)
    pk, k1, k2, k3 = jax.random.split(key, 4)
    params = init_params(pk)

    text_enc_input = jax.random.randint(k1, (CONTEXT_SIZE, BATCH, T_SRC), 0, VOCAB,
                                        dtype=jnp.int32)
    text_enc_in_len = jnp.full((CONTEXT_SIZE, BATCH), T_SRC, dtype=jnp.int32)  # unused
    image_enc_input = jax.random.normal(k2, (BATCH, IMAGE_IN), jnp.float32)    # unused in forward
    dec_text_input = jax.random.randint(k3, (BATCH, T_DEC), 0, VOCAB, dtype=jnp.int32)

    fwd = jax.jit(hred_forward)
    out = fwd(params, text_enc_input, dec_text_input)
    out = jax.block_until_ready(out)
    assert out.shape == (BATCH, T_DEC, VOCAB), out.shape
    assert bool(jnp.all(jnp.isfinite(out)))
    print("KERNEL_OK")
</pallas_src>

<mosaic_0001>
module attributes {stable_mosaic.version = 11 : i64} {
  func.func @hred_kernel(%arg0: memref<8x4x96xf32, #tpu.memory_space<vmem>>, %arg1: memref<6x2x96xf32, #tpu.memory_space<vmem>>, %arg2: memref<2x2x4xf32, #tpu.memory_space<vmem>>, %arg3: memref<32x96xf32, #tpu.memory_space<vmem>>, %arg4: memref<1x96xf32, #tpu.memory_space<vmem>>, %arg5: memref<32x96xf32, #tpu.memory_space<vmem>>, %arg6: memref<32x96xf32, #tpu.memory_space<vmem>>, %arg7: memref<1x96xf32, #tpu.memory_space<vmem>>, %arg8: memref<1x96xf32, #tpu.memory_space<vmem>>, %arg9: memref<32x32xf32, #tpu.memory_space<vmem>>, %arg10: memref<1x32xf32, #tpu.memory_space<vmem>>, %arg11: memref<32x96xf32, #tpu.memory_space<vmem>>, %arg12: memref<32x96xf32, #tpu.memory_space<vmem>>, %arg13: memref<1x96xf32, #tpu.memory_space<vmem>>, %arg14: memref<32x64xf32, #tpu.memory_space<vmem>>, %arg15: memref<32x32xf32, #tpu.memory_space<vmem>>, %arg16: memref<1x32xf32, #tpu.memory_space<vmem>>, %arg17: memref<32x32xf32, #tpu.memory_space<vmem>>, %arg18: memref<1x32xf32, #tpu.memory_space<vmem>>, %arg19: memref<6x2x32xf32, #tpu.memory_space<vmem>>, %arg20: memref<8x2x16xf32, #tpu.memory_space<vmem>>, %arg21: memref<8x2x16xf32, #tpu.memory_space<vmem>>) attributes {dimension_semantics = [], scalar_prefetch = 0 : i64, scratch_operands = 2 : i64, tpu.core_type = #tpu.core_type<tc>} {
    %c0 = arith.constant 0 : index
    %c0_0 = arith.constant 0 : index
    %0 = vector.load %arg3[%c0, %c0_0] : memref<32x96xf32, #tpu.memory_space<vmem>>, vector<32x96xf32>
    %c0_1 = arith.constant 0 : index
    %c0_2 = arith.constant 0 : index
    %1 = vector.load %arg4[%c0_1, %c0_2] : memref<1x96xf32, #tpu.memory_space<vmem>>, vector<1x96xf32>
    %c0_3 = arith.constant 0 : index
    %c0_4 = arith.constant 0 : index
    %2 = vector.load %arg5[%c0_3, %c0_4] : memref<32x96xf32, #tpu.memory_space<vmem>>, vector<32x96xf32>
    %c0_5 = arith.constant 0 : index
    %c0_6 = arith.constant 0 : index
    %3 = vector.load %arg6[%c0_5, %c0_6] : memref<32x96xf32, #tpu.memory_space<vmem>>, vector<32x96xf32>
    %c0_7 = arith.constant 0 : index
    %c0_8 = arith.constant 0 : index
    %4 = vector.load %arg7[%c0_7, %c0_8] : memref<1x96xf32, #tpu.memory_space<vmem>>, vector<1x96xf32>
    %c0_9 = arith.constant 0 : index
    %c0_10 = arith.constant 0 : index
    %5 = vector.load %arg8[%c0_9, %c0_10] : memref<1x96xf32, #tpu.memory_space<vmem>>, vector<1x96xf32>
    %c0_11 = arith.constant 0 : index
    %c0_12 = arith.constant 0 : index
    %6 = vector.load %arg9[%c0_11, %c0_12] : memref<32x32xf32, #tpu.memory_space<vmem>>, vector<32x32xf32>
    %c0_13 = arith.constant 0 : index
    %c0_14 = arith.constant 0 : index
    %7 = vector.load %arg10[%c0_13, %c0_14] : memref<1x32xf32, #tpu.memory_space<vmem>>, vector<1x32xf32>
    %c0_15 = arith.constant 0 : index
    %c0_16 = arith.constant 0 : index
    %8 = vector.load %arg11[%c0_15, %c0_16] : memref<32x96xf32, #tpu.memory_space<vmem>>, vector<32x96xf32>
    %c0_17 = arith.constant 0 : index
    %c0_18 = arith.constant 0 : index
    %9 = vector.load %arg12[%c0_17, %c0_18] : memref<32x96xf32, #tpu.memory_space<vmem>>, vector<32x96xf32>
    %c0_19 = arith.constant 0 : index
    %c0_20 = arith.constant 0 : index
    %10 = vector.load %arg13[%c0_19, %c0_20] : memref<1x96xf32, #tpu.memory_space<vmem>>, vector<1x96xf32>
    %c0_21 = arith.constant 0 : index
    %c0_22 = arith.constant 0 : index
    %11 = vector.load %arg14[%c0_21, %c0_22] : memref<32x64xf32, #tpu.memory_space<vmem>>, vector<32x64xf32>
    %c0_23 = arith.constant 0 : index
    %c0_24 = arith.constant 0 : index
    %12 = vector.load %arg15[%c0_23, %c0_24] : memref<32x32xf32, #tpu.memory_space<vmem>>, vector<32x32xf32>
    %c0_25 = arith.constant 0 : index
    %c0_26 = arith.constant 0 : index
    %13 = vector.load %arg16[%c0_25, %c0_26] : memref<1x32xf32, #tpu.memory_space<vmem>>, vector<1x32xf32>
    %c0_27 = arith.constant 0 : index
    %c0_28 = arith.constant 0 : index
    %14 = vector.load %arg17[%c0_27, %c0_28] : memref<32x32xf32, #tpu.memory_space<vmem>>, vector<32x32xf32>
    %c0_29 = arith.constant 0 : index
    %c0_30 = arith.constant 0 : index
    %15 = vector.load %arg18[%c0_29, %c0_30] : memref<1x32xf32, #tpu.memory_space<vmem>>, vector<1x32xf32>
    %c1 = arith.constant 1 : index
    %c0_31 = arith.constant 0 : index
    %c0_32 = arith.constant 0 : index
    %16 = vector.load %arg2[%c1, %c0_31, %c0_32] : memref<2x2x4xf32, #tpu.memory_space<vmem>>, vector<1x2x4xf32>
    %17 = vector.shape_cast %16 : vector<1x2x4xf32> to vector<2x4xf32>
    %cst = arith.constant 0.000000e+00 : f32
    %18 = vector.broadcast %cst : f32 to vector<4x32xf32>
    %cst_33 = arith.constant dense<0.000000e+00> : vector<4x96xf32>
    %19 = tpu.matmul %18, %0, %cst_33 {dimension_numbers = #tpu.dot_dimension_numbers<[1], [0], [0], [1], [0, 0, 1, 1], [], []>} : vector<4x32xf32>, vector<32x96xf32>, vector<4x96xf32> -> vector<4x96xf32>
    %20 = vector.broadcast %1 : vector<1x96xf32> to vector<4x96xf32>
    %21 = arith.addf %19, %20 : vector<4x96xf32>
    %c0_34 = arith.constant 0 : index
    %c0_35 = arith.constant 0 : index
    %c0_36 = arith.constant 0 : index
    %22 = vector.load %arg0[%c0_34, %c0_35, %c0_36] : memref<8x4x96xf32, #tpu.memory_space<vmem>>, vector<1x4x96xf32>
    %23 = vector.shape_cast %22 : vector<1x4x96xf32> to vector<4x96xf32>
    %24 = vector.extract_strided_slice %23 {offsets = [0, 0], sizes = [4, 32], strides = [1, 1]} : vector<4x96xf32> to vector<4x32xf32>
    %25 = vector.extract_strided_slice %21 {offsets = [0, 0], sizes = [4, 32], strides = [1, 1]} : vector<4x96xf32> to vector<4x32xf32>
    %26 = arith.addf %24, %25 : vector<4x32xf32>
    %27 = arith.negf %26 : vector<4x32xf32>
    %28 = math.exp %27 : vector<4x32xf32>
    %cst_37 = arith.constant 1.000000e+00 : f32
    %29 = vector.broadcast %cst_37 : f32 to vector<4x32xf32>
    %30 = arith.addf %29, %28 : vector<4x32xf32>
    %31 = arith.divf %29, %30 : vector<4x32xf32>
    %32 = vector.extract_strided_slice %23 {offsets = [0, 32], sizes = [4, 32], strides = [1, 1]} : vector<4x96xf32> to vector<4x32xf32>
    %33 = vector.extract_strided_slice %21 {offsets = [0, 32], sizes = [4, 32], strides = [1, 1]} : vector<4x96xf32> to vector<4x32xf32>
    %34 = arith.addf %32, %33 : vector<4x32xf32>
    %35 = arith.negf %34 : vector<4x32xf32>
    %36 = math.exp %35 : vector<4x32xf32>
    %cst_38 = arith.constant 1.000000e+00 : f32
    %37 = vector.broadcast %cst_38 : f32 to vector<4x32xf32>
    %38 = arith.addf %37, %36 : vector<4x32xf32>
    %39 = arith.divf %37, %38 : vector<4x32xf32>
    %40 = vector.extract_strided_slice %23 {offsets = [0, 64], sizes = [4, 32], strides = [1, 1]} : vector<4x96xf32> to vector<4x32xf32>
    %41 = vector.extract_strided_slice %21 {offsets = [0, 64], sizes = [4, 32], strides = [1, 1]} : vector<4x96xf32> to vector<4x32xf32>
    %42 = arith.mulf %31, %41 : vector<4x32xf32>
    %43 = arith.addf %40, %42 : vector<4x32xf32>
    %44 = math.tanh %43 : vector<4x32xf32>
    %cst_39 = arith.constant 1.000000e+00 : f32
    %45 = vector.broadcast %cst_39 : f32 to vector<4x32xf32>
    %46 = arith.subf %45, %39 : vector<4x32xf32>
    %47 = arith.mulf %46, %44 : vector<4x32xf32>
    %48 = arith.mulf %39, %18 : vector<4x32xf32>
    %49 = arith.addf %47, %48 : vector<4x32xf32>
    %cst_40 = arith.constant dense<0.000000e+00> : vector<2x32xf32>
    %50 = tpu.matmul %17, %49, %cst_40 {dimension_numbers = #tpu.dot_dimension_numbers<[1], [0], [0], [1], [0, 0, 1, 1], [], []>} : vector<2x4xf32>, vector<4x32xf32>, vector<2x32xf32> -> vector<2x32xf32>
    %51 = vector.extract_strided_slice %50 {offsets = [0, 0], sizes = [2, 16], strides = [1, 1]} : vector<2x32xf32> to vector<2x16xf32>
    %c0_41 = arith.constant 0 : index
    %c0_42 = arith.constant 0 : index
    %c0_43 = arith.constant 0 : index
    %52 = vector.load %arg20[%c0_41, %c0_42, %c0_43] : memref<8x2x16xf32, #tpu.memory_space<vmem>>, vector<1x2x16xf32>
    %53 = vector.shape_cast %52 : vector<1x2x16xf32> to vector<2x16xf32>
    %54 = vector.shape_cast %51 : vector<2x16xf32> to vector<1x2x16xf32>
    tpu.vector_store %arg20[%c0_41, %c0_42, %c0_43], %54 {strides = array<i32>} : memref<8x2x16xf32, #tpu.memory_space<vmem>>, vector<1x2x16xf32>,
    %55 = vector.extract_strided_slice %50 {offsets = [0, 16], sizes = [2, 16], strides = [1, 1]} : vector<2x32xf32> to vector<2x16xf32>
    %c7 = arith.constant 7 : index
    %c0_44 = arith.constant 0 : index
    %c0_45 = arith.constant 0 : index
    %56 = vector.load %arg21[%c7, %c0_44, %c0_45] : memref<8x2x16xf32, #tpu.memory_space<vmem>>, vector<1x2x16xf32>
    %57 = vector.shape_cast %56 : vector<1x2x16xf32> to vector<2x16xf32>
    %58 = vector.shape_cast %55 : vector<2x16xf32> to vector<1x2x16xf32>
    tpu.vector_store %arg21[%c7, %c0_44, %c0_45], %58 {strides = array<i32>} : memref<8x2x16xf32, #tpu.memory_space<vmem>>, vector<1x2x16xf32>,
    %cst_46 = arith.constant dense<0.000000e+00> : vector<4x96xf32>
    %59 = tpu.matmul %49, %0, %cst_46 {dimension_numbers = #tpu.dot_dimension_numbers<[1], [0], [0], [1], [0, 0, 1, 1], [], []>} : vector<4x32xf32>, vector<32x96xf32>, vector<4x96xf32> -> vector<4x96xf32>
    %60 = vector.broadcast %1 : vector<1x96xf32> to vector<4x96xf32>
    %61 = arith.addf %59, %60 : vector<4x96xf32>
    %c1_47 = arith.constant 1 : index
    %c0_48 = arith.constant 0 : index
    %c0_49 = arith.constant 0 : index
    %62 = vector.load %arg0[%c1_47, %c0_48, %c0_49] : memref<8x4x96xf32, #tpu.memory_space<vmem>>, vector<1x4x96xf32>
    %63 = vector.shape_cast %62 : vector<1x4x96xf32> to vector<4x96xf32>
    %64 = vector.extract_strided_slice %63 {offsets = [0, 0], sizes = [4, 32], strides = [1, 1]} : vector<4x96xf32> to vector<4x32xf32>
    %65 = vector.extract_strided_slice %61 {offsets = [0, 0], sizes = [4, 32], strides = [1, 1]} : vector<4x96xf32> to vector<4x32xf32>
    %66 = arith.addf %64, %65 : vector<4x32xf32>
    %67 = arith.negf %66 : vector<4x32xf32>
    %68 = math.exp %67 : vector<4x32xf32>
    %cst_50 = arith.constant 1.000000e+00 : f32
    %69 = vector.broadcast %cst_50 : f32 to vector<4x32xf32>
    %70 = arith.addf %69, %68 : vector<4x32xf32>
    %71 = arith.divf %69, %70 : vector<4x32xf32>
    %72 = vector.extract_strided_slice %63 {offsets = [0, 32], sizes = [4, 32], strides = [1, 1]} : vector<4x96xf32> to vector<4x32xf32>
    %73 = vector.extract_strided_slice %61 {offsets = [0, 32], sizes = [4, 32], strides = [1, 1]} : vector<4x96xf32> to vector<4x32xf32>
    %74 = arith.addf %72, %73 : vector<4x32xf32>
    %75 = arith.negf %74 : vector<4x32xf32>
    %76 = math.exp %75 : vector<4x32xf32>
    %cst_51 = arith.constant 1.000000e+00 : f32
    %77 = vector.broadcast %cst_51 : f32 to vector<4x32xf32>
    %78 = arith.addf %77, %76 : vector<4x32xf32>
    %79 = arith.divf %77, %78 : vector<4x32xf32>
    %80 = vector.extract_strided_slice %63 {offsets = [0, 64], sizes = [4, 32], strides = [1, 1]} : vector<4x96xf32> to vector<4x32xf32>
    %81 = vector.extract_strided_slice %61 {offsets = [0, 64], sizes = [4, 32], strides = [1, 1]} : vector<4x96xf32> to vector<4x32xf32>
    %82 = arith.mulf %71, %81 : vector<4x32xf32>
    %83 = arith.addf %80, %82 : vector<4x32xf32>
    %84 = math.tanh %83 : vector<4x32xf32>
    %cst_52 = arith.constant 1.000000e+00 : f32
    %85 = vector.broadcast %cst_52 : f32 to vector<4x32xf32>
    %86 = arith.subf %85, %79 : vector<4x32xf32>
    %87 = arith.mulf %86, %84 : vector<4x32xf32>
    %88 = arith.mulf %79, %49 : vector<4x32xf32>
    %89 = arith.addf %87, %88 : vector<4x32xf32>
    %cst_53 = arith.constant dense<0.000000e+00> : vector<2x32xf32>
    %90 = tpu.matmul %17, %89, %cst_53 {dimension_numbers = #tpu.dot_dimension_numbers<[1], [0], [0], [1], [0, 0, 1, 1], [], []>} : vector<2x4xf32>, vector<4x32xf32>, vector<2x32xf32> -> vector<2x32xf32>
    %91 = vector.extract_strided_slice %90 {offsets = [0, 0], sizes = [2, 16], strides = [1, 1]} : vector<2x32xf32> to vector<2x16xf32>
    %c1_54 = arith.constant 1 : index
    %c0_55 = arith.constant 0 : index
    %c0_56 = arith.constant 0 : index
    %92 = vector.load %arg20[%c1_54, %c0_55, %c0_56] : memref<8x2x16xf32, #tpu.memory_space<vmem>>, vector<1x2x16xf32>
    %93 = vector.shape_cast %92 : vector<1x2x16xf32> to vector<2x16xf32>
    %94 = vector.shape_cast %91 : vector<2x16xf32> to vector<1x2x16xf32>
    tpu.vector_store %arg20[%c1_54, %c0_55, %c0_56], %94 {strides = array<i32>} : memref<8x2x16xf32, #tpu.memory_space<vmem>>, vector<1x2x16xf32>,
    %95 = vector.extract_strided_slice %90 {offsets = [0, 16], sizes = [2, 16], strides = [1, 1]} : vector<2x32xf32> to vector<2x16xf32>
    %c6 = arith.constant 6 : index
    %c0_57 = arith.constant 0 : index
    %c0_58 = arith.constant 0 : index
    %96 = vector.load %arg21[%c6, %c0_57, %c0_58] : memref<8x2x16xf32, #tpu.memory_space<vmem>>, vector<1x2x16xf32>
    %97 = vector.shape_cast %96 : vector<1x2x16xf32> to vector<2x16xf32>
    %98 = vector.shape_cast %95 : vector<2x16xf32> to vector<1x2x16xf32>
    tpu.vector_store %arg21[%c6, %c0_57, %c0_58], %98 {strides = array<i32>} : memref<8x2x16xf32, #tpu.memory_space<vmem>>, vector<1x2x16xf32>,
    %cst_59 = arith.constant dense<0.000000e+00> : vector<4x96xf32>
    %99 = tpu.matmul %89, %0, %cst_59 {dimension_numbers = #tpu.dot_dimension_numbers<[1], [0], [0], [1], [0, 0, 1, 1], [], []>} : vector<4x32xf32>, vector<32x96xf32>, vector<4x96xf32> -> vector<4x96xf32>
    %100 = vector.broadcast %1 : vector<1x96xf32> to vector<4x96xf32>
    %101 = arith.addf %99, %100 : vector<4x96xf32>
    %c2 = arith.constant 2 : index
    %c0_60 = arith.constant 0 : index
    %c0_61 = arith.constant 0 : index
    %102 = vector.load %arg0[%c2, %c0_60, %c0_61] : memref<8x4x96xf32, #tpu.memory_space<vmem>>, vector<1x4x96xf32>
    %103 = vector.shape_cast %102 : vector<1x4x96xf32> to vector<4x96xf32>
    %104 = vector.extract_strided_slice %103 {offsets = [0, 0], sizes = [4, 32], strides = [1, 1]} : vector<4x96xf32> to vector<4x32xf32>
    %105 = vector.extract_strided_slice %101 {offsets = [0, 0], sizes = [4, 32], strides = [1, 1]} : vector<4x96xf32> to vector<4x32xf32>
    %106 = arith.addf %104, %105 : vector<4x32xf32>
    %107 = arith.negf %106 : vector<4x32xf32>
    %108 = math.exp %107 : vector<4x32xf32>
    %cst_62 = arith.constant 1.000000e+00 : f32
    %109 = vector.broadcast %cst_62 : f32 to vector<4x32xf32>
    %110 = arith.addf %109, %108 : vector<4x32xf32>
    %111 = arith.divf %109, %110 : vector<4x32xf32>
    %112 = vector.extract_strided_slice %103 {offsets = [0, 32], sizes = [4, 32], strides = [1, 1]} : vector<4x96xf32> to vector<4x32xf32>
    %113 = vector.extract_strided_slice %101 {offsets = [0, 32], sizes = [4, 32], strides = [1, 1]} : vector<4x96xf32> to vector<4x32xf32>
    %114 = arith.addf %112, %113 : vector<4x32xf32>
    %115 = arith.negf %114 : vector<4x32xf32>
    %116 = math.exp %115 : vector<4x32xf32>
    %cst_63 = arith.constant 1.000000e+00 : f32
    %117 = vector.broadcast %cst_63 : f32 to vector<4x32xf32>
    %118 = arith.addf %117, %116 : vector<4x32xf32>
    %119 = arith.divf %117, %118 : vector<4x32xf32>
    %120 = vector.extract_strided_slice %103 {offsets = [0, 64], sizes = [4, 32], strides = [1, 1]} : vector<4x96xf32> to vector<4x32xf32>
    %121 = vector.extract_strided_slice %101 {offsets = [0, 64], sizes = [4, 32], strides = [1, 1]} : vector<4x96xf32> to vector<4x32xf32>
    %122 = arith.mulf %111, %121 : vector<4x32xf32>
    %123 = arith.addf %120, %122 : vector<4x32xf32>
    %124 = math.tanh %123 : vector<4x32xf32>
    %cst_64 = arith.constant 1.000000e+00 : f32
    %125 = vector.broadcast %cst_64 : f32 to vector<4x32xf32>
    %126 = arith.subf %125, %119 : vector<4x32xf32>
    %127 = arith.mulf %126, %124 : vector<4x32xf32>
    %128 = arith.mulf %119, %89 : vector<4x32xf32>
    %129 = arith.addf %127, %128 : vector<4x32xf32>
    %cst_65 = arith.constant dense<0.000000e+00> : vector<2x32xf32>
    %130 = tpu.matmul %17, %129, %cst_65 {dimension_numbers = #tpu.dot_dimension_numbers<[1], [0], [0], [1], [0, 0, 1, 1], [], []>} : vector<2x4xf32>, vector<4x32xf32>, vector<2x32xf32> -> vector<2x32xf32>
    %131 = vector.extract_strided_slice %130 {offsets = [0, 0], sizes = [2, 16], strides = [1, 1]} : vector<2x32xf32> to vector<2x16xf32>
    %c2_66 = arith.constant 2 : index
    %c0_67 = arith.constant 0 : index
    %c0_68 = arith.constant 0 : index
    %132 = vector.load %arg20[%c2_66, %c0_67, %c0_68] : memref<8x2x16xf32, #tpu.memory_space<vmem>>, vector<1x2x16xf32>
    %133 = vector.shape_cast %132 : vector<1x2x16xf32> to vector<2x16xf32>
    %134 = vector.shape_cast %131 : vector<2x16xf32> to vector<1x2x16xf32>
    tpu.vector_store %arg20[%c2_66, %c0_67, %c0_68], %134 {strides = array<i32>} : memref<8x2x16xf32, #tpu.memory_space<vmem>>, vector<1x2x16xf32>,
    %135 = vector.extract_strided_slice %130 {offsets = [0, 16], sizes = [2, 16], strides = [1, 1]} : vector<2x32xf32> to vector<2x16xf32>
    %c5 = arith.constant 5 : index
    %c0_69 = arith.constant 0 : index
    %c0_70 = arith.constant 0 : index
    %136 = vector.load %arg21[%c5, %c0_69, %c0_70] : memref<8x2x16xf32, #tpu.memory_space<vmem>>, vector<1x2x16xf32>
    %137 = vector.shape_cast %136 : vector<1x2x16xf32> to vector<2x16xf32>
    %138 = vector.shape_cast %135 : vector<2x16xf32> to vector<1x2x16xf32>
    tpu.vector_store %arg21[%c5, %c0_69, %c0_70], %138 {strides = array<i32>} : memref<8x2x16xf32, #tpu.memory_space<vmem>>, vector<1x2x16xf32>,
    %cst_71 = arith.constant dense<0.000000e+00> : vector<4x96xf32>
    %139 = tpu.matmul %129, %0, %cst_71 {dimension_numbers = #tpu.dot_dimension_numbers<[1], [0], [0], [1], [0, 0, 1, 1], [], []>} : vector<4x32xf32>, vector<32x96xf32>, vector<4x96xf32> -> vector<4x96xf32>
    %140 = vector.broadcast %1 : vector<1x96xf32> to vector<4x96xf32>
    %141 = arith.addf %139, %140 : vector<4x96xf32>
    %c3 = arith.constant 3 : index
    %c0_72 = arith.constant 0 : index
    %c0_73 = arith.constant 0 : index
    %142 = vector.load %arg0[%c3, %c0_72, %c0_73] : memref<8x4x96xf32, #tpu.memory_space<vmem>>, vector<1x4x96xf32>
    %143 = vector.shape_cast %142 : vector<1x4x96xf32> to vector<4x96xf32>
    %144 = vector.extract_strided_slice %143 {offsets = [0, 0], sizes = [4, 32], strides = [1, 1]} : vector<4x96xf32> to vector<4x32xf32>
    %145 = vector.extract_strided_slice %141 {offsets = [0, 0], sizes = [4, 32], strides = [1, 1]} : vector<4x96xf32> to vector<4x32xf32>
    %146 = arith.addf %144, %145 : vector<4x32xf32>
    %147 = arith.negf %146 : vector<4x32xf32>
    %148 = math.exp %147 : vector<4x32xf32>
    %cst_74 = arith.constant 1.000000e+00 : f32
    %149 = vector.broadcast %cst_74 : f32 to vector<4x32xf32>
    %150 = arith.addf %149, %148 : vector<4x32xf32>
    %151 = arith.divf %149, %150 : vector<4x32xf32>
    %152 = vector.extract_strided_slice %143 {offsets = [0, 32], sizes = [4, 32], strides = [1, 1]} : vector<4x96xf32> to vector<4x32xf32>
    %153 = vector.extract_strided_slice %141 {offsets = [0, 32], sizes = [4, 32], strides = [1, 1]} : vector<4x96xf32> to vector<4x32xf32>
    %154 = arith.addf %152, %153 : vector<4x32xf32>
    %155 = arith.negf %154 : vector<4x32xf32>
    %156 = math.exp %155 : vector<4x32xf32>
    %cst_75 = arith.constant 1.000000e+00 : f32
    %157 = vector.broadcast %cst_75 : f32 to vector<4x32xf32>
    %158 = arith.addf %157, %156 : vector<4x32xf32>
    %159 = arith.divf %157, %158 : vector<4x32xf32>
    %160 = vector.extract_strided_slice %143 {offsets = [0, 64], sizes = [4, 32], strides = [1, 1]} : vector<4x96xf32> to vector<4x32xf32>
    %161 = vector.extract_strided_slice %141 {offsets = [0, 64], sizes = [4, 32], strides = [1, 1]} : vector<4x96xf32> to vector<4x32xf32>
    %162 = arith.mulf %151, %161 : vector<4x32xf32>
    %163 = arith.addf %160, %162 : vector<4x32xf32>
    %164 = math.tanh %163 : vector<4x32xf32>
    %cst_76 = arith.constant 1.000000e+00 : f32
    %165 = vector.broadcast %cst_76 : f32 to vector<4x32xf32>
    %166 = arith.subf %165, %159 : vector<4x32xf32>
    %167 = arith.mulf %166, %164 : vector<4x32xf32>
    %168 = arith.mulf %159, %129 : vector<4x32xf32>
    %169 = arith.addf %167, %168 : vector<4x32xf32>
    %cst_77 = arith.constant dense<0.000000e+00> : vector<2x32xf32>
    %170 = tpu.matmul %17, %169, %cst_77 {dimension_numbers = #tpu.dot_dimension_numbers<[1], [0], [0], [1], [0, 0, 1, 1], [], []>} : vector<2x4xf32>, vector<4x32xf32>, vector<2x32xf32> -> vector<2x32xf32>
    %171 = vector.extract_strided_slice %170 {offsets = [0, 0], sizes = [2, 16], strides = [1, 1]} : vector<2x32xf32> to vector<2x16xf32>
    %c3_78 = arith.constant 3 : index
    %c0_79 = arith.constant 0 : index
    %c0_80 = arith.constant 0 : index
    %172 = vector.load %arg20[%c3_78, %c0_79, %c0_80] : memref<8x2x16xf32, #tpu.memory_space<vmem>>, vector<1x2x16xf32>
    %173 = vector.shape_cast %172 : vector<1x2x16xf32> to vector<2x16xf32>
    %174 = vector.shape_cast %171 : vector<2x16xf32> to vector<1x2x16xf32>
    tpu.vector_store %arg20[%c3_78, %c0_79, %c0_80], %174 {strides = array<i32>} : memref<8x2x16xf32, #tpu.memory_space<vmem>>, vector<1x2x16xf32>,
    %175 = vector.extract_strided_slice %170 {offsets = [0, 16], sizes = [2, 16], strides = [1, 1]} : vector<2x32xf32> to vector<2x16xf32>
    %c4 = arith.constant 4 : index
    %c0_81 = arith.constant 0 : index
    %c0_82 = arith.constant 0 : index
    %176 = vector.load %arg21[%c4, %c0_81, %c0_82] : memref<8x2x16xf32, #tpu.memory_space<vmem>>, vector<1x2x16xf32>
    %177 = vector.shape_cast %176 : vector<1x2x16xf32> to vector<2x16xf32>
    %178 = vector.shape_cast %175 : vector<2x16xf32> to vector<1x2x16xf32>
    tpu.vector_store %arg21[%c4, %c0_81, %c0_82], %178 {strides = array<i32>} : memref<8x2x16xf32, #tpu.memory_space<vmem>>, vector<1x2x16xf32>,
    %cst_83 = arith.constant dense<0.000000e+00> : vector<4x96xf32>
    %179 = tpu.matmul %169, %0, %cst_83 {dimension_numbers = #tpu.dot_dimension_numbers<[1], [0], [0], [1], [0, 0, 1, 1], [], []>} : vector<4x32xf32>, vector<32x96xf32>, vector<4x96xf32> -> vector<4x96xf32>
    %180 = vector.broadcast %1 : vector<1x96xf32> to vector<4x96xf32>
    %181 = arith.addf %179, %180 : vector<4x96xf32>
    %c4_84 = arith.constant 4 : index
    %c0_85 = arith.constant 0 : index
    %c0_86 = arith.constant 0 : index
    %182 = vector.load %arg0[%c4_84, %c0_85, %c0_86] : memref<8x4x96xf32, #tpu.memory_space<vmem>>, vector<1x4x96xf32>
    %183 = vector.shape_cast %182 : vector<1x4x96xf32> to vector<4x96xf32>
    %184 = vector.extract_strided_slice %183 {offsets = [0, 0], sizes = [4, 32], strides = [1, 1]} : vector<4x96xf32> to vector<4x32xf32>
    %185 = vector.extract_strided_slice %181 {offsets = [0, 0], sizes = [4, 32], strides = [1, 1]} : vector<4x96xf32> to vector<4x32xf32>
    %186 = arith.addf %184, %185 : vector<4x32xf32>
    %187 = arith.negf %186 : vector<4x32xf32>
    %188 = math.exp %187 : vector<4x32xf32>
    %cst_87 = arith.constant 1.000000e+00 : f32
    %189 = vector.broadcast %cst_87 : f32 to vector<4x32xf32>
    %190 = arith.addf %189, %188 : vector<4x32xf32>
    %191 = arith.divf %189, %190 : vector<4x32xf32>
    %192 = vector.extract_strided_slice %183 {offsets = [0, 32], sizes = [4, 32], strides = [1, 1]} : vector<4x96xf32> to vector<4x32xf32>
    %193 = vector.extract_strided_slice %181 {offsets = [0, 32], sizes = [4, 32], strides = [1, 1]} : vector<4x96xf32> to vector<4x32xf32>
    %194 = arith.addf %192, %193 : vector<4x32xf32>
    %195 = arith.negf %194 : vector<4x32xf32>
    %196 = math.exp %195 : vector<4x32xf32>
    %cst_88 = arith.constant 1.000000e+00 : f32
    %197 = vector.broadcast %cst_88 : f32 to vector<4x32xf32>
    %198 = arith.addf %197, %196 : vector<4x32xf32>
    %199 = arith.divf %197, %198 : vector<4x32xf32>
    %200 = vector.extract_strided_slice %183 {offsets = [0, 64], sizes = [4, 32], strides = [1, 1]} : vector<4x96xf32> to vector<4x32xf32>
    %201 = vector.extract_strided_slice %181 {offsets = [0, 64], sizes = [4, 32], strides = [1, 1]} : vector<4x96xf32> to vector<4x32xf32>
    %202 = arith.mulf %191, %201 : vector<4x32xf32>
    %203 = arith.addf %200, %202 : vector<4x32xf32>
    %204 = math.tanh %203 : vector<4x32xf32>
    %cst_89 = arith.constant 1.000000e+00 : f32
    %205 = vector.broadcast %cst_89 : f32 to vector<4x32xf32>
    %206 = arith.subf %205, %199 : vector<4x32xf32>
    %207 = arith.mulf %206, %204 : vector<4x32xf32>
    %208 = arith.mulf %199, %169 : vector<4x32xf32>
    %209 = arith.addf %207, %208 : vector<4x32xf32>
    %cst_90 = arith.constant dense<0.000000e+00> : vector<2x32xf32>
    %210 = tpu.matmul %17, %209, %cst_90 {dimension_numbers = #tpu.dot_dimension_numbers<[1], [0], [0], [1], [0, 0, 1, 1], [], []>} : vector<2x4xf32>, vector<4x32xf32>, vector<2x32xf32> -> vector<2x32xf32>
    %211 = vector.extract_strided_slice %210 {offsets = [0, 0], sizes = [2, 16], strides = [1, 1]} : vector<2x32xf32> to vector<2x16xf32>
    %c4_91 = arith.constant 4 : index
    %c0_92 = arith.constant 0 : index
    %c0_93 = arith.constant 0 : index
    %212 = vector.load %arg20[%c4_91, %c0_92, %c0_93] : memref<8x2x16xf32, #tpu.memory_space<vmem>>, vector<1x2x16xf32>
    %213 = vector.shape_cast %212 : vector<1x2x16xf32> to vector<2x16xf32>
    %214 = vector.shape_cast %211 : vector<2x16xf32> to vector<1x2x16xf32>
    tpu.vector_store %arg20[%c4_91, %c0_92, %c0_93], %214 {strides = array<i32>} : memref<8x2x16xf32, #tpu.memory_space<vmem>>, vector<1x2x16xf32>,
    %215 = vector.extract_strided_slice %210 {offsets = [0, 16], sizes = [2, 16], strides = [1, 1]} : vector<2x32xf32> to vector<2x16xf32>
    %c3_94 = arith.constant 3 : index
    %c0_95 = arith.constant 0 : index
    %c0_96 = arith.constant 0 : index
    %216 = vector.load %arg21[%c3_94, %c0_95, %c0_96] : memref<8x2x16xf32, #tpu.memory_space<vmem>>, vector<1x2x16xf32>
    %217 = vector.shape_cast %216 : vector<1x2x16xf32> to vector<2x16xf32>
    %218 = vector.shape_cast %215 : vector<2x16xf32> to vector<1x2x16xf32>
    tpu.vector_store %arg21[%c3_94, %c0_95, %c0_96], %218 {strides = array<i32>} : memref<8x2x16xf32, #tpu.memory_space<vmem>>, vector<1x2x16xf32>,
    %cst_97 = arith.constant dense<0.000000e+00> : vector<4x96xf32>
    %219 = tpu.matmul %209, %0, %cst_97 {dimension_numbers = #tpu.dot_dimension_numbers<[1], [0], [0], [1], [0, 0, 1, 1], [], []>} : vector<4x32xf32>, vector<32x96xf32>, vector<4x96xf32> -> vector<4x96xf32>
    %220 = vector.broadcast %1 : vector<1x96xf32> to vector<4x96xf32>
    %221 = arith.addf %219, %220 : vector<4x96xf32>
    %c5_98 = arith.constant 5 : index
    %c0_99 = arith.constant 0 : index
    %c0_100 = arith.constant 0 : index
    %222 = vector.load %arg0[%c5_98, %c0_99, %c0_100] : memref<8x4x96xf32, #tpu.memory_space<vmem>>, vector<1x4x96xf32>
    %223 = vector.shape_cast %222 : vector<1x4x96xf32> to vector<4x96xf32>
    %224 = vector.extract_strided_slice %223 {offsets = [0, 0], sizes = [4, 32], strides = [1, 1]} : vector<4x96xf32> to vector<4x32xf32>
    %225 = vector.extract_strided_slice %221 {offsets = [0, 0], sizes = [4, 32], strides = [1, 1]} : vector<4x96xf32> to vector<4x32xf32>
    %226 = arith.addf %224, %225 : vector<4x32xf32>
    %227 = arith.negf %226 : vector<4x32xf32>
    %228 = math.exp %227 : vector<4x32xf32>
    %cst_101 = arith.constant 1.000000e+00 : f32
    %229 = vector.broadcast %cst_101 : f32 to vector<4x32xf32>
    %230 = arith.addf %229, %228 : vector<4x32xf32>
    %231 = arith.divf %229, %230 : vector<4x32xf32>
    %232 = vector.extract_strided_slice %223 {offsets = [0, 32], sizes = [4, 32], strides = [1, 1]} : vector<4x96xf32> to vector<4x32xf32>
    %233 = vector.extract_strided_slice %221 {offsets = [0, 32], sizes = [4, 32], strides = [1, 1]} : vector<4x96xf32> to vector<4x32xf32>
    %234 = arith.addf %232, %233 : vector<4x32xf32>
    %235 = arith.negf %234 : vector<4x32xf32>
    %236 = math.exp %235 : vector<4x32xf32>
    %cst_102 = arith.constant 1.000000e+00 : f32
    %237 = vector.broadcast %cst_102 : f32 to vector<4x32xf32>
    %238 = arith.addf %237, %236 : vector<4x32xf32>
    %239 = arith.divf %237, %238 : vector<4x32xf32>
    %240 = vector.extract_strided_slice %223 {offsets = [0, 64], sizes = [4, 32], strides = [1, 1]} : vector<4x96xf32> to vector<4x32xf32>
    %241 = vector.extract_strided_slice %221 {offsets = [0, 64], sizes = [4, 32], strides = [1, 1]} : vector<4x96xf32> to vector<4x32xf32>
    %242 = arith.mulf %231, %241 : vector<4x32xf32>
    %243 = arith.addf %240, %242 : vector<4x32xf32>
    %244 = math.tanh %243 : vector<4x32xf32>
    %cst_103 = arith.constant 1.000000e+00 : f32
    %245 = vector.broadcast %cst_103 : f32 to vector<4x32xf32>
    %246 = arith.subf %245, %239 : vector<4x32xf32>
    %247 = arith.mulf %246, %244 : vector<4x32xf32>
    %248 = arith.mulf %239, %209 : vector<4x32xf32>
    %249 = arith.addf %247, %248 : vector<4x32xf32>
    %cst_104 = arith.constant dense<0.000000e+00> : vector<2x32xf32>
    %250 = tpu.matmul %17, %249, %cst_104 {dimension_numbers = #tpu.dot_dimension_numbers<[1], [0], [0], [1], [0, 0, 1, 1], [], []>} : vector<2x4xf32>, vector<4x32xf32>, vector<2x32xf32> -> vector<2x32xf32>
    %251 = vector.extract_strided_slice %250 {offsets = [0, 0], sizes = [2, 16], strides = [1, 1]} : vector<2x32xf32> to vector<2x16xf32>
    %c5_105 = arith.constant 5 : index
    %c0_106 = arith.constant 0 : index
    %c0_107 = arith.constant 0 : index
    %252 = vector.load %arg20[%c5_105, %c0_106, %c0_107] : memref<8x2x16xf32, #tpu.memory_space<vmem>>, vector<1x2x16xf32>
    %253 = vector.shape_cast %252 : vector<1x2x16xf32> to vector<2x16xf32>
    %254 = vector.shape_cast %251 : vector<2x16xf32> to vector<1x2x16xf32>
    tpu.vector_store %arg20[%c5_105, %c0_106, %c0_107], %254 {strides = array<i32>} : memref<8x2x16xf32, #tpu.memory_space<vmem>>, vector<1x2x16xf32>,
    %255 = vector.extract_strided_slice %250 {offsets = [0, 16], sizes = [2, 16], strides = [1, 1]} : vector<2x32xf32> to vector<2x16xf32>
    %c2_108 = arith.constant 2 : index
    %c0_109 = arith.constant 0 : index
    %c0_110 = arith.constant 0 : index
    %256 = vector.load %arg21[%c2_108, %c0_109, %c0_110] : memref<8x2x16xf32, #tpu.memory_space<vmem>>, vector<1x2x16xf32>
    %257 = vector.shape_cast %256 : vector<1x2x16xf32> to vector<2x16xf32>
    %258 = vector.shape_cast %255 : vector<2x16xf32> to vector<1x2x16xf32>
    tpu.vector_store %arg21[%c2_108, %c0_109, %c0_110], %258 {strides = array<i32>} : memref<8x2x16xf32, #tpu.memory_space<vmem>>, vector<1x2x16xf32>,
    %cst_111 = arith.constant dense<0.000000e+00> : vector<4x96xf32>
    %259 = tpu.matmul %249, %0, %cst_111 {dimension_numbers = #tpu.dot_dimension_numbers<[1], [0], [0], [1], [0, 0, 1, 1], [], []>} : vector<4x32xf32>, vector<32x96xf32>, vector<4x96xf32> -> vector<4x96xf32>
    %260 = vector.broadcast %1 : vector<1x96xf32> to vector<4x96xf32>
    %261 = arith.addf %259, %260 : vector<4x96xf32>
    %c6_112 = arith.constant 6 : index
    %c0_113 = arith.constant 0 : index
    %c0_114 = arith.constant 0 : index
    %262 = vector.load %arg0[%c6_112, %c0_113, %c0_114] : memref<8x4x96xf32, #tpu.memory_space<vmem>>, vector<1x4x96xf32>
    %263 = vector.shape_cast %262 : vector<1x4x96xf32> to vector<4x96xf32>
    %264 = vector.extract_strided_slice %263 {offsets = [0, 0], sizes = [4, 32], strides = [1, 1]} : vector<4x96xf32> to vector<4x32xf32>
    %265 = vector.extract_strided_slice %261 {offsets = [0, 0], sizes = [4, 32], strides = [1, 1]} : vector<4x96xf32> to vector<4x32xf32>
    %266 = arith.addf %264, %265 : vector<4x32xf32>
    %267 = arith.negf %266 : vector<4x32xf32>
    %268 = math.exp %267 : vector<4x32xf32>
    %cst_115 = arith.constant 1.000000e+00 : f32
    %269 = vector.broadcast %cst_115 : f32 to vector<4x32xf32>
    %270 = arith.addf %269, %268 : vector<4x32xf32>
    %271 = arith.divf %269, %270 : vector<4x32xf32>
    %272 = vector.extract_strided_slice %263 {offsets = [0, 32], sizes = [4, 32], strides = [1, 1]} : vector<4x96xf32> to vector<4x32xf32>
    %273 = vector.extract_strided_slice %261 {offsets = [0, 32], sizes = [4, 32], strides = [1, 1]} : vector<4x96xf32> to vector<4x32xf32>
    %274 = arith.addf %272, %273 : vector<4x32xf32>
    %275 = arith.negf %274 : vector<4x32xf32>
    %276 = math.exp %275 : vector<4x32xf32>
    %cst_116 = arith.constant 1.000000e+00 : f32
    %277 = vector.broadcast %cst_116 : f32 to vector<4x32xf32>
    %278 = arith.addf %277, %276 : vector<4x32xf32>
    %279 = arith.divf %277, %278 : vector<4x32xf32>
    %280 = vector.extract_strided_slice %263 {offsets = [0, 64], sizes = [4, 32], strides = [1, 1]} : vector<4x96xf32> to vector<4x32xf32>
    %281 = vector.extract_strided_slice %261 {offsets = [0, 64], sizes = [4, 32], strides = [1, 1]} : vector<4x96xf32> to vector<4x32xf32>
    %282 = arith.mulf %271, %281 : vector<4x32xf32>
    %283 = arith.addf %280, %282 : vector<4x32xf32>
    %284 = math.tanh %283 : vector<4x32xf32>
    %cst_117 = arith.constant 1.000000e+00 : f32
    %285 = vector.broadcast %cst_117 : f32 to vector<4x32xf32>
    %286 = arith.subf %285, %279 : vector<4x32xf32>
    %287 = arith.mulf %286, %284 : vector<4x32xf32>
    %288 = arith.mulf %279, %249 : vector<4x32xf32>
    %289 = arith.addf %287, %288 : vector<4x32xf32>
    %cst_118 = arith.constant dense<0.000000e+00> : vector<2x32xf32>
    %290 = tpu.matmul %17, %289, %cst_118 {dimension_numbers = #tpu.dot_dimension_numbers<[1], [0], [0], [1], [0, 0, 1, 1], [], []>} : vector<2x4xf32>, vector<4x32xf32>, vector<2x32xf32> -> vector<2x32xf32>
    %291 = vector.extract_strided_slice %290 {offsets = [0, 0], sizes = [2, 16], strides = [1, 1]} : vector<2x32xf32> to vector<2x16xf32>
    %c6_119 = arith.constant 6 : index
    %c0_120 = arith.constant 0 : index
    %c0_121 = arith.constant 0 : index
    %292 = vector.load %arg20[%c6_119, %c0_120, %c0_121] : memref<8x2x16xf32, #tpu.memory_space<vmem>>, vector<1x2x16xf32>
    %293 = vector.shape_cast %292 : vector<1x2x16xf32> to vector<2x16xf32>
    %294 = vector.shape_cast %291 : vector<2x16xf32> to vector<1x2x16xf32>
    tpu.vector_store %arg20[%c6_119, %c0_120, %c0_121], %294 {strides = array<i32>} : memref<8x2x16xf32, #tpu.memory_space<vmem>>, vector<1x2x16xf32>,
    %295 = vector.extract_strided_slice %290 {offsets = [0, 16], sizes = [2, 16], strides = [1, 1]} : vector<2x32xf32> to vector<2x16xf32>
    %c1_122 = arith.constant 1 : index
    %c0_123 = arith.constant 0 : index
    %c0_124 = arith.constant 0 : index
    %296 = vector.load %arg21[%c1_122, %c0_123, %c0_124] : memref<8x2x16xf32, #tpu.memory_space<vmem>>, vector<1x2x16xf32>
    %297 = vector.shape_cast %296 : vector<1x2x16xf32> to vector<2x16xf32>
    %298 = vector.shape_cast %295 : vector<2x16xf32> to vector<1x2x16xf32>
    tpu.vector_store %arg21[%c1_122, %c0_123, %c0_124], %298 {strides = array<i32>} : memref<8x2x16xf32, #tpu.memory_space<vmem>>, vector<1x2x16xf32>,
    %cst_125 = arith.constant dense<0.000000e+00> : vector<4x96xf32>
    %299 = tpu.matmul %289, %0, %cst_125 {dimension_numbers = #tpu.dot_dimension_numbers<[1], [0], [0], [1], [0, 0, 1, 1], [], []>} : vector<4x32xf32>, vector<32x96xf32>, vector<4x96xf32> -> vector<4x96xf32>
    %300 = vector.broadcast %1 : vector<1x96xf32> to vector<4x96xf32>
    %301 = arith.addf %299, %300 : vector<4x96xf32>
    %c7_126 = arith.constant 7 : index
    %c0_127 = arith.constant 0 : index
    %c0_128 = arith.constant 0 : index
    %302 = vector.load %arg0[%c7_126, %c0_127, %c0_128] : memref<8x4x96xf32, #tpu.memory_space<vmem>>, vector<1x4x96xf32>
    %303 = vector.shape_cast %302 : vector<1x4x96xf32> to vector<4x96xf32>
    %304 = vector.extract_strided_slice %303 {offsets = [0, 0], sizes = [4, 32], strides = [1, 1]} : vector<4x96xf32> to vector<4x32xf32>
    %305 = vector.extract_strided_slice %301 {offsets = [0, 0], sizes = [4, 32], strides = [1, 1]} : vector<4x96xf32> to vector<4x32xf32>
    %306 = arith.addf %304, %305 : vector<4x32xf32>
    %307 = arith.negf %306 : vector<4x32xf32>
    %308 = math.exp %307 : vector<4x32xf32>
    %cst_129 = arith.constant 1.000000e+00 : f32
    %309 = vector.broadcast %cst_129 : f32 to vector<4x32xf32>
    %310 = arith.addf %309, %308 : vector<4x32xf32>
    %311 = arith.divf %309, %310 : vector<4x32xf32>
    %312 = vector.extract_strided_slice %303 {offsets = [0, 32], sizes = [4, 32], strides = [1, 1]} : vector<4x96xf32> to vector<4x32xf32>
    %313 = vector.extract_strided_slice %301 {offsets = [0, 32], sizes = [4, 32], strides = [1, 1]} : vector<4x96xf32> to vector<4x32xf32>
    %314 = arith.addf %312, %313 : vector<4x32xf32>
    %315 = arith.negf %314 : vector<4x32xf32>
    %316 = math.exp %315 : vector<4x32xf32>
    %cst_130 = arith.constant 1.000000e+00 : f32
    %317 = vector.broadcast %cst_130 : f32 to vector<4x32xf32>
    %318 = arith.addf %317, %316 : vector<4x32xf32>
    %319 = arith.divf %317, %318 : vector<4x32xf32>
    %320 = vector.extract_strided_slice %303 {offsets = [0, 64], sizes = [4, 32], strides = [1, 1]} : vector<4x96xf32> to vector<4x32xf32>
    %321 = vector.extract_strided_slice %301 {offsets = [0, 64], sizes = [4, 32], strides = [1, 1]} : vector<4x96xf32> to vector<4x32xf32>
    %322 = arith.mulf %311, %321 : vector<4x32xf32>
    %323 = arith.addf %320, %322 : vector<4x32xf32>
    %324 = math.tanh %323 : vector<4x32xf32>
    %cst_131 = arith.constant 1.000000e+00 : f32
    %325 = vector.broadcast %cst_131 : f32 to vector<4x32xf32>
    %326 = arith.subf %325, %319 : vector<4x32xf32>
    %327 = arith.mulf %326, %324 : vector<4x32xf32>
    %328 = arith.mulf %319, %289 : vector<4x32xf32>
    %329 = arith.addf %327, %328 : vector<4x32xf32>
    %cst_132 = arith.constant dense<0.000000e+00> : vector<2x32xf32>
    %330 = tpu.matmul %17, %329, %cst_132 {dimension_numbers = #tpu.dot_dimension_numbers<[1], [0], [0], [1], [0, 0, 1, 1], [], []>} : vector<2x4xf32>, vector<4x32xf32>, vector<2x32xf32> -> vector<2x32xf32>
    %331 = vector.extract_strided_slice %330 {offsets = [0, 0], sizes = [2, 16], strides = [1, 1]} : vector<2x32xf32> to vector<2x16xf32>
    %c7_133 = arith.constant 7 : index
    %c0_134 = arith.constant 0 : index
    %c0_135 = arith.constant 0 : index
    %332 = vector.load %arg20[%c7_133, %c0_134, %c0_135] : memref<8x2x16xf32, #tpu.memory_space<vmem>>, vector<1x2x16xf32>
    %333 = vector.shape_cast %332 : vector<1x2x16xf32> to vector<2x16xf32>
    %334 = vector.shape_cast %331 : vector<2x16xf32> to vector<1x2x16xf32>
    tpu.vector_store %arg20[%c7_133, %c0_134, %c0_135], %334 {strides = array<i32>} : memref<8x2x16xf32, #tpu.memory_space<vmem>>, vector<1x2x16xf32>,
    %335 = vector.extract_strided_slice %330 {offsets = [0, 16], sizes = [2, 16], strides = [1, 1]} : vector<2x32xf32> to vector<2x16xf32>
    %c0_136 = arith.constant 0 : index
    %c0_137 = arith.constant 0 : index
    %c0_138 = arith.constant 0 : index
    %336 = vector.load %arg21[%c0_136, %c0_137, %c0_138] : memref<8x2x16xf32, #tpu.memory_space<vmem>>, vector<1x2x16xf32>
    %337 = vector.shape_cast %336 : vector<1x2x16xf32> to vector<2x16xf32>
    %338 = vector.shape_cast %335 : vector<2x16xf32> to vector<1x2x16xf32>
    tpu.vector_store %arg21[%c0_136, %c0_137, %c0_138], %338 {strides = array<i32>} : memref<8x2x16xf32, #tpu.memory_space<vmem>>, vector<1x2x16xf32>,
    %cst_139 = arith.constant dense<0.000000e+00> : vector<4x32xf32>
    %339 = tpu.matmul %329, %6, %cst_139 {dimension_numbers = #tpu.dot_dimension_numbers<[1], [0], [0], [1], [0, 0, 1, 1], [], []>} : vector<4x32xf32>, vector<32x32xf32>, vector<4x32xf32> -> vector<4x32xf32>
    %340 = vector.broadcast %7 : vector<1x32xf32> to vector<4x32xf32>
    %341 = arith.addf %339, %340 : vector<4x32xf32>
    %342 = math.tanh %341 : vector<4x32xf32>
    %cst_140 = arith.constant dense<0.000000e+00> : vector<4x96xf32>
    %343 = tpu.matmul %342, %2, %cst_140 {dimension_numbers = #tpu.dot_dimension_numbers<[1], [0], [0], [1], [0, 0, 1, 1], [], []>} : vector<4x32xf32>, vector<32x96xf32>, vector<4x96xf32> -> vector<4x96xf32>
    %344 = vector.broadcast %4 : vector<1x96xf32> to vector<4x96xf32>
    %345 = arith.addf %343, %344 : vector<4x96xf32>
    %cst_141 = arith.constant 0.000000e+00 : f32
    %346 = vector.broadcast %cst_141 : f32 to vector<2x32xf32>
    %cst_142 = arith.constant dense<0.000000e+00> : vector<2x96xf32>
    %347 = tpu.matmul %346, %3, %cst_142 {dimension_numbers = #tpu.dot_dimension_numbers<[1], [0], [0], [1], [0, 0, 1, 1], [], []>} : vector<2x32xf32>, vector<32x96xf32>, vector<2x96xf32> -> vector<2x96xf32>
    %348 = vector.broadcast %5 : vector<1x96xf32> to vector<2x96xf32>
    %349 = arith.addf %347, %348 : vector<2x96xf32>
    %c0_143 = arith.constant 0 : index
    %c0_144 = arith.constant 0 : index
    %c0_145 = arith.constant 0 : index
    %350 = vector.load %arg2[%c0_143, %c0_144, %c0_145] : memref<2x2x4xf32, #tpu.memory_space<vmem>>, vector<1x2x4xf32>
    %351 = vector.shape_cast %350 : vector<1x2x4xf32> to vector<2x4xf32>
    %cst_146 = arith.constant dense<0.000000e+00> : vector<2x96xf32>
    %352 = tpu.matmul %351, %345, %cst_146 {dimension_numbers = #tpu.dot_dimension_numbers<[1], [0], [0], [1], [0, 0, 1, 1], [], []>} : vector<2x4xf32>, vector<4x96xf32>, vector<2x96xf32> -> vector<2x96xf32>
    %353 = vector.extract_strided_slice %352 {offsets = [0, 0], sizes = [2, 32], strides = [1, 1]} : vector<2x96xf32> to vector<2x32xf32>
    %354 = vector.extract_strided_slice %349 {offsets = [0, 0], sizes = [2, 32], strides = [1, 1]} : vector<2x96xf32> to vector<2x32xf32>
    %355 = arith.addf %353, %354 : vector<2x32xf32>
    %356 = arith.negf %355 : vector<2x32xf32>
    %357 = math.exp %356 : vector<2x32xf32>
    %cst_147 = arith.constant 1.000000e+00 : f32
    %358 = vector.broadcast %cst_147 : f32 to vector<2x32xf32>
    %359 = arith.addf %358, %357 : vector<2x32xf32>
    %360 = arith.divf %358, %359 : vector<2x32xf32>
    %361 = vector.extract_strided_slice %352 {offsets = [0, 32], sizes = [2, 32], strides = [1, 1]} : vector<2x96xf32> to vector<2x32xf32>
    %362 = vector.extract_strided_slice %349 {offsets = [0, 32], sizes = [2, 32], strides = [1, 1]} : vector<2x96xf32> to vector<2x32xf32>
    %363 = arith.addf %361, %362 : vector<2x32xf32>
    %364 = arith.negf %363 : vector<2x32xf32>
    %365 = math.exp %364 : vector<2x32xf32>
    %cst_148 = arith.constant 1.000000e+00 : f32
    %366 = vector.broadcast %cst_148 : f32 to vector<2x32xf32>
    %367 = arith.addf %366, %365 : vector<2x32xf32>
    %368 = arith.divf %366, %367 : vector<2x32xf32>
    %369 = vector.extract_strided_slice %352 {offsets = [0, 64], sizes = [2, 32], strides = [1, 1]} : vector<2x96xf32> to vector<2x32xf32>
    %370 = vector.extract_strided_slice %349 {offsets = [0, 64], sizes = [2, 32], strides = [1, 1]} : vector<2x96xf32> to vector<2x32xf32>
    %371 = arith.mulf %360, %370 : vector<2x32xf32>
    %372 = arith.addf %369, %371 : vector<2x32xf32>
    %373 = math.tanh %372 : vector<2x32xf32>
    %cst_149 = arith.constant 1.000000e+00 : f32
    %374 = vector.broadcast %cst_149 : f32 to vector<2x32xf32>
    %375 = arith.subf %374, %368 : vector<2x32xf32>
    %376 = arith.mulf %375, %373 : vector<2x32xf32>
    %377 = arith.mulf %368, %346 : vector<2x32xf32>
    %378 = arith.addf %376, %377 : vector<2x32xf32>
    %cst_150 = arith.constant dense<0.000000e+00> : vector<2x96xf32>
    %379 = tpu.matmul %378, %3, %cst_150 {dimension_numbers = #tpu.dot_dimension_numbers<[1], [0], [0], [1], [0, 0, 1, 1], [], []>} : vector<2x32xf32>, vector<32x96xf32>, vector<2x96xf32> -> vector<2x96xf32>
    %380 = vector.broadcast %5 : vector<1x96xf32> to vector<2x96xf32>
    %381 = arith.addf %379, %380 : vector<2x96xf32>
    %c1_151 = arith.constant 1 : index
    %c0_152 = arith.constant 0 : index
    %c0_153 = arith.constant 0 : index
    %382 = vector.load %arg2[%c1_151, %c0_152, %c0_153] : memref<2x2x4xf32, #tpu.memory_space<vmem>>, vector<1x2x4xf32>
    %383 = vector.shape_cast %382 : vector<1x2x4xf32> to vector<2x4xf32>
    %cst_154 = arith.constant dense<0.000000e+00> : vector<2x96xf32>
    %384 = tpu.matmul %383, %345, %cst_154 {dimension_numbers = #tpu.dot_dimension_numbers<[1], [0], [0], [1], [0, 0, 1, 1], [], []>} : vector<2x4xf32>, vector<4x96xf32>, vector<2x96xf32> -> vector<2x96xf32>
    %385 = vector.extract_strided_slice %384 {offsets = [0, 0], sizes = [2, 32], strides = [1, 1]} : vector<2x96xf32> to vector<2x32xf32>
    %386 = vector.extract_strided_slice %381 {offsets = [0, 0], sizes = [2, 32], strides = [1, 1]} : vector<2x96xf32> to vector<2x32xf32>
    %387 = arith.addf %385, %386 : vector<2x32xf32>
    %388 = arith.negf %387 : vector<2x32xf32>
    %389 = math.exp %388 : vector<2x32xf32>
    %cst_155 = arith.constant 1.000000e+00 : f32
    %390 = vector.broadcast %cst_155 : f32 to vector<2x32xf32>
    %391 = arith.addf %390, %389 : vector<2x32xf32>
    %392 = arith.divf %390, %391 : vector<2x32xf32>
    %393 = vector.extract_strided_slice %384 {offsets = [0, 32], sizes = [2, 32], strides = [1, 1]} : vector<2x96xf32> to vector<2x32xf32>
    %394 = vector.extract_strided_slice %381 {offsets = [0, 32], sizes = [2, 32], strides = [1, 1]} : vector<2x96xf32> to vector<2x32xf32>
    %395 = arith.addf %393, %394 : vector<2x32xf32>
    %396 = arith.negf %395 : vector<2x32xf32>
    %397 = math.exp %396 : vector<2x32xf32>
    %cst_156 = arith.constant 1.000000e+00 : f32
    %398 = vector.broadcast %cst_156 : f32 to vector<2x32xf32>
    %399 = arith.addf %398, %397 : vector<2x32xf32>
    %400 = arith.divf %398, %399 : vector<2x32xf32>
    %401 = vector.extract_strided_slice %384 {offsets = [0, 64], sizes = [2, 32], strides = [1, 1]} : vector<2x96xf32> to vector<2x32xf32>
    %402 = vector.extract_strided_slice %381 {offsets = [0, 64], sizes = [2, 32], strides = [1, 1]} : vector<2x96xf32> to vector<2x32xf32>
    %403 = arith.mulf %392, %402 : vector<2x32xf32>
    %404 = arith.addf %401, %403 : vector<2x32xf32>
    %405 = math.tanh %404 : vector<2x32xf32>
    %cst_157 = arith.constant 1.000000e+00 : f32
    %406 = vector.broadcast %cst_157 : f32 to vector<2x32xf32>
    %407 = arith.subf %406, %400 : vector<2x32xf32>
    %408 = arith.mulf %407, %405 : vector<2x32xf32>
    %409 = arith.mulf %400, %378 : vector<2x32xf32>
    %410 = arith.addf %408, %409 : vector<2x32xf32>
    %cst_158 = arith.constant dense<0.000000e+00> : vector<2x32xf32>
    %411 = tpu.matmul %410, %6, %cst_158 {dimension_numbers = #tpu.dot_dimension_numbers<[1], [0], [0], [1], [0, 0, 1, 1], [], []>} : vector<2x32xf32>, vector<32x32xf32>, vector<2x32xf32> -> vector<2x32xf32>
    %412 = vector.broadcast %7 : vector<1x32xf32> to vector<2x32xf32>
    %413 = arith.addf %411, %412 : vector<2x32xf32>
    %414 = math.tanh %413 : vector<2x32xf32>
    %c0_159 = arith.constant 0 : index
    %c0_160 = arith.constant 0 : index
    %c0_161 = arith.constant 0 : index
    %415 = vector.load %arg20[%c0_159, %c0_160, %c0_161] : memref<8x2x16xf32, #tpu.memory_space<vmem>>, vector<8x2x16xf32>
    %c0_162 = arith.constant 0 : index
    %c0_163 = arith.constant 0 : index
    %c0_164 = arith.constant 0 : index
    %416 = vector.load %arg21[%c0_162, %c0_163, %c0_164] : memref<8x2x16xf32, #tpu.memory_space<vmem>>, vector<8x2x16xf32>
    %cst_165 = arith.constant 0.000000e+00 : f32
    %417 = vector.broadcast %cst_165 : f32 to vector<2x32xf32>
    %c0_166 = arith.constant 0 : index
    %c0_167 = arith.constant 0 : index
    %c0_168 = arith.constant 0 : index
    %418 = vector.load %arg1[%c0_166, %c0_167, %c0_168] : memref<6x2x96xf32, #tpu.memory_space<vmem>>, vector<1x2x96xf32>
    %419 = vector.shape_cast %418 : vector<1x2x96xf32> to vector<2x96xf32>
    %cst_169 = arith.constant dense<0.000000e+00> : vector<2x96xf32>
    %420 = tpu.matmul %417, %8, %cst_169 {dimension_numbers = #tpu.dot_dimension_numbers<[1], [0], [0], [1], [0, 0, 1, 1], [], []>} : vector<2x32xf32>, vector<32x96xf32>, vector<2x96xf32> -> vector<2x96xf32>
    %421 = arith.addf %419, %420 : vector<2x96xf32>
    %cst_170 = arith.constant dense<0.000000e+00> : vector<2x96xf32>
    %422 = tpu.matmul %414, %9, %cst_170 {dimension_numbers = #tpu.dot_dimension_numbers<[1], [0], [0], [1], [0, 0, 1, 1], [], []>} : vector<2x32xf32>, vector<32x96xf32>, vector<2x96xf32> -> vector<2x96xf32>
    %423 = vector.broadcast %10 : vector<1x96xf32> to vector<2x96xf32>
    %424 = arith.addf %422, %423 : vector<2x96xf32>
    %425 = vector.extract_strided_slice %421 {offsets = [0, 0], sizes = [2, 32], strides = [1, 1]} : vector<2x96xf32> to vector<2x32xf32>
    %426 = vector.extract_strided_slice %424 {offsets = [0, 0], sizes = [2, 32], strides = [1, 1]} : vector<2x96xf32> to vector<2x32xf32>
    %427 = arith.addf %425, %426 : vector<2x32xf32>
    %428 = arith.negf %427 : vector<2x32xf32>
    %429 = math.exp %428 : vector<2x32xf32>
    %cst_171 = arith.constant 1.000000e+00 : f32
    %430 = vector.broadcast %cst_171 : f32 to vector<2x32xf32>
    %431 = arith.addf %430, %429 : vector<2x32xf32>
    %432 = arith.divf %430, %431 : vector<2x32xf32>
    %433 = vector.extract_strided_slice %421 {offsets = [0, 32], sizes = [2, 32], strides = [1, 1]} : vector<2x96xf32> to vector<2x32xf32>
    %434 = vector.extract_strided_slice %424 {offsets = [0, 32], sizes = [2, 32], strides = [1, 1]} : vector<2x96xf32> to vector<2x32xf32>
    %435 = arith.addf %433, %434 : vector<2x32xf32>
    %436 = arith.negf %435 : vector<2x32xf32>
    %437 = math.exp %436 : vector<2x32xf32>
    %cst_172 = arith.constant 1.000000e+00 : f32
    %438 = vector.broadcast %cst_172 : f32 to vector<2x32xf32>
    %439 = arith.addf %438, %437 : vector<2x32xf32>
    %440 = arith.divf %438, %439 : vector<2x32xf32>
    %441 = vector.extract_strided_slice %421 {offsets = [0, 64], sizes = [2, 32], strides = [1, 1]} : vector<2x96xf32> to vector<2x32xf32>
    %442 = vector.extract_strided_slice %424 {offsets = [0, 64], sizes = [2, 32], strides = [1, 1]} : vector<2x96xf32> to vector<2x32xf32>
    %443 = arith.mulf %432, %442 : vector<2x32xf32>
    %444 = arith.addf %441, %443 : vector<2x32xf32>
    %445 = math.tanh %444 : vector<2x32xf32>
    %cst_173 = arith.constant 1.000000e+00 : f32
    %446 = vector.broadcast %cst_173 : f32 to vector<2x32xf32>
    %447 = arith.subf %446, %440 : vector<2x32xf32>
    %448 = arith.mulf %447, %445 : vector<2x32xf32>
    %449 = arith.mulf %440, %414 : vector<2x32xf32>
    %450 = arith.addf %448, %449 : vector<2x32xf32>
    %cst_174 = arith.constant dense<0.000000e+00> : vector<2x64xf32>
    %451 = tpu.matmul %450, %11, %cst_174 {dimension_numbers = #tpu.dot_dimension_numbers<[1], [0], [0], [1], [0, 0, 1, 1], [], []>} : vector<2x32xf32>, vector<32x64xf32>, vector<2x64xf32> -> vector<2x64xf32>
    %452 = vector.extract_strided_slice %451 {offsets = [0, 0], sizes = [2, 16], strides = [1, 1]} : vector<2x64xf32> to vector<2x16xf32>
    %453 = vector.shape_cast %452 : vector<2x16xf32> to vector<1x2x16xf32>
    %454 = vector.extract_strided_slice %451 {offsets = [0, 16], sizes = [2, 16], strides = [1, 1]} : vector<2x64xf32> to vector<2x16xf32>
    %455 = vector.shape_cast %454 : vector<2x16xf32> to vector<1x2x16xf32>
    %456 = vector.extract_strided_slice %451 {offsets = [0, 32], sizes = [2, 32], strides = [1, 1]} : vector<2x64xf32> to vector<2x32xf32>
    %457 = vector.broadcast %453 : vector<1x2x16xf32> to vector<8x2x16xf32>
    %458 = arith.mulf %415, %457 : vector<8x2x16xf32>
    %cst_175 = arith.constant dense<0.000000e+00> : vector<8x2xf32>
    %459 = vector.multi_reduction <add>, %458, %cst_175 [2] : vector<8x2x16xf32> to vector<8x2xf32>
    %460 = vector.shape_cast %459 : vector<8x2xf32> to vector<8x2x1xf32>
    %461 = vector.broadcast %455 : vector<1x2x16xf32> to vector<8x2x16xf32>
    %462 = arith.mulf %416, %461 : vector<8x2x16xf32>
    %cst_176 = arith.constant dense<0.000000e+00> : vector<8x2xf32>
    %463 = vector.multi_reduction <add>, %462, %cst_176 [2] : vector<8x2x16xf32> to vector<8x2xf32>
    %464 = vector.shape_cast %463 : vector<8x2xf32> to vector<8x2x1xf32>
    %465 = arith.addf %460, %464 : vector<8x2x1xf32>
    %cst_177 = arith.constant dense<0xFF800000> : vector<2x1xf32>
    %466 = vector.multi_reduction <maximumf>, %465, %cst_177 [0] : vector<8x2x1xf32> to vector<2x1xf32>
    %467 = vector.shape_cast %466 : vector<2x1xf32> to vector<1x2x1xf32>
    %468 = vector.broadcast %467 : vector<1x2x1xf32> to vector<8x2x1xf32>
    %469 = arith.subf %465, %468 : vector<8x2x1xf32>
    %470 = math.exp %469 : vector<8x2x1xf32>
    %cst_178 = arith.constant dense<0.000000e+00> : vector<2x1xf32>
    %471 = vector.multi_reduction <add>, %470, %cst_178 [0] : vector<8x2x1xf32> to vector<2x1xf32>
    %472 = vector.shape_cast %471 : vector<2x1xf32> to vector<1x2x1xf32>
    %473 = tpu.reciprocal %472 {approx = true} : vector<1x2x1xf32> -> vector<1x2x1xf32>
    %474 = vector.broadcast %473 : vector<1x2x1xf32> to vector<8x2x1xf32>
    %475 = arith.mulf %470, %474 : vector<8x2x1xf32>
    %476 = vector.broadcast %475 : vector<8x2x1xf32> to vector<8x2x16xf32>
    %477 = arith.mulf %476, %415 : vector<8x2x16xf32>
    %cst_179 = arith.constant dense<0.000000e+00> : vector<2x16xf32>
    %478 = vector.multi_reduction <add>, %477, %cst_179 [0] : vector<8x2x16xf32> to vector<2x16xf32>
    %479 = vector.broadcast %475 : vector<8x2x1xf32> to vector<8x2x16xf32>
    %480 = arith.mulf %479, %416 : vector<8x2x16xf32>
    %cst_180 = arith.constant dense<0.000000e+00> : vector<2x16xf32>
    %481 = vector.multi_reduction <add>, %480, %cst_180 [0] : vector<8x2x16xf32> to vector<2x16xf32>
    %482 = vector.extract_strided_slice %12 {offsets = [0, 0], sizes = [16, 32], strides = [1, 1]} : vector<32x32xf32> to vector<16x32xf32>
    %cst_181 = arith.constant dense<0.000000e+00> : vector<2x32xf32>
    %483 = tpu.matmul %478, %482, %cst_181 {dimension_numbers = #tpu.dot_dimension_numbers<[1], [0], [0], [1], [0, 0, 1, 1], [], []>} : vector<2x16xf32>, vector<16x32xf32>, vector<2x32xf32> -> vector<2x32xf32>
    %484 = arith.addf %456, %483 : vector<2x32xf32>
    %485 = vector.extract_strided_slice %12 {offsets = [16, 0], sizes = [16, 32], strides = [1, 1]} : vector<32x32xf32> to vector<16x32xf32>
    %cst_182 = arith.constant dense<0.000000e+00> : vector<2x32xf32>
    %486 = tpu.matmul %481, %485, %cst_182 {dimension_numbers = #tpu.dot_dimension_numbers<[1], [0], [0], [1], [0, 0, 1, 1], [], []>} : vector<2x16xf32>, vector<16x32xf32>, vector<2x32xf32> -> vector<2x32xf32>
    %487 = arith.addf %484, %486 : vector<2x32xf32>
    %488 = vector.broadcast %13 : vector<1x32xf32> to vector<2x32xf32>
    %489 = arith.addf %487, %488 : vector<2x32xf32>
    %490 = math.tanh %489 : vector<2x32xf32>
    %cst_183 = arith.constant dense<0.000000e+00> : vector<2x32xf32>
    %491 = tpu.matmul %490, %14, %cst_183 {dimension_numbers = #tpu.dot_dimension_numbers<[1], [0], [0], [1], [0, 0, 1, 1], [], []>} : vector<2x32xf32>, vector<32x32xf32>, vector<2x32xf32> -> vector<2x32xf32>
    %492 = vector.broadcast %15 : vector<1x32xf32> to vector<2x32xf32>
    %493 = arith.addf %491, %492 : vector<2x32xf32>
    %cst_184 = arith.constant dense<0xFF800000> : vector<2xf32>
    %494 = vector.multi_reduction <maximumf>, %493, %cst_184 [1] : vector<2x32xf32> to vector<2xf32>
    %495 = vector.shape_cast %494 : vector<2xf32> to vector<2x1xf32>
    %496 = vector.broadcast %495 : vector<2x1xf32> to vector<2x32xf32>
    %497 = arith.subf %493, %496 : vector<2x32xf32>
    %498 = math.exp %497 : vector<2x32xf32>
    %cst_185 = arith.constant dense<0.000000e+00> : vector<2xf32>
    %499 = vector.multi_reduction <add>, %498, %cst_185 [1] : vector<2x32xf32> to vector<2xf32>
    %500 = vector.shape_cast %499 : vector<2xf32> to vector<2x1xf32>
    %501 = tpu.reciprocal %500 {approx = true} : vector<2x1xf32> -> vector<2x1xf32>
    %502 = vector.broadcast %501 : vector<2x1xf32> to vector<2x32xf32>
    %503 = arith.mulf %498, %502 : vector<2x32xf32>
    %c0_186 = arith.constant 0 : index
    %c0_187 = arith.constant 0 : index
    %c0_188 = arith.constant 0 : index
    %504 = vector.load %arg19[%c0_186, %c0_187, %c0_188] : memref<6x2x32xf32, #tpu.memory_space<vmem>>, vector<1x2x32xf32>
    %505 = vector.shape_cast %504 : vector<1x2x32xf32> to vector<2x32xf32>
    %506 = vector.shape_cast %503 : vector<2x32xf32> to vector<1x2x32xf32>
    tpu.vector_store %arg19[%c0_186, %c0_187, %c0_188], %506 {strides = array<i32>} : memref<6x2x32xf32, #tpu.memory_space<vmem>>, vector<1x2x32xf32>,
    %c1_189 = arith.constant 1 : index
    %c0_190 = arith.constant 0 : index
    %c0_191 = arith.constant 0 : index
    %507 = vector.load %arg1[%c1_189, %c0_190, %c0_191] : memref<6x2x96xf32, #tpu.memory_space<vmem>>, vector<1x2x96xf32>
    %508 = vector.shape_cast %507 : vector<1x2x96xf32> to vector<2x96xf32>
    %cst_192 = arith.constant dense<0.000000e+00> : vector<2x96xf32>
    %509 = tpu.matmul %490, %8, %cst_192 {dimension_numbers = #tpu.dot_dimension_numbers<[1], [0], [0], [1], [0, 0, 1, 1], [], []>} : vector<2x32xf32>, vector<32x96xf32>, vector<2x96xf32> -> vector<2x96xf32>
    %510 = arith.addf %508, %509 : vector<2x96xf32>
    %cst_193 = arith.constant dense<0.000000e+00> : vector<2x96xf32>
    %511 = tpu.matmul %450, %9, %cst_193 {dimension_numbers = #tpu.dot_dimension_numbers<[1], [0], [0], [1], [0, 0, 1, 1], [], []>} : vector<2x32xf32>, vector<32x96xf32>, vector<2x96xf32> -> vector<2x96xf32>
    %512 = vector.broadcast %10 : vector<1x96xf32> to vector<2x96xf32>
    %513 = arith.addf %511, %512 : vector<2x96xf32>
    %514 = vector.extract_strided_slice %510 {offsets = [0, 0], sizes = [2, 32], strides = [1, 1]} : vector<2x96xf32> to vector<2x32xf32>
    %515 = vector.extract_strided_slice %513 {offsets = [0, 0], sizes = [2, 32], strides = [1, 1]} : vector<2x96xf32> to vector<2x32xf32>
    %516 = arith.addf %514, %515 : vector<2x32xf32>
    %517 = arith.negf %516 : vector<2x32xf32>
    %518 = math.exp %517 : vector<2x32xf32>
    %cst_194 = arith.constant 1.000000e+00 : f32
    %519 = vector.broadcast %cst_194 : f32 to vector<2x32xf32>
    %520 = arith.addf %519, %518 : vector<2x32xf32>
    %521 = arith.divf %519, %520 : vector<2x32xf32>
    %522 = vector.extract_strided_slice %510 {offsets = [0, 32], sizes = [2, 32], strides = [1, 1]} : vector<2x96xf32> to vector<2x32xf32>
    %523 = vector.extract_strided_slice %513 {offsets = [0, 32], sizes = [2, 32], strides = [1, 1]} : vector<2x96xf32> to vector<2x32xf32>
    %524 = arith.addf %522, %523 : vector<2x32xf32>
    %525 = arith.negf %524 : vector<2x32xf32>
    %526 = math.exp %525 : vector<2x32xf32>
    %cst_195 = arith.constant 1.000000e+00 : f32
    %527 = vector.broadcast %cst_195 : f32 to vector<2x32xf32>
    %528 = arith.addf %527, %526 : vector<2x32xf32>
    %529 = arith.divf %527, %528 : vector<2x32xf32>
    %530 = vector.extract_strided_slice %510 {offsets = [0, 64], sizes = [2, 32], strides = [1, 1]} : vector<2x96xf32> to vector<2x32xf32>
    %531 = vector.extract_strided_slice %513 {offsets = [0, 64], sizes = [2, 32], strides = [1, 1]} : vector<2x96xf32> to vector<2x32xf32>
    %532 = arith.mulf %521, %531 : vector<2x32xf32>
    %533 = arith.addf %530, %532 : vector<2x32xf32>
    %534 = math.tanh %533 : vector<2x32xf32>
    %cst_196 = arith.constant 1.000000e+00 : f32
    %535 = vector.broadcast %cst_196 : f32 to vector<2x32xf32>
    %536 = arith.subf %535, %529 : vector<2x32xf32>
    %537 = arith.mulf %536, %534 : vector<2x32xf32>
    %538 = arith.mulf %529, %450 : vector<2x32xf32>
    %539 = arith.addf %537, %538 : vector<2x32xf32>
    %cst_197 = arith.constant dense<0.000000e+00> : vector<2x64xf32>
    %540 = tpu.matmul %539, %11, %cst_197 {dimension_numbers = #tpu.dot_dimension_numbers<[1], [0], [0], [1], [0, 0, 1, 1], [], []>} : vector<2x32xf32>, vector<32x64xf32>, vector<2x64xf32> -> vector<2x64xf32>
    %541 = vector.extract_strided_slice %540 {offsets = [0, 0], sizes = [2, 16], strides = [1, 1]} : vector<2x64xf32> to vector<2x16xf32>
    %542 = vector.shape_cast %541 : vector<2x16xf32> to vector<1x2x16xf32>
    %543 = vector.extract_strided_slice %540 {offsets = [0, 16], sizes = [2, 16], strides = [1, 1]} : vector<2x64xf32> to vector<2x16xf32>
    %544 = vector.shape_cast %543 : vector<2x16xf32> to vector<1x2x16xf32>
    %545 = vector.extract_strided_slice %540 {offsets = [0, 32], sizes = [2, 32], strides = [1, 1]} : vector<2x64xf32> to vector<2x32xf32>
    %546 = vector.broadcast %542 : vector<1x2x16xf32> to vector<8x2x16xf32>
    %547 = arith.mulf %415, %546 : vector<8x2x16xf32>
    %cst_198 = arith.constant dense<0.000000e+00> : vector<8x2xf32>
    %548 = vector.multi_reduction <add>, %547, %cst_198 [2] : vector<8x2x16xf32> to vector<8x2xf32>
    %549 = vector.shape_cast %548 : vector<8x2xf32> to vector<8x2x1xf32>
    %550 = vector.broadcast %544 : vector<1x2x16xf32> to vector<8x2x16xf32>
    %551 = arith.mulf %416, %550 : vector<8x2x16xf32>
    %cst_199 = arith.constant dense<0.000000e+00> : vector<8x2xf32>
    %552 = vector.multi_reduction <add>, %551, %cst_199 [2] : vector<8x2x16xf32> to vector<8x2xf32>
    %553 = vector.shape_cast %552 : vector<8x2xf32> to vector<8x2x1xf32>
    %554 = arith.addf %549, %553 : vector<8x2x1xf32>
    %cst_200 = arith.constant dense<0xFF800000> : vector<2x1xf32>
    %555 = vector.multi_reduction <maximumf>, %554, %cst_200 [0] : vector<8x2x1xf32> to vector<2x1xf32>
    %556 = vector.shape_cast %555 : vector<2x1xf32> to vector<1x2x1xf32>
    %557 = vector.broadcast %556 : vector<1x2x1xf32> to vector<8x2x1xf32>
    %558 = arith.subf %554, %557 : vector<8x2x1xf32>
    %559 = math.exp %558 : vector<8x2x1xf32>
    %cst_201 = arith.constant dense<0.000000e+00> : vector<2x1xf32>
    %560 = vector.multi_reduction <add>, %559, %cst_201 [0] : vector<8x2x1xf32> to vector<2x1xf32>
    %561 = vector.shape_cast %560 : vector<2x1xf32> to vector<1x2x1xf32>
    %562 = tpu.reciprocal %561 {approx = true} : vector<1x2x1xf32> -> vector<1x2x1xf32>
    %563 = vector.broadcast %562 : vector<1x2x1xf32> to vector<8x2x1xf32>
    %564 = arith.mulf %559, %563 : vector<8x2x1xf32>
    %565 = vector.broadcast %564 : vector<8x2x1xf32> to vector<8x2x16xf32>
    %566 = arith.mulf %565, %415 : vector<8x2x16xf32>
    %cst_202 = arith.constant dense<0.000000e+00> : vector<2x16xf32>
    %567 = vector.multi_reduction <add>, %566, %cst_202 [0] : vector<8x2x16xf32> to vector<2x16xf32>
    %568 = vector.broadcast %564 : vector<8x2x1xf32> to vector<8x2x16xf32>
    %569 = arith.mulf %568, %416 : vector<8x2x16xf32>
    %cst_203 = arith.constant dense<0.000000e+00> : vector<2x16xf32>
    %570 = vector.multi_reduction <add>, %569, %cst_203 [0] : vector<8x2x16xf32> to vector<2x16xf32>
    %571 = vector.extract_strided_slice %12 {offsets = [0, 0], sizes = [16, 32], strides = [1, 1]} : vector<32x32xf32> to vector<16x32xf32>
    %cst_204 = arith.constant dense<0.000000e+00> : vector<2x32xf32>
    %572 = tpu.matmul %567, %571, %cst_204 {dimension_numbers = #tpu.dot_dimension_numbers<[1], [0], [0], [1], [0, 0, 1, 1], [], []>} : vector<2x16xf32>, vector<16x32xf32>, vector<2x32xf32> -> vector<2x32xf32>
    %573 = arith.addf %545, %572 : vector<2x32xf32>
    %574 = vector.extract_strided_slice %12 {offsets = [16, 0], sizes = [16, 32], strides = [1, 1]} : vector<32x32xf32> to vector<16x32xf32>
    %cst_205 = arith.constant dense<0.000000e+00> : vector<2x32xf32>
    %575 = tpu.matmul %570, %574, %cst_205 {dimension_numbers = #tpu.dot_dimension_numbers<[1], [0], [0], [1], [0, 0, 1, 1], [], []>} : vector<2x16xf32>, vector<16x32xf32>, vector<2x32xf32> -> vector<2x32xf32>
    %576 = arith.addf %573, %575 : vector<2x32xf32>
    %577 = vector.broadcast %13 : vector<1x32xf32> to vector<2x32xf32>
    %578 = arith.addf %576, %577 : vector<2x32xf32>
    %579 = math.tanh %578 : vector<2x32xf32>
    %cst_206 = arith.constant dense<0.000000e+00> : vector<2x32xf32>
    %580 = tpu.matmul %579, %14, %cst_206 {dimension_numbers = #tpu.dot_dimension_numbers<[1], [0], [0], [1], [0, 0, 1, 1], [], []>} : vector<2x32xf32>, vector<32x32xf32>, vector<2x32xf32> -> vector<2x32xf32>
    %581 = vector.broadcast %15 : vector<1x32xf32> to vector<2x32xf32>
    %582 = arith.addf %580, %581 : vector<2x32xf32>
    %cst_207 = arith.constant dense<0xFF800000> : vector<2xf32>
    %583 = vector.multi_reduction <maximumf>, %582, %cst_207 [1] : vector<2x32xf32> to vector<2xf32>
    %584 = vector.shape_cast %583 : vector<2xf32> to vector<2x1xf32>
    %585 = vector.broadcast %584 : vector<2x1xf32> to vector<2x32xf32>
    %586 = arith.subf %582, %585 : vector<2x32xf32>
    %587 = math.exp %586 : vector<2x32xf32>
    %cst_208 = arith.constant dense<0.000000e+00> : vector<2xf32>
    %588 = vector.multi_reduction <add>, %587, %cst_208 [1] : vector<2x32xf32> to vector<2xf32>
    %589 = vector.shape_cast %588 : vector<2xf32> to vector<2x1xf32>
    %590 = tpu.reciprocal %589 {approx = true} : vector<2x1xf32> -> vector<2x1xf32>
    %591 = vector.broadcast %590 : vector<2x1xf32> to vector<2x32xf32>
    %592 = arith.mulf %587, %591 : vector<2x32xf32>
    %c1_209 = arith.constant 1 : index
    %c0_210 = arith.constant 0 : index
    %c0_211 = arith.constant 0 : index
    %593 = vector.load %arg19[%c1_209, %c0_210, %c0_211] : memref<6x2x32xf32, #tpu.memory_space<vmem>>, vector<1x2x32xf32>
    %594 = vector.shape_cast %593 : vector<1x2x32xf32> to vector<2x32xf32>
    %595 = vector.shape_cast %592 : vector<2x32xf32> to vector<1x2x32xf32>
    tpu.vector_store %arg19[%c1_209, %c0_210, %c0_211], %595 {strides = array<i32>} : memref<6x2x32xf32, #tpu.memory_space<vmem>>, vector<1x2x32xf32>,
    %c2_212 = arith.constant 2 : index
    %c0_213 = arith.constant 0 : index
    %c0_214 = arith.constant 0 : index
    %596 = vector.load %arg1[%c2_212, %c0_213, %c0_214] : memref<6x2x96xf32, #tpu.memory_space<vmem>>, vector<1x2x96xf32>
    %597 = vector.shape_cast %596 : vector<1x2x96xf32> to vector<2x96xf32>
    %cst_215 = arith.constant dense<0.000000e+00> : vector<2x96xf32>
    %598 = tpu.matmul %579, %8, %cst_215 {dimension_numbers = #tpu.dot_dimension_numbers<[1], [0], [0], [1], [0, 0, 1, 1], [], []>} : vector<2x32xf32>, vector<32x96xf32>, vector<2x96xf32> -> vector<2x96xf32>
    %599 = arith.addf %597, %598 : vector<2x96xf32>
    %cst_216 = arith.constant dense<0.000000e+00> : vector<2x96xf32>
    %600 = tpu.matmul %539, %9, %cst_216 {dimension_numbers = #tpu.dot_dimension_numbers<[1], [0], [0], [1], [0, 0, 1, 1], [], []>} : vector<2x32xf32>, vector<32x96xf32>, vector<2x96xf32> -> vector<2x96xf32>
    %601 = vector.broadcast %10 : vector<1x96xf32> to vector<2x96xf32>
    %602 = arith.addf %600, %601 : vector<2x96xf32>
    %603 = vector.extract_strided_slice %599 {offsets = [0, 0], sizes = [2, 32], strides = [1, 1]} : vector<2x96xf32> to vector<2x32xf32>
    %604 = vector.extract_strided_slice %602 {offsets = [0, 0], sizes = [2, 32], strides = [1, 1]} : vector<2x96xf32> to vector<2x32xf32>
    %605 = arith.addf %603, %604 : vector<2x32xf32>
    %606 = arith.negf %605 : vector<2x32xf32>
    %607 = math.exp %606 : vector<2x32xf32>
    %cst_217 = arith.constant 1.000000e+00 : f32
    %608 = vector.broadcast %cst_217 : f32 to vector<2x32xf32>
    %609 = arith.addf %608, %607 : vector<2x32xf32>
    %610 = arith.divf %608, %609 : vector<2x32xf32>
    %611 = vector.extract_strided_slice %599 {offsets = [0, 32], sizes = [2, 32], strides = [1, 1]} : vector<2x96xf32> to vector<2x32xf32>
    %612 = vector.extract_strided_slice %602 {offsets = [0, 32], sizes = [2, 32], strides = [1, 1]} : vector<2x96xf32> to vector<2x32xf32>
    %613 = arith.addf %611, %612 : vector<2x32xf32>
    %614 = arith.negf %613 : vector<2x32xf32>
    %615 = math.exp %614 : vector<2x32xf32>
    %cst_218 = arith.constant 1.000000e+00 : f32
    %616 = vector.broadcast %cst_218 : f32 to vector<2x32xf32>
    %617 = arith.addf %616, %615 : vector<2x32xf32>
    %618 = arith.divf %616, %617 : vector<2x32xf32>
    %619 = vector.extract_strided_slice %599 {offsets = [0, 64], sizes = [2, 32], strides = [1, 1]} : vector<2x96xf32> to vector<2x32xf32>
    %620 = vector.extract_strided_slice %602 {offsets = [0, 64], sizes = [2, 32], strides = [1, 1]} : vector<2x96xf32> to vector<2x32xf32>
    %621 = arith.mulf %610, %620 : vector<2x32xf32>
    %622 = arith.addf %619, %621 : vector<2x32xf32>
    %623 = math.tanh %622 : vector<2x32xf32>
    %cst_219 = arith.constant 1.000000e+00 : f32
    %624 = vector.broadcast %cst_219 : f32 to vector<2x32xf32>
    %625 = arith.subf %624, %618 : vector<2x32xf32>
    %626 = arith.mulf %625, %623 : vector<2x32xf32>
    %627 = arith.mulf %618, %539 : vector<2x32xf32>
    %628 = arith.addf %626, %627 : vector<2x32xf32>
    %cst_220 = arith.constant dense<0.000000e+00> : vector<2x64xf32>
    %629 = tpu.matmul %628, %11, %cst_220 {dimension_numbers = #tpu.dot_dimension_numbers<[1], [0], [0], [1], [0, 0, 1, 1], [], []>} : vector<2x32xf32>, vector<32x64xf32>, vector<2x64xf32> -> vector<2x64xf32>
    %630 = vector.extract_strided_slice %629 {offsets = [0, 0], sizes = [2, 16], strides = [1, 1]} : vector<2x64xf32> to vector<2x16xf32>
    %631 = vector.shape_cast %630 : vector<2x16xf32> to vector<1x2x16xf32>
    %632 = vector.extract_strided_slice %629 {offsets = [0, 16], sizes = [2, 16], strides = [1, 1]} : vector<2x64xf32> to vector<2x16xf32>
    %633 = vector.shape_cast %632 : vector<2x16xf32> to vector<1x2x16xf32>
    %634 = vector.extract_strided_slice %629 {offsets = [0, 32], sizes = [2, 32], strides = [1, 1]} : vector<2x64xf32> to vector<2x32xf32>
    %635 = vector.broadcast %631 : vector<1x2x16xf32> to vector<8x2x16xf32>
    %636 = arith.mulf %415, %635 : vector<8x2x16xf32>
    %cst_221 = arith.constant dense<0.000000e+00> : vector<8x2xf32>
    %637 = vector.multi_reduction <add>, %636, %cst_221 [2] : vector<8x2x16xf32> to vector<8x2xf32>
    %638 = vector.shape_cast %637 : vector<8x2xf32> to vector<8x2x1xf32>
    %639 = vector.broadcast %633 : vector<1x2x16xf32> to vector<8x2x16xf32>
    %640 = arith.mulf %416, %639 : vector<8x2x16xf32>
    %cst_222 = arith.constant dense<0.000000e+00> : vector<8x2xf32>
    %641 = vector.multi_reduction <add>, %640, %cst_222 [2] : vector<8x2x16xf32> to vector<8x2xf32>
    %642 = vector.shape_cast %641 : vector<8x2xf32> to vector<8x2x1xf32>
    %643 = arith.addf %638, %642 : vector<8x2x1xf32>
    %cst_223 = arith.constant dense<0xFF800000> : vector<2x1xf32>
    %644 = vector.multi_reduction <maximumf>, %643, %cst_223 [0] : vector<8x2x1xf32> to vector<2x1xf32>
    %645 = vector.shape_cast %644 : vector<2x1xf32> to vector<1x2x1xf32>
    %646 = vector.broadcast %645 : vector<1x2x1xf32> to vector<8x2x1xf32>
    %647 = arith.subf %643, %646 : vector<8x2x1xf32>
    %648 = math.exp %647 : vector<8x2x1xf32>
    %cst_224 = arith.constant dense<0.000000e+00> : vector<2x1xf32>
    %649 = vector.multi_reduction <add>, %648, %cst_224 [0] : vector<8x2x1xf32> to vector<2x1xf32>
    %650 = vector.shape_cast %649 : vector<2x1xf32> to vector<1x2x1xf32>
    %651 = tpu.reciprocal %650 {approx = true} : vector<1x2x1xf32> -> vector<1x2x1xf32>
    %652 = vector.broadcast %651 : vector<1x2x1xf32> to vector<8x2x1xf32>
    %653 = arith.mulf %648, %652 : vector<8x2x1xf32>
    %654 = vector.broadcast %653 : vector<8x2x1xf32> to vector<8x2x16xf32>
    %655 = arith.mulf %654, %415 : vector<8x2x16xf32>
    %cst_225 = arith.constant dense<0.000000e+00> : vector<2x16xf32>
    %656 = vector.multi_reduction <add>, %655, %cst_225 [0] : vector<8x2x16xf32> to vector<2x16xf32>
    %657 = vector.broadcast %653 : vector<8x2x1xf32> to vector<8x2x16xf32>
    %658 = arith.mulf %657, %416 : vector<8x2x16xf32>
    %cst_226 = arith.constant dense<0.000000e+00> : vector<2x16xf32>
    %659 = vector.multi_reduction <add>, %658, %cst_226 [0] : vector<8x2x16xf32> to vector<2x16xf32>
    %660 = vector.extract_strided_slice %12 {offsets = [0, 0], sizes = [16, 32], strides = [1, 1]} : vector<32x32xf32> to vector<16x32xf32>
    %cst_227 = arith.constant dense<0.000000e+00> : vector<2x32xf32>
    %661 = tpu.matmul %656, %660, %cst_227 {dimension_numbers = #tpu.dot_dimension_numbers<[1], [0], [0], [1], [0, 0, 1, 1], [], []>} : vector<2x16xf32>, vector<16x32xf32>, vector<2x32xf32> -> vector<2x32xf32>
    %662 = arith.addf %634, %661 : vector<2x32xf32>
    %663 = vector.extract_strided_slice %12 {offsets = [16, 0], sizes = [16, 32], strides = [1, 1]} : vector<32x32xf32> to vector<16x32xf32>
    %cst_228 = arith.constant dense<0.000000e+00> : vector<2x32xf32>
    %664 = tpu.matmul %659, %663, %cst_228 {dimension_numbers = #tpu.dot_dimension_numbers<[1], [0], [0], [1], [0, 0, 1, 1], [], []>} : vector<2x16xf32>, vector<16x32xf32>, vector<2x32xf32> -> vector<2x32xf32>
    %665 = arith.addf %662, %664 : vector<2x32xf32>
    %666 = vector.broadcast %13 : vector<1x32xf32> to vector<2x32xf32>
    %667 = arith.addf %665, %666 : vector<2x32xf32>
    %668 = math.tanh %667 : vector<2x32xf32>
    %cst_229 = arith.constant dense<0.000000e+00> : vector<2x32xf32>
    %669 = tpu.matmul %668, %14, %cst_229 {dimension_numbers = #tpu.dot_dimension_numbers<[1], [0], [0], [1], [0, 0, 1, 1], [], []>} : vector<2x32xf32>, vector<32x32xf32>, vector<2x32xf32> -> vector<2x32xf32>
    %670 = vector.broadcast %15 : vector<1x32xf32> to vector<2x32xf32>
    %671 = arith.addf %669, %670 : vector<2x32xf32>
    %cst_230 = arith.constant dense<0xFF800000> : vector<2xf32>
    %672 = vector.multi_reduction <maximumf>, %671, %cst_230 [1] : vector<2x32xf32> to vector<2xf32>
    %673 = vector.shape_cast %672 : vector<2xf32> to vector<2x1xf32>
    %674 = vector.broadcast %673 : vector<2x1xf32> to vector<2x32xf32>
    %675 = arith.subf %671, %674 : vector<2x32xf32>
    %676 = math.exp %675 : vector<2x32xf32>
    %cst_231 = arith.constant dense<0.000000e+00> : vector<2xf32>
    %677 = vector.multi_reduction <add>, %676, %cst_231 [1] : vector<2x32xf32> to vector<2xf32>
    %678 = vector.shape_cast %677 : vector<2xf32> to vector<2x1xf32>
    %679 = tpu.reciprocal %678 {approx = true} : vector<2x1xf32> -> vector<2x1xf32>
    %680 = vector.broadcast %679 : vector<2x1xf32> to vector<2x32xf32>
    %681 = arith.mulf %676, %680 : vector<2x32xf32>
    %c2_232 = arith.constant 2 : index
    %c0_233 = arith.constant 0 : index
    %c0_234 = arith.constant 0 : index
    %682 = vector.load %arg19[%c2_232, %c0_233, %c0_234] : memref<6x2x32xf32, #tpu.memory_space<vmem>>, vector<1x2x32xf32>
    %683 = vector.shape_cast %682 : vector<1x2x32xf32> to vector<2x32xf32>
    %684 = vector.shape_cast %681 : vector<2x32xf32> to vector<1x2x32xf32>
    tpu.vector_store %arg19[%c2_232, %c0_233, %c0_234], %684 {strides = array<i32>} : memref<6x2x32xf32, #tpu.memory_space<vmem>>, vector<1x2x32xf32>,
    %c3_235 = arith.constant 3 : index
    %c0_236 = arith.constant 0 : index
    %c0_237 = arith.constant 0 : index
    %685 = vector.load %arg1[%c3_235, %c0_236, %c0_237] : memref<6x2x96xf32, #tpu.memory_space<vmem>>, vector<1x2x96xf32>
    %686 = vector.shape_cast %685 : vector<1x2x96xf32> to vector<2x96xf32>
    %cst_238 = arith.constant dense<0.000000e+00> : vector<2x96xf32>
    %687 = tpu.matmul %668, %8, %cst_238 {dimension_numbers = #tpu.dot_dimension_numbers<[1], [0], [0], [1], [0, 0, 1, 1], [], []>} : vector<2x32xf32>, vector<32x96xf32>, vector<2x96xf32> -> vector<2x96xf32>
    %688 = arith.addf %686, %687 : vector<2x96xf32>
    %cst_239 = arith.constant dense<0.000000e+00> : vector<2x96xf32>
    %689 = tpu.matmul %628, %9, %cst_239 {dimension_numbers = #tpu.dot_dimension_numbers<[1], [0], [0], [1], [0, 0, 1, 1], [], []>} : vector<2x32xf32>, vector<32x96xf32>, vector<2x96xf32> -> vector<2x96xf32>
    %690 = vector.broadcast %10 : vector<1x96xf32> to vector<2x96xf32>
    %691 = arith.addf %689, %690 : vector<2x96xf32>
    %692 = vector.extract_strided_slice %688 {offsets = [0, 0], sizes = [2, 32], strides = [1, 1]} : vector<2x96xf32> to vector<2x32xf32>
    %693 = vector.extract_strided_slice %691 {offsets = [0, 0], sizes = [2, 32], strides = [1, 1]} : vector<2x96xf32> to vector<2x32xf32>
    %694 = arith.addf %692, %693 : vector<2x32xf32>
    %695 = arith.negf %694 : vector<2x32xf32>
    %696 = math.exp %695 : vector<2x32xf32>
    %cst_240 = arith.constant 1.000000e+00 : f32
    %697 = vector.broadcast %cst_240 : f32 to vector<2x32xf32>
    %698 = arith.addf %697, %696 : vector<2x32xf32>
    %699 = arith.divf %697, %698 : vector<2x32xf32>
    %700 = vector.extract_strided_slice %688 {offsets = [0, 32], sizes = [2, 32], strides = [1, 1]} : vector<2x96xf32> to vector<2x32xf32>
    %701 = vector.extract_strided_slice %691 {offsets = [0, 32], sizes = [2, 32], strides = [1, 1]} : vector<2x96xf32> to vector<2x32xf32>
    %702 = arith.addf %700, %701 : vector<2x32xf32>
    %703 = arith.negf %702 : vector<2x32xf32>
    %704 = math.exp %703 : vector<2x32xf32>
    %cst_241 = arith.constant 1.000000e+00 : f32
    %705 = vector.broadcast %cst_241 : f32 to vector<2x32xf32>
    %706 = arith.addf %705, %704 : vector<2x32xf32>
    %707 = arith.divf %705, %706 : vector<2x32xf32>
    %708 = vector.extract_strided_slice %688 {offsets = [0, 64], sizes = [2, 32], strides = [1, 1]} : vector<2x96xf32> to vector<2x32xf32>
    %709 = vector.extract_strided_slice %691 {offsets = [0, 64], sizes = [2, 32], strides = [1, 1]} : vector<2x96xf32> to vector<2x32xf32>
    %710 = arith.mulf %699, %709 : vector<2x32xf32>
    %711 = arith.addf %708, %710 : vector<2x32xf32>
    %712 = math.tanh %711 : vector<2x32xf32>
    %cst_242 = arith.constant 1.000000e+00 : f32
    %713 = vector.broadcast %cst_242 : f32 to vector<2x32xf32>
    %714 = arith.subf %713, %707 : vector<2x32xf32>
    %715 = arith.mulf %714, %712 : vector<2x32xf32>
    %716 = arith.mulf %707, %628 : vector<2x32xf32>
    %717 = arith.addf %715, %716 : vector<2x32xf32>
    %cst_243 = arith.constant dense<0.000000e+00> : vector<2x64xf32>
    %718 = tpu.matmul %717, %11, %cst_243 {dimension_numbers = #tpu.dot_dimension_numbers<[1], [0], [0], [1], [0, 0, 1, 1], [], []>} : vector<2x32xf32>, vector<32x64xf32>, vector<2x64xf32> -> vector<2x64xf32>
    %719 = vector.extract_strided_slice %718 {offsets = [0, 0], sizes = [2, 16], strides = [1, 1]} : vector<2x64xf32> to vector<2x16xf32>
    %720 = vector.shape_cast %719 : vector<2x16xf32> to vector<1x2x16xf32>
    %721 = vector.extract_strided_slice %718 {offsets = [0, 16], sizes = [2, 16], strides = [1, 1]} : vector<2x64xf32> to vector<2x16xf32>
    %722 = vector.shape_cast %721 : vector<2x16xf32> to vector<1x2x16xf32>
    %723 = vector.extract_strided_slice %718 {offsets = [0, 32], sizes = [2, 32], strides = [1, 1]} : vector<2x64xf32> to vector<2x32xf32>
    %724 = vector.broadcast %720 : vector<1x2x16xf32> to vector<8x2x16xf32>
    %725 = arith.mulf %415, %724 : vector<8x2x16xf32>
    %cst_244 = arith.constant dense<0.000000e+00> : vector<8x2xf32>
    %726 = vector.multi_reduction <add>, %725, %cst_244 [2] : vector<8x2x16xf32> to vector<8x2xf32>
    %727 = vector.shape_cast %726 : vector<8x2xf32> to vector<8x2x1xf32>
    %728 = vector.broadcast %722 : vector<1x2x16xf32> to vector<8x2x16xf32>
    %729 = arith.mulf %416, %728 : vector<8x2x16xf32>
    %cst_245 = arith.constant dense<0.000000e+00> : vector<8x2xf32>
    %730 = vector.multi_reduction <add>, %729, %cst_245 [2] : vector<8x2x16xf32> to vector<8x2xf32>
    %731 = vector.shape_cast %730 : vector<8x2xf32> to vector<8x2x1xf32>
    %732 = arith.addf %727, %731 : vector<8x2x1xf32>
    %cst_246 = arith.constant dense<0xFF800000> : vector<2x1xf32>
    %733 = vector.multi_reduction <maximumf>, %732, %cst_246 [0] : vector<8x2x1xf32> to vector<2x1xf32>
    %734 = vector.shape_cast %733 : vector<2x1xf32> to vector<1x2x1xf32>
    %735 = vector.broadcast %734 : vector<1x2x1xf32> to vector<8x2x1xf32>
    %736 = arith.subf %732, %735 : vector<8x2x1xf32>
    %737 = math.exp %736 : vector<8x2x1xf32>
    %cst_247 = arith.constant dense<0.000000e+00> : vector<2x1xf32>
    %738 = vector.multi_reduction <add>, %737, %cst_247 [0] : vector<8x2x1xf32> to vector<2x1xf32>
    %739 = vector.shape_cast %738 : vector<2x1xf32> to vector<1x2x1xf32>
    %740 = tpu.reciprocal %739 {approx = true} : vector<1x2x1xf32> -> vector<1x2x1xf32>
    %741 = vector.broadcast %740 : vector<1x2x1xf32> to vector<8x2x1xf32>
    %742 = arith.mulf %737, %741 : vector<8x2x1xf32>
    %743 = vector.broadcast %742 : vector<8x2x1xf32> to vector<8x2x16xf32>
    %744 = arith.mulf %743, %415 : vector<8x2x16xf32>
    %cst_248 = arith.constant dense<0.000000e+00> : vector<2x16xf32>
    %745 = vector.multi_reduction <add>, %744, %cst_248 [0] : vector<8x2x16xf32> to vector<2x16xf32>
    %746 = vector.broadcast %742 : vector<8x2x1xf32> to vector<8x2x16xf32>
    %747 = arith.mulf %746, %416 : vector<8x2x16xf32>
    %cst_249 = arith.constant dense<0.000000e+00> : vector<2x16xf32>
    %748 = vector.multi_reduction <add>, %747, %cst_249 [0] : vector<8x2x16xf32> to vector<2x16xf32>
    %749 = vector.extract_strided_slice %12 {offsets = [0, 0], sizes = [16, 32], strides = [1, 1]} : vector<32x32xf32> to vector<16x32xf32>
    %cst_250 = arith.constant dense<0.000000e+00> : vector<2x32xf32>
    %750 = tpu.matmul %745, %749, %cst_250 {dimension_numbers = #tpu.dot_dimension_numbers<[1], [0], [0], [1], [0, 0, 1, 1], [], []>} : vector<2x16xf32>, vector<16x32xf32>, vector<2x32xf32> -> vector<2x32xf32>
    %751 = arith.addf %723, %750 : vector<2x32xf32>
    %752 = vector.extract_strided_slice %12 {offsets = [16, 0], sizes = [16, 32], strides = [1, 1]} : vector<32x32xf32> to vector<16x32xf32>
    %cst_251 = arith.constant dense<0.000000e+00> : vector<2x32xf32>
    %753 = tpu.matmul %748, %752, %cst_251 {dimension_numbers = #tpu.dot_dimension_numbers<[1], [0], [0], [1], [0, 0, 1, 1], [], []>} : vector<2x16xf32>, vector<16x32xf32>, vector<2x32xf32> -> vector<2x32xf32>
    %754 = arith.addf %751, %753 : vector<2x32xf32>
    %755 = vector.broadcast %13 : vector<1x32xf32> to vector<2x32xf32>
    %756 = arith.addf %754, %755 : vector<2x32xf32>
    %757 = math.tanh %756 : vector<2x32xf32>
    %cst_252 = arith.constant dense<0.000000e+00> : vector<2x32xf32>
    %758 = tpu.matmul %757, %14, %cst_252 {dimension_numbers = #tpu.dot_dimension_numbers<[1], [0], [0], [1], [0, 0, 1, 1], [], []>} : vector<2x32xf32>, vector<32x32xf32>, vector<2x32xf32> -> vector<2x32xf32>
    %759 = vector.broadcast %15 : vector<1x32xf32> to vector<2x32xf32>
    %760 = arith.addf %758, %759 : vector<2x32xf32>
    %cst_253 = arith.constant dense<0xFF800000> : vector<2xf32>
    %761 = vector.multi_reduction <maximumf>, %760, %cst_253 [1] : vector<2x32xf32> to vector<2xf32>
    %762 = vector.shape_cast %761 : vector<2xf32> to vector<2x1xf32>
    %763 = vector.broadcast %762 : vector<2x1xf32> to vector<2x32xf32>
    %764 = arith.subf %760, %763 : vector<2x32xf32>
    %765 = math.exp %764 : vector<2x32xf32>
    %cst_254 = arith.constant dense<0.000000e+00> : vector<2xf32>
    %766 = vector.multi_reduction <add>, %765, %cst_254 [1] : vector<2x32xf32> to vector<2xf32>
    %767 = vector.shape_cast %766 : vector<2xf32> to vector<2x1xf32>
    %768 = tpu.reciprocal %767 {approx = true} : vector<2x1xf32> -> vector<2x1xf32>
    %769 = vector.broadcast %768 : vector<2x1xf32> to vector<2x32xf32>
    %770 = arith.mulf %765, %769 : vector<2x32xf32>
    %c3_255 = arith.constant 3 : index
    %c0_256 = arith.constant 0 : index
    %c0_257 = arith.constant 0 : index
    %771 = vector.load %arg19[%c3_255, %c0_256, %c0_257] : memref<6x2x32xf32, #tpu.memory_space<vmem>>, vector<1x2x32xf32>
    %772 = vector.shape_cast %771 : vector<1x2x32xf32> to vector<2x32xf32>
    %773 = vector.shape_cast %770 : vector<2x32xf32> to vector<1x2x32xf32>
    tpu.vector_store %arg19[%c3_255, %c0_256, %c0_257], %773 {strides = array<i32>} : memref<6x2x32xf32, #tpu.memory_space<vmem>>, vector<1x2x32xf32>,
    %c4_258 = arith.constant 4 : index
    %c0_259 = arith.constant 0 : index
    %c0_260 = arith.constant 0 : index
    %774 = vector.load %arg1[%c4_258, %c0_259, %c0_260] : memref<6x2x96xf32, #tpu.memory_space<vmem>>, vector<1x2x96xf32>
    %775 = vector.shape_cast %774 : vector<1x2x96xf32> to vector<2x96xf32>
    %cst_261 = arith.constant dense<0.000000e+00> : vector<2x96xf32>
    %776 = tpu.matmul %757, %8, %cst_261 {dimension_numbers = #tpu.dot_dimension_numbers<[1], [0], [0], [1], [0, 0, 1, 1], [], []>} : vector<2x32xf32>, vector<32x96xf32>, vector<2x96xf32> -> vector<2x96xf32>
    %777 = arith.addf %775, %776 : vector<2x96xf32>
    %cst_262 = arith.constant dense<0.000000e+00> : vector<2x96xf32>
    %778 = tpu.matmul %717, %9, %cst_262 {dimension_numbers = #tpu.dot_dimension_numbers<[1], [0], [0], [1], [0, 0, 1, 1], [], []>} : vector<2x32xf32>, vector<32x96xf32>, vector<2x96xf32> -> vector<2x96xf32>
    %779 = vector.broadcast %10 : vector<1x96xf32> to vector<2x96xf32>
    %780 = arith.addf %778, %779 : vector<2x96xf32>
    %781 = vector.extract_strided_slice %777 {offsets = [0, 0], sizes = [2, 32], strides = [1, 1]} : vector<2x96xf32> to vector<2x32xf32>
    %782 = vector.extract_strided_slice %780 {offsets = [0, 0], sizes = [2, 32], strides = [1, 1]} : vector<2x96xf32> to vector<2x32xf32>
    %783 = arith.addf %781, %782 : vector<2x32xf32>
    %784 = arith.negf %783 : vector<2x32xf32>
    %785 = math.exp %784 : vector<2x32xf32>
    %cst_263 = arith.constant 1.000000e+00 : f32
    %786 = vector.broadcast %cst_263 : f32 to vector<2x32xf32>
    %787 = arith.addf %786, %785 : vector<2x32xf32>
    %788 = arith.divf %786, %787 : vector<2x32xf32>
    %789 = vector.extract_strided_slice %777 {offsets = [0, 32], sizes = [2, 32], strides = [1, 1]} : vector<2x96xf32> to vector<2x32xf32>
    %790 = vector.extract_strided_slice %780 {offsets = [0, 32], sizes = [2, 32], strides = [1, 1]} : vector<2x96xf32> to vector<2x32xf32>
    %791 = arith.addf %789, %790 : vector<2x32xf32>
    %792 = arith.negf %791 : vector<2x32xf32>
    %793 = math.exp %792 : vector<2x32xf32>
    %cst_264 = arith.constant 1.000000e+00 : f32
    %794 = vector.broadcast %cst_264 : f32 to vector<2x32xf32>
    %795 = arith.addf %794, %793 : vector<2x32xf32>
    %796 = arith.divf %794, %795 : vector<2x32xf32>
    %797 = vector.extract_strided_slice %777 {offsets = [0, 64], sizes = [2, 32], strides = [1, 1]} : vector<2x96xf32> to vector<2x32xf32>
    %798 = vector.extract_strided_slice %780 {offsets = [0, 64], sizes = [2, 32], strides = [1, 1]} : vector<2x96xf32> to vector<2x32xf32>
    %799 = arith.mulf %788, %798 : vector<2x32xf32>
    %800 = arith.addf %797, %799 : vector<2x32xf32>
    %801 = math.tanh %800 : vector<2x32xf32>
    %cst_265 = arith.constant 1.000000e+00 : f32
    %802 = vector.broadcast %cst_265 : f32 to vector<2x32xf32>
    %803 = arith.subf %802, %796 : vector<2x32xf32>
    %804 = arith.mulf %803, %801 : vector<2x32xf32>
    %805 = arith.mulf %796, %717 : vector<2x32xf32>
    %806 = arith.addf %804, %805 : vector<2x32xf32>
    %cst_266 = arith.constant dense<0.000000e+00> : vector<2x64xf32>
    %807 = tpu.matmul %806, %11, %cst_266 {dimension_numbers = #tpu.dot_dimension_numbers<[1], [0], [0], [1], [0, 0, 1, 1], [], []>} : vector<2x32xf32>, vector<32x64xf32>, vector<2x64xf32> -> vector<2x64xf32>
    %808 = vector.extract_strided_slice %807 {offsets = [0, 0], sizes = [2, 16], strides = [1, 1]} : vector<2x64xf32> to vector<2x16xf32>
    %809 = vector.shape_cast %808 : vector<2x16xf32> to vector<1x2x16xf32>
    %810 = vector.extract_strided_slice %807 {offsets = [0, 16], sizes = [2, 16], strides = [1, 1]} : vector<2x64xf32> to vector<2x16xf32>
    %811 = vector.shape_cast %810 : vector<2x16xf32> to vector<1x2x16xf32>
    %812 = vector.extract_strided_slice %807 {offsets = [0, 32], sizes = [2, 32], strides = [1, 1]} : vector<2x64xf32> to vector<2x32xf32>
    %813 = vector.broadcast %809 : vector<1x2x16xf32> to vector<8x2x16xf32>
    %814 = arith.mulf %415, %813 : vector<8x2x16xf32>
    %cst_267 = arith.constant dense<0.000000e+00> : vector<8x2xf32>
    %815 = vector.multi_reduction <add>, %814, %cst_267 [2] : vector<8x2x16xf32> to vector<8x2xf32>
    %816 = vector.shape_cast %815 : vector<8x2xf32> to vector<8x2x1xf32>
    %817 = vector.broadcast %811 : vector<1x2x16xf32> to vector<8x2x16xf32>
    %818 = arith.mulf %416, %817 : vector<8x2x16xf32>
    %cst_268 = arith.constant dense<0.000000e+00> : vector<8x2xf32>
    %819 = vector.multi_reduction <add>, %818, %cst_268 [2] : vector<8x2x16xf32> to vector<8x2xf32>
    %820 = vector.shape_cast %819 : vector<8x2xf32> to vector<8x2x1xf32>
    %821 = arith.addf %816, %820 : vector<8x2x1xf32>
    %cst_269 = arith.constant dense<0xFF800000> : vector<2x1xf32>
    %822 = vector.multi_reduction <maximumf>, %821, %cst_269 [0] : vector<8x2x1xf32> to vector<2x1xf32>
    %823 = vector.shape_cast %822 : vector<2x1xf32> to vector<1x2x1xf32>
    %824 = vector.broadcast %823 : vector<1x2x1xf32> to vector<8x2x1xf32>
    %825 = arith.subf %821, %824 : vector<8x2x1xf32>
    %826 = math.exp %825 : vector<8x2x1xf32>
    %cst_270 = arith.constant dense<0.000000e+00> : vector<2x1xf32>
    %827 = vector.multi_reduction <add>, %826, %cst_270 [0] : vector<8x2x1xf32> to vector<2x1xf32>
    %828 = vector.shape_cast %827 : vector<2x1xf32> to vector<1x2x1xf32>
    %829 = tpu.reciprocal %828 {approx = true} : vector<1x2x1xf32> -> vector<1x2x1xf32>
    %830 = vector.broadcast %829 : vector<1x2x1xf32> to vector<8x2x1xf32>
    %831 = arith.mulf %826, %830 : vector<8x2x1xf32>
    %832 = vector.broadcast %831 : vector<8x2x1xf32> to vector<8x2x16xf32>
    %833 = arith.mulf %832, %415 : vector<8x2x16xf32>
    %cst_271 = arith.constant dense<0.000000e+00> : vector<2x16xf32>
    %834 = vector.multi_reduction <add>, %833, %cst_271 [0] : vector<8x2x16xf32> to vector<2x16xf32>
    %835 = vector.broadcast %831 : vector<8x2x1xf32> to vector<8x2x16xf32>
    %836 = arith.mulf %835, %416 : vector<8x2x16xf32>
    %cst_272 = arith.constant dense<0.000000e+00> : vector<2x16xf32>
    %837 = vector.multi_reduction <add>, %836, %cst_272 [0] : vector<8x2x16xf32> to vector<2x16xf32>
    %838 = vector.extract_strided_slice %12 {offsets = [0, 0], sizes = [16, 32], strides = [1, 1]} : vector<32x32xf32> to vector<16x32xf32>
    %cst_273 = arith.constant dense<0.000000e+00> : vector<2x32xf32>
    %839 = tpu.matmul %834, %838, %cst_273 {dimension_numbers = #tpu.dot_dimension_numbers<[1], [0], [0], [1], [0, 0, 1, 1], [], []>} : vector<2x16xf32>, vector<16x32xf32>, vector<2x32xf32> -> vector<2x32xf32>
    %840 = arith.addf %812, %839 : vector<2x32xf32>
    %841 = vector.extract_strided_slice %12 {offsets = [16, 0], sizes = [16, 32], strides = [1, 1]} : vector<32x32xf32> to vector<16x32xf32>
    %cst_274 = arith.constant dense<0.000000e+00> : vector<2x32xf32>
    %842 = tpu.matmul %837, %841, %cst_274 {dimension_numbers = #tpu.dot_dimension_numbers<[1], [0], [0], [1], [0, 0, 1, 1], [], []>} : vector<2x16xf32>, vector<16x32xf32>, vector<2x32xf32> -> vector<2x32xf32>
    %843 = arith.addf %840, %842 : vector<2x32xf32>
    %844 = vector.broadcast %13 : vector<1x32xf32> to vector<2x32xf32>
    %845 = arith.addf %843, %844 : vector<2x32xf32>
    %846 = math.tanh %845 : vector<2x32xf32>
    %cst_275 = arith.constant dense<0.000000e+00> : vector<2x32xf32>
    %847 = tpu.matmul %846, %14, %cst_275 {dimension_numbers = #tpu.dot_dimension_numbers<[1], [0], [0], [1], [0, 0, 1, 1], [], []>} : vector<2x32xf32>, vector<32x32xf32>, vector<2x32xf32> -> vector<2x32xf32>
    %848 = vector.broadcast %15 : vector<1x32xf32> to vector<2x32xf32>
    %849 = arith.addf %847, %848 : vector<2x32xf32>
    %cst_276 = arith.constant dense<0xFF800000> : vector<2xf32>
    %850 = vector.multi_reduction <maximumf>, %849, %cst_276 [1] : vector<2x32xf32> to vector<2xf32>
    %851 = vector.shape_cast %850 : vector<2xf32> to vector<2x1xf32>
    %852 = vector.broadcast %851 : vector<2x1xf32> to vector<2x32xf32>
    %853 = arith.subf %849, %852 : vector<2x32xf32>
    %854 = math.exp %853 : vector<2x32xf32>
    %cst_277 = arith.constant dense<0.000000e+00> : vector<2xf32>
    %855 = vector.multi_reduction <add>, %854, %cst_277 [1] : vector<2x32xf32> to vector<2xf32>
    %856 = vector.shape_cast %855 : vector<2xf32> to vector<2x1xf32>
    %857 = tpu.reciprocal %856 {approx = true} : vector<2x1xf32> -> vector<2x1xf32>
    %858 = vector.broadcast %857 : vector<2x1xf32> to vector<2x32xf32>
    %859 = arith.mulf %854, %858 : vector<2x32xf32>
    %c4_278 = arith.constant 4 : index
    %c0_279 = arith.constant 0 : index
    %c0_280 = arith.constant 0 : index
    %860 = vector.load %arg19[%c4_278, %c0_279, %c0_280] : memref<6x2x32xf32, #tpu.memory_space<vmem>>, vector<1x2x32xf32>
    %861 = vector.shape_cast %860 : vector<1x2x32xf32> to vector<2x32xf32>
    %862 = vector.shape_cast %859 : vector<2x32xf32> to vector<1x2x32xf32>
    tpu.vector_store %arg19[%c4_278, %c0_279, %c0_280], %862 {strides = array<i32>} : memref<6x2x32xf32, #tpu.memory_space<vmem>>, vector<1x2x32xf32>,
    %c5_281 = arith.constant 5 : index
    %c0_282 = arith.constant 0 : index
    %c0_283 = arith.constant 0 : index
    %863 = vector.load %arg1[%c5_281, %c0_282, %c0_283] : memref<6x2x96xf32, #tpu.memory_space<vmem>>, vector<1x2x96xf32>
    %864 = vector.shape_cast %863 : vector<1x2x96xf32> to vector<2x96xf32>
    %cst_284 = arith.constant dense<0.000000e+00> : vector<2x96xf32>
    %865 = tpu.matmul %846, %8, %cst_284 {dimension_numbers = #tpu.dot_dimension_numbers<[1], [0], [0], [1], [0, 0, 1, 1], [], []>} : vector<2x32xf32>, vector<32x96xf32>, vector<2x96xf32> -> vector<2x96xf32>
    %866 = arith.addf %864, %865 : vector<2x96xf32>
    %cst_285 = arith.constant dense<0.000000e+00> : vector<2x96xf32>
    %867 = tpu.matmul %806, %9, %cst_285 {dimension_numbers = #tpu.dot_dimension_numbers<[1], [0], [0], [1], [0, 0, 1, 1], [], []>} : vector<2x32xf32>, vector<32x96xf32>, vector<2x96xf32> -> vector<2x96xf32>
    %868 = vector.broadcast %10 : vector<1x96xf32> to vector<2x96xf32>
    %869 = arith.addf %867, %868 : vector<2x96xf32>
    %870 = vector.extract_strided_slice %866 {offsets = [0, 0], sizes = [2, 32], strides = [1, 1]} : vector<2x96xf32> to vector<2x32xf32>
    %871 = vector.extract_strided_slice %869 {offsets = [0, 0], sizes = [2, 32], strides = [1, 1]} : vector<2x96xf32> to vector<2x32xf32>
    %872 = arith.addf %870, %871 : vector<2x32xf32>
    %873 = arith.negf %872 : vector<2x32xf32>
    %874 = math.exp %873 : vector<2x32xf32>
    %cst_286 = arith.constant 1.000000e+00 : f32
    %875 = vector.broadcast %cst_286 : f32 to vector<2x32xf32>
    %876 = arith.addf %875, %874 : vector<2x32xf32>
    %877 = arith.divf %875, %876 : vector<2x32xf32>
    %878 = vector.extract_strided_slice %866 {offsets = [0, 32], sizes = [2, 32], strides = [1, 1]} : vector<2x96xf32> to vector<2x32xf32>
    %879 = vector.extract_strided_slice %869 {offsets = [0, 32], sizes = [2, 32], strides = [1, 1]} : vector<2x96xf32> to vector<2x32xf32>
    %880 = arith.addf %878, %879 : vector<2x32xf32>
    %881 = arith.negf %880 : vector<2x32xf32>
    %882 = math.exp %881 : vector<2x32xf32>
    %cst_287 = arith.constant 1.000000e+00 : f32
    %883 = vector.broadcast %cst_287 : f32 to vector<2x32xf32>
    %884 = arith.addf %883, %882 : vector<2x32xf32>
    %885 = arith.divf %883, %884 : vector<2x32xf32>
    %886 = vector.extract_strided_slice %866 {offsets = [0, 64], sizes = [2, 32], strides = [1, 1]} : vector<2x96xf32> to vector<2x32xf32>
    %887 = vector.extract_strided_slice %869 {offsets = [0, 64], sizes = [2, 32], strides = [1, 1]} : vector<2x96xf32> to vector<2x32xf32>
    %888 = arith.mulf %877, %887 : vector<2x32xf32>
    %889 = arith.addf %886, %888 : vector<2x32xf32>
    %890 = math.tanh %889 : vector<2x32xf32>
    %cst_288 = arith.constant 1.000000e+00 : f32
    %891 = vector.broadcast %cst_288 : f32 to vector<2x32xf32>
    %892 = arith.subf %891, %885 : vector<2x32xf32>
    %893 = arith.mulf %892, %890 : vector<2x32xf32>
    %894 = arith.mulf %885, %806 : vector<2x32xf32>
    %895 = arith.addf %893, %894 : vector<2x32xf32>
    %cst_289 = arith.constant dense<0.000000e+00> : vector<2x64xf32>
    %896 = tpu.matmul %895, %11, %cst_289 {dimension_numbers = #tpu.dot_dimension_numbers<[1], [0], [0], [1], [0, 0, 1, 1], [], []>} : vector<2x32xf32>, vector<32x64xf32>, vector<2x64xf32> -> vector<2x64xf32>
    %897 = vector.extract_strided_slice %896 {offsets = [0, 0], sizes = [2, 16], strides = [1, 1]} : vector<2x64xf32> to vector<2x16xf32>
    %898 = vector.shape_cast %897 : vector<2x16xf32> to vector<1x2x16xf32>
    %899 = vector.extract_strided_slice %896 {offsets = [0, 16], sizes = [2, 16], strides = [1, 1]} : vector<2x64xf32> to vector<2x16xf32>
    %900 = vector.shape_cast %899 : vector<2x16xf32> to vector<1x2x16xf32>
    %901 = vector.extract_strided_slice %896 {offsets = [0, 32], sizes = [2, 32], strides = [1, 1]} : vector<2x64xf32> to vector<2x32xf32>
    %902 = vector.broadcast %898 : vector<1x2x16xf32> to vector<8x2x16xf32>
    %903 = arith.mulf %415, %902 : vector<8x2x16xf32>
    %cst_290 = arith.constant dense<0.000000e+00> : vector<8x2xf32>
    %904 = vector.multi_reduction <add>, %903, %cst_290 [2] : vector<8x2x16xf32> to vector<8x2xf32>
    %905 = vector.shape_cast %904 : vector<8x2xf32> to vector<8x2x1xf32>
    %906 = vector.broadcast %900 : vector<1x2x16xf32> to vector<8x2x16xf32>
    %907 = arith.mulf %416, %906 : vector<8x2x16xf32>
    %cst_291 = arith.constant dense<0.000000e+00> : vector<8x2xf32>
    %908 = vector.multi_reduction <add>, %907, %cst_291 [2] : vector<8x2x16xf32> to vector<8x2xf32>
    %909 = vector.shape_cast %908 : vector<8x2xf32> to vector<8x2x1xf32>
    %910 = arith.addf %905, %909 : vector<8x2x1xf32>
    %cst_292 = arith.constant dense<0xFF800000> : vector<2x1xf32>
    %911 = vector.multi_reduction <maximumf>, %910, %cst_292 [0] : vector<8x2x1xf32> to vector<2x1xf32>
    %912 = vector.shape_cast %911 : vector<2x1xf32> to vector<1x2x1xf32>
    %913 = vector.broadcast %912 : vector<1x2x1xf32> to vector<8x2x1xf32>
    %914 = arith.subf %910, %913 : vector<8x2x1xf32>
    %915 = math.exp %914 : vector<8x2x1xf32>
    %cst_293 = arith.constant dense<0.000000e+00> : vector<2x1xf32>
    %916 = vector.multi_reduction <add>, %915, %cst_293 [0] : vector<8x2x1xf32> to vector<2x1xf32>
    %917 = vector.shape_cast %916 : vector<2x1xf32> to vector<1x2x1xf32>
    %918 = tpu.reciprocal %917 {approx = true} : vector<1x2x1xf32> -> vector<1x2x1xf32>
    %919 = vector.broadcast %918 : vector<1x2x1xf32> to vector<8x2x1xf32>
    %920 = arith.mulf %915, %919 : vector<8x2x1xf32>
    %921 = vector.broadcast %920 : vector<8x2x1xf32> to vector<8x2x16xf32>
    %922 = arith.mulf %921, %415 : vector<8x2x16xf32>
    %cst_294 = arith.constant dense<0.000000e+00> : vector<2x16xf32>
    %923 = vector.multi_reduction <add>, %922, %cst_294 [0] : vector<8x2x16xf32> to vector<2x16xf32>
    %924 = vector.broadcast %920 : vector<8x2x1xf32> to vector<8x2x16xf32>
    %925 = arith.mulf %924, %416 : vector<8x2x16xf32>
    %cst_295 = arith.constant dense<0.000000e+00> : vector<2x16xf32>
    %926 = vector.multi_reduction <add>, %925, %cst_295 [0] : vector<8x2x16xf32> to vector<2x16xf32>
    %927 = vector.extract_strided_slice %12 {offsets = [0, 0], sizes = [16, 32], strides = [1, 1]} : vector<32x32xf32> to vector<16x32xf32>
    %cst_296 = arith.constant dense<0.000000e+00> : vector<2x32xf32>
    %928 = tpu.matmul %923, %927, %cst_296 {dimension_numbers = #tpu.dot_dimension_numbers<[1], [0], [0], [1], [0, 0, 1, 1], [], []>} : vector<2x16xf32>, vector<16x32xf32>, vector<2x32xf32> -> vector<2x32xf32>
    %929 = arith.addf %901, %928 : vector<2x32xf32>
    %930 = vector.extract_strided_slice %12 {offsets = [16, 0], sizes = [16, 32], strides = [1, 1]} : vector<32x32xf32> to vector<16x32xf32>
    %cst_297 = arith.constant dense<0.000000e+00> : vector<2x32xf32>
    %931 = tpu.matmul %926, %930, %cst_297 {dimension_numbers = #tpu.dot_dimension_numbers<[1], [0], [0], [1], [0, 0, 1, 1], [], []>} : vector<2x16xf32>, vector<16x32xf32>, vector<2x32xf32> -> vector<2x32xf32>
    %932 = arith.addf %929, %931 : vector<2x32xf32>
    %933 = vector.broadcast %13 : vector<1x32xf32> to vector<2x32xf32>
    %934 = arith.addf %932, %933 : vector<2x32xf32>
    %935 = math.tanh %934 : vector<2x32xf32>
    %cst_298 = arith.constant dense<0.000000e+00> : vector<2x32xf32>
    %936 = tpu.matmul %935, %14, %cst_298 {dimension_numbers = #tpu.dot_dimension_numbers<[1], [0], [0], [1], [0, 0, 1, 1], [], []>} : vector<2x32xf32>, vector<32x32xf32>, vector<2x32xf32> -> vector<2x32xf32>
    %937 = vector.broadcast %15 : vector<1x32xf32> to vector<2x32xf32>
    %938 = arith.addf %936, %937 : vector<2x32xf32>
    %cst_299 = arith.constant dense<0xFF800000> : vector<2xf32>
    %939 = vector.multi_reduction <maximumf>, %938, %cst_299 [1] : vector<2x32xf32> to vector<2xf32>
    %940 = vector.shape_cast %939 : vector<2xf32> to vector<2x1xf32>
    %941 = vector.broadcast %940 : vector<2x1xf32> to vector<2x32xf32>
    %942 = arith.subf %938, %941 : vector<2x32xf32>
    %943 = math.exp %942 : vector<2x32xf32>
    %cst_300 = arith.constant dense<0.000000e+00> : vector<2xf32>
    %944 = vector.multi_reduction <add>, %943, %cst_300 [1] : vector<2x32xf32> to vector<2xf32>
    %945 = vector.shape_cast %944 : vector<2xf32> to vector<2x1xf32>
    %946 = tpu.reciprocal %945 {approx = true} : vector<2x1xf32> -> vector<2x1xf32>
    %947 = vector.broadcast %946 : vector<2x1xf32> to vector<2x32xf32>
    %948 = arith.mulf %943, %947 : vector<2x32xf32>
    %c5_301 = arith.constant 5 : index
    %c0_302 = arith.constant 0 : index
    %c0_303 = arith.constant 0 : index
    %949 = vector.load %arg19[%c5_301, %c0_302, %c0_303] : memref<6x2x32xf32, #tpu.memory_space<vmem>>, vector<1x2x32xf32>
    %950 = vector.shape_cast %949 : vector<1x2x32xf32> to vector<2x32xf32>
    %951 = vector.shape_cast %948 : vector<2x32xf32> to vector<1x2x32xf32>
    tpu.vector_store %arg19[%c5_301, %c0_302, %c0_303], %951 {strides = array<i32>} : memref<6x2x32xf32, #tpu.memory_space<vmem>>, vector<1x2x32xf32>,
    return
  }
}

</mosaic_0001>

<llo_original>
// kernel: hred_forward.1
$region0: #{hred_forward.1}
  #allocation0 [shape = 'u32[]', space=smem, size = 0x4, offset = 0x4, fixed_abs, tag = 'smem constant byte address 0x4 - core index']
  #allocation1 [shape = 'u32[144,128]{1,0:T(1,128)}', space=vmem, size = 0x12000, scoped, tag = 'internal scratch']
  #allocation2 [shape = 'f32[8,2,16]{2,1,0:T(2,128)}', space=vmem, size = 0x2000, scoped, tag = 'scratch operand']
  #allocation3 [shape = 'f32[8,2,16]{2,1,0:T(2,128)}', space=vmem, size = 0x2000, scoped, tag = 'scratch operand']
  %s0 = inlined_call_operand.vmem [shape: f32[8,4,96], index: 0, kind: input, shape index: {}]
  %s1 = inlined_call_operand.vmem [shape: f32[6,2,96], index: 1, kind: input, shape index: {}]
  %s2 = inlined_call_operand.vmem [shape: f32[2,2,4], index: 2, kind: input, shape index: {}]
  %s3 = inlined_call_operand.vmem [shape: f32[32,96], index: 3, kind: input, shape index: {}]
  %s4 = inlined_call_operand.vmem [shape: f32[1,96], index: 4, kind: input, shape index: {}]
  %s5 = inlined_call_operand.vmem [shape: f32[32,96], index: 5, kind: input, shape index: {}]
  %s6 = inlined_call_operand.vmem [shape: f32[32,96], index: 6, kind: input, shape index: {}]
  %s7 = inlined_call_operand.vmem [shape: f32[1,96], index: 7, kind: input, shape index: {}]
  %s8 = inlined_call_operand.vmem [shape: f32[1,96], index: 8, kind: input, shape index: {}]
  %s9 = inlined_call_operand.vmem [shape: f32[32,32], index: 9, kind: input, shape index: {}]
  %s10 = inlined_call_operand.vmem [shape: f32[1,32], index: 10, kind: input, shape index: {}]
  %s11 = inlined_call_operand.vmem [shape: f32[32,96], index: 11, kind: input, shape index: {}]
  %s12 = inlined_call_operand.vmem [shape: f32[32,96], index: 12, kind: input, shape index: {}]
  %s13 = inlined_call_operand.vmem [shape: f32[1,96], index: 13, kind: input, shape index: {}]
  %s14 = inlined_call_operand.vmem [shape: f32[32,64], index: 14, kind: input, shape index: {}]
  %s15 = inlined_call_operand.vmem [shape: f32[32,32], index: 15, kind: input, shape index: {}]
  %s16 = inlined_call_operand.vmem [shape: f32[1,32], index: 16, kind: input, shape index: {}]
  %s17 = inlined_call_operand.vmem [shape: f32[32,32], index: 17, kind: input, shape index: {}]
  %s18 = inlined_call_operand.vmem [shape: f32[1,32], index: 18, kind: input, shape index: {}]
  %s19 = inlined_call_operand.hbm [shape: f32[6,2,32], index: 19, kind: output, shape index: {}]
  %s20 = sld [smem:[#allocation0]]
  $region86: #{hred_forward.1} parent=0
    _
  %s22 = ssub.s32 1, %s20
  %s23 = scalar_select 0, %s22, %s20
  $region1: #{hred_forward.1} parent=0
    #allocation4 [shape = 'u8[6144]{0}', space=vmem, size = 0x1800, scoped, tag = 'output window, operand 0, single buffered']
    #allocation5 [shape = 's32[1]{0}', space=sflag, size = 0x4, scoped, tag = 'scoped memory for hred_forward.1']
    %24 = vsyncpa [#allocation5], 0
    // Predicated region
    $region2: #{hred_forward.1} parent=1 // pred_check
      _
    $region3: #{hred_forward.1} parent=1 // pred_check_branch
      %26 = sbr.rel (0) target = $region5
    $region4: #{hred_forward.1} parent=1 // pred_region
      _
    $region5: #{hred_forward.1} parent=1 // pred_fallthru
      _
    // Predicated region
    $region6: #{hred_forward.1} parent=1 // pred_check
      _
    $region7: #{hred_forward.1} parent=1 // pred_check_branch
      %28 = sbr.rel (0) target = $region9
    $region8: #{hred_forward.1} parent=1 // pred_region
      _
    $region9: #{hred_forward.1} parent=1 // pred_fallthru
      _
    // Predicated region
    $region10: #{hred_forward.1} parent=1 // pred_check
      _
    $region11: #{hred_forward.1} parent=1 // pred_check_branch
      %30 = sbr.rel (0) target = $region13
    $region12: #{hred_forward.1} parent=1 // pred_region
      _
    $region13: #{hred_forward.1} parent=1 // pred_fallthru
      _
    // Predicated region
    $region14: #{hred_forward.1} parent=1 // pred_check
      _
    $region15: #{hred_forward.1} parent=1 // pred_check_branch
      %32 = sbr.rel (0) target = $region17
    $region16: #{hred_forward.1} parent=1 // pred_region
      _
    $region17: #{hred_forward.1} parent=1 // pred_fallthru
      _
    // Predicated region
    $region18: #{hred_forward.1} parent=1 // pred_check
      _
    $region19: #{hred_forward.1} parent=1 // pred_check_branch
      %34 = sbr.rel (0) target = $region21
    $region20: #{hred_forward.1} parent=1 // pred_region
      _
    $region21: #{hred_forward.1} parent=1 // pred_fallthru
      _
    // Predicated region
    $region22: #{hred_forward.1} parent=1 // pred_check
      _
    $region23: #{hred_forward.1} parent=1 // pred_check_branch
      %36 = sbr.rel (0) target = $region25
    $region24: #{hred_forward.1} parent=1 // pred_region
      _
    $region25: #{hred_forward.1} parent=1 // pred_fallthru
      _
    // Predicated region
    $region26: #{hred_forward.1} parent=1 // pred_check
      _
    $region27: #{hred_forward.1} parent=1 // pred_check_branch
      %38 = sbr.rel (0) target = $region29
    $region28: #{hred_forward.1} parent=1 // pred_region
      _
    $region29: #{hred_forward.1} parent=1 // pred_fallthru
      _
    // Predicated region
    $region30: #{hred_forward.1} parent=1 // pred_check
      _
    $region31: #{hred_forward.1} parent=1 // pred_check_branch
      %40 = sbr.rel (0) target = $region33
    $region32: #{hred_forward.1} parent=1 // pred_region
      _
    $region33: #{hred_forward.1} parent=1 // pred_fallthru
      _
    // Predicated region
    $region34: #{hred_forward.1} parent=1 // pred_check
      _
    $region35: #{hred_forward.1} parent=1 // pred_check_branch
      %42 = sbr.rel (0) target = $region37
    $region36: #{hred_forward.1} parent=1 // pred_region
      _
    $region37: #{hred_forward.1} parent=1 // pred_fallthru
      _
    // Predicated region
    $region38: #{hred_forward.1} parent=1 // pred_check
      _
    $region39: #{hred_forward.1} parent=1 // pred_check_branch
      %44 = sbr.rel (0) target = $region41
    $region40: #{hred_forward.1} parent=1 // pred_region
      _
    $region41: #{hred_forward.1} parent=1 // pred_fallthru
      _
    // Predicated region
    $region42: #{hred_forward.1} parent=1 // pred_check
      _
    $region43: #{hred_forward.1} parent=1 // pred_check_branch
      %46 = sbr.rel (0) target = $region45
    $region44: #{hred_forward.1} parent=1 // pred_region
      _
    $region45: #{hred_forward.1} parent=1 // pred_fallthru
      _
    // Predicated region
    $region46: #{hred_forward.1} parent=1 // pred_check
      _
    $region47: #{hred_forward.1} parent=1 // pred_check_branch
      %48 = sbr.rel (0) target = $region49
    $region48: #{hred_forward.1} parent=1 // pred_region
      _
    $region49: #{hred_forward.1} parent=1 // pred_fallthru
      _
    // Predicated region
    $region50: #{hred_forward.1} parent=1 // pred_check
      _
    $region51: #{hred_forward.1} parent=1 // pred_check_branch
      %50 = sbr.rel (0) target = $region53
    $region52: #{hred_forward.1} parent=1 // pred_region
      _
    $region53: #{hred_forward.1} parent=1 // pred_fallthru
      _
    // Predicated region
    $region54: #{hred_forward.1} parent=1 // pred_check
      _
    $region55: #{hred_forward.1} parent=1 // pred_check_branch
      %52 = sbr.rel (0) target = $region57
    $region56: #{hred_forward.1} parent=1 // pred_region
      _
    $region57: #{hred_forward.1} parent=1 // pred_fallthru
      _
    // Predicated region
    $region58: #{hred_forward.1} parent=1 // pred_check
      _
    $region59: #{hred_forward.1} parent=1 // pred_check_branch
      %54 = sbr.rel (0) target = $region61
    $region60: #{hred_forward.1} parent=1 // pred_region
      _
    $region61: #{hred_forward.1} parent=1 // pred_fallthru
      _
    // Predicated region
    $region62: #{hred_forward.1} parent=1 // pred_check
      _
    $region63: #{hred_forward.1} parent=1 // pred_check_branch
      %56 = sbr.rel (0) target = $region65
    $region64: #{hred_forward.1} parent=1 // pred_region
      _
    $region65: #{hred_forward.1} parent=1 // pred_fallthru
      _
    // Predicated region
    $region66: #{hred_forward.1} parent=1 // pred_check
      _
    $region67: #{hred_forward.1} parent=1 // pred_check_branch
      %58 = sbr.rel (0) target = $region69
    $region68: #{hred_forward.1} parent=1 // pred_region
      _
    $region69: #{hred_forward.1} parent=1 // pred_fallthru
      _
    // Predicated region
    $region70: #{hred_forward.1} parent=1 // pred_check
      _
    $region71: #{hred_forward.1} parent=1 // pred_check_branch
      %60 = sbr.rel (0) target = $region73
    $region72: #{hred_forward.1} parent=1 // pred_region
      _
    $region73: #{hred_forward.1} parent=1 // pred_fallthru
      _
    // Predicated region
    $region74: #{hred_forward.1} parent=1 // pred_check
      _
    $region75: #{hred_forward.1} parent=1 // pred_check_branch
      %62 = sbr.rel (0) target = $region77
    $region76: #{hred_forward.1} parent=1 // pred_region
      _
    $region77: #{hred_forward.1} parent=1 // pred_fallthru
      _
    %v63 = vld [vmem:[%s3] sm:$0xff]
    %v64 = vld [vmem:[%s3 + $0x8] sm:$0xff]
    %v65 = vld [vmem:[%s3 + $0x10] sm:$0xff]
    %v66 = vld [vmem:[%s3 + $0x18] sm:$0xff]
    %v67 = vld [vmem:[%s4] sm:$0x1]
    %v68 = vld [vmem:[%s5] sm:$0xff]
    %v69 = vld [vmem:[%s5 + $0x8] sm:$0xff]
    %v70 = vld [vmem:[%s5 + $0x10] sm:$0xff]
    %v71 = vld [vmem:[%s5 + $0x18] sm:$0xff]
    %v72 = vld [vmem:[%s6] sm:$0xff]
    %v73 = vld [vmem:[%s6 + $0x8] sm:$0xff]
    %v74 = vld [vmem:[%s6 + $0x10] sm:$0xff]
    %v75 = vld [vmem:[%s6 + $0x18] sm:$0xff]
    %v76 = vld [vmem:[%s7] sm:$0x1]
    %v77 = vld [vmem:[%s8] sm:$0x1]
    %v78 = vld [vmem:[%s9] sm:$0xff]
    %v79 = vld [vmem:[%s9 + $0x8] sm:$0xff]
    %v80 = vld [vmem:[%s9 + $0x10] sm:$0xff]
    %v81 = vld [vmem:[%s9 + $0x18] sm:$0xff]
    %v82 = vld [vmem:[%s10] sm:$0x1]
    %v83 = vld [vmem:[%s11] sm:$0xff]
    %v84 = vld [vmem:[%s11 + $0x8] sm:$0xff]
    %v85 = vld [vmem:[%s11 + $0x10] sm:$0xff]
    %v86 = vld [vmem:[%s11 + $0x18] sm:$0xff]
    %v87 = vld [vmem:[%s12] sm:$0xff]
    %v88 = vld [vmem:[%s12 + $0x8] sm:$0xff]
    %v89 = vld [vmem:[%s12 + $0x10] sm:$0xff]
    %v90 = vld [vmem:[%s12 + $0x18] sm:$0xff]
    %v91 = vld [vmem:[%s13] sm:$0x1]
    %v92 = vld [vmem:[%s14] sm:$0xff]
    %v93 = vld [vmem:[%s14 + $0x8] sm:$0xff]
    %v94 = vld [vmem:[%s14 + $0x10] sm:$0xff]
    %v95 = vld [vmem:[%s14 + $0x18] sm:$0xff]
    %v96 = vld [vmem:[%s15] sm:$0xff]
    %v97 = vld [vmem:[%s15 + $0x8] sm:$0xff]
    %v98 = vld [vmem:[%s15 + $0x10] sm:$0xff]
    %v99 = vld [vmem:[%s15 + $0x18] sm:$0xff]
    %v100 = vld [vmem:[%s16] sm:$0x1]
    %v101 = vld [vmem:[%s17] sm:$0xff]
    %v102 = vld [vmem:[%s17 + $0x8] sm:$0xff]
    %v103 = vld [vmem:[%s17 + $0x10] sm:$0xff]
    %v104 = vld [vmem:[%s17 + $0x18] sm:$0xff]
    %v105 = vld [vmem:[%s18] sm:$0x1]
    %s106 = scalar_lea.vmem %s2, 2
    %v107 = vld [vmem:[%s106] sm:$0x3]
    %v109 = vlaneseq
    %v110 = vshrl.u32 %v109, 7
    %v111 = vsub.s32 0, %v110
    %v112 = vrot.slane %v67, %v111
    %vm114 = vcmask 261120
    %v116 = vsel %vm114, 0.0, 0
    %118 = vmatprep.subr.mxu0 0.0
    %119 = vmatpush1.msra.mxu0 %v63
    %120 = vmatprep.subr.mxu0 0.0
    %121 = vmatpush1.msra.mxu0 %v64
    %122 = vmatprep.subr.mxu0 0.0
    %123 = vmatpush1.msra.mxu0 %v65
    %124 = vmatprep.subr.mxu0 0.0
    %125 = vmatpush1.msra.mxu0 %v66
    %126 = vmatprep.subr.mxu0 0.0
    %127 = vmatpush1.msra.mxu0 0.0
    %128 = vmatprep.subr.mxu0 0.0
    %129 = vmatpush1.msra.mxu0 0.0
    %130 = vmatprep.subr.mxu0 0.0
    %131 = vmatpush1.msra.mxu0 0.0
    %132 = vmatprep.subr.mxu0 0.0
    %133 = vmatpush1.msra.mxu0 0.0
    %134 = vmatprep.subr.mxu0 0.0
    %135 = vmatpush1.msra.mxu0 0.0
    %136 = vmatprep.subr.mxu0 0.0
    %137 = vmatpush1.msra.mxu0 0.0
    %138 = vmatprep.subr.mxu0 0.0
    %139 = vmatpush1.msra.mxu0 0.0
    %140 = vmatprep.subr.mxu0 0.0
    %141 = vmatpush1.msra.mxu0 0.0
    %142 = vmatprep.subr.mxu0 0.0
    %143 = vmatpush1.msra.mxu0 0.0
    %144 = vmatprep.subr.mxu0 0.0
    %145 = vmatpush1.msra.mxu0 0.0
    %146 = vmatprep.subr.mxu0 0.0
    %147 = vmatpush1.msra.mxu0 0.0
    %148 = vmatprep.subr.mxu0 0.0
    %149 = vmatpush1.msra.mxu0 0.0
    %150 = vmatprep.subr.mxu0 0.0
    %151 = vmatpush1.msra.mxu0 0.0
    %152 = vmatprep.subr.mxu0 0.0
    %153 = vmatpush1.msra.mxu0 0.0
    %154 = vmatprep.subr.mxu0 0.0
    %155 = vmatpush1.msra.mxu0 0.0
    %156 = vmatprep.subr.mxu0 0.0
    %157 = vmatpush1.msra.mxu0 0.0
    %158 = vmatprep.subr.mxu0 0.0
    %159 = vmatpush1.msra.mxu0 0.0
    %160 = vmatprep.subr.mxu0 0.0
    %161 = vmatpush1.msra.mxu0 0.0
    %162 = vmatprep.subr.mxu0 0.0
    %163 = vmatpush1.msra.mxu0 0.0
    %164 = vmatprep.subr.mxu0 0.0
    %165 = vmatpush1.msra.mxu0 0.0
    %166 = vmatprep.subr.mxu0 0.0
    %167 = vmatpush1.msra.mxu0 0.0
    %168 = vmatprep.subr.mxu0 0.0
    %169 = vmatpush1.msra.mxu0 0.0
    %170 = vmatprep.subr.mxu0 0.0
    %171 = vmatpush1.msra.mxu0 0.0
    %172 = vmatprep.subr.mxu0 0.0
    %173 = vmatpush1.msra.mxu0 0.0
    %174 = vmatprep.subr.mxu0 0.0
    %175 = vmatpush1.msra.mxu0 0.0
    %176 = vmatprep.subr.mxu0 0.0
    %177 = vmatpush1.msra.mxu0 0.0
    %178 = vmatprep.subr.mxu0 0.0
    %179 = vmatpush1.msra.mxu0 0.0
    %180 = vmatprep.subr.mxu0 0.0
    %181 = vmatpush1.msra.mxu0 0.0
    %182 = vmatprep.mubr.f32.mxu0 0.0
    %183 = vmatmul.mubr.f32.gmra.mrb[0].mxu0 %v116
    %v184 = vpop.f32.mrb[0].mxu0
    %v185 = vadd.f32 %v112, %v184
    %v186 = vpop.f32.mrb[0].mxu0
    %187 = vdwg.mxu0
    %v188 = vld [vmem:[%s0] sm:$0xf]
    %v189 = vadd.f32 %v188, %v185
    %v190 = vxor.u32 %v189, 2147483648
    %v191 = vmul.f32 %v190, 1.442695
    %v192 = vpow.pop %v191
    %v193 = vadd.f32 %v192, 1.0
    %v194 = vrcp.pop %v193
    %v195 = vmul.f32 1.0, %v194
    %197 = vrot.lane.b32.xlu0 %v185, 64
    %v198 = vpop.permute.xlu0 %197
    %v200 = vmul.f32 %v195, %v198
    %202 = vrot.lane.b32.xlu0 %v200, 64
    %v203 = vpop.permute.xlu0 %202
    %v205 = vadd.f32 %v188, %v203
    %v206 = vtanh.pop %v205
    %v207 = vsub.f32 1.0, %v195
    %209 = vrot.lane.b32.xlu0 %v206, 96
    %v210 = vpop.permute.xlu0 %209
    %v212 = vmul.f32 %v207, %v210
    %v213 = vmul.f32 %v195, 0.0
    %v214 = vadd.f32 %v212, %v213
    %216 = vrot.lane.b32.xlu0 %v214, 96
    %v217 = vpop.permute.xlu0 %216
    %vm218 = vcmask 31744
    %v220 = vsel %vm218, %v107, 0
    %vm222 = vcmask 1043456
    %v223 = vsel %vm222, %v217, 0
    %225 = vmatprep.subr.mxu0 0.0
    %226 = vmatpush1.msra.mxu0 %v223
    %227 = vmatprep.subr.mxu0 0.0
    %228 = vmatpush1.msra.mxu0 0.0
    %229 = vmatprep.subr.mxu0 0.0
    %230 = vmatpush1.msra.mxu0 0.0
    %231 = vmatprep.subr.mxu0 0.0
    %232 = vmatpush1.msra.mxu0 0.0
    %233 = vmatprep.subr.mxu0 0.0
    %234 = vmatpush1.msra.mxu0 0.0
    %235 = vmatprep.subr.mxu0 0.0
    %236 = vmatpush1.msra.mxu0 0.0
    %237 = vmatprep.subr.mxu0 0.0
    %238 = vmatpush1.msra.mxu0 0.0
    %239 = vmatprep.subr.mxu0 0.0
    %240 = vmatpush1.msra.mxu0 0.0
    %241 = vmatprep.subr.mxu0 0.0
    %242 = vmatpush1.msra.mxu0 0.0
    %243 = vmatprep.subr.mxu0 0.0
    %244 = vmatpush1.msra.mxu0 0.0
    %245 = vmatprep.subr.mxu0 0.0
    %246 = vmatpush1.msra.mxu0 0.0
    %247 = vmatprep.subr.mxu0 0.0
    %248 = vmatpush1.msra.mxu0 0.0
    %249 = vmatprep.subr.mxu0 0.0
    %250 = vmatpush1.msra.mxu0 0.0
    %251 = vmatprep.subr.mxu0 0.0
    %252 = vmatpush1.msra.mxu0 0.0
    %253 = vmatprep.subr.mxu0 0.0
    %254 = vmatpush1.msra.mxu0 0.0
    %255 = vmatprep.subr.mxu0 0.0
    %256 = vmatpush1.msra.mxu0 0.0
    %257 = vmatprep.subr.mxu0 0.0
    %258 = vmatpush1.msra.mxu0 0.0
    %259 = vmatprep.subr.mxu0 0.0
    %260 = vmatpush1.msra.mxu0 0.0
    %261 = vmatprep.subr.mxu0 0.0
    %262 = vmatpush1.msra.mxu0 0.0
    %263 = vmatprep.subr.mxu0 0.0
    %264 = vmatpush1.msra.mxu0 0.0
    %265 = vmatprep.subr.mxu0 0.0
    %266 = vmatpush1.msra.mxu0 0.0
    %267 = vmatprep.subr.mxu0 0.0
    %268 = vmatpush1.msra.mxu0 0.0
    %269 = vmatprep.subr.mxu0 0.0
    %270 = vmatpush1.msra.mxu0 0.0
    %271 = vmatprep.subr.mxu0 0.0
    %272 = vmatpush1.msra.mxu0 0.0
    %273 = vmatprep.subr.mxu0 0.0
    %274 = vmatpush1.msra.mxu0 0.0
    %275 = vmatprep.subr.mxu0 0.0
    %276 = vmatpush1.msra.mxu0 0.0
    %277 = vmatprep.subr.mxu0 0.0
    %278 = vmatpush1.msra.mxu0 0.0
    %279 = vmatprep.subr.mxu0 0.0
    %280 = vmatpush1.msra.mxu0 0.0
    %281 = vmatprep.subr.mxu0 0.0
    %282 = vmatpush1.msra.mxu0 0.0
    %283 = vmatprep.subr.mxu0 0.0
    %284 = vmatpush1.msra.mxu0 0.0
    %285 = vmatprep.subr.mxu0 0.0
    %286 = vmatpush1.msra.mxu0 0.0
    %287 = vmatprep.subr.mxu0 0.0
    %288 = vmatpush1.msra.mxu0 0.0
    %289 = vmatprep.mubr.f32.mxu0 0.0
    %290 = vmatmul.mubr.f32.gmra.mrb[0].mxu0 %v220
    %v291 = vpop.f32.mrb[0].mxu0
    %v292 = vadd.f32 0.0, %v291
    %v293 = vpop.f32.mrb[0].mxu0
    %294 = vdwg.mxu0
    %vm295 = vcmask 123904
    %296 = vst.msk [vmem:[#allocation2] sm:$0x3] %vm295, %v292
    %298 = vrot.lane.b32.xlu0 %v292, 112
    %v299 = vpop.permute.xlu0 %298
    %s301 = scalar_lea.vmem [#allocation3], 14
    %302 = vst.msk [vmem:[%s301] sm:$0x3] %vm295, %v299
    %v303 = vsel %vm114, %v217, 0
    %305 = vmatprep.subr.mxu0 0.0
    %306 = vmatpush1.msra.mxu0 %v63
    %307 = vmatprep.subr.mxu0 0.0
    %308 = vmatpush1.msra.mxu0 %v64
    %309 = vmatprep.subr.mxu0 0.0
    %310 = vmatpush1.msra.mxu0 %v65
    %311 = vmatprep.subr.mxu0 0.0
    %312 = vmatpush1.msra.mxu0 %v66
    %313 = vmatprep.subr.mxu0 0.0
    %314 = vmatpush1.msra.mxu0 0.0
    %315 = vmatprep.subr.mxu0 0.0
    %316 = vmatpush1.msra.mxu0 0.0
    %317 = vmatprep.subr.mxu0 0.0
    %318 = vmatpush1.msra.mxu0 0.0
    %319 = vmatprep.subr.mxu0 0.0
    %320 = vmatpush1.msra.mxu0 0.0
    %321 = vmatprep.subr.mxu0 0.0
    %322 = vmatpush1.msra.mxu0 0.0
    %323 = vmatprep.subr.mxu0 0.0
    %324 = vmatpush1.msra.mxu0 0.0
    %325 = vmatprep.subr.mxu0 0.0
    %326 = vmatpush1.msra.mxu0 0.0
    %327 = vmatprep.subr.mxu0 0.0
    %328 = vmatpush1.msra.mxu0 0.0
    %329 = vmatprep.subr.mxu0 0.0
    %330 = vmatpush1.msra.mxu0 0.0
    %331 = vmatprep.subr.mxu0 0.0
    %332 = vmatpush1.msra.mxu0 0.0
    %333 = vmatprep.subr.mxu0 0.0
    %334 = vmatpush1.msra.mxu0 0.0
    %335 = vmatprep.subr.mxu0 0.0
    %336 = vmatpush1.msra.mxu0 0.0
    %337 = vmatprep.subr.mxu0 0.0
    %338 = vmatpush1.msra.mxu0 0.0
    %339 = vmatprep.subr.mxu0 0.0
    %340 = vmatpush1.msra.mxu0 0.0
    %341 = vmatprep.subr.mxu0 0.0
    %342 = vmatpush1.msra.mxu0 0.0
    %343 = vmatprep.subr.mxu0 0.0
    %344 = vmatpush1.msra.mxu0 0.0
    %345 = vmatprep.subr.mxu0 0.0
    %346 = vmatpush1.msra.mxu0 0.0
    %347 = vmatprep.subr.mxu0 0.0
    %348 = vmatpush1.msra.mxu0 0.0
    %349 = vmatprep.subr.mxu0 0.0
    %350 = vmatpush1.msra.mxu0 0.0
    %351 = vmatprep.subr.mxu0 0.0
    %352 = vmatpush1.msra.mxu0 0.0
    %353 = vmatprep.subr.mxu0 0.0
    %354 = vmatpush1.msra.mxu0 0.0
    %355 = vmatprep.subr.mxu0 0.0
    %356 = vmatpush1.msra.mxu0 0.0
    %357 = vmatprep.subr.mxu0 0.0
    %358 = vmatpush1.msra.mxu0 0.0
    %359 = vmatprep.subr.mxu0 0.0
    %360 = vmatpush1.msra.mxu0 0.0
    %361 = vmatprep.subr.mxu0 0.0
    %362 = vmatpush1.msra.mxu0 0.0
    %363 = vmatprep.subr.mxu0 0.0
    %364 = vmatpush1.msra.mxu0 0.0
    %365 = vmatprep.subr.mxu0 0.0
    %366 = vmatpush1.msra.mxu0 0.0
    %367 = vmatprep.subr.mxu0 0.0
    %368 = vmatpush1.msra.mxu0 0.0
    %369 = vmatprep.mubr.f32.mxu0 0.0
    %370 = vmatmul.mubr.f32.gmra.mrb[0].mxu0 %v303
    %v371 = vpop.f32.mrb[0].mxu0
    %v372 = vadd.f32 %v112, %v371
    %v373 = vpop.f32.mrb[0].mxu0
    %374 = vdwg.mxu0
    %s375 = scalar_lea.vmem %s0, 4
    %v376 = vld [vmem:[%s375] sm:$0xf]
    %v377 = vadd.f32 %v376, %v372
    %v378 = vxor.u32 %v377, 2147483648
    %v379 = vmul.f32 %v378, 1.442695
    %v380 = vpow.pop %v379
    %v381 = vadd.f32 %v380, 1.0
    %v382 = vrcp.pop %v381
    %v383 = vmul.f32 1.0, %v382
    %385 = vrot.lane.b32.xlu0 %v372, 64
    %v386 = vpop.permute.xlu0 %385
    %v388 = vmul.f32 %v383, %v386
    %390 = vrot.lane.b32.xlu0 %v388, 64
    %v391 = vpop.permute.xlu0 %390
    %v393 = vadd.f32 %v376, %v391
    %v394 = vtanh.pop %v393
    %v395 = vsub.f32 1.0, %v383
    %397 = vrot.lane.b32.xlu0 %v394, 96
    %v398 = vpop.permute.xlu0 %397
    %v400 = vmul.f32 %v395, %v398
    %v401 = vmul.f32 %v383, %v214
    %v402 = vadd.f32 %v400, %v401
    %404 = vrot.lane.b32.xlu0 %v402, 96
    %v405 = vpop.permute.xlu0 %404
    %v406 = vsel %vm222, %v405, 0
    %408 = vmatprep.subr.mxu0 0.0
    %409 = vmatpush1.msra.mxu0 %v406
    %410 = vmatprep.subr.mxu0 0.0
    %411 = vmatpush1.msra.mxu0 0.0
    %412 = vmatprep.subr.mxu0 0.0
    %413 = vmatpush1.msra.mxu0 0.0
    %414 = vmatprep.subr.mxu0 0.0
    %415 = vmatpush1.msra.mxu0 0.0
    %416 = vmatprep.subr.mxu0 0.0
    %417 = vmatpush1.msra.mxu0 0.0
    %418 = vmatprep.subr.mxu0 0.0
    %419 = vmatpush1.msra.mxu0 0.0
    %420 = vmatprep.subr.mxu0 0.0
    %421 = vmatpush1.msra.mxu0 0.0
    %422 = vmatprep.subr.mxu0 0.0
    %423 = vmatpush1.msra.mxu0 0.0
    %424 = vmatprep.subr.mxu0 0.0
    %425 = vmatpush1.msra.mxu0 0.0
    %426 = vmatprep.subr.mxu0 0.0
    %427 = vmatpush1.msra.mxu0 0.0
    %428 = vmatprep.subr.mxu0 0.0
    %429 = vmatpush1.msra.mxu0 0.0
    %430 = vmatprep.subr.mxu0 0.0
    %431 = vmatpush1.msra.mxu0 0.0
    %432 = vmatprep.subr.mxu0 0.0
    %433 = vmatpush1.msra.mxu0 0.0
    %434 = vmatprep.subr.mxu0 0.0
    %435 = vmatpush1.msra.mxu0 0.0
    %436 = vmatprep.subr.mxu0 0.0
    %437 = vmatpush1.msra.mxu0 0.0
    %438 = vmatprep.subr.mxu0 0.0
    %439 = vmatpush1.msra.mxu0 0.0
    %440 = vmatprep.subr.mxu0 0.0
    %441 = vmatpush1.msra.mxu0 0.0
    %442 = vmatprep.subr.mxu0 0.0
    %443 = vmatpush1.msra.mxu0 0.0
    %444 = vmatprep.subr.mxu0 0.0
    %445 = vmatpush1.msra.mxu0 0.0
    %446 = vmatprep.subr.mxu0 0.0
    %447 = vmatpush1.msra.mxu0 0.0
    %448 = vmatprep.subr.mxu0 0.0
    %449 = vmatpush1.msra.mxu0 0.0
    %450 = vmatprep.subr.mxu0 0.0
    %451 = vmatpush1.msra.mxu0 0.0
    %452 = vmatprep.subr.mxu0 0.0
    %453 = vmatpush1.msra.mxu0 0.0
    %454 = vmatprep.subr.mxu0 0.0
    %455 = vmatpush1.msra.mxu0 0.0
    %456 = vmatprep.subr.mxu0 0.0
    %457 = vmatpush1.msra.mxu0 0.0
    %458 = vmatprep.subr.mxu0 0.0
    %459 = vmatpush1.msra.mxu0 0.0
    %460 = vmatprep.subr.mxu0 0.0
    %461 = vmatpush1.msra.mxu0 0.0
    %462 = vmatprep.subr.mxu0 0.0
    %463 = vmatpush1.msra.mxu0 0.0
    %464 = vmatprep.subr.mxu0 0.0
    %465 = vmatpush1.msra.mxu0 0.0
    %466 = vmatprep.subr.mxu0 0.0
    %467 = vmatpush1.msra.mxu0 0.0
    %468 = vmatprep.subr.mxu0 0.0
    %469 = vmatpush1.msra.mxu0 0.0
    %470 = vmatprep.subr.mxu0 0.0
    %471 = vmatpush1.msra.mxu0 0.0
    %472 = vmatprep.mubr.f32.mxu0 0.0
    %473 = vmatmul.mubr.f32.gmra.mrb[0].mxu0 %v220
    %v474 = vpop.f32.mrb[0].mxu0
    %v475 = vadd.f32 0.0, %v474
    %v476 = vpop.f32.mrb[0].mxu0
    %477 = vdwg.mxu0
    %s478 = scalar_lea.vmem [#allocation2], 2
    %479 = vst.msk [vmem:[%s478] sm:$0x3] %vm295, %v475
    %481 = vrot.lane.b32.xlu0 %v475, 112
    %v482 = vpop.permute.xlu0 %481
    %s484 = scalar_lea.vmem [#allocation3], 12
    %485 = vst.msk [vmem:[%s484] sm:$0x3] %vm295, %v482
    %v486 = vsel %vm114, %v405, 0
    %488 = vmatprep.subr.mxu0 0.0
    %489 = vmatpush1.msra.mxu0 %v63
    %490 = vmatprep.subr.mxu0 0.0
    %491 = vmatpush1.msra.mxu0 %v64
    %492 = vmatprep.subr.mxu0 0.0
    %493 = vmatpush1.msra.mxu0 %v65
    %494 = vmatprep.subr.mxu0 0.0
    %495 = vmatpush1.msra.mxu0 %v66
    %496 = vmatprep.subr.mxu0 0.0
    %497 = vmatpush1.msra.mxu0 0.0
    %498 = vmatprep.subr.mxu0 0.0
    %499 = vmatpush1.msra.mxu0 0.0
    %500 = vmatprep.subr.mxu0 0.0
    %501 = vmatpush1.msra.mxu0 0.0
    %502 = vmatprep.subr.mxu0 0.0
    %503 = vmatpush1.msra.mxu0 0.0
    %504 = vmatprep.subr.mxu0 0.0
    %505 = vmatpush1.msra.mxu0 0.0
    %506 = vmatprep.subr.mxu0 0.0
    %507 = vmatpush1.msra.mxu0 0.0
    %508 = vmatprep.subr.mxu0 0.0
    %509 = vmatpush1.msra.mxu0 0.0
    %510 = vmatprep.subr.mxu0 0.0
    %511 = vmatpush1.msra.mxu0 0.0
    %512 = vmatprep.subr.mxu0 0.0
    %513 = vmatpush1.msra.mxu0 0.0
    %514 = vmatprep.subr.mxu0 0.0
    %515 = vmatpush1.msra.mxu0 0.0
    %516 = vmatprep.subr.mxu0 0.0
    %517 = vmatpush1.msra.mxu0 0.0
    %518 = vmatprep.subr.mxu0 0.0
    %519 = vmatpush1.msra.mxu0 0.0
    %520 = vmatprep.subr.mxu0 0.0
    %521 = vmatpush1.msra.mxu0 0.0
    %522 = vmatprep.subr.mxu0 0.0
    %523 = vmatpush1.msra.mxu0 0.0
    %524 = vmatprep.subr.mxu0 0.0
    %525 = vmatpush1.msra.mxu0 0.0
    %526 = vmatprep.subr.mxu0 0.0
    %527 = vmatpush1.msra.mxu0 0.0
    %528 = vmatprep.subr.mxu0 0.0
    %529 = vmatpush1.msra.mxu0 0.0
    %530 = vmatprep.subr.mxu0 0.0
    %531 = vmatpush1.msra.mxu0 0.0
    %532 = vmatprep.subr.mxu0 0.0
    %533 = vmatpush1.msra.mxu0 0.0
    %534 = vmatprep.subr.mxu0 0.0
    %535 = vmatpush1.msra.mxu0 0.0
    %536 = vmatprep.subr.mxu0 0.0
    %537 = vmatpush1.msra.mxu0 0.0
    %538 = vmatprep.subr.mxu0 0.0
    %539 = vmatpush1.msra.mxu0 0.0
    %540 = vmatprep.subr.mxu0 0.0
    %541 = vmatpush1.msra.mxu0 0.0
    %542 = vmatprep.subr.mxu0 0.0
    %543 = vmatpush1.msra.mxu0 0.0
    %544 = vmatprep.subr.mxu0 0.0
    %545 = vmatpush1.msra.mxu0 0.0
    %546 = vmatprep.subr.mxu0 0.0
    %547 = vmatpush1.msra.mxu0 0.0
    %548 = vmatprep.subr.mxu0 0.0
    %549 = vmatpush1.msra.mxu0 0.0
    %550 = vmatprep.subr.mxu0 0.0
    %551 = vmatpush1.msra.mxu0 0.0
    %552 = vmatprep.mubr.f32.mxu0 0.0
    %553 = vmatmul.mubr.f32.gmra.mrb[0].mxu0 %v486
    %v554 = vpop.f32.mrb[0].mxu0
    %v555 = vadd.f32 %v112, %v554
    %v556 = vpop.f32.mrb[0].mxu0
    %557 = vdwg.mxu0
    %s558 = scalar_lea.vmem %s0, 8
    %v559 = vld [vmem:[%s558] sm:$0xf]
    %v560 = vadd.f32 %v559, %v555
    %v561 = vxor.u32 %v560, 2147483648
    %v562 = vmul.f32 %v561, 1.442695
    %v563 = vpow.pop %v562
    %v564 = vadd.f32 %v563, 1.0
    %v565 = vrcp.pop %v564
    %v566 = vmul.f32 1.0, %v565
    %568 = vrot.lane.b32.xlu0 %v555, 64
    %v569 = vpop.permute.xlu0 %568
    %v571 = vmul.f32 %v566, %v569
    %573 = vrot.lane.b32.xlu0 %v571, 64
    %v574 = vpop.permute.xlu0 %573
    %v576 = vadd.f32 %v559, %v574
    %v577 = vtanh.pop %v576
    %v578 = vsub.f32 1.0, %v566
    %580 = vrot.lane.b32.xlu0 %v577, 96
    %v581 = vpop.permute.xlu0 %580
    %v583 = vmul.f32 %v578, %v581
    %v584 = vmul.f32 %v566, %v402
    %v585 = vadd.f32 %v583, %v584
    %587 = vrot.lane.b32.xlu0 %v585, 96
    %v588 = vpop.permute.xlu0 %587
    %v589 = vsel %vm222, %v588, 0
    %591 = vmatprep.subr.mxu0 0.0
    %592 = vmatpush1.msra.mxu0 %v589
    %593 = vmatprep.subr.mxu0 0.0
    %594 = vmatpush1.msra.mxu0 0.0
    %595 = vmatprep.subr.mxu0 0.0
    %596 = vmatpush1.msra.mxu0 0.0
    %597 = vmatprep.subr.mxu0 0.0
    %598 = vmatpush1.msra.mxu0 0.0
    %599 = vmatprep.subr.mxu0 0.0
    %600 = vmatpush1.msra.mxu0 0.0
    %601 = vmatprep.subr.mxu0 0.0
    %602 = vmatpush1.msra.mxu0 0.0
    %603 = vmatprep.subr.mxu0 0.0
    %604 = vmatpush1.msra.mxu0 0.0
    %605 = vmatprep.subr.mxu0 0.0
    %606 = vmatpush1.msra.mxu0 0.0
    %607 = vmatprep.subr.mxu0 0.0
    %608 = vmatpush1.msra.mxu0 0.0
    %609 = vmatprep.subr.mxu0 0.0
    %610 = vmatpush1.msra.mxu0 0.0
    %611 = vmatprep.subr.mxu0 0.0
    %612 = vmatpush1.msra.mxu0 0.0
    %613 = vmatprep.subr.mxu0 0.0
    %614 = vmatpush1.msra.mxu0 0.0
    %615 = vmatprep.subr.mxu0 0.0
    %616 = vmatpush1.msra.mxu0 0.0
    %617 = vmatprep.subr.mxu0 0.0
    %618 = vmatpush1.msra.mxu0 0.0
    %619 = vmatprep.subr.mxu0 0.0
    %620 = vmatpush1.msra.mxu0 0.0
    %621 = vmatprep.subr.mxu0 0.0
    %622 = vmatpush1.msra.mxu0 0.0
    %623 = vmatprep.subr.mxu0 0.0
    %624 = vmatpush1.msra.mxu0 0.0
    %625 = vmatprep.subr.mxu0 0.0
    %626 = vmatpush1.msra.mxu0 0.0
    %627 = vmatprep.subr.mxu0 0.0
    %628 = vmatpush1.msra.mxu0 0.0
    %629 = vmatprep.subr.mxu0 0.0
    %630 = vmatpush1.msra.mxu0 0.0
    %631 = vmatprep.subr.mxu0 0.0
    %632 = vmatpush1.msra.mxu0 0.0
    %633 = vmatprep.subr.mxu0 0.0
    %634 = vmatpush1.msra.mxu0 0.0
    %635 = vmatprep.subr.mxu0 0.0
    %636 = vmatpush1.msra.mxu0 0.0
    %637 = vmatprep.subr.mxu0 0.0
    %638 = vmatpush1.msra.mxu0 0.0
    %639 = vmatprep.subr.mxu0 0.0
    %640 = vmatpush1.msra.mxu0 0.0
    %641 = vmatprep.subr.mxu0 0.0
    %642 = vmatpush1.msra.mxu0 0.0
    %643 = vmatprep.subr.mxu0 0.0
    %644 = vmatpush1.msra.mxu0 0.0
    %645 = vmatprep.subr.mxu0 0.0
    %646 = vmatpush1.msra.mxu0 0.0
    %647 = vmatprep.subr.mxu0 0.0
    %648 = vmatpush1.msra.mxu0 0.0
    %649 = vmatprep.subr.mxu0 0.0
    %650 = vmatpush1.msra.mxu0 0.0
    %651 = vmatprep.subr.mxu0 0.0
    %652 = vmatpush1.msra.mxu0 0.0
    %653 = vmatprep.subr.mxu0 0.0
    %654 = vmatpush1.msra.mxu0 0.0
    %655 = vmatprep.mubr.f32.mxu0 0.0
    %656 = vmatmul.mubr.f32.gmra.mrb[0].mxu0 %v220
    %v657 = vpop.f32.mrb[0].mxu0
    %v658 = vadd.f32 0.0, %v657
    %v659 = vpop.f32.mrb[0].mxu0
    %660 = vdwg.mxu0
    %s661 = scalar_lea.vmem [#allocation2], 4
    %662 = vst.msk [vmem:[%s661] sm:$0x3] %vm295, %v658
    %664 = vrot.lane.b32.xlu0 %v658, 112
    %v665 = vpop.permute.xlu0 %664
    %s667 = scalar_lea.vmem [#allocation3], 10
    %668 = vst.msk [vmem:[%s667] sm:$0x3] %vm295, %v665
    %v669 = vsel %vm114, %v588, 0
    %671 = vmatprep.subr.mxu0 0.0
    %672 = vmatpush1.msra.mxu0 %v63
    %673 = vmatprep.subr.mxu0 0.0
    %674 = vmatpush1.msra.mxu0 %v64
    %675 = vmatprep.subr.mxu0 0.0
    %676 = vmatpush1.msra.mxu0 %v65
    %677 = vmatprep.subr.mxu0 0.0
    %678 = vmatpush1.msra.mxu0 %v66
    %679 = vmatprep.subr.mxu0 0.0
    %680 = vmatpush1.msra.mxu0 0.0
    %681 = vmatprep.subr.mxu0 0.0
    %682 = vmatpush1.msra.mxu0 0.0
    %683 = vmatprep.subr.mxu0 0.0
    %684 = vmatpush1.msra.mxu0 0.0
    %685 = vmatprep.subr.mxu0 0.0
    %686 = vmatpush1.msra.mxu0 0.0
    %687 = vmatprep.subr.mxu0 0.0
    %688 = vmatpush1.msra.mxu0 0.0
    %689 = vmatprep.subr.mxu0 0.0
    %690 = vmatpush1.msra.mxu0 0.0
    %691 = vmatprep.subr.mxu0 0.0
    %692 = vmatpush1.msra.mxu0 0.0
    %693 = vmatprep.subr.mxu0 0.0
    %694 = vmatpush1.msra.mxu0 0.0
    %695 = vmatprep.subr.mxu0 0.0
    %696 = vmatpush1.msra.mxu0 0.0
    %697 = vmatprep.subr.mxu0 0.0
    %698 = vmatpush1.msra.mxu0 0.0
    %699 = vmatprep.subr.mxu0 0.0
    %700 = vmatpush1.msra.mxu0 0.0
    %701 = vmatprep.subr.mxu0 0.0
    %702 = vmatpush1.msra.mxu0 0.0
    %703 = vmatprep.subr.mxu0 0.0
    %704 = vmatpush1.msra.mxu0 0.0
    %705 = vmatprep.subr.mxu0 0.0
    %706 = vmatpush1.msra.mxu0 0.0
    %707 = vmatprep.subr.mxu0 0.0
    %708 = vmatpush1.msra.mxu0 0.0
    %709 = vmatprep.subr.mxu0 0.0
    %710 = vmatpush1.msra.mxu0 0.0
    %711 = vmatprep.subr.mxu0 0.0
    %712 = vmatpush1.msra.mxu0 0.0
    %713 = vmatprep.subr.mxu0 0.0
    %714 = vmatpush1.msra.mxu0 0.0
    %715 = vmatprep.subr.mxu0 0.0
    %716 = vmatpush1.msra.mxu0 0.0
    %717 = vmatprep.subr.mxu0 0.0
    %718 = vmatpush1.msra.mxu0 0.0
    %719 = vmatprep.subr.mxu0 0.0
    %720 = vmatpush1.msra.mxu0 0.0
    %721 = vmatprep.subr.mxu0 0.0
    %722 = vmatpush1.msra.mxu0 0.0
    %723 = vmatprep.subr.mxu0 0.0
    %724 = vmatpush1.msra.mxu0 0.0
    %725 = vmatprep.subr.mxu0 0.0
    %726 = vmatpush1.msra.mxu0 0.0
    %727 = vmatprep.subr.mxu0 0.0
    %728 = vmatpush1.msra.mxu0 0.0
    %729 = vmatprep.subr.mxu0 0.0
    %730 = vmatpush1.msra.mxu0 0.0
    %731 = vmatprep.subr.mxu0 0.0
    %732 = vmatpush1.msra.mxu0 0.0
    %733 = vmatprep.subr.mxu0 0.0
    %734 = vmatpush1.msra.mxu0 0.0
    %735 = vmatprep.mubr.f32.mxu0 0.0
    %736 = vmatmul.mubr.f32.gmra.mrb[0].mxu0 %v669
    %v737 = vpop.f32.mrb[0].mxu0
    %v738 = vadd.f32 %v112, %v737
    %v739 = vpop.f32.mrb[0].mxu0
    %740 = vdwg.mxu0
    %s741 = scalar_lea.vmem %s0, 12
    %v742 = vld [vmem:[%s741] sm:$0xf]
    %v743 = vadd.f32 %v742, %v738
    %v744 = vxor.u32 %v743, 2147483648
    %v745 = vmul.f32 %v744, 1.442695
    %v746 = vpow.pop %v745
    %v747 = vadd.f32 %v746, 1.0
    %v748 = vrcp.pop %v747
    %v749 = vmul.f32 1.0, %v748
    %751 = vrot.lane.b32.xlu0 %v738, 64
    %v752 = vpop.permute.xlu0 %751
    %v754 = vmul.f32 %v749, %v752
    %756 = vrot.lane.b32.xlu0 %v754, 64
    %v757 = vpop.permute.xlu0 %756
    %v759 = vadd.f32 %v742, %v757
    %v760 = vtanh.pop %v759
    %v761 = vsub.f32 1.0, %v749
    %763 = vrot.lane.b32.xlu0 %v760, 96
    %v764 = vpop.permute.xlu0 %763
    %v766 = vmul.f32 %v761, %v764
    %v767 = vmul.f32 %v749, %v585
    %v768 = vadd.f32 %v766, %v767
    %770 = vrot.lane.b32.xlu0 %v768, 96
    %v771 = vpop.permute.xlu0 %770
    %v772 = vsel %vm222, %v771, 0
    %774 = vmatprep.subr.mxu0 0.0
    %775 = vmatpush1.msra.mxu0 %v772
    %776 = vmatprep.subr.mxu0 0.0
    %777 = vmatpush1.msra.mxu0 0.0
    %778 = vmatprep.subr.mxu0 0.0
    %779 = vmatpush1.msra.mxu0 0.0
    %780 = vmatprep.subr.mxu0 0.0
    %781 = vmatpush1.msra.mxu0 0.0
    %782 = vmatprep.subr.mxu0 0.0
    %783 = vmatpush1.msra.mxu0 0.0
    %784 = vmatprep.subr.mxu0 0.0
    %785 = vmatpush1.msra.mxu0 0.0
    %786 = vmatprep.subr.mxu0 0.0
    %787 = vmatpush1.msra.mxu0 0.0
    %788 = vmatprep.subr.mxu0 0.0
    %789 = vmatpush1.msra.mxu0 0.0
    %790 = vmatprep.subr.mxu0 0.0
    %791 = vmatpush1.msra.mxu0 0.0
    %792 = vmatprep.subr.mxu0 0.0
    %793 = vmatpush1.msra.mxu0 0.0
    %794 = vmatprep.subr.mxu0 0.0
    %795 = vmatpush1.msra.mxu0 0.0
    %796 = vmatprep.subr.mxu0 0.0
    %797 = vmatpush1.msra.mxu0 0.0
    %798 = vmatprep.subr.mxu0 0.0
    %799 = vmatpush1.msra.mxu0 0.0
    %800 = vmatprep.subr.mxu0 0.0
    %801 = vmatpush1.msra.mxu0 0.0
    %802 = vmatprep.subr.mxu0 0.0
    %803 = vmatpush1.msra.mxu0 0.0
    %804 = vmatprep.subr.mxu0 0.0
    %805 = vmatpush1.msra.mxu0 0.0
    %806 = vmatprep.subr.mxu0 0.0
    %807 = vmatpush1.msra.mxu0 0.0
    %808 = vmatprep.subr.mxu0 0.0
    %809 = vmatpush1.msra.mxu0 0.0
    %810 = vmatprep.subr.mxu0 0.0
    %811 = vmatpush1.msra.mxu0 0.0
    %812 = vmatprep.subr.mxu0 0.0
    %813 = vmatpush1.msra.mxu0 0.0
    %814 = vmatprep.subr.mxu0 0.0
    %815 = vmatpush1.msra.mxu0 0.0
    %816 = vmatprep.subr.mxu0 0.0
    %817 = vmatpush1.msra.mxu0 0.0
    %818 = vmatprep.subr.mxu0 0.0
    %819 = vmatpush1.msra.mxu0 0.0
    %820 = vmatprep.subr.mxu0 0.0
    %821 = vmatpush1.msra.mxu0 0.0
    %822 = vmatprep.subr.mxu0 0.0
    %823 = vmatpush1.msra.mxu0 0.0
    %824 = vmatprep.subr.mxu0 0.0
    %825 = vmatpush1.msra.mxu0 0.0
    %826 = vmatprep.subr.mxu0 0.0
    %827 = vmatpush1.msra.mxu0 0.0
    %828 = vmatprep.subr.mxu0 0.0
    %829 = vmatpush1.msra.mxu0 0.0
    %830 = vmatprep.subr.mxu0 0.0
    %831 = vmatpush1.msra.mxu0 0.0
    %832 = vmatprep.subr.mxu0 0.0
    %833 = vmatpush1.msra.mxu0 0.0
    %834 = vmatprep.subr.mxu0 0.0
    %835 = vmatpush1.msra.mxu0 0.0
    %836 = vmatprep.subr.mxu0 0.0
    %837 = vmatpush1.msra.mxu0 0.0
    %838 = vmatprep.mubr.f32.mxu0 0.0
    %839 = vmatmul.mubr.f32.gmra.mrb[0].mxu0 %v220
    %v840 = vpop.f32.mrb[0].mxu0
    %v841 = vadd.f32 0.0, %v840
    %v842 = vpop.f32.mrb[0].mxu0
    %843 = vdwg.mxu0
    %s844 = scalar_lea.vmem [#allocation2], 6
    %845 = vst.msk [vmem:[%s844] sm:$0x3] %vm295, %v841
    %847 = vrot.lane.b32.xlu0 %v841, 112
    %v848 = vpop.permute.xlu0 %847
    %s850 = scalar_lea.vmem [#allocation3], 8
    %851 = vst.msk [vmem:[%s850] sm:$0x3] %vm295, %v848
    %v852 = vsel %vm114, %v771, 0
    %854 = vmatprep.subr.mxu0 0.0
    %855 = vmatpush1.msra.mxu0 %v63
    %856 = vmatprep.subr.mxu0 0.0
    %857 = vmatpush1.msra.mxu0 %v64
    %858 = vmatprep.subr.mxu0 0.0
    %859 = vmatpush1.msra.mxu0 %v65
    %860 = vmatprep.subr.mxu0 0.0
    %861 = vmatpush1.msra.mxu0 %v66
    %862 = vmatprep.subr.mxu0 0.0
    %863 = vmatpush1.msra.mxu0 0.0
    %864 = vmatprep.subr.mxu0 0.0
    %865 = vmatpush1.msra.mxu0 0.0
    %866 = vmatprep.subr.mxu0 0.0
    %867 = vmatpush1.msra.mxu0 0.0
    %868 = vmatprep.subr.mxu0 0.0
    %869 = vmatpush1.msra.mxu0 0.0
    %870 = vmatprep.subr.mxu0 0.0
    %871 = vmatpush1.msra.mxu0 0.0
    %872 = vmatprep.subr.mxu0 0.0
    %873 = vmatpush1.msra.mxu0 0.0
    %874 = vmatprep.subr.mxu0 0.0
    %875 = vmatpush1.msra.mxu0 0.0
    %876 = vmatprep.subr.mxu0 0.0
    %877 = vmatpush1.msra.mxu0 0.0
    %878 = vmatprep.subr.mxu0 0.0
    %879 = vmatpush1.msra.mxu0 0.0
    %880 = vmatprep.subr.mxu0 0.0
    %881 = vmatpush1.msra.mxu0 0.0
    %882 = vmatprep.subr.mxu0 0.0
    %883 = vmatpush1.msra.mxu0 0.0
    %884 = vmatprep.subr.mxu0 0.0
    %885 = vmatpush1.msra.mxu0 0.0
    %886 = vmatprep.subr.mxu0 0.0
    %887 = vmatpush1.msra.mxu0 0.0
    %888 = vmatprep.subr.mxu0 0.0
    %889 = vmatpush1.msra.mxu0 0.0
    %890 = vmatprep.subr.mxu0 0.0
    %891 = vmatpush1.msra.mxu0 0.0
    %892 = vmatprep.subr.mxu0 0.0
    %893 = vmatpush1.msra.mxu0 0.0
    %894 = vmatprep.subr.mxu0 0.0
    %895 = vmatpush1.msra.mxu0 0.0
    %896 = vmatprep.subr.mxu0 0.0
    %897 = vmatpush1.msra.mxu0 0.0
    %898 = vmatprep.subr.mxu0 0.0
    %899 = vmatpush1.msra.mxu0 0.0
    %900 = vmatprep.subr.mxu0 0.0
    %901 = vmatpush1.msra.mxu0 0.0
    %902 = vmatprep.subr.mxu0 0.0
    %903 = vmatpush1.msra.mxu0 0.0
    %904 = vmatprep.subr.mxu0 0.0
    %905 = vmatpush1.msra.mxu0 0.0
    %906 = vmatprep.subr.mxu0 0.0
    %907 = vmatpush1.msra.mxu0 0.0
    %908 = vmatprep.subr.mxu0 0.0
    %909 = vmatpush1.msra.mxu0 0.0
    %910 = vmatprep.subr.mxu0 0.0
    %911 = vmatpush1.msra.mxu0 0.0
    %912 = vmatprep.subr.mxu0 0.0
    %913 = vmatpush1.msra.mxu0 0.0
    %914 = vmatprep.subr.mxu0 0.0
    %915 = vmatpush1.msra.mxu0 0.0
    %916 = vmatprep.subr.mxu0 0.0
    %917 = vmatpush1.msra.mxu0 0.0
    %918 = vmatprep.mubr.f32.mxu0 0.0
    %919 = vmatmul.mubr.f32.gmra.mrb[0].mxu0 %v852
    %v920 = vpop.f32.mrb[0].mxu0
    %v921 = vadd.f32 %v112, %v920
    %v922 = vpop.f32.mrb[0].mxu0
    %923 = vdwg.mxu0
    %s924 = scalar_lea.vmem %s0, 16
    %v925 = vld [vmem:[%s924] sm:$0xf]
    %v926 = vadd.f32 %v925, %v921
    %v927 = vxor.u32 %v926, 2147483648
    %v928 = vmul.f32 %v927, 1.442695
    %v929 = vpow.pop %v928
    %v930 = vadd.f32 %v929, 1.0
    %v931 = vrcp.pop %v930
    %v932 = vmul.f32 1.0, %v931
    %934 = vrot.lane.b32.xlu0 %v921, 64
    %v935 = vpop.permute.xlu0 %934
    %v937 = vmul.f32 %v932, %v935
    %939 = vrot.lane.b32.xlu0 %v937, 64
    %v940 = vpop.permute.xlu0 %939
    %v942 = vadd.f32 %v925, %v940
    %v943 = vtanh.pop %v942
    %v944 = vsub.f32 1.0, %v932
    %946 = vrot.lane.b32.xlu0 %v943, 96
    %v947 = vpop.permute.xlu0 %946
    %v949 = vmul.f32 %v944, %v947
    %v950 = vmul.f32 %v932, %v768
    %v951 = vadd.f32 %v949, %v950
    %953 = vrot.lane.b32.xlu0 %v951, 96
    %v954 = vpop.permute.xlu0 %953
    %v955 = vsel %vm222, %v954, 0
    %957 = vmatprep.subr.mxu0 0.0
    %958 = vmatpush1.msra.mxu0 %v955
    %959 = vmatprep.subr.mxu0 0.0
    %960 = vmatpush1.msra.mxu0 0.0
    %961 = vmatprep.subr.mxu0 0.0
    %962 = vmatpush1.msra.mxu0 0.0
    %963 = vmatprep.subr.mxu0 0.0
    %964 = vmatpush1.msra.mxu0 0.0
    %965 = vmatprep.subr.mxu0 0.0
    %966 = vmatpush1.msra.mxu0 0.0
    %967 = vmatprep.subr.mxu0 0.0
    %968 = vmatpush1.msra.mxu0 0.0
    %969 = vmatprep.subr.mxu0 0.0
    %970 = vmatpush1.msra.mxu0 0.0
    %971 = vmatprep.subr.mxu0 0.0
    %972 = vmatpush1.msra.mxu0 0.0
    %973 = vmatprep.subr.mxu0 0.0
    %974 = vmatpush1.msra.mxu0 0.0
    %975 = vmatprep.subr.mxu0 0.0
    %976 = vmatpush1.msra.mxu0 0.0
    %977 = vmatprep.subr.mxu0 0.0
    %978 = vmatpush1.msra.mxu0 0.0
    %979 = vmatprep.subr.mxu0 0.0
    %980 = vmatpush1.msra.mxu0 0.0
    %981 = vmatprep.subr.mxu0 0.0
    %982 = vmatpush1.msra.mxu0 0.0
    %983 = vmatprep.subr.mxu0 0.0
    %984 = vmatpush1.msra.mxu0 0.0
    %985 = vmatprep.subr.mxu0 0.0
    %986 = vmatpush1.msra.mxu0 0.0
    %987 = vmatprep.subr.mxu0 0.0
    %988 = vmatpush1.msra.mxu0 0.0
    %989 = vmatprep.subr.mxu0 0.0
    %990 = vmatpush1.msra.mxu0 0.0
    %991 = vmatprep.subr.mxu0 0.0
    %992 = vmatpush1.msra.mxu0 0.0
    %993 = vmatprep.subr.mxu0 0.0
    %994 = vmatpush1.msra.mxu0 0.0
    %995 = vmatprep.subr.mxu0 0.0
    %996 = vmatpush1.msra.mxu0 0.0
    %997 = vmatprep.subr.mxu0 0.0
    %998 = vmatpush1.msra.mxu0 0.0
    %999 = vmatprep.subr.mxu0 0.0
    %1000 = vmatpush1.msra.mxu0 0.0
    %1001 = vmatprep.subr.mxu0 0.0
    %1002 = vmatpush1.msra.mxu0 0.0
    %1003 = vmatprep.subr.mxu0 0.0
    %1004 = vmatpush1.msra.mxu0 0.0
    %1005 = vmatprep.subr.mxu0 0.0
    %1006 = vmatpush1.msra.mxu0 0.0
    %1007 = vmatprep.subr.mxu0 0.0
    %1008 = vmatpush1.msra.mxu0 0.0
    %1009 = vmatprep.subr.mxu0 0.0
    %1010 = vmatpush1.msra.mxu0 0.0
    %1011 = vmatprep.subr.mxu0 0.0
    %1012 = vmatpush1.msra.mxu0 0.0
    %1013 = vmatprep.subr.mxu0 0.0
    %1014 = vmatpush1.msra.mxu0 0.0
    %1015 = vmatprep.subr.mxu0 0.0
    %1016 = vmatpush1.msra.mxu0 0.0
    %1017 = vmatprep.subr.mxu0 0.0
    %1018 = vmatpush1.msra.mxu0 0.0
    %1019 = vmatprep.subr.mxu0 0.0
    %1020 = vmatpush1.msra.mxu0 0.0
    %1021 = vmatprep.mubr.f32.mxu0 0.0
    %1022 = vmatmul.mubr.f32.gmra.mrb[0].mxu0 %v220
    %v1023 = vpop.f32.mrb[0].mxu0
    %v1024 = vadd.f32 0.0, %v1023
    %v1025 = vpop.f32.mrb[0].mxu0
    %1026 = vdwg.mxu0
    %s1027 = scalar_lea.vmem [#allocation2], 8
    %1028 = vst.msk [vmem:[%s1027] sm:$0x3] %vm295, %v1024
    %1030 = vrot.lane.b32.xlu0 %v1024, 112
    %v1031 = vpop.permute.xlu0 %1030
    %s1033 = scalar_lea.vmem [#allocation3], 6
    %1034 = vst.msk [vmem:[%s1033] sm:$0x3] %vm295, %v1031
    %v1035 = vsel %vm114, %v954, 0
    %1037 = vmatprep.subr.mxu0 0.0
    %1038 = vmatpush1.msra.mxu0 %v63
    %1039 = vmatprep.subr.mxu0 0.0
    %1040 = vmatpush1.msra.mxu0 %v64
    %1041 = vmatprep.subr.mxu0 0.0
    %1042 = vmatpush1.msra.mxu0 %v65
    %1043 = vmatprep.subr.mxu0 0.0
    %1044 = vmatpush1.msra.mxu0 %v66
    %1045 = vmatprep.subr.mxu0 0.0
    %1046 = vmatpush1.msra.mxu0 0.0
    %1047 = vmatprep.subr.mxu0 0.0
    %1048 = vmatpush1.msra.mxu0 0.0
    %1049 = vmatprep.subr.mxu0 0.0
    %1050 = vmatpush1.msra.mxu0 0.0
    %1051 = vmatprep.subr.mxu0 0.0
    %1052 = vmatpush1.msra.mxu0 0.0
    %1053 = vmatprep.subr.mxu0 0.0
    %1054 = vmatpush1.msra.mxu0 0.0
    %1055 = vmatprep.subr.mxu0 0.0
    %1056 = vmatpush1.msra.mxu0 0.0
    %1057 = vmatprep.subr.mxu0 0.0
    %1058 = vmatpush1.msra.mxu0 0.0
    %1059 = vmatprep.subr.mxu0 0.0
    %1060 = vmatpush1.msra.mxu0 0.0
    %1061 = vmatprep.subr.mxu0 0.0
    %1062 = vmatpush1.msra.mxu0 0.0
    %1063 = vmatprep.subr.mxu0 0.0
    %1064 = vmatpush1.msra.mxu0 0.0
    %1065 = vmatprep.subr.mxu0 0.0
    %1066 = vmatpush1.msra.mxu0 0.0
    %1067 = vmatprep.subr.mxu0 0.0
    %1068 = vmatpush1.msra.mxu0 0.0
    %1069 = vmatprep.subr.mxu0 0.0
    %1070 = vmatpush1.msra.mxu0 0.0
    %1071 = vmatprep.subr.mxu0 0.0
    %1072 = vmatpush1.msra.mxu0 0.0
    %1073 = vmatprep.subr.mxu0 0.0
    %1074 = vmatpush1.msra.mxu0 0.0
    %1075 = vmatprep.subr.mxu0 0.0
    %1076 = vmatpush1.msra.mxu0 0.0
    %1077 = vmatprep.subr.mxu0 0.0
    %1078 = vmatpush1.msra.mxu0 0.0
    %1079 = vmatprep.subr.mxu0 0.0
    %1080 = vmatpush1.msra.mxu0 0.0
    %1081 = vmatprep.subr.mxu0 0.0
    %1082 = vmatpush1.msra.mxu0 0.0
    %1083 = vmatprep.subr.mxu0 0.0
    %1084 = vmatpush1.msra.mxu0 0.0
    %1085 = vmatprep.subr.mxu0 0.0
    %1086 = vmatpush1.msra.mxu0 0.0
    %1087 = vmatprep.subr.mxu0 0.0
    %1088 = vmatpush1.msra.mxu0 0.0
    %1089 = vmatprep.subr.mxu0 0.0
    %1090 = vmatpush1.msra.mxu0 0.0
    %1091 = vmatprep.subr.mxu0 0.0
    %1092 = vmatpush1.msra.mxu0 0.0
    %1093 = vmatprep.subr.mxu0 0.0
    %1094 = vmatpush1.msra.mxu0 0.0
    %1095 = vmatprep.subr.mxu0 0.0
    %1096 = vmatpush1.msra.mxu0 0.0
    %1097 = vmatprep.subr.mxu0 0.0
    %1098 = vmatpush1.msra.mxu0 0.0
    %1099 = vmatprep.subr.mxu0 0.0
    %1100 = vmatpush1.msra.mxu0 0.0
    %1101 = vmatprep.mubr.f32.mxu0 0.0
    %1102 = vmatmul.mubr.f32.gmra.mrb[0].mxu0 %v1035
    %v1103 = vpop.f32.mrb[0].mxu0
    %v1104 = vadd.f32 %v112, %v1103
    %v1105 = vpop.f32.mrb[0].mxu0
    %1106 = vdwg.mxu0
    %s1107 = scalar_lea.vmem %s0, 20
    %v1108 = vld [vmem:[%s1107] sm:$0xf]
    %v1109 = vadd.f32 %v1108, %v1104
    %v1110 = vxor.u32 %v1109, 2147483648
    %v1111 = vmul.f32 %v1110, 1.442695
    %v1112 = vpow.pop %v1111
    %v1113 = vadd.f32 %v1112, 1.0
    %v1114 = vrcp.pop %v1113
    %v1115 = vmul.f32 1.0, %v1114
    %1117 = vrot.lane.b32.xlu0 %v1104, 64
    %v1118 = vpop.permute.xlu0 %1117
    %v1120 = vmul.f32 %v1115, %v1118
    %1122 = vrot.lane.b32.xlu0 %v1120, 64
    %v1123 = vpop.permute.xlu0 %1122
    %v1125 = vadd.f32 %v1108, %v1123
    %v1126 = vtanh.pop %v1125
    %v1127 = vsub.f32 1.0, %v1115
    %1129 = vrot.lane.b32.xlu0 %v1126, 96
    %v1130 = vpop.permute.xlu0 %1129
    %v1132 = vmul.f32 %v1127, %v1130
    %v1133 = vmul.f32 %v1115, %v951
    %v1134 = vadd.f32 %v1132, %v1133
    %1136 = vrot.lane.b32.xlu0 %v1134, 96
    %v1137 = vpop.permute.xlu0 %1136
    %v1138 = vsel %vm222, %v1137, 0
    %1140 = vmatprep.subr.mxu0 0.0
    %1141 = vmatpush1.msra.mxu0 %v1138
    %1142 = vmatprep.subr.mxu0 0.0
    %1143 = vmatpush1.msra.mxu0 0.0
    %1144 = vmatprep.subr.mxu0 0.0
    %1145 = vmatpush1.msra.mxu0 0.0
    %1146 = vmatprep.subr.mxu0 0.0
    %1147 = vmatpush1.msra.mxu0 0.0
    %1148 = vmatprep.subr.mxu0 0.0
    %1149 = vmatpush1.msra.mxu0 0.0
    %1150 = vmatprep.subr.mxu0 0.0
    %1151 = vmatpush1.msra.mxu0 0.0
    %1152 = vmatprep.subr.mxu0 0.0
    %1153 = vmatpush1.msra.mxu0 0.0
    %1154 = vmatprep.subr.mxu0 0.0
    %1155 = vmatpush1.msra.mxu0 0.0
    %1156 = vmatprep.subr.mxu0 0.0
    %1157 = vmatpush1.msra.mxu0 0.0
    %1158 = vmatprep.subr.mxu0 0.0
    %1159 = vmatpush1.msra.mxu0 0.0
    %1160 = vmatprep.subr.mxu0 0.0
    %1161 = vmatpush1.msra.mxu0 0.0
    %1162 = vmatprep.subr.mxu0 0.0
    %1163 = vmatpush1.msra.mxu0 0.0
    %1164 = vmatprep.subr.mxu0 0.0
    %1165 = vmatpush1.msra.mxu0 0.0
    %1166 = vmatprep.subr.mxu0 0.0
    %1167 = vmatpush1.msra.mxu0 0.0
    %1168 = vmatprep.subr.mxu0 0.0
    %1169 = vmatpush1.msra.mxu0 0.0
    %1170 = vmatprep.subr.mxu0 0.0
    %1171 = vmatpush1.msra.mxu0 0.0
    %1172 = vmatprep.subr.mxu0 0.0
    %1173 = vmatpush1.msra.mxu0 0.0
    %1174 = vmatprep.subr.mxu0 0.0
    %1175 = vmatpush1.msra.mxu0 0.0
    %1176 = vmatprep.subr.mxu0 0.0
    %1177 = vmatpush1.msra.mxu0 0.0
    %1178 = vmatprep.subr.mxu0 0.0
    %1179 = vmatpush1.msra.mxu0 0.0
    %1180 = vmatprep.subr.mxu0 0.0
    %1181 = vmatpush1.msra.mxu0 0.0
    %1182 = vmatprep.subr.mxu0 0.0
    %1183 = vmatpush1.msra.mxu0 0.0
    %1184 = vmatprep.subr.mxu0 0.0
    %1185 = vmatpush1.msra.mxu0 0.0
    %1186 = vmatprep.subr.mxu0 0.0
    %1187 = vmatpush1.msra.mxu0 0.0
    %1188 = vmatprep.subr.mxu0 0.0
    %1189 = vmatpush1.msra.mxu0 0.0
    %1190 = vmatprep.subr.mxu0 0.0
    %1191 = vmatpush1.msra.mxu0 0.0
    %1192 = vmatprep.subr.mxu0 0.0
    %1193 = vmatpush1.msra.mxu0 0.0
    %1194 = vmatprep.subr.mxu0 0.0
    %1195 = vmatpush1.msra.mxu0 0.0
    %1196 = vmatprep.subr.mxu0 0.0
    %1197 = vmatpush1.msra.mxu0 0.0
    %1198 = vmatprep.subr.mxu0 0.0
    %1199 = vmatpush1.msra.mxu0 0.0
    %1200 = vmatprep.subr.mxu0 0.0
    %1201 = vmatpush1.msra.mxu0 0.0
    %1202 = vmatprep.subr.mxu0 0.0
    %1203 = vmatpush1.msra.mxu0 0.0
    %1204 = vmatprep.mubr.f32.mxu0 0.0
    %1205 = vmatmul.mubr.f32.gmra.mrb[0].mxu0 %v220
    %v1206 = vpop.f32.mrb[0].mxu0
    %v1207 = vadd.f32 0.0, %v1206
    %v1208 = vpop.f32.mrb[0].mxu0
    %1209 = vdwg.mxu0
    %s1210 = scalar_lea.vmem [#allocation2], 10
    %1211 = vst.msk [vmem:[%s1210] sm:$0x3] %vm295, %v1207
    %1213 = vrot.lane.b32.xlu0 %v1207, 112
    %v1214 = vpop.permute.xlu0 %1213
    %s1216 = scalar_lea.vmem [#allocation3], 4
    %1217 = vst.msk [vmem:[%s1216] sm:$0x3] %vm295, %v1214
    %v1218 = vsel %vm114, %v1137, 0
    %1220 = vmatprep.subr.mxu0 0.0
    %1221 = vmatpush1.msra.mxu0 %v63
    %1222 = vmatprep.subr.mxu0 0.0
    %1223 = vmatpush1.msra.mxu0 %v64
    %1224 = vmatprep.subr.mxu0 0.0
    %1225 = vmatpush1.msra.mxu0 %v65
    %1226 = vmatprep.subr.mxu0 0.0
    %1227 = vmatpush1.msra.mxu0 %v66
    %1228 = vmatprep.subr.mxu0 0.0
    %1229 = vmatpush1.msra.mxu0 0.0
    %1230 = vmatprep.subr.mxu0 0.0
    %1231 = vmatpush1.msra.mxu0 0.0
    %1232 = vmatprep.subr.mxu0 0.0
    %1233 = vmatpush1.msra.mxu0 0.0
    %1234 = vmatprep.subr.mxu0 0.0
    %1235 = vmatpush1.msra.mxu0 0.0
    %1236 = vmatprep.subr.mxu0 0.0
    %1237 = vmatpush1.msra.mxu0 0.0
    %1238 = vmatprep.subr.mxu0 0.0
    %1239 = vmatpush1.msra.mxu0 0.0
    %1240 = vmatprep.subr.mxu0 0.0
    %1241 = vmatpush1.msra.mxu0 0.0
    %1242 = vmatprep.subr.mxu0 0.0
    %1243 = vmatpush1.msra.mxu0 0.0
    %1244 = vmatprep.subr.mxu0 0.0
    %1245 = vmatpush1.msra.mxu0 0.0
    %1246 = vmatprep.subr.mxu0 0.0
    %1247 = vmatpush1.msra.mxu0 0.0
    %1248 = vmatprep.subr.mxu0 0.0
    %1249 = vmatpush1.msra.mxu0 0.0
    %1250 = vmatprep.subr.mxu0 0.0
    %1251 = vmatpush1.msra.mxu0 0.0
    %1252 = vmatprep.subr.mxu0 0.0
    %1253 = vmatpush1.msra.mxu0 0.0
    %1254 = vmatprep.subr.mxu0 0.0
    %1255 = vmatpush1.msra.mxu0 0.0
    %1256 = vmatprep.subr.mxu0 0.0
    %1257 = vmatpush1.msra.mxu0 0.0
    %1258 = vmatprep.subr.mxu0 0.0
    %1259 = vmatpush1.msra.mxu0 0.0
    %1260 = vmatprep.subr.mxu0 0.0
    %1261 = vmatpush1.msra.mxu0 0.0
    %1262 = vmatprep.subr.mxu0 0.0
    %1263 = vmatpush1.msra.mxu0 0.0
    %1264 = vmatprep.subr.mxu0 0.0
    %1265 = vmatpush1.msra.mxu0 0.0
    %1266 = vmatprep.subr.mxu0 0.0
    %1267 = vmatpush1.msra.mxu0 0.0
    %1268 = vmatprep.subr.mxu0 0.0
    %1269 = vmatpush1.msra.mxu0 0.0
    %1270 = vmatprep.subr.mxu0 0.0
    %1271 = vmatpush1.msra.mxu0 0.0
    %1272 = vmatprep.subr.mxu0 0.0
    %1273 = vmatpush1.msra.mxu0 0.0
    %1274 = vmatprep.subr.mxu0 0.0
    %1275 = vmatpush1.msra.mxu0 0.0
    %1276 = vmatprep.subr.mxu0 0.0
    %1277 = vmatpush1.msra.mxu0 0.0
    %1278 = vmatprep.subr.mxu0 0.0
    %1279 = vmatpush1.msra.mxu0 0.0
    %1280 = vmatprep.subr.mxu0 0.0
    %1281 = vmatpush1.msra.mxu0 0.0
    %1282 = vmatprep.subr.mxu0 0.0
    %1283 = vmatpush1.msra.mxu0 0.0
    %1284 = vmatprep.mubr.f32.mxu0 0.0
    %1285 = vmatmul.mubr.f32.gmra.mrb[0].mxu0 %v1218
    %v1286 = vpop.f32.mrb[0].mxu0
    %v1287 = vadd.f32 %v112, %v1286
    %v1288 = vpop.f32.mrb[0].mxu0
    %1289 = vdwg.mxu0
    %s1290 = scalar_lea.vmem %s0, 24
    %v1291 = vld [vmem:[%s1290] sm:$0xf]
    %v1292 = vadd.f32 %v1291, %v1287
    %v1293 = vxor.u32 %v1292, 2147483648
    %v1294 = vmul.f32 %v1293, 1.442695
    %v1295 = vpow.pop %v1294
    %v1296 = vadd.f32 %v1295, 1.0
    %v1297 = vrcp.pop %v1296
    %v1298 = vmul.f32 1.0, %v1297
    %1300 = vrot.lane.b32.xlu0 %v1287, 64
    %v1301 = vpop.permute.xlu0 %1300
    %v1303 = vmul.f32 %v1298, %v1301
    %1305 = vrot.lane.b32.xlu0 %v1303, 64
    %v1306 = vpop.permute.xlu0 %1305
    %v1308 = vadd.f32 %v1291, %v1306
    %v1309 = vtanh.pop %v1308
    %v1310 = vsub.f32 1.0, %v1298
    %1312 = vrot.lane.b32.xlu0 %v1309, 96
    %v1313 = vpop.permute.xlu0 %1312
    %v1315 = vmul.f32 %v1310, %v1313
    %v1316 = vmul.f32 %v1298, %v1134
    %v1317 = vadd.f32 %v1315, %v1316
    %1319 = vrot.lane.b32.xlu0 %v1317, 96
    %v1320 = vpop.permute.xlu0 %1319
    %v1321 = vsel %vm222, %v1320, 0
    %1323 = vmatprep.subr.mxu0 0.0
    %1324 = vmatpush1.msra.mxu0 %v1321
    %1325 = vmatprep.subr.mxu0 0.0
    %1326 = vmatpush1.msra.mxu0 0.0
    %1327 = vmatprep.subr.mxu0 0.0
    %1328 = vmatpush1.msra.mxu0 0.0
    %1329 = vmatprep.subr.mxu0 0.0
    %1330 = vmatpush1.msra.mxu0 0.0
    %1331 = vmatprep.subr.mxu0 0.0
    %1332 = vmatpush1.msra.mxu0 0.0
    %1333 = vmatprep.subr.mxu0 0.0
    %1334 = vmatpush1.msra.mxu0 0.0
    %1335 = vmatprep.subr.mxu0 0.0
    %1336 = vmatpush1.msra.mxu0 0.0
    %1337 = vmatprep.subr.mxu0 0.0
    %1338 = vmatpush1.msra.mxu0 0.0
    %1339 = vmatprep.subr.mxu0 0.0
    %1340 = vmatpush1.msra.mxu0 0.0
    %1341 = vmatprep.subr.mxu0 0.0
    %1342 = vmatpush1.msra.mxu0 0.0
    %1343 = vmatprep.subr.mxu0 0.0
    %1344 = vmatpush1.msra.mxu0 0.0
    %1345 = vmatprep.subr.mxu0 0.0
    %1346 = vmatpush1.msra.mxu0 0.0
    %1347 = vmatprep.subr.mxu0 0.0
    %1348 = vmatpush1.msra.mxu0 0.0
    %1349 = vmatprep.subr.mxu0 0.0
    %1350 = vmatpush1.msra.mxu0 0.0
    %1351 = vmatprep.subr.mxu0 0.0
    %1352 = vmatpush1.msra.mxu0 0.0
    %1353 = vmatprep.subr.mxu0 0.0
    %1354 = vmatpush1.msra.mxu0 0.0
    %1355 = vmatprep.subr.mxu0 0.0
    %1356 = vmatpush1.msra.mxu0 0.0
    %1357 = vmatprep.subr.mxu0 0.0
    %1358 = vmatpush1.msra.mxu0 0.0
    %1359 = vmatprep.subr.mxu0 0.0
    %1360 = vmatpush1.msra.mxu0 0.0
    %1361 = vmatprep.subr.mxu0 0.0
    %1362 = vmatpush1.msra.mxu0 0.0
    %1363 = vmatprep.subr.mxu0 0.0
    %1364 = vmatpush1.msra.mxu0 0.0
    %1365 = vmatprep.subr.mxu0 0.0
    %1366 = vmatpush1.msra.mxu0 0.0
    %1367 = vmatprep.subr.mxu0 0.0
    %1368 = vmatpush1.msra.mxu0 0.0
    %1369 = vmatprep.subr.mxu0 0.0
    %1370 = vmatpush1.msra.mxu0 0.0
    %1371 = vmatprep.subr.mxu0 0.0
    %1372 = vmatpush1.msra.mxu0 0.0
    %1373 = vmatprep.subr.mxu0 0.0
    %1374 = vmatpush1.msra.mxu0 0.0
    %1375 = vmatprep.subr.mxu0 0.0
    %1376 = vmatpush1.msra.mxu0 0.0
    %1377 = vmatprep.subr.mxu0 0.0
    %1378 = vmatpush1.msra.mxu0 0.0
    %1379 = vmatprep.subr.mxu0 0.0
    %1380 = vmatpush1.msra.mxu0 0.0
    %1381 = vmatprep.subr.mxu0 0.0
    %1382 = vmatpush1.msra.mxu0 0.0
    %1383 = vmatprep.subr.mxu0 0.0
    %1384 = vmatpush1.msra.mxu0 0.0
    %1385 = vmatprep.subr.mxu0 0.0
    %1386 = vmatpush1.msra.mxu0 0.0
    %1387 = vmatprep.mubr.f32.mxu0 0.0
    %1388 = vmatmul.mubr.f32.gmra.mrb[0].mxu0 %v220
    %v1389 = vpop.f32.mrb[0].mxu0
    %v1390 = vadd.f32 0.0, %v1389
    %v1391 = vpop.f32.mrb[0].mxu0
    %1392 = vdwg.mxu0
    %s1393 = scalar_lea.vmem [#allocation2], 12
    %1394 = vst.msk [vmem:[%s1393] sm:$0x3] %vm295, %v1390
    %1396 = vrot.lane.b32.xlu0 %v1390, 112
    %v1397 = vpop.permute.xlu0 %1396
    %s1399 = scalar_lea.vmem [#allocation3], 2
    %1400 = vst.msk [vmem:[%s1399] sm:$0x3] %vm295, %v1397
    %v1401 = vsel %vm114, %v1320, 0
    %1403 = vmatprep.subr.mxu0 0.0
    %1404 = vmatpush1.msra.mxu0 %v63
    %1405 = vmatprep.subr.mxu0 0.0
    %1406 = vmatpush1.msra.mxu0 %v64
    %1407 = vmatprep.subr.mxu0 0.0
    %1408 = vmatpush1.msra.mxu0 %v65
    %1409 = vmatprep.subr.mxu0 0.0
    %1410 = vmatpush1.msra.mxu0 %v66
    %1411 = vmatprep.subr.mxu0 0.0
    %1412 = vmatpush1.msra.mxu0 0.0
    %1413 = vmatprep.subr.mxu0 0.0
    %1414 = vmatpush1.msra.mxu0 0.0
    %1415 = vmatprep.subr.mxu0 0.0
    %1416 = vmatpush1.msra.mxu0 0.0
    %1417 = vmatprep.subr.mxu0 0.0
    %1418 = vmatpush1.msra.mxu0 0.0
    %1419 = vmatprep.subr.mxu0 0.0
    %1420 = vmatpush1.msra.mxu0 0.0
    %1421 = vmatprep.subr.mxu0 0.0
    %1422 = vmatpush1.msra.mxu0 0.0
    %1423 = vmatprep.subr.mxu0 0.0
    %1424 = vmatpush1.msra.mxu0 0.0
    %1425 = vmatprep.subr.mxu0 0.0
    %1426 = vmatpush1.msra.mxu0 0.0
    %1427 = vmatprep.subr.mxu0 0.0
    %1428 = vmatpush1.msra.mxu0 0.0
    %1429 = vmatprep.subr.mxu0 0.0
    %1430 = vmatpush1.msra.mxu0 0.0
    %1431 = vmatprep.subr.mxu0 0.0
    %1432 = vmatpush1.msra.mxu0 0.0
    %1433 = vmatprep.subr.mxu0 0.0
    %1434 = vmatpush1.msra.mxu0 0.0
    %1435 = vmatprep.subr.mxu0 0.0
    %1436 = vmatpush1.msra.mxu0 0.0
    %1437 = vmatprep.subr.mxu0 0.0
    %1438 = vmatpush1.msra.mxu0 0.0
    %1439 = vmatprep.subr.mxu0 0.0
    %1440 = vmatpush1.msra.mxu0 0.0
    %1441 = vmatprep.subr.mxu0 0.0
    %1442 = vmatpush1.msra.mxu0 0.0
    %1443 = vmatprep.subr.mxu0 0.0
    %1444 = vmatpush1.msra.mxu0 0.0
    %1445 = vmatprep.subr.mxu0 0.0
    %1446 = vmatpush1.msra.mxu0 0.0
    %1447 = vmatprep.subr.mxu0 0.0
    %1448 = vmatpush1.msra.mxu0 0.0
    %1449 = vmatprep.subr.mxu0 0.0
    %1450 = vmatpush1.msra.mxu0 0.0
    %1451 = vmatprep.subr.mxu0 0.0
    %1452 = vmatpush1.msra.mxu0 0.0
    %1453 = vmatprep.subr.mxu0 0.0
    %1454 = vmatpush1.msra.mxu0 0.0
    %1455 = vmatprep.subr.mxu0 0.0
    %1456 = vmatpush1.msra.mxu0 0.0
    %1457 = vmatprep.subr.mxu0 0.0
    %1458 = vmatpush1.msra.mxu0 0.0
    %1459 = vmatprep.subr.mxu0 0.0
    %1460 = vmatpush1.msra.mxu0 0.0
    %1461 = vmatprep.subr.mxu0 0.0
    %1462 = vmatpush1.msra.mxu0 0.0
    %1463 = vmatprep.subr.mxu0 0.0
    %1464 = vmatpush1.msra.mxu0 0.0
    %1465 = vmatprep.subr.mxu0 0.0
    %1466 = vmatpush1.msra.mxu0 0.0
    %1467 = vmatprep.mubr.f32.mxu0 0.0
    %1468 = vmatmul.mubr.f32.gmra.mrb[0].mxu0 %v1401
    %v1469 = vpop.f32.mrb[0].mxu0
    %v1470 = vadd.f32 %v112, %v1469
    %v1471 = vpop.f32.mrb[0].mxu0
    %1472 = vdwg.mxu0
    %s1473 = scalar_lea.vmem %s0, 28
    %v1474 = vld [vmem:[%s1473] sm:$0xf]
    %v1475 = vadd.f32 %v1474, %v1470
    %v1476 = vxor.u32 %v1475, 2147483648
    %v1477 = vmul.f32 %v1476, 1.442695
    %v1478 = vpow.pop %v1477
    %v1479 = vadd.f32 %v1478, 1.0
    %v1480 = vrcp.pop %v1479
    %v1481 = vmul.f32 1.0, %v1480
    %1483 = vrot.lane.b32.xlu0 %v1470, 64
    %v1484 = vpop.permute.xlu0 %1483
    %v1486 = vmul.f32 %v1481, %v1484
    %1488 = vrot.lane.b32.xlu0 %v1486, 64
    %v1489 = vpop.permute.xlu0 %1488
    %v1491 = vadd.f32 %v1474, %v1489
    %v1492 = vtanh.pop %v1491
    %v1493 = vsub.f32 1.0, %v1481
    %1495 = vrot.lane.b32.xlu0 %v1492, 96
    %v1496 = vpop.permute.xlu0 %1495
    %v1498 = vmul.f32 %v1493, %v1496
    %v1499 = vmul.f32 %v1481, %v1317
    %v1500 = vadd.f32 %v1498, %v1499
    %1502 = vrot.lane.b32.xlu0 %v1500, 96
    %v1503 = vpop.permute.xlu0 %1502
    %v1504 = vsel %vm222, %v1503, 0
    %1506 = vmatprep.subr.mxu0 0.0
    %1507 = vmatpush1.msra.mxu0 %v1504
    %1508 = vmatprep.subr.mxu0 0.0
    %1509 = vmatpush1.msra.mxu0 0.0
    %1510 = vmatprep.subr.mxu0 0.0
    %1511 = vmatpush1.msra.mxu0 0.0
    %1512 = vmatprep.subr.mxu0 0.0
    %1513 = vmatpush1.msra.mxu0 0.0
    %1514 = vmatprep.subr.mxu0 0.0
    %1515 = vmatpush1.msra.mxu0 0.0
    %1516 = vmatprep.subr.mxu0 0.0
    %1517 = vmatpush1.msra.mxu0 0.0
    %1518 = vmatprep.subr.mxu0 0.0
    %1519 = vmatpush1.msra.mxu0 0.0
    %1520 = vmatprep.subr.mxu0 0.0
    %1521 = vmatpush1.msra.mxu0 0.0
    %1522 = vmatprep.subr.mxu0 0.0
    %1523 = vmatpush1.msra.mxu0 0.0
    %1524 = vmatprep.subr.mxu0 0.0
    %1525 = vmatpush1.msra.mxu0 0.0
    %1526 = vmatprep.subr.mxu0 0.0
    %1527 = vmatpush1.msra.mxu0 0.0
    %1528 = vmatprep.subr.mxu0 0.0
    %1529 = vmatpush1.msra.mxu0 0.0
    %1530 = vmatprep.subr.mxu0 0.0
    %1531 = vmatpush1.msra.mxu0 0.0
    %1532 = vmatprep.subr.mxu0 0.0
    %1533 = vmatpush1.msra.mxu0 0.0
    %1534 = vmatprep.subr.mxu0 0.0
    %1535 = vmatpush1.msra.mxu0 0.0
    %1536 = vmatprep.subr.mxu0 0.0
    %1537 = vmatpush1.msra.mxu0 0.0
    %1538 = vmatprep.subr.mxu0 0.0
    %1539 = vmatpush1.msra.mxu0 0.0
    %1540 = vmatprep.subr.mxu0 0.0
    %1541 = vmatpush1.msra.mxu0 0.0
    %1542 = vmatprep.subr.mxu0 0.0
    %1543 = vmatpush1.msra.mxu0 0.0
    %1544 = vmatprep.subr.mxu0 0.0
    %1545 = vmatpush1.msra.mxu0 0.0
    %1546 = vmatprep.subr.mxu0 0.0
    %1547 = vmatpush1.msra.mxu0 0.0
    %1548 = vmatprep.subr.mxu0 0.0
    %1549 = vmatpush1.msra.mxu0 0.0
    %1550 = vmatprep.subr.mxu0 0.0
    %1551 = vmatpush1.msra.mxu0 0.0
    %1552 = vmatprep.subr.mxu0 0.0
    %1553 = vmatpush1.msra.mxu0 0.0
    %1554 = vmatprep.subr.mxu0 0.0
    %1555 = vmatpush1.msra.mxu0 0.0
    %1556 = vmatprep.subr.mxu0 0.0
    %1557 = vmatpush1.msra.mxu0 0.0
    %1558 = vmatprep.subr.mxu0 0.0
    %1559 = vmatpush1.msra.mxu0 0.0
    %1560 = vmatprep.subr.mxu0 0.0
    %1561 = vmatpush1.msra.mxu0 0.0
    %1562 = vmatprep.subr.mxu0 0.0
    %1563 = vmatpush1.msra.mxu0 0.0
    %1564 = vmatprep.subr.mxu0 0.0
    %1565 = vmatpush1.msra.mxu0 0.0
    %1566 = vmatprep.subr.mxu0 0.0
    %1567 = vmatpush1.msra.mxu0 0.0
    %1568 = vmatprep.subr.mxu0 0.0
    %1569 = vmatpush1.msra.mxu0 0.0
    %1570 = vmatprep.mubr.f32.mxu0 0.0
    %1571 = vmatmul.mubr.f32.gmra.mrb[0].mxu0 %v220
    %v1572 = vpop.f32.mrb[0].mxu0
    %v1573 = vadd.f32 0.0, %v1572
    %v1574 = vpop.f32.mrb[0].mxu0
    %1575 = vdwg.mxu0
    %s1576 = scalar_lea.vmem [#allocation2], 14
    %1577 = vst.msk [vmem:[%s1576] sm:$0x3] %vm295, %v1573
    %1579 = vrot.lane.b32.xlu0 %v1573, 112
    %v1580 = vpop.permute.xlu0 %1579
    %1582 = vst.msk [vmem:[#allocation3] sm:$0x3] %vm295, %v1580
    %v1584 = vlaneseq
    %v1585 = vshrl.u32 %v1584, 7
    %v1586 = vsub.s32 0, %v1585
    %v1587 = vrot.slane %v82, %v1586
    %v1589 = vsel %vm114, %v1503, 0
    %1591 = vmatprep.subr.mxu0 0.0
    %1592 = vmatpush1.msra.mxu0 %v78
    %1593 = vmatprep.subr.mxu0 0.0
    %1594 = vmatpush1.msra.mxu0 %v79
    %1595 = vmatprep.subr.mxu0 0.0
    %1596 = vmatpush1.msra.mxu0 %v80
    %1597 = vmatprep.subr.mxu0 0.0
    %1598 = vmatpush1.msra.mxu0 %v81
    %1599 = vmatprep.subr.mxu0 0.0
    %1600 = vmatpush1.msra.mxu0 0.0
    %1601 = vmatprep.subr.mxu0 0.0
    %1602 = vmatpush1.msra.mxu0 0.0
    %1603 = vmatprep.subr.mxu0 0.0
    %1604 = vmatpush1.msra.mxu0 0.0
    %1605 = vmatprep.subr.mxu0 0.0
    %1606 = vmatpush1.msra.mxu0 0.0
    %1607 = vmatprep.subr.mxu0 0.0
    %1608 = vmatpush1.msra.mxu0 0.0
    %1609 = vmatprep.subr.mxu0 0.0
    %1610 = vmatpush1.msra.mxu0 0.0
    %1611 = vmatprep.subr.mxu0 0.0
    %1612 = vmatpush1.msra.mxu0 0.0
    %1613 = vmatprep.subr.mxu0 0.0
    %1614 = vmatpush1.msra.mxu0 0.0
    %1615 = vmatprep.subr.mxu0 0.0
    %1616 = vmatpush1.msra.mxu0 0.0
    %1617 = vmatprep.subr.mxu0 0.0
    %1618 = vmatpush1.msra.mxu0 0.0
    %1619 = vmatprep.subr.mxu0 0.0
    %1620 = vmatpush1.msra.mxu0 0.0
    %1621 = vmatprep.subr.mxu0 0.0
    %1622 = vmatpush1.msra.mxu0 0.0
    %1623 = vmatprep.subr.mxu0 0.0
    %1624 = vmatpush1.msra.mxu0 0.0
    %1625 = vmatprep.subr.mxu0 0.0
    %1626 = vmatpush1.msra.mxu0 0.0
    %1627 = vmatprep.subr.mxu0 0.0
    %1628 = vmatpush1.msra.mxu0 0.0
    %1629 = vmatprep.subr.mxu0 0.0
    %1630 = vmatpush1.msra.mxu0 0.0
    %1631 = vmatprep.subr.mxu0 0.0
    %1632 = vmatpush1.msra.mxu0 0.0
    %1633 = vmatprep.subr.mxu0 0.0
    %1634 = vmatpush1.msra.mxu0 0.0
    %1635 = vmatprep.subr.mxu0 0.0
    %1636 = vmatpush1.msra.mxu0 0.0
    %1637 = vmatprep.subr.mxu0 0.0
    %1638 = vmatpush1.msra.mxu0 0.0
    %1639 = vmatprep.subr.mxu0 0.0
    %1640 = vmatpush1.msra.mxu0 0.0
    %1641 = vmatprep.subr.mxu0 0.0
    %1642 = vmatpush1.msra.mxu0 0.0
    %1643 = vmatprep.subr.mxu0 0.0
    %1644 = vmatpush1.msra.mxu0 0.0
    %1645 = vmatprep.subr.mxu0 0.0
    %1646 = vmatpush1.msra.mxu0 0.0
    %1647 = vmatprep.subr.mxu0 0.0
    %1648 = vmatpush1.msra.mxu0 0.0
    %1649 = vmatprep.subr.mxu0 0.0
    %1650 = vmatpush1.msra.mxu0 0.0
    %1651 = vmatprep.subr.mxu0 0.0
    %1652 = vmatpush1.msra.mxu0 0.0
    %1653 = vmatprep.subr.mxu0 0.0
    %1654 = vmatpush1.msra.mxu0 0.0
    %1655 = vmatprep.mubr.f32.mxu0 0.0
    %1656 = vmatmul.mubr.f32.gmra.mrb[0].mxu0 %v1589
    %v1657 = vpop.f32.mrb[0].mxu0
    %v1658 = vadd.f32 %v1587, %v1657
    %v1659 = vpop.f32.mrb[0].mxu0
    %1660 = vdwg.mxu0
    %v1661 = vtanh.pop %v1658
    %v1663 = vlaneseq
    %v1664 = vshrl.u32 %v1663, 7
    %v1665 = vsub.s32 0, %v1664
    %v1666 = vrot.slane %v76, %v1665
    %v1669 = vsel %vm114, %v1661, 0
    %1671 = vmatprep.subr.mxu0 0.0
    %1672 = vmatpush1.msra.mxu0 %v68
    %1673 = vmatprep.subr.mxu0 0.0
    %1674 = vmatpush1.msra.mxu0 %v69
    %1675 = vmatprep.subr.mxu0 0.0
    %1676 = vmatpush1.msra.mxu0 %v70
    %1677 = vmatprep.subr.mxu0 0.0
    %1678 = vmatpush1.msra.mxu0 %v71
    %1679 = vmatprep.subr.mxu0 0.0
    %1680 = vmatpush1.msra.mxu0 0.0
    %1681 = vmatprep.subr.mxu0 0.0
    %1682 = vmatpush1.msra.mxu0 0.0
    %1683 = vmatprep.subr.mxu0 0.0
    %1684 = vmatpush1.msra.mxu0 0.0
    %1685 = vmatprep.subr.mxu0 0.0
    %1686 = vmatpush1.msra.mxu0 0.0
    %1687 = vmatprep.subr.mxu0 0.0
    %1688 = vmatpush1.msra.mxu0 0.0
    %1689 = vmatprep.subr.mxu0 0.0
    %1690 = vmatpush1.msra.mxu0 0.0
    %1691 = vmatprep.subr.mxu0 0.0
    %1692 = vmatpush1.msra.mxu0 0.0
    %1693 = vmatprep.subr.mxu0 0.0
    %1694 = vmatpush1.msra.mxu0 0.0
    %1695 = vmatprep.subr.mxu0 0.0
    %1696 = vmatpush1.msra.mxu0 0.0
    %1697 = vmatprep.subr.mxu0 0.0
    %1698 = vmatpush1.msra.mxu0 0.0
    %1699 = vmatprep.subr.mxu0 0.0
    %1700 = vmatpush1.msra.mxu0 0.0
    %1701 = vmatprep.subr.mxu0 0.0
    %1702 = vmatpush1.msra.mxu0 0.0
    %1703 = vmatprep.subr.mxu0 0.0
    %1704 = vmatpush1.msra.mxu0 0.0
    %1705 = vmatprep.subr.mxu0 0.0
    %1706 = vmatpush1.msra.mxu0 0.0
    %1707 = vmatprep.subr.mxu0 0.0
    %1708 = vmatpush1.msra.mxu0 0.0
    %1709 = vmatprep.subr.mxu0 0.0
    %1710 = vmatpush1.msra.mxu0 0.0
    %1711 = vmatprep.subr.mxu0 0.0
    %1712 = vmatpush1.msra.mxu0 0.0
    %1713 = vmatprep.subr.mxu0 0.0
    %1714 = vmatpush1.msra.mxu0 0.0
    %1715 = vmatprep.subr.mxu0 0.0
    %1716 = vmatpush1.msra.mxu0 0.0
    %1717 = vmatprep.subr.mxu0 0.0
    %1718 = vmatpush1.msra.mxu0 0.0
    %1719 = vmatprep.subr.mxu0 0.0
    %1720 = vmatpush1.msra.mxu0 0.0
    %1721 = vmatprep.subr.mxu0 0.0
    %1722 = vmatpush1.msra.mxu0 0.0
    %1723 = vmatprep.subr.mxu0 0.0
    %1724 = vmatpush1.msra.mxu0 0.0
    %1725 = vmatprep.subr.mxu0 0.0
    %1726 = vmatpush1.msra.mxu0 0.0
    %1727 = vmatprep.subr.mxu0 0.0
    %1728 = vmatpush1.msra.mxu0 0.0
    %1729 = vmatprep.subr.mxu0 0.0
    %1730 = vmatpush1.msra.mxu0 0.0
    %1731 = vmatprep.subr.mxu0 0.0
    %1732 = vmatpush1.msra.mxu0 0.0
    %1733 = vmatprep.subr.mxu0 0.0
    %1734 = vmatpush1.msra.mxu0 0.0
    %1735 = vmatprep.mubr.f32.mxu0 0.0
    %1736 = vmatmul.mubr.f32.gmra.mrb[0].mxu0 %v1669
    %v1737 = vpop.f32.mrb[0].mxu0
    %v1738 = vadd.f32 %v1666, %v1737
    %v1739 = vpop.f32.mrb[0].mxu0
    %1740 = vdwg.mxu0
    %v1742 = vlaneseq
    %v1743 = vshrl.u32 %v1742, 7
    %v1744 = vsub.s32 0, %v1743
    %v1745 = vrot.slane %v77, %v1744
    %1747 = vmatprep.subr.mxu0 0.0
    %1748 = vmatpush1.msra.mxu0 %v72
    %1749 = vmatprep.subr.mxu0 0.0
    %1750 = vmatpush1.msra.mxu0 %v73
    %1751 = vmatprep.subr.mxu0 0.0
    %1752 = vmatpush1.msra.mxu0 %v74
    %1753 = vmatprep.subr.mxu0 0.0
    %1754 = vmatpush1.msra.mxu0 %v75
    %1755 = vmatprep.subr.mxu0 0.0
    %1756 = vmatpush1.msra.mxu0 0.0
    %1757 = vmatprep.subr.mxu0 0.0
    %1758 = vmatpush1.msra.mxu0 0.0
    %1759 = vmatprep.subr.mxu0 0.0
    %1760 = vmatpush1.msra.mxu0 0.0
    %1761 = vmatprep.subr.mxu0 0.0
    %1762 = vmatpush1.msra.mxu0 0.0
    %1763 = vmatprep.subr.mxu0 0.0
    %1764 = vmatpush1.msra.mxu0 0.0
    %1765 = vmatprep.subr.mxu0 0.0
    %1766 = vmatpush1.msra.mxu0 0.0
    %1767 = vmatprep.subr.mxu0 0.0
    %1768 = vmatpush1.msra.mxu0 0.0
    %1769 = vmatprep.subr.mxu0 0.0
    %1770 = vmatpush1.msra.mxu0 0.0
    %1771 = vmatprep.subr.mxu0 0.0
    %1772 = vmatpush1.msra.mxu0 0.0
    %1773 = vmatprep.subr.mxu0 0.0
    %1774 = vmatpush1.msra.mxu0 0.0
    %1775 = vmatprep.subr.mxu0 0.0
    %1776 = vmatpush1.msra.mxu0 0.0
    %1777 = vmatprep.subr.mxu0 0.0
    %1778 = vmatpush1.msra.mxu0 0.0
    %1779 = vmatprep.subr.mxu0 0.0
    %1780 = vmatpush1.msra.mxu0 0.0
    %1781 = vmatprep.subr.mxu0 0.0
    %1782 = vmatpush1.msra.mxu0 0.0
    %1783 = vmatprep.subr.mxu0 0.0
    %1784 = vmatpush1.msra.mxu0 0.0
    %1785 = vmatprep.subr.mxu0 0.0
    %1786 = vmatpush1.msra.mxu0 0.0
    %1787 = vmatprep.subr.mxu0 0.0
    %1788 = vmatpush1.msra.mxu0 0.0
    %1789 = vmatprep.subr.mxu0 0.0
    %1790 = vmatpush1.msra.mxu0 0.0
    %1791 = vmatprep.subr.mxu0 0.0
    %1792 = vmatpush1.msra.mxu0 0.0
    %1793 = vmatprep.subr.mxu0 0.0
    %1794 = vmatpush1.msra.mxu0 0.0
    %1795 = vmatprep.subr.mxu0 0.0
    %1796 = vmatpush1.msra.mxu0 0.0
    %1797 = vmatprep.subr.mxu0 0.0
    %1798 = vmatpush1.msra.mxu0 0.0
    %1799 = vmatprep.subr.mxu0 0.0
    %1800 = vmatpush1.msra.mxu0 0.0
    %1801 = vmatprep.subr.mxu0 0.0
    %1802 = vmatpush1.msra.mxu0 0.0
    %1803 = vmatprep.subr.mxu0 0.0
    %1804 = vmatpush1.msra.mxu0 0.0
    %1805 = vmatprep.subr.mxu0 0.0
    %1806 = vmatpush1.msra.mxu0 0.0
    %1807 = vmatprep.subr.mxu0 0.0
    %1808 = vmatpush1.msra.mxu0 0.0
    %1809 = vmatprep.subr.mxu0 0.0
    %1810 = vmatpush1.msra.mxu0 0.0
    %1811 = vmatprep.mubr.f32.mxu0 0.0
    %1812 = vmatmul.mubr.f32.gmra.mrb[0].mxu0 %v116
    %v1813 = vpop.f32.mrb[0].mxu0
    %v1814 = vadd.f32 %v1745, %v1813
    %v1815 = vpop.f32.mrb[0].mxu0
    %1816 = vdwg.mxu0
    %v1817 = vld [vmem:[%s2] sm:$0x3]
    %v1819 = vsel %vm218, %v1817, 0
    %v1822 = vsel %vm222, %v1738, 0
    %1824 = vmatprep.subr.mxu0 0.0
    %1825 = vmatpush1.msra.mxu0 %v1822
    %1826 = vmatprep.subr.mxu0 0.0
    %1827 = vmatpush1.msra.mxu0 0.0
    %1828 = vmatprep.subr.mxu0 0.0
    %1829 = vmatpush1.msra.mxu0 0.0
    %1830 = vmatprep.subr.mxu0 0.0
    %1831 = vmatpush1.msra.mxu0 0.0
    %1832 = vmatprep.subr.mxu0 0.0
    %1833 = vmatpush1.msra.mxu0 0.0
    %1834 = vmatprep.subr.mxu0 0.0
    %1835 = vmatpush1.msra.mxu0 0.0
    %1836 = vmatprep.subr.mxu0 0.0
    %1837 = vmatpush1.msra.mxu0 0.0
    %1838 = vmatprep.subr.mxu0 0.0
    %1839 = vmatpush1.msra.mxu0 0.0
    %1840 = vmatprep.subr.mxu0 0.0
    %1841 = vmatpush1.msra.mxu0 0.0
    %1842 = vmatprep.subr.mxu0 0.0
    %1843 = vmatpush1.msra.mxu0 0.0
    %1844 = vmatprep.subr.mxu0 0.0
    %1845 = vmatpush1.msra.mxu0 0.0
    %1846 = vmatprep.subr.mxu0 0.0
    %1847 = vmatpush1.msra.mxu0 0.0
    %1848 = vmatprep.subr.mxu0 0.0
    %1849 = vmatpush1.msra.mxu0 0.0
    %1850 = vmatprep.subr.mxu0 0.0
    %1851 = vmatpush1.msra.mxu0 0.0
    %1852 = vmatprep.subr.mxu0 0.0
    %1853 = vmatpush1.msra.mxu0 0.0
    %1854 = vmatprep.subr.mxu0 0.0
    %1855 = vmatpush1.msra.mxu0 0.0
    %1856 = vmatprep.subr.mxu0 0.0
    %1857 = vmatpush1.msra.mxu0 0.0
    %1858 = vmatprep.subr.mxu0 0.0
    %1859 = vmatpush1.msra.mxu0 0.0
    %1860 = vmatprep.subr.mxu0 0.0
    %1861 = vmatpush1.msra.mxu0 0.0
    %1862 = vmatprep.subr.mxu0 0.0
    %1863 = vmatpush1.msra.mxu0 0.0
    %1864 = vmatprep.subr.mxu0 0.0
    %1865 = vmatpush1.msra.mxu0 0.0
    %1866 = vmatprep.subr.mxu0 0.0
    %1867 = vmatpush1.msra.mxu0 0.0
    %1868 = vmatprep.subr.mxu0 0.0
    %1869 = vmatpush1.msra.mxu0 0.0
    %1870 = vmatprep.subr.mxu0 0.0
    %1871 = vmatpush1.msra.mxu0 0.0
    %1872 = vmatprep.subr.mxu0 0.0
    %1873 = vmatpush1.msra.mxu0 0.0
    %1874 = vmatprep.subr.mxu0 0.0
    %1875 = vmatpush1.msra.mxu0 0.0
    %1876 = vmatprep.subr.mxu0 0.0
    %1877 = vmatpush1.msra.mxu0 0.0
    %1878 = vmatprep.subr.mxu0 0.0
    %1879 = vmatpush1.msra.mxu0 0.0
    %1880 = vmatprep.subr.mxu0 0.0
    %1881 = vmatpush1.msra.mxu0 0.0
    %1882 = vmatprep.subr.mxu0 0.0
    %1883 = vmatpush1.msra.mxu0 0.0
    %1884 = vmatprep.subr.mxu0 0.0
    %1885 = vmatpush1.msra.mxu0 0.0
    %1886 = vmatprep.subr.mxu0 0.0
    %1887 = vmatpush1.msra.mxu0 0.0
    %1888 = vmatprep.mubr.f32.mxu0 0.0
    %1889 = vmatmul.mubr.f32.gmra.mrb[0].mxu0 %v1819
    %v1890 = vpop.f32.mrb[0].mxu0
    %v1891 = vadd.f32 0.0, %v1890
    %v1892 = vpop.f32.mrb[0].mxu0
    %1893 = vdwg.mxu0
    %v1894 = vadd.f32 %v1891, %v1814
    %v1895 = vxor.u32 %v1894, 2147483648
    %v1896 = vmul.f32 %v1895, 1.442695
    %v1897 = vpow.pop %v1896
    %v1898 = vadd.f32 %v1897, 1.0
    %v1899 = vrcp.pop %v1898
    %v1900 = vmul.f32 1.0, %v1899
    %1902 = vrot.lane.b32.xlu0 %v1814, 64
    %v1903 = vpop.permute.xlu0 %1902
    %v1905 = vmul.f32 %v1900, %v1903
    %1907 = vrot.lane.b32.xlu0 %v1905, 64
    %v1908 = vpop.permute.xlu0 %1907
    %v1910 = vadd.f32 %v1891, %v1908
    %v1911 = vtanh.pop %v1910
    %v1912 = vsub.f32 1.0, %v1900
    %1914 = vrot.lane.b32.xlu0 %v1911, 96
    %v1915 = vpop.permute.xlu0 %1914
    %v1917 = vmul.f32 %v1912, %v1915
    %v1918 = vmul.f32 %v1900, 0.0
    %v1919 = vadd.f32 %v1917, %v1918
    %1921 = vrot.lane.b32.xlu0 %v1919, 96
    %v1922 = vpop.permute.xlu0 %1921
    %v1923 = vsel %vm114, %v1922, 0
    %1925 = vmatprep.subr.mxu0 0.0
    %1926 = vmatpush1.msra.mxu0 %v72
    %1927 = vmatprep.subr.mxu0 0.0
    %1928 = vmatpush1.msra.mxu0 %v73
    %1929 = vmatprep.subr.mxu0 0.0
    %1930 = vmatpush1.msra.mxu0 %v74
    %1931 = vmatprep.subr.mxu0 0.0
    %1932 = vmatpush1.msra.mxu0 %v75
    %1933 = vmatprep.subr.mxu0 0.0
    %1934 = vmatpush1.msra.mxu0 0.0
    %1935 = vmatprep.subr.mxu0 0.0
    %1936 = vmatpush1.msra.mxu0 0.0
    %1937 = vmatprep.subr.mxu0 0.0
    %1938 = vmatpush1.msra.mxu0 0.0
    %1939 = vmatprep.subr.mxu0 0.0
    %1940 = vmatpush1.msra.mxu0 0.0
    %1941 = vmatprep.subr.mxu0 0.0
    %1942 = vmatpush1.msra.mxu0 0.0
    %1943 = vmatprep.subr.mxu0 0.0
    %1944 = vmatpush1.msra.mxu0 0.0
    %1945 = vmatprep.subr.mxu0 0.0
    %1946 = vmatpush1.msra.mxu0 0.0
    %1947 = vmatprep.subr.mxu0 0.0
    %1948 = vmatpush1.msra.mxu0 0.0
    %1949 = vmatprep.subr.mxu0 0.0
    %1950 = vmatpush1.msra.mxu0 0.0
    %1951 = vmatprep.subr.mxu0 0.0
    %1952 = vmatpush1.msra.mxu0 0.0
    %1953 = vmatprep.subr.mxu0 0.0
    %1954 = vmatpush1.msra.mxu0 0.0
    %1955 = vmatprep.subr.mxu0 0.0
    %1956 = vmatpush1.msra.mxu0 0.0
    %1957 = vmatprep.subr.mxu0 0.0
    %1958 = vmatpush1.msra.mxu0 0.0
    %1959 = vmatprep.subr.mxu0 0.0
    %1960 = vmatpush1.msra.mxu0 0.0
    %1961 = vmatprep.subr.mxu0 0.0
    %1962 = vmatpush1.msra.mxu0 0.0
    %1963 = vmatprep.subr.mxu0 0.0
    %1964 = vmatpush1.msra.mxu0 0.0
    %1965 = vmatprep.subr.mxu0 0.0
    %1966 = vmatpush1.msra.mxu0 0.0
    %1967 = vmatprep.subr.mxu0 0.0
    %1968 = vmatpush1.msra.mxu0 0.0
    %1969 = vmatprep.subr.mxu0 0.0
    %1970 = vmatpush1.msra.mxu0 0.0
    %1971 = vmatprep.subr.mxu0 0.0
    %1972 = vmatpush1.msra.mxu0 0.0
    %1973 = vmatprep.subr.mxu0 0.0
    %1974 = vmatpush1.msra.mxu0 0.0
    %1975 = vmatprep.subr.mxu0 0.0
    %1976 = vmatpush1.msra.mxu0 0.0
    %1977 = vmatprep.subr.mxu0 0.0
    %1978 = vmatpush1.msra.mxu0 0.0
    %1979 = vmatprep.subr.mxu0 0.0
    %1980 = vmatpush1.msra.mxu0 0.0
    %1981 = vmatprep.subr.mxu0 0.0
    %1982 = vmatpush1.msra.mxu0 0.0
    %1983 = vmatprep.subr.mxu0 0.0
    %1984 = vmatpush1.msra.mxu0 0.0
    %1985 = vmatprep.subr.mxu0 0.0
    %1986 = vmatpush1.msra.mxu0 0.0
    %1987 = vmatprep.subr.mxu0 0.0
    %1988 = vmatpush1.msra.mxu0 0.0
    %1989 = vmatprep.mubr.f32.mxu0 0.0
    %1990 = vmatmul.mubr.f32.gmra.mrb[0].mxu0 %v1923
    %v1991 = vpop.f32.mrb[0].mxu0
    %v1992 = vadd.f32 %v1745, %v1991
    %v1993 = vpop.f32.mrb[0].mxu0
    %1994 = vdwg.mxu0
    %v1995 = vld [vmem:[%s106] sm:$0x3]
    %v1997 = vsel %vm218, %v1995, 0
    %1999 = vmatprep.subr.mxu0 0.0
    %2000 = vmatpush1.msra.mxu0 %v1822
    %2001 = vmatprep.subr.mxu0 0.0
    %2002 = vmatpush1.msra.mxu0 0.0
    %2003 = vmatprep.subr.mxu0 0.0
    %2004 = vmatpush1.msra.mxu0 0.0
    %2005 = vmatprep.subr.mxu0 0.0
    %2006 = vmatpush1.msra.mxu0 0.0
    %2007 = vmatprep.subr.mxu0 0.0
    %2008 = vmatpush1.msra.mxu0 0.0
    %2009 = vmatprep.subr.mxu0 0.0
    %2010 = vmatpush1.msra.mxu0 0.0
    %2011 = vmatprep.subr.mxu0 0.0
    %2012 = vmatpush1.msra.mxu0 0.0
    %2013 = vmatprep.subr.mxu0 0.0
    %2014 = vmatpush1.msra.mxu0 0.0
    %2015 = vmatprep.subr.mxu0 0.0
    %2016 = vmatpush1.msra.mxu0 0.0
    %2017 = vmatprep.subr.mxu0 0.0
    %2018 = vmatpush1.msra.mxu0 0.0
    %2019 = vmatprep.subr.mxu0 0.0
    %2020 = vmatpush1.msra.mxu0 0.0
    %2021 = vmatprep.subr.mxu0 0.0
    %2022 = vmatpush1.msra.mxu0 0.0
    %2023 = vmatprep.subr.mxu0 0.0
    %2024 = vmatpush1.msra.mxu0 0.0
    %2025 = vmatprep.subr.mxu0 0.0
    %2026 = vmatpush1.msra.mxu0 0.0
    %2027 = vmatprep.subr.mxu0 0.0
    %2028 = vmatpush1.msra.mxu0 0.0
    %2029 = vmatprep.subr.mxu0 0.0
    %2030 = vmatpush1.msra.mxu0 0.0
    %2031 = vmatprep.subr.mxu0 0.0
    %2032 = vmatpush1.msra.mxu0 0.0
    %2033 = vmatprep.subr.mxu0 0.0
    %2034 = vmatpush1.msra.mxu0 0.0
    %2035 = vmatprep.subr.mxu0 0.0
    %2036 = vmatpush1.msra.mxu0 0.0
    %2037 = vmatprep.subr.mxu0 0.0
    %2038 = vmatpush1.msra.mxu0 0.0
    %2039 = vmatprep.subr.mxu0 0.0
    %2040 = vmatpush1.msra.mxu0 0.0
    %2041 = vmatprep.subr.mxu0 0.0
    %2042 = vmatpush1.msra.mxu0 0.0
    %2043 = vmatprep.subr.mxu0 0.0
    %2044 = vmatpush1.msra.mxu0 0.0
    %2045 = vmatprep.subr.mxu0 0.0
    %2046 = vmatpush1.msra.mxu0 0.0
    %2047 = vmatprep.subr.mxu0 0.0
    %2048 = vmatpush1.msra.mxu0 0.0
    %2049 = vmatprep.subr.mxu0 0.0
    %2050 = vmatpush1.msra.mxu0 0.0
    %2051 = vmatprep.subr.mxu0 0.0
    %2052 = vmatpush1.msra.mxu0 0.0
    %2053 = vmatprep.subr.mxu0 0.0
    %2054 = vmatpush1.msra.mxu0 0.0
    %2055 = vmatprep.subr.mxu0 0.0
    %2056 = vmatpush1.msra.mxu0 0.0
    %2057 = vmatprep.subr.mxu0 0.0
    %2058 = vmatpush1.msra.mxu0 0.0
    %2059 = vmatprep.subr.mxu0 0.0
    %2060 = vmatpush1.msra.mxu0 0.0
    %2061 = vmatprep.subr.mxu0 0.0
    %2062 = vmatpush1.msra.mxu0 0.0
    %2063 = vmatprep.mubr.f32.mxu0 0.0
    %2064 = vmatmul.mubr.f32.gmra.mrb[0].mxu0 %v1997
    %v2065 = vpop.f32.mrb[0].mxu0
    %v2066 = vadd.f32 0.0, %v2065
    %v2067 = vpop.f32.mrb[0].mxu0
    %2068 = vdwg.mxu0
    %v2069 = vadd.f32 %v2066, %v1992
    %v2070 = vxor.u32 %v2069, 2147483648
    %v2071 = vmul.f32 %v2070, 1.442695
    %v2072 = vpow.pop %v2071
    %v2073 = vadd.f32 %v2072, 1.0
    %v2074 = vrcp.pop %v2073
    %v2075 = vmul.f32 1.0, %v2074
    %2077 = vrot.lane.b32.xlu0 %v1992, 64
    %v2078 = vpop.permute.xlu0 %2077
    %v2080 = vmul.f32 %v2075, %v2078
    %2082 = vrot.lane.b32.xlu0 %v2080, 64
    %v2083 = vpop.permute.xlu0 %2082
    %v2085 = vadd.f32 %v2066, %v2083
    %v2086 = vtanh.pop %v2085
    %v2087 = vsub.f32 1.0, %v2075
    %2089 = vrot.lane.b32.xlu0 %v2086, 96
    %v2090 = vpop.permute.xlu0 %2089
    %v2092 = vmul.f32 %v2087, %v2090
    %v2093 = vmul.f32 %v2075, %v1919
    %v2094 = vadd.f32 %v2092, %v2093
    %2096 = vrot.lane.b32.xlu0 %v2094, 96
    %v2097 = vpop.permute.xlu0 %2096
    %v2098 = vsel %vm114, %v2097, 0
    %2100 = vmatprep.subr.mxu0 0.0
    %2101 = vmatpush1.msra.mxu0 %v78
    %2102 = vmatprep.subr.mxu0 0.0
    %2103 = vmatpush1.msra.mxu0 %v79
    %2104 = vmatprep.subr.mxu0 0.0
    %2105 = vmatpush1.msra.mxu0 %v80
    %2106 = vmatprep.subr.mxu0 0.0
    %2107 = vmatpush1.msra.mxu0 %v81
    %2108 = vmatprep.subr.mxu0 0.0
    %2109 = vmatpush1.msra.mxu0 0.0
    %2110 = vmatprep.subr.mxu0 0.0
    %2111 = vmatpush1.msra.mxu0 0.0
    %2112 = vmatprep.subr.mxu0 0.0
    %2113 = vmatpush1.msra.mxu0 0.0
    %2114 = vmatprep.subr.mxu0 0.0
    %2115 = vmatpush1.msra.mxu0 0.0
    %2116 = vmatprep.subr.mxu0 0.0
    %2117 = vmatpush1.msra.mxu0 0.0
    %2118 = vmatprep.subr.mxu0 0.0
    %2119 = vmatpush1.msra.mxu0 0.0
    %2120 = vmatprep.subr.mxu0 0.0
    %2121 = vmatpush1.msra.mxu0 0.0
    %2122 = vmatprep.subr.mxu0 0.0
    %2123 = vmatpush1.msra.mxu0 0.0
    %2124 = vmatprep.subr.mxu0 0.0
    %2125 = vmatpush1.msra.mxu0 0.0
    %2126 = vmatprep.subr.mxu0 0.0
    %2127 = vmatpush1.msra.mxu0 0.0
    %2128 = vmatprep.subr.mxu0 0.0
    %2129 = vmatpush1.msra.mxu0 0.0
    %2130 = vmatprep.subr.mxu0 0.0
    %2131 = vmatpush1.msra.mxu0 0.0
    %2132 = vmatprep.subr.mxu0 0.0
    %2133 = vmatpush1.msra.mxu0 0.0
    %2134 = vmatprep.subr.mxu0 0.0
    %2135 = vmatpush1.msra.mxu0 0.0
    %2136 = vmatprep.subr.mxu0 0.0
    %2137 = vmatpush1.msra.mxu0 0.0
    %2138 = vmatprep.subr.mxu0 0.0
    %2139 = vmatpush1.msra.mxu0 0.0
    %2140 = vmatprep.subr.mxu0 0.0
    %2141 = vmatpush1.msra.mxu0 0.0
    %2142 = vmatprep.subr.mxu0 0.0
    %2143 = vmatpush1.msra.mxu0 0.0
    %2144 = vmatprep.subr.mxu0 0.0
    %2145 = vmatpush1.msra.mxu0 0.0
    %2146 = vmatprep.subr.mxu0 0.0
    %2147 = vmatpush1.msra.mxu0 0.0
    %2148 = vmatprep.subr.mxu0 0.0
    %2149 = vmatpush1.msra.mxu0 0.0
    %2150 = vmatprep.subr.mxu0 0.0
    %2151 = vmatpush1.msra.mxu0 0.0
    %2152 = vmatprep.subr.mxu0 0.0
    %2153 = vmatpush1.msra.mxu0 0.0
    %2154 = vmatprep.subr.mxu0 0.0
    %2155 = vmatpush1.msra.mxu0 0.0
    %2156 = vmatprep.subr.mxu0 0.0
    %2157 = vmatpush1.msra.mxu0 0.0
    %2158 = vmatprep.subr.mxu0 0.0
    %2159 = vmatpush1.msra.mxu0 0.0
    %2160 = vmatprep.subr.mxu0 0.0
    %2161 = vmatpush1.msra.mxu0 0.0
    %2162 = vmatprep.subr.mxu0 0.0
    %2163 = vmatpush1.msra.mxu0 0.0
    %2164 = vmatprep.mubr.f32.mxu0 0.0
    %2165 = vmatmul.mubr.f32.gmra.mrb[0].mxu0 %v2098
    %v2166 = vpop.f32.mrb[0].mxu0
    %v2167 = vadd.f32 %v1587, %v2166
    %v2168 = vpop.f32.mrb[0].mxu0
    %2169 = vdwg.mxu0
    %v2170 = vtanh.pop %v2167
    %v2171 = vld [vmem:[#allocation2] sm:$0x3]
    %v2172 = vld [vmem:[#allocation2 + $0x2] sm:$0x3]
    %v2173 = vld [vmem:[#allocation2 + $0x4] sm:$0x3]
    %v2174 = vld [vmem:[#allocation2 + $0x6] sm:$0x3]
    %v2175 = vld [vmem:[#allocation2 + $0x8] sm:$0x3]
    %v2176 = vld [vmem:[#allocation2 + $0xa] sm:$0x3]
    %v2177 = vld [vmem:[#allocation2 + $0xc] sm:$0x3]
    %v2178 = vld [vmem:[#allocation2 + $0xe] sm:$0x3]
    %v2179 = vld [vmem:[#allocation3] sm:$0x3]
    %v2180 = vld [vmem:[#allocation3 + $0x2] sm:$0x3]
    %v2181 = vld [vmem:[#allocation3 + $0x4] sm:$0x3]
    %v2182 = vld [vmem:[#allocation3 + $0x6] sm:$0x3]
    %v2183 = vld [vmem:[#allocation3 + $0x8] sm:$0x3]
    %v2184 = vld [vmem:[#allocation3 + $0xa] sm:$0x3]
    %v2185 = vld [vmem:[#allocation3 + $0xc] sm:$0x3]
    %v2186 = vld [vmem:[#allocation3 + $0xe] sm:$0x3]
    %v2187 = vld [vmem:[%s1] sm:$0x3]
    %2188 = vmatprep.subr.mxu0 0.0
    %2189 = vmatpush1.msra.mxu0 %v83
    %2190 = vmatprep.subr.mxu0 0.0
    %2191 = vmatpush1.msra.mxu0 %v84
    %2192 = vmatprep.subr.mxu0 0.0
    %2193 = vmatpush1.msra.mxu0 %v85
    %2194 = vmatprep.subr.mxu0 0.0
    %2195 = vmatpush1.msra.mxu0 %v86
    %2196 = vmatprep.subr.mxu0 0.0
    %2197 = vmatpush1.msra.mxu0 0.0
    %2198 = vmatprep.subr.mxu0 0.0
    %2199 = vmatpush1.msra.mxu0 0.0
    %2200 = vmatprep.subr.mxu0 0.0
    %2201 = vmatpush1.msra.mxu0 0.0
    %2202 = vmatprep.subr.mxu0 0.0
    %2203 = vmatpush1.msra.mxu0 0.0
    %2204 = vmatprep.subr.mxu0 0.0
    %2205 = vmatpush1.msra.mxu0 0.0
    %2206 = vmatprep.subr.mxu0 0.0
    %2207 = vmatpush1.msra.mxu0 0.0
    %2208 = vmatprep.subr.mxu0 0.0
    %2209 = vmatpush1.msra.mxu0 0.0
    %2210 = vmatprep.subr.mxu0 0.0
    %2211 = vmatpush1.msra.mxu0 0.0
    %2212 = vmatprep.subr.mxu0 0.0
    %2213 = vmatpush1.msra.mxu0 0.0
    %2214 = vmatprep.subr.mxu0 0.0
    %2215 = vmatpush1.msra.mxu0 0.0
    %2216 = vmatprep.subr.mxu0 0.0
    %2217 = vmatpush1.msra.mxu0 0.0
    %2218 = vmatprep.subr.mxu0 0.0
    %2219 = vmatpush1.msra.mxu0 0.0
    %2220 = vmatprep.subr.mxu0 0.0
    %2221 = vmatpush1.msra.mxu0 0.0
    %2222 = vmatprep.subr.mxu0 0.0
    %2223 = vmatpush1.msra.mxu0 0.0
    %2224 = vmatprep.subr.mxu0 0.0
    %2225 = vmatpush1.msra.mxu0 0.0
    %2226 = vmatprep.subr.mxu0 0.0
    %2227 = vmatpush1.msra.mxu0 0.0
    %2228 = vmatprep.subr.mxu0 0.0
    %2229 = vmatpush1.msra.mxu0 0.0
    %2230 = vmatprep.subr.mxu0 0.0
    %2231 = vmatpush1.msra.mxu0 0.0
    %2232 = vmatprep.subr.mxu0 0.0
    %2233 = vmatpush1.msra.mxu0 0.0
    %2234 = vmatprep.subr.mxu0 0.0
    %2235 = vmatpush1.msra.mxu0 0.0
    %2236 = vmatprep.subr.mxu0 0.0
    %2237 = vmatpush1.msra.mxu0 0.0
    %2238 = vmatprep.subr.mxu0 0.0
    %2239 = vmatpush1.msra.mxu0 0.0
    %2240 = vmatprep.subr.mxu0 0.0
    %2241 = vmatpush1.msra.mxu0 0.0
    %2242 = vmatprep.subr.mxu0 0.0
    %2243 = vmatpush1.msra.mxu0 0.0
    %2244 = vmatprep.subr.mxu0 0.0
    %2245 = vmatpush1.msra.mxu0 0.0
    %2246 = vmatprep.subr.mxu0 0.0
    %2247 = vmatpush1.msra.mxu0 0.0
    %2248 = vmatprep.subr.mxu0 0.0
    %2249 = vmatpush1.msra.mxu0 0.0
    %2250 = vmatprep.subr.mxu0 0.0
    %2251 = vmatpush1.msra.mxu0 0.0
    %2252 = vmatprep.mubr.f32.mxu0 0.0
    %2253 = vmatmul.mubr.f32.gmra.mrb[0].mxu0 %v116
    %v2254 = vpop.f32.mrb[0].mxu0
    %v2255 = vadd.f32 0.0, %v2254
    %v2256 = vpop.f32.mrb[0].mxu0
    %2257 = vdwg.mxu0
    %v2258 = vadd.f32 %v2187, %v2255
    %v2260 = vlaneseq
    %v2261 = vshrl.u32 %v2260, 7
    %v2262 = vsub.s32 0, %v2261
    %v2263 = vrot.slane %v91, %v2262
    %v2266 = vsel %vm114, %v2170, 0
    %2268 = vmatprep.subr.mxu0 0.0
    %2269 = vmatpush1.msra.mxu0 %v87
    %2270 = vmatprep.subr.mxu0 0.0
    %2271 = vmatpush1.msra.mxu0 %v88
    %2272 = vmatprep.subr.mxu0 0.0
    %2273 = vmatpush1.msra.mxu0 %v89
    %2274 = vmatprep.subr.mxu0 0.0
    %2275 = vmatpush1.msra.mxu0 %v90
    %2276 = vmatprep.subr.mxu0 0.0
    %2277 = vmatpush1.msra.mxu0 0.0
    %2278 = vmatprep.subr.mxu0 0.0
    %2279 = vmatpush1.msra.mxu0 0.0
    %2280 = vmatprep.subr.mxu0 0.0
    %2281 = vmatpush1.msra.mxu0 0.0
    %2282 = vmatprep.subr.mxu0 0.0
    %2283 = vmatpush1.msra.mxu0 0.0
    %2284 = vmatprep.subr.mxu0 0.0
    %2285 = vmatpush1.msra.mxu0 0.0
    %2286 = vmatprep.subr.mxu0 0.0
    %2287 = vmatpush1.msra.mxu0 0.0
    %2288 = vmatprep.subr.mxu0 0.0
    %2289 = vmatpush1.msra.mxu0 0.0
    %2290 = vmatprep.subr.mxu0 0.0
    %2291 = vmatpush1.msra.mxu0 0.0
    %2292 = vmatprep.subr.mxu0 0.0
    %2293 = vmatpush1.msra.mxu0 0.0
    %2294 = vmatprep.subr.mxu0 0.0
    %2295 = vmatpush1.msra.mxu0 0.0
    %2296 = vmatprep.subr.mxu0 0.0
    %2297 = vmatpush1.msra.mxu0 0.0
    %2298 = vmatprep.subr.mxu0 0.0
    %2299 = vmatpush1.msra.mxu0 0.0
    %2300 = vmatprep.subr.mxu0 0.0
    %2301 = vmatpush1.msra.mxu0 0.0
    %2302 = vmatprep.subr.mxu0 0.0
    %2303 = vmatpush1.msra.mxu0 0.0
    %2304 = vmatprep.subr.mxu0 0.0
    %2305 = vmatpush1.msra.mxu0 0.0
    %2306 = vmatprep.subr.mxu0 0.0
    %2307 = vmatpush1.msra.mxu0 0.0
    %2308 = vmatprep.subr.mxu0 0.0
    %2309 = vmatpush1.msra.mxu0 0.0
    %2310 = vmatprep.subr.mxu0 0.0
    %2311 = vmatpush1.msra.mxu0 0.0
    %2312 = vmatprep.subr.mxu0 0.0
    %2313 = vmatpush1.msra.mxu0 0.0
    %2314 = vmatprep.subr.mxu0 0.0
    %2315 = vmatpush1.msra.mxu0 0.0
    %2316 = vmatprep.subr.mxu0 0.0
    %2317 = vmatpush1.msra.mxu0 0.0
    %2318 = vmatprep.subr.mxu0 0.0
    %2319 = vmatpush1.msra.mxu0 0.0
    %2320 = vmatprep.subr.mxu0 0.0
    %2321 = vmatpush1.msra.mxu0 0.0
    %2322 = vmatprep.subr.mxu0 0.0
    %2323 = vmatpush1.msra.mxu0 0.0
    %2324 = vmatprep.subr.mxu0 0.0
    %2325 = vmatpush1.msra.mxu0 0.0
    %2326 = vmatprep.subr.mxu0 0.0
    %2327 = vmatpush1.msra.mxu0 0.0
    %2328 = vmatprep.subr.mxu0 0.0
    %2329 = vmatpush1.msra.mxu0 0.0
    %2330 = vmatprep.subr.mxu0 0.0
    %2331 = vmatpush1.msra.mxu0 0.0
    %2332 = vmatprep.mubr.f32.mxu0 0.0
    %2333 = vmatmul.mubr.f32.gmra.mrb[0].mxu0 %v2266
    %v2334 = vpop.f32.mrb[0].mxu0
    %v2335 = vadd.f32 %v2263, %v2334
    %v2336 = vpop.f32.mrb[0].mxu0
    %2337 = vdwg.mxu0
    %v2338 = vadd.f32 %v2258, %v2335
    %v2339 = vxor.u32 %v2338, 2147483648
    %v2340 = vmul.f32 %v2339, 1.442695
    %v2341 = vpow.pop %v2340
    %v2342 = vadd.f32 %v2341, 1.0
    %v2343 = vrcp.pop %v2342
    %v2344 = vmul.f32 1.0, %v2343
    %2346 = vrot.lane.b32.xlu0 %v2335, 64
    %v2347 = vpop.permute.xlu0 %2346
    %v2349 = vmul.f32 %v2344, %v2347
    %2351 = vrot.lane.b32.xlu0 %v2349, 64
    %v2352 = vpop.permute.xlu0 %2351
    %v2354 = vadd.f32 %v2258, %v2352
    %v2355 = vtanh.pop %v2354
    %v2356 = vsub.f32 1.0, %v2344
    %2358 = vrot.lane.b32.xlu0 %v2355, 96
    %v2359 = vpop.permute.xlu0 %2358
    %v2361 = vmul.f32 %v2356, %v2359
    %2362 = vrot.lane.b32.xlu0 %v2170, 32
    %v2363 = vpop.permute.xlu0 %2362
    %v2365 = vmul.f32 %v2344, %v2363
    %v2366 = vadd.f32 %v2361, %v2365
    %2368 = vrot.lane.b32.xlu0 %v2366, 96
    %v2369 = vpop.permute.xlu0 %2368
    %v2370 = vsel %vm114, %v2369, 0
    %2372 = vmatprep.subr.mxu0 0.0
    %2373 = vmatpush1.msra.mxu0 %v92
    %2374 = vmatprep.subr.mxu0 0.0
    %2375 = vmatpush1.msra.mxu0 %v93
    %2376 = vmatprep.subr.mxu0 0.0
    %2377 = vmatpush1.msra.mxu0 %v94
    %2378 = vmatprep.subr.mxu0 0.0
    %2379 = vmatpush1.msra.mxu0 %v95
    %2380 = vmatprep.subr.mxu0 0.0
    %2381 = vmatpush1.msra.mxu0 0.0
    %2382 = vmatprep.subr.mxu0 0.0
    %2383 = vmatpush1.msra.mxu0 0.0
    %2384 = vmatprep.subr.mxu0 0.0
    %2385 = vmatpush1.msra.mxu0 0.0
    %2386 = vmatprep.subr.mxu0 0.0
    %2387 = vmatpush1.msra.mxu0 0.0
    %2388 = vmatprep.subr.mxu0 0.0
    %2389 = vmatpush1.msra.mxu0 0.0
    %2390 = vmatprep.subr.mxu0 0.0
    %2391 = vmatpush1.msra.mxu0 0.0
    %2392 = vmatprep.subr.mxu0 0.0
    %2393 = vmatpush1.msra.mxu0 0.0
    %2394 = vmatprep.subr.mxu0 0.0
    %2395 = vmatpush1.msra.mxu0 0.0
    %2396 = vmatprep.subr.mxu0 0.0
    %2397 = vmatpush1.msra.mxu0 0.0
    %2398 = vmatprep.subr.mxu0 0.0
    %2399 = vmatpush1.msra.mxu0 0.0
    %2400 = vmatprep.subr.mxu0 0.0
    %2401 = vmatpush1.msra.mxu0 0.0
    %2402 = vmatprep.subr.mxu0 0.0
    %2403 = vmatpush1.msra.mxu0 0.0
    %2404 = vmatprep.subr.mxu0 0.0
    %2405 = vmatpush1.msra.mxu0 0.0
    %2406 = vmatprep.subr.mxu0 0.0
    %2407 = vmatpush1.msra.mxu0 0.0
    %2408 = vmatprep.subr.mxu0 0.0
    %2409 = vmatpush1.msra.mxu0 0.0
    %2410 = vmatprep.subr.mxu0 0.0
    %2411 = vmatpush1.msra.mxu0 0.0
    %2412 = vmatprep.subr.mxu0 0.0
    %2413 = vmatpush1.msra.mxu0 0.0
    %2414 = vmatprep.subr.mxu0 0.0
    %2415 = vmatpush1.msra.mxu0 0.0
    %2416 = vmatprep.subr.mxu0 0.0
    %2417 = vmatpush1.msra.mxu0 0.0
    %2418 = vmatprep.subr.mxu0 0.0
    %2419 = vmatpush1.msra.mxu0 0.0
    %2420 = vmatprep.subr.mxu0 0.0
    %2421 = vmatpush1.msra.mxu0 0.0
    %2422 = vmatprep.subr.mxu0 0.0
    %2423 = vmatpush1.msra.mxu0 0.0
    %2424 = vmatprep.subr.mxu0 0.0
    %2425 = vmatpush1.msra.mxu0 0.0
    %2426 = vmatprep.subr.mxu0 0.0
    %2427 = vmatpush1.msra.mxu0 0.0
    %2428 = vmatprep.subr.mxu0 0.0
    %2429 = vmatpush1.msra.mxu0 0.0
    %2430 = vmatprep.subr.mxu0 0.0
    %2431 = vmatpush1.msra.mxu0 0.0
    %2432 = vmatprep.subr.mxu0 0.0
    %2433 = vmatpush1.msra.mxu0 0.0
    %2434 = vmatprep.subr.mxu0 0.0
    %2435 = vmatpush1.msra.mxu0 0.0
    %2436 = vmatprep.mubr.f32.mxu0 0.0
    %2437 = vmatmul.mubr.f32.gmra.mrb[0].mxu0 %v2370
    %v2438 = vpop.f32.mrb[0].mxu0
    %v2439 = vadd.f32 0.0, %v2438
    %v2440 = vpop.f32.mrb[0].mxu0
    %2441 = vdwg.mxu0
    %v2442 = vmul.f32 %v2171, %v2439
    %v2443 = vmul.f32 %v2172, %v2439
    %v2444 = vmul.f32 %v2173, %v2439
    %v2445 = vmul.f32 %v2174, %v2439
    %v2446 = vmul.f32 %v2175, %v2439
    %v2447 = vmul.f32 %v2176, %v2439
    %v2448 = vmul.f32 %v2177, %v2439
    %v2449 = vmul.f32 %v2178, %v2439
    %v2450 = vsel %vm295, %v2442, 0.0
    %2451 = vadd.xlane.f32.xlu0 %v2450
    %v2452 = vpop.xlane.xlu0 %2451
    %v2453 = vsel %vm295, %v2443, 0.0
    %2454 = vadd.xlane.f32.xlu0 %v2453
    %v2455 = vpop.xlane.xlu0 %2454
    %v2456 = vsel %vm295, %v2444, 0.0
    %2457 = vadd.xlane.f32.xlu0 %v2456
    %v2458 = vpop.xlane.xlu0 %2457
    %v2459 = vsel %vm295, %v2445, 0.0
    %2460 = vadd.xlane.f32.xlu0 %v2459
    %v2461 = vpop.xlane.xlu0 %2460
    %v2462 = vsel %vm295, %v2446, 0.0
    %2463 = vadd.xlane.f32.xlu0 %v2462
    %v2464 = vpop.xlane.xlu0 %2463
    %v2465 = vsel %vm295, %v2447, 0.0
    %2466 = vadd.xlane.f32.xlu0 %v2465
    %v2467 = vpop.xlane.xlu0 %2466
    %v2468 = vsel %vm295, %v2448, 0.0
    %2469 = vadd.xlane.f32.xlu0 %v2468
    %v2470 = vpop.xlane.xlu0 %2469
    %v2471 = vsel %vm295, %v2449, 0.0
    %2472 = vadd.xlane.f32.xlu0 %v2471
    %v2473 = vpop.xlane.xlu0 %2472
    %2475 = vrot.lane.b32.xlu0 %v2439, 112
    %v2476 = vpop.permute.xlu0 %2475
    %v2478 = vmul.f32 %v2179, %v2476
    %v2479 = vmul.f32 %v2180, %v2476
    %v2480 = vmul.f32 %v2181, %v2476
    %v2481 = vmul.f32 %v2182, %v2476
    %v2482 = vmul.f32 %v2183, %v2476
    %v2483 = vmul.f32 %v2184, %v2476
    %v2484 = vmul.f32 %v2185, %v2476
    %v2485 = vmul.f32 %v2186, %v2476
    %v2486 = vsel %vm295, %v2478, 0.0
    %2487 = vadd.xlane.f32.xlu0 %v2486
    %v2488 = vpop.xlane.xlu0 %2487
    %v2489 = vsel %vm295, %v2479, 0.0
    %2490 = vadd.xlane.f32.xlu0 %v2489
    %v2491 = vpop.xlane.xlu0 %2490
    %v2492 = vsel %vm295, %v2480, 0.0
    %2493 = vadd.xlane.f32.xlu0 %v2492
    %v2494 = vpop.xlane.xlu0 %2493
    %v2495 = vsel %vm295, %v2481, 0.0
    %2496 = vadd.xlane.f32.xlu0 %v2495
    %v2497 = vpop.xlane.xlu0 %2496
    %v2498 = vsel %vm295, %v2482, 0.0
    %2499 = vadd.xlane.f32.xlu0 %v2498
    %v2500 = vpop.xlane.xlu0 %2499
    %v2501 = vsel %vm295, %v2483, 0.0
    %2502 = vadd.xlane.f32.xlu0 %v2501
    %v2503 = vpop.xlane.xlu0 %2502
    %v2504 = vsel %vm295, %v2484, 0.0
    %2505 = vadd.xlane.f32.xlu0 %v2504
    %v2506 = vpop.xlane.xlu0 %2505
    %v2507 = vsel %vm295, %v2485, 0.0
    %2508 = vadd.xlane.f32.xlu0 %v2507
    %v2509 = vpop.xlane.xlu0 %2508
    %v2510 = vadd.f32 %v2452, %v2488
    %v2511 = vadd.f32 %v2455, %v2491
    %v2512 = vadd.f32 %v2458, %v2494
    %v2513 = vadd.f32 %v2461, %v2497
    %v2514 = vadd.f32 %v2464, %v2500
    %v2515 = vadd.f32 %v2467, %v2503
    %v2516 = vadd.f32 %v2470, %v2506
    %v2517 = vadd.f32 %v2473, %v2509
    %vm2518 = vcmask 1041408
    %v2519 = vsel %vm2518, %v2510, -inf
    %v2520 = vsel %vm2518, %v2511, -inf
    %v2521 = vsel %vm2518, %v2512, -inf
    %v2522 = vsel %vm2518, %v2513, -inf
    %v2523 = vsel %vm2518, %v2514, -inf
    %v2524 = vmax.f32 %v2519, %v2523
    %v2525 = vsel %vm2518, %v2515, -inf
    %v2526 = vmax.f32 %v2520, %v2525
    %v2527 = vsel %vm2518, %v2516, -inf
    %v2528 = vmax.f32 %v2521, %v2527
    %v2529 = vsel %vm2518, %v2517, -inf
    %v2530 = vmax.f32 %v2522, %v2529
    %v2531 = vmax.f32 %v2524, %v2526
    %v2532 = vmax.f32 %v2528, %v2530
    %v2533 = vmax.f32 %v2531, %v2532
    %v2534 = vsub.f32 %v2510, %v2533
    %v2535 = vsub.f32 %v2511, %v2533
    %v2536 = vsub.f32 %v2512, %v2533
    %v2537 = vsub.f32 %v2513, %v2533
    %v2538 = vsub.f32 %v2514, %v2533
    %v2539 = vsub.f32 %v2515, %v2533
    %v2540 = vsub.f32 %v2516, %v2533
    %v2541 = vsub.f32 %v2517, %v2533
    %v2542 = vmul.f32 %v2534, 1.442695
    %v2543 = vpow.pop %v2542
    %v2544 = vmul.f32 %v2535, 1.442695
    %v2545 = vpow.pop %v2544
    %v2546 = vmul.f32 %v2536, 1.442695
    %v2547 = vpow.pop %v2546
    %v2548 = vmul.f32 %v2537, 1.442695
    %v2549 = vpow.pop %v2548
    %v2550 = vmul.f32 %v2538, 1.442695
    %v2551 = vpow.pop %v2550
    %v2552 = vmul.f32 %v2539, 1.442695
    %v2553 = vpow.pop %v2552
    %v2554 = vmul.f32 %v2540, 1.442695
    %v2555 = vpow.pop %v2554
    %v2556 = vmul.f32 %v2541, 1.442695
    %v2557 = vpow.pop %v2556
    %v2558 = vsel %vm2518, %v2543, 0.0
    %v2559 = vsel %vm2518, %v2545, 0.0
    %v2560 = vadd.f32 %v2558, %v2559
    %v2561 = vsel %vm2518, %v2547, 0.0
    %v2562 = vadd.f32 %v2560, %v2561
    %v2563 = vsel %vm2518, %v2549, 0.0
    %v2564 = vadd.f32 %v2562, %v2563
    %v2565 = vsel %vm2518, %v2551, 0.0
    %v2566 = vadd.f32 %v2564, %v2565
    %v2567 = vsel %vm2518, %v2553, 0.0
    %v2568 = vadd.f32 %v2566, %v2567
    %v2569 = vsel %vm2518, %v2555, 0.0
    %v2570 = vadd.f32 %v2568, %v2569
    %v2571 = vsel %vm2518, %v2557, 0.0
    %v2572 = vadd.f32 %v2570, %v2571
    %v2573 = vrcp.pop %v2572
    %v2574 = vmul.f32 %v2543, %v2573
    %v2575 = vmul.f32 %v2545, %v2573
    %v2576 = vmul.f32 %v2547, %v2573
    %v2577 = vmul.f32 %v2549, %v2573
    %v2578 = vmul.f32 %v2551, %v2573
    %v2579 = vmul.f32 %v2553, %v2573
    %v2580 = vmul.f32 %v2555, %v2573
    %v2581 = vmul.f32 %v2557, %v2573
    %v2582 = vmul.f32 %v2574, %v2171
    %v2583 = vmul.f32 %v2575, %v2172
    %v2584 = vmul.f32 %v2576, %v2173
    %v2585 = vmul.f32 %v2577, %v2174
    %v2586 = vmul.f32 %v2578, %v2175
    %v2587 = vmul.f32 %v2579, %v2176
    %v2588 = vmul.f32 %v2580, %v2177
    %v2589 = vmul.f32 %v2581, %v2178
    %v2590 = vsel %vm295, %v2582, 0.0
    %v2591 = vsel %vm295, %v2583, 0.0
    %v2592 = vadd.f32 %v2590, %v2591
    %v2593 = vsel %vm295, %v2584, 0.0
    %v2594 = vadd.f32 %v2592, %v2593
    %v2595 = vsel %vm295, %v2585, 0.0
    %v2596 = vadd.f32 %v2594, %v2595
    %v2597 = vsel %vm295, %v2586, 0.0
    %v2598 = vadd.f32 %v2596, %v2597
    %v2599 = vsel %vm295, %v2587, 0.0
    %v2600 = vadd.f32 %v2598, %v2599
    %v2601 = vsel %vm295, %v2588, 0.0
    %v2602 = vadd.f32 %v2600, %v2601
    %v2603 = vsel %vm295, %v2589, 0.0
    %v2604 = vadd.f32 %v2602, %v2603
    %v2605 = vmul.f32 %v2574, %v2179
    %v2606 = vmul.f32 %v2575, %v2180
    %v2607 = vmul.f32 %v2576, %v2181
    %v2608 = vmul.f32 %v2577, %v2182
    %v2609 = vmul.f32 %v2578, %v2183
    %v2610 = vmul.f32 %v2579, %v2184
    %v2611 = vmul.f32 %v2580, %v2185
    %v2612 = vmul.f32 %v2581, %v2186
    %v2613 = vsel %vm295, %v2605, 0.0
    %v2614 = vsel %vm295, %v2606, 0.0
    %v2615 = vadd.f32 %v2613, %v2614
    %v2616 = vsel %vm295, %v2607, 0.0
    %v2617 = vadd.f32 %v2615, %v2616
    %v2618 = vsel %vm295, %v2608, 0.0
    %v2619 = vadd.f32 %v2617, %v2618
    %v2620 = vsel %vm295, %v2609, 0.0
    %v2621 = vadd.f32 %v2619, %v2620
    %v2622 = vsel %vm295, %v2610, 0.0
    %v2623 = vadd.f32 %v2621, %v2622
    %v2624 = vsel %vm295, %v2611, 0.0
    %v2625 = vadd.f32 %v2623, %v2624
    %v2626 = vsel %vm295, %v2612, 0.0
    %v2627 = vadd.f32 %v2625, %v2626
    %vm2628 = vcmask 130048
    %v2630 = vsel %vm2628, %v2604, 0
    %2632 = vmatprep.subr.mxu0 0.0
    %2633 = vmatpush1.msra.mxu0 %v96
    %2634 = vmatprep.subr.mxu0 0.0
    %2635 = vmatpush1.msra.mxu0 %v97
    %2636 = vmatprep.subr.mxu0 0.0
    %2637 = vmatpush1.msra.mxu0 0.0
    %2638 = vmatprep.subr.mxu0 0.0
    %2639 = vmatpush1.msra.mxu0 0.0
    %2640 = vmatprep.subr.mxu0 0.0
    %2641 = vmatpush1.msra.mxu0 0.0
    %2642 = vmatprep.subr.mxu0 0.0
    %2643 = vmatpush1.msra.mxu0 0.0
    %2644 = vmatprep.subr.mxu0 0.0
    %2645 = vmatpush1.msra.mxu0 0.0
    %2646 = vmatprep.subr.mxu0 0.0
    %2647 = vmatpush1.msra.mxu0 0.0
    %2648 = vmatprep.subr.mxu0 0.0
    %2649 = vmatpush1.msra.mxu0 0.0
    %2650 = vmatprep.subr.mxu0 0.0
    %2651 = vmatpush1.msra.mxu0 0.0
    %2652 = vmatprep.subr.mxu0 0.0
    %2653 = vmatpush1.msra.mxu0 0.0
    %2654 = vmatprep.subr.mxu0 0.0
    %2655 = vmatpush1.msra.mxu0 0.0
    %2656 = vmatprep.subr.mxu0 0.0
    %2657 = vmatpush1.msra.mxu0 0.0
    %2658 = vmatprep.subr.mxu0 0.0
    %2659 = vmatpush1.msra.mxu0 0.0
    %2660 = vmatprep.subr.mxu0 0.0
    %2661 = vmatpush1.msra.mxu0 0.0
    %2662 = vmatprep.subr.mxu0 0.0
    %2663 = vmatpush1.msra.mxu0 0.0
    %2664 = vmatprep.subr.mxu0 0.0
    %2665 = vmatpush1.msra.mxu0 0.0
    %2666 = vmatprep.subr.mxu0 0.0
    %2667 = vmatpush1.msra.mxu0 0.0
    %2668 = vmatprep.subr.mxu0 0.0
    %2669 = vmatpush1.msra.mxu0 0.0
    %2670 = vmatprep.subr.mxu0 0.0
    %2671 = vmatpush1.msra.mxu0 0.0
    %2672 = vmatprep.subr.mxu0 0.0
    %2673 = vmatpush1.msra.mxu0 0.0
    %2674 = vmatprep.subr.mxu0 0.0
    %2675 = vmatpush1.msra.mxu0 0.0
    %2676 = vmatprep.subr.mxu0 0.0
    %2677 = vmatpush1.msra.mxu0 0.0
    %2678 = vmatprep.subr.mxu0 0.0
    %2679 = vmatpush1.msra.mxu0 0.0
    %2680 = vmatprep.subr.mxu0 0.0
    %2681 = vmatpush1.msra.mxu0 0.0
    %2682 = vmatprep.subr.mxu0 0.0
    %2683 = vmatpush1.msra.mxu0 0.0
    %2684 = vmatprep.subr.mxu0 0.0
    %2685 = vmatpush1.msra.mxu0 0.0
    %2686 = vmatprep.subr.mxu0 0.0
    %2687 = vmatpush1.msra.mxu0 0.0
    %2688 = vmatprep.subr.mxu0 0.0
    %2689 = vmatpush1.msra.mxu0 0.0
    %2690 = vmatprep.subr.mxu0 0.0
    %2691 = vmatpush1.msra.mxu0 0.0
    %2692 = vmatprep.subr.mxu0 0.0
    %2693 = vmatpush1.msra.mxu0 0.0
    %2694 = vmatprep.subr.mxu0 0.0
    %2695 = vmatpush1.msra.mxu0 0.0
    %2696 = vmatprep.mubr.f32.mxu0 0.0
    %2697 = vmatmul.mubr.f32.gmra.mrb[0].mxu0 %v2630
    %v2698 = vpop.f32.mrb[0].mxu0
    %v2699 = vadd.f32 0.0, %v2698
    %v2700 = vpop.f32.mrb[0].mxu0
    %2701 = vdwg.mxu0
    %2703 = vrot.lane.b32.xlu0 %v2699, 32
    %v2704 = vpop.permute.xlu0 %2703
    %v2706 = vadd.f32 %v2439, %v2704
    %v2708 = vsel %vm2628, %v2627, 0
    %2710 = vmatprep.subr.mxu0 0.0
    %2711 = vmatpush1.msra.mxu0 %v98
    %2712 = vmatprep.subr.mxu0 0.0
    %2713 = vmatpush1.msra.mxu0 %v99
    %2714 = vmatprep.subr.mxu0 0.0
    %2715 = vmatpush1.msra.mxu0 0.0
    %2716 = vmatprep.subr.mxu0 0.0
    %2717 = vmatpush1.msra.mxu0 0.0
    %2718 = vmatprep.subr.mxu0 0.0
    %2719 = vmatpush1.msra.mxu0 0.0
    %2720 = vmatprep.subr.mxu0 0.0
    %2721 = vmatpush1.msra.mxu0 0.0
    %2722 = vmatprep.subr.mxu0 0.0
    %2723 = vmatpush1.msra.mxu0 0.0
    %2724 = vmatprep.subr.mxu0 0.0
    %2725 = vmatpush1.msra.mxu0 0.0
    %2726 = vmatprep.subr.mxu0 0.0
    %2727 = vmatpush1.msra.mxu0 0.0
    %2728 = vmatprep.subr.mxu0 0.0
    %2729 = vmatpush1.msra.mxu0 0.0
    %2730 = vmatprep.subr.mxu0 0.0
    %2731 = vmatpush1.msra.mxu0 0.0
    %2732 = vmatprep.subr.mxu0 0.0
    %2733 = vmatpush1.msra.mxu0 0.0
    %2734 = vmatprep.subr.mxu0 0.0
    %2735 = vmatpush1.msra.mxu0 0.0
    %2736 = vmatprep.subr.mxu0 0.0
    %2737 = vmatpush1.msra.mxu0 0.0
    %2738 = vmatprep.subr.mxu0 0.0
    %2739 = vmatpush1.msra.mxu0 0.0
    %2740 = vmatprep.subr.mxu0 0.0
    %2741 = vmatpush1.msra.mxu0 0.0
    %2742 = vmatprep.subr.mxu0 0.0
    %2743 = vmatpush1.msra.mxu0 0.0
    %2744 = vmatprep.subr.mxu0 0.0
    %2745 = vmatpush1.msra.mxu0 0.0
    %2746 = vmatprep.subr.mxu0 0.0
    %2747 = vmatpush1.msra.mxu0 0.0
    %2748 = vmatprep.subr.mxu0 0.0
    %2749 = vmatpush1.msra.mxu0 0.0
    %2750 = vmatprep.subr.mxu0 0.0
    %2751 = vmatpush1.msra.mxu0 0.0
    %2752 = vmatprep.subr.mxu0 0.0
    %2753 = vmatpush1.msra.mxu0 0.0
    %2754 = vmatprep.subr.mxu0 0.0
    %2755 = vmatpush1.msra.mxu0 0.0
    %2756 = vmatprep.subr.mxu0 0.0
    %2757 = vmatpush1.msra.mxu0 0.0
    %2758 = vmatprep.subr.mxu0 0.0
    %2759 = vmatpush1.msra.mxu0 0.0
    %2760 = vmatprep.subr.mxu0 0.0
    %2761 = vmatpush1.msra.mxu0 0.0
    %2762 = vmatprep.subr.mxu0 0.0
    %2763 = vmatpush1.msra.mxu0 0.0
    %2764 = vmatprep.subr.mxu0 0.0
    %2765 = vmatpush1.msra.mxu0 0.0
    %2766 = vmatprep.subr.mxu0 0.0
    %2767 = vmatpush1.msra.mxu0 0.0
    %2768 = vmatprep.subr.mxu0 0.0
    %2769 = vmatpush1.msra.mxu0 0.0
    %2770 = vmatprep.subr.mxu0 0.0
    %2771 = vmatpush1.msra.mxu0 0.0
    %2772 = vmatprep.subr.mxu0 0.0
    %2773 = vmatpush1.msra.mxu0 0.0
    %2774 = vmatprep.mubr.f32.mxu0 0.0
    %2775 = vmatmul.mubr.f32.gmra.mrb[0].mxu0 %v2708
    %v2776 = vpop.f32.mrb[0].mxu0
    %v2777 = vadd.f32 0.0, %v2776
    %v2778 = vpop.f32.mrb[0].mxu0
    %2779 = vdwg.mxu0
    %2781 = vrot.lane.b32.xlu0 %v2777, 32
    %v2782 = vpop.permute.xlu0 %2781
    %v2784 = vadd.f32 %v2706, %v2782
    %v2786 = vlaneseq
    %v2787 = vshrl.u32 %v2786, 7
    %v2788 = vsub.s32 0, %v2787
    %v2789 = vrot.slane %v100, %v2788
    %2790 = vrot.lane.b32.xlu0 %v2789, 32
    %v2791 = vpop.permute.xlu0 %2790
    %v2793 = vadd.f32 %v2784, %v2791
    %v2794 = vtanh.pop %v2793
    %v2796 = vlaneseq
    %v2797 = vshrl.u32 %v2796, 7
    %v2798 = vsub.s32 0, %v2797
    %v2799 = vrot.slane %v105, %v2798
    %2802 = vrot.lane.b32.xlu0 %v2794, 96
    %v2803 = vpop.permute.xlu0 %2802
    %v2804 = vsel %vm114, %v2803, 0
    %2806 = vmatprep.subr.mxu0 0.0
    %2807 = vmatpush1.msra.mxu0 %v101
    %2808 = vmatprep.subr.mxu0 0.0
    %2809 = vmatpush1.msra.mxu0 %v102
    %2810 = vmatprep.subr.mxu0 0.0
    %2811 = vmatpush1.msra.mxu0 %v103
    %2812 = vmatprep.subr.mxu0 0.0
    %2813 = vmatpush1.msra.mxu0 %v104
    %2814 = vmatprep.subr.mxu0 0.0
    %2815 = vmatpush1.msra.mxu0 0.0
    %2816 = vmatprep.subr.mxu0 0.0
    %2817 = vmatpush1.msra.mxu0 0.0
    %2818 = vmatprep.subr.mxu0 0.0
    %2819 = vmatpush1.msra.mxu0 0.0
    %2820 = vmatprep.subr.mxu0 0.0
    %2821 = vmatpush1.msra.mxu0 0.0
    %2822 = vmatprep.subr.mxu0 0.0
    %2823 = vmatpush1.msra.mxu0 0.0
    %2824 = vmatprep.subr.mxu0 0.0
    %2825 = vmatpush1.msra.mxu0 0.0
    %2826 = vmatprep.subr.mxu0 0.0
    %2827 = vmatpush1.msra.mxu0 0.0
    %2828 = vmatprep.subr.mxu0 0.0
    %2829 = vmatpush1.msra.mxu0 0.0
    %2830 = vmatprep.subr.mxu0 0.0
    %2831 = vmatpush1.msra.mxu0 0.0
    %2832 = vmatprep.subr.mxu0 0.0
    %2833 = vmatpush1.msra.mxu0 0.0
    %2834 = vmatprep.subr.mxu0 0.0
    %2835 = vmatpush1.msra.mxu0 0.0
    %2836 = vmatprep.subr.mxu0 0.0
    %2837 = vmatpush1.msra.mxu0 0.0
    %2838 = vmatprep.subr.mxu0 0.0
    %2839 = vmatpush1.msra.mxu0 0.0
    %2840 = vmatprep.subr.mxu0 0.0
    %2841 = vmatpush1.msra.mxu0 0.0
    %2842 = vmatprep.subr.mxu0 0.0
    %2843 = vmatpush1.msra.mxu0 0.0
    %2844 = vmatprep.subr.mxu0 0.0
    %2845 = vmatpush1.msra.mxu0 0.0
    %2846 = vmatprep.subr.mxu0 0.0
    %2847 = vmatpush1.msra.mxu0 0.0
    %2848 = vmatprep.subr.mxu0 0.0
    %2849 = vmatpush1.msra.mxu0 0.0
    %2850 = vmatprep.subr.mxu0 0.0
    %2851 = vmatpush1.msra.mxu0 0.0
    %2852 = vmatprep.subr.mxu0 0.0
    %2853 = vmatpush1.msra.mxu0 0.0
    %2854 = vmatprep.subr.mxu0 0.0
    %2855 = vmatpush1.msra.mxu0 0.0
    %2856 = vmatprep.subr.mxu0 0.0
    %2857 = vmatpush1.msra.mxu0 0.0
    %2858 = vmatprep.subr.mxu0 0.0
    %2859 = vmatpush1.msra.mxu0 0.0
    %2860 = vmatprep.subr.mxu0 0.0
    %2861 = vmatpush1.msra.mxu0 0.0
    %2862 = vmatprep.subr.mxu0 0.0
    %2863 = vmatpush1.msra.mxu0 0.0
    %2864 = vmatprep.subr.mxu0 0.0
    %2865 = vmatpush1.msra.mxu0 0.0
    %2866 = vmatprep.subr.mxu0 0.0
    %2867 = vmatpush1.msra.mxu0 0.0
    %2868 = vmatprep.subr.mxu0 0.0
    %2869 = vmatpush1.msra.mxu0 0.0
    %2870 = vmatprep.mubr.f32.mxu0 0.0
    %2871 = vmatmul.mubr.f32.gmra.mrb[0].mxu0 %v2804
    %v2872 = vpop.f32.mrb[0].mxu0
    %v2873 = vadd.f32 %v2799, %v2872
    %v2874 = vpop.f32.mrb[0].mxu0
    %2875 = vdwg.mxu0
    %vm2876 = vcmask 254976
    %v2877 = vsel %vm2876, %v2873, -inf
    %2878 = vmax.xlane.f32.xlu0 %v2877
    %v2879 = vpop.xlane.xlu0 %2878
    %v2880 = vsub.f32 %v2873, %v2879
    %v2881 = vmul.f32 %v2880, 1.442695
    %v2882 = vpow.pop %v2881
    %v2883 = vsel %vm2876, %v2882, 0.0
    %2884 = vadd.xlane.f32.xlu0 %v2883
    %v2885 = vpop.xlane.xlu0 %2884
    %v2886 = vrcp.pop %v2885
    %v2887 = vmul.f32 %v2882, %v2886
    %2888 = vst.msk [vmem:[#allocation4] sm:$0x3] %vm2876, %v2887
    %s2889 = scalar_lea.vmem %s1, 2
    %v2890 = vld [vmem:[%s2889] sm:$0x3]
    %2891 = vmatprep.subr.mxu0 0.0
    %2892 = vmatpush1.msra.mxu0 %v83
    %2893 = vmatprep.subr.mxu0 0.0
    %2894 = vmatpush1.msra.mxu0 %v84
    %2895 = vmatprep.subr.mxu0 0.0
    %2896 = vmatpush1.msra.mxu0 %v85
    %2897 = vmatprep.subr.mxu0 0.0
    %2898 = vmatpush1.msra.mxu0 %v86
    %2899 = vmatprep.subr.mxu0 0.0
    %2900 = vmatpush1.msra.mxu0 0.0
    %2901 = vmatprep.subr.mxu0 0.0
    %2902 = vmatpush1.msra.mxu0 0.0
    %2903 = vmatprep.subr.mxu0 0.0
    %2904 = vmatpush1.msra.mxu0 0.0
    %2905 = vmatprep.subr.mxu0 0.0
    %2906 = vmatpush1.msra.mxu0 0.0
    %2907 = vmatprep.subr.mxu0 0.0
    %2908 = vmatpush1.msra.mxu0 0.0
    %2909 = vmatprep.subr.mxu0 0.0
    %2910 = vmatpush1.msra.mxu0 0.0
    %2911 = vmatprep.subr.mxu0 0.0
    %2912 = vmatpush1.msra.mxu0 0.0
    %2913 = vmatprep.subr.mxu0 0.0
    %2914 = vmatpush1.msra.mxu0 0.0
    %2915 = vmatprep.subr.mxu0 0.0
    %2916 = vmatpush1.msra.mxu0 0.0
    %2917 = vmatprep.subr.mxu0 0.0
    %2918 = vmatpush1.msra.mxu0 0.0
    %2919 = vmatprep.subr.mxu0 0.0
    %2920 = vmatpush1.msra.mxu0 0.0
    %2921 = vmatprep.subr.mxu0 0.0
    %2922 = vmatpush1.msra.mxu0 0.0
    %2923 = vmatprep.subr.mxu0 0.0
    %2924 = vmatpush1.msra.mxu0 0.0
    %2925 = vmatprep.subr.mxu0 0.0
    %2926 = vmatpush1.msra.mxu0 0.0
    %2927 = vmatprep.subr.mxu0 0.0
    %2928 = vmatpush1.msra.mxu0 0.0
    %2929 = vmatprep.subr.mxu0 0.0
    %2930 = vmatpush1.msra.mxu0 0.0
    %2931 = vmatprep.subr.mxu0 0.0
    %2932 = vmatpush1.msra.mxu0 0.0
    %2933 = vmatprep.subr.mxu0 0.0
    %2934 = vmatpush1.msra.mxu0 0.0
    %2935 = vmatprep.subr.mxu0 0.0
    %2936 = vmatpush1.msra.mxu0 0.0
    %2937 = vmatprep.subr.mxu0 0.0
    %2938 = vmatpush1.msra.mxu0 0.0
    %2939 = vmatprep.subr.mxu0 0.0
    %2940 = vmatpush1.msra.mxu0 0.0
    %2941 = vmatprep.subr.mxu0 0.0
    %2942 = vmatpush1.msra.mxu0 0.0
    %2943 = vmatprep.subr.mxu0 0.0
    %2944 = vmatpush1.msra.mxu0 0.0
    %2945 = vmatprep.subr.mxu0 0.0
    %2946 = vmatpush1.msra.mxu0 0.0
    %2947 = vmatprep.subr.mxu0 0.0
    %2948 = vmatpush1.msra.mxu0 0.0
    %2949 = vmatprep.subr.mxu0 0.0
    %2950 = vmatpush1.msra.mxu0 0.0
    %2951 = vmatprep.subr.mxu0 0.0
    %2952 = vmatpush1.msra.mxu0 0.0
    %2953 = vmatprep.subr.mxu0 0.0
    %2954 = vmatpush1.msra.mxu0 0.0
    %2955 = vmatprep.mubr.f32.mxu0 0.0
    %2956 = vmatmul.mubr.f32.gmra.mrb[0].mxu0 %v2804
    %v2957 = vpop.f32.mrb[0].mxu0
    %v2958 = vadd.f32 0.0, %v2957
    %v2959 = vpop.f32.mrb[0].mxu0
    %2960 = vdwg.mxu0
    %v2961 = vadd.f32 %v2890, %v2958
    %2962 = vmatprep.subr.mxu0 0.0
    %2963 = vmatpush1.msra.mxu0 %v87
    %2964 = vmatprep.subr.mxu0 0.0
    %2965 = vmatpush1.msra.mxu0 %v88
    %2966 = vmatprep.subr.mxu0 0.0
    %2967 = vmatpush1.msra.mxu0 %v89
    %2968 = vmatprep.subr.mxu0 0.0
    %2969 = vmatpush1.msra.mxu0 %v90
    %2970 = vmatprep.subr.mxu0 0.0
    %2971 = vmatpush1.msra.mxu0 0.0
    %2972 = vmatprep.subr.mxu0 0.0
    %2973 = vmatpush1.msra.mxu0 0.0
    %2974 = vmatprep.subr.mxu0 0.0
    %2975 = vmatpush1.msra.mxu0 0.0
    %2976 = vmatprep.subr.mxu0 0.0
    %2977 = vmatpush1.msra.mxu0 0.0
    %2978 = vmatprep.subr.mxu0 0.0
    %2979 = vmatpush1.msra.mxu0 0.0
    %2980 = vmatprep.subr.mxu0 0.0
    %2981 = vmatpush1.msra.mxu0 0.0
    %2982 = vmatprep.subr.mxu0 0.0
    %2983 = vmatpush1.msra.mxu0 0.0
    %2984 = vmatprep.subr.mxu0 0.0
    %2985 = vmatpush1.msra.mxu0 0.0
    %2986 = vmatprep.subr.mxu0 0.0
    %2987 = vmatpush1.msra.mxu0 0.0
    %2988 = vmatprep.subr.mxu0 0.0
    %2989 = vmatpush1.msra.mxu0 0.0
    %2990 = vmatprep.subr.mxu0 0.0
    %2991 = vmatpush1.msra.mxu0 0.0
    %2992 = vmatprep.subr.mxu0 0.0
    %2993 = vmatpush1.msra.mxu0 0.0
    %2994 = vmatprep.subr.mxu0 0.0
    %2995 = vmatpush1.msra.mxu0 0.0
    %2996 = vmatprep.subr.mxu0 0.0
    %2997 = vmatpush1.msra.mxu0 0.0
    %2998 = vmatprep.subr.mxu0 0.0
    %2999 = vmatpush1.msra.mxu0 0.0
    %3000 = vmatprep.subr.mxu0 0.0
    %3001 = vmatpush1.msra.mxu0 0.0
    %3002 = vmatprep.subr.mxu0 0.0
    %3003 = vmatpush1.msra.mxu0 0.0
    %3004 = vmatprep.subr.mxu0 0.0
    %3005 = vmatpush1.msra.mxu0 0.0
    %3006 = vmatprep.subr.mxu0 0.0
    %3007 = vmatpush1.msra.mxu0 0.0
    %3008 = vmatprep.subr.mxu0 0.0
    %3009 = vmatpush1.msra.mxu0 0.0
    %3010 = vmatprep.subr.mxu0 0.0
    %3011 = vmatpush1.msra.mxu0 0.0
    %3012 = vmatprep.subr.mxu0 0.0
    %3013 = vmatpush1.msra.mxu0 0.0
    %3014 = vmatprep.subr.mxu0 0.0
    %3015 = vmatpush1.msra.mxu0 0.0
    %3016 = vmatprep.subr.mxu0 0.0
    %3017 = vmatpush1.msra.mxu0 0.0
    %3018 = vmatprep.subr.mxu0 0.0
    %3019 = vmatpush1.msra.mxu0 0.0
    %3020 = vmatprep.subr.mxu0 0.0
    %3021 = vmatpush1.msra.mxu0 0.0
    %3022 = vmatprep.subr.mxu0 0.0
    %3023 = vmatpush1.msra.mxu0 0.0
    %3024 = vmatprep.subr.mxu0 0.0
    %3025 = vmatpush1.msra.mxu0 0.0
    %3026 = vmatprep.mubr.f32.mxu0 0.0
    %3027 = vmatmul.mubr.f32.gmra.mrb[0].mxu0 %v2370
    %v3028 = vpop.f32.mrb[0].mxu0
    %v3029 = vadd.f32 %v2263, %v3028
    %v3030 = vpop.f32.mrb[0].mxu0
    %3031 = vdwg.mxu0
    %v3032 = vadd.f32 %v2961, %v3029
    %v3033 = vxor.u32 %v3032, 2147483648
    %v3034 = vmul.f32 %v3033, 1.442695
    %v3035 = vpow.pop %v3034
    %v3036 = vadd.f32 %v3035, 1.0
    %v3037 = vrcp.pop %v3036
    %v3038 = vmul.f32 1.0, %v3037
    %3040 = vrot.lane.b32.xlu0 %v3029, 64
    %v3041 = vpop.permute.xlu0 %3040
    %v3043 = vmul.f32 %v3038, %v3041
    %3045 = vrot.lane.b32.xlu0 %v3043, 64
    %v3046 = vpop.permute.xlu0 %3045
    %v3048 = vadd.f32 %v2961, %v3046
    %v3049 = vtanh.pop %v3048
    %v3050 = vsub.f32 1.0, %v3038
    %3052 = vrot.lane.b32.xlu0 %v3049, 96
    %v3053 = vpop.permute.xlu0 %3052
    %v3055 = vmul.f32 %v3050, %v3053
    %v3056 = vmul.f32 %v3038, %v2366
    %v3057 = vadd.f32 %v3055, %v3056
    %3059 = vrot.lane.b32.xlu0 %v3057, 96
    %v3060 = vpop.permute.xlu0 %3059
    %v3061 = vsel %vm114, %v3060, 0
    %3063 = vmatprep.subr.mxu0 0.0
    %3064 = vmatpush1.msra.mxu0 %v92
    %3065 = vmatprep.subr.mxu0 0.0
    %3066 = vmatpush1.msra.mxu0 %v93
    %3067 = vmatprep.subr.mxu0 0.0
    %3068 = vmatpush1.msra.mxu0 %v94
    %3069 = vmatprep.subr.mxu0 0.0
    %3070 = vmatpush1.msra.mxu0 %v95
    %3071 = vmatprep.subr.mxu0 0.0
    %3072 = vmatpush1.msra.mxu0 0.0
    %3073 = vmatprep.subr.mxu0 0.0
    %3074 = vmatpush1.msra.mxu0 0.0
    %3075 = vmatprep.subr.mxu0 0.0
    %3076 = vmatpush1.msra.mxu0 0.0
    %3077 = vmatprep.subr.mxu0 0.0
    %3078 = vmatpush1.msra.mxu0 0.0
    %3079 = vmatprep.subr.mxu0 0.0
    %3080 = vmatpush1.msra.mxu0 0.0
    %3081 = vmatprep.subr.mxu0 0.0
    %3082 = vmatpush1.msra.mxu0 0.0
    %3083 = vmatprep.subr.mxu0 0.0
    %3084 = vmatpush1.msra.mxu0 0.0
    %3085 = vmatprep.subr.mxu0 0.0
    %3086 = vmatpush1.msra.mxu0 0.0
    %3087 = vmatprep.subr.mxu0 0.0
    %3088 = vmatpush1.msra.mxu0 0.0
    %3089 = vmatprep.subr.mxu0 0.0
    %3090 = vmatpush1.msra.mxu0 0.0
    %3091 = vmatprep.subr.mxu0 0.0
    %3092 = vmatpush1.msra.mxu0 0.0
    %3093 = vmatprep.subr.mxu0 0.0
    %3094 = vmatpush1.msra.mxu0 0.0
    %3095 = vmatprep.subr.mxu0 0.0
    %3096 = vmatpush1.msra.mxu0 0.0
    %3097 = vmatprep.subr.mxu0 0.0
    %3098 = vmatpush1.msra.mxu0 0.0
    %3099 = vmatprep.subr.mxu0 0.0
    %3100 = vmatpush1.msra.mxu0 0.0
    %3101 = vmatprep.subr.mxu0 0.0
    %3102 = vmatpush1.msra.mxu0 0.0
    %3103 = vmatprep.subr.mxu0 0.0
    %3104 = vmatpush1.msra.mxu0 0.0
    %3105 = vmatprep.subr.mxu0 0.0
    %3106 = vmatpush1.msra.mxu0 0.0
    %3107 = vmatprep.subr.mxu0 0.0
    %3108 = vmatpush1.msra.mxu0 0.0
    %3109 = vmatprep.subr.mxu0 0.0
    %3110 = vmatpush1.msra.mxu0 0.0
    %3111 = vmatprep.subr.mxu0 0.0
    %3112 = vmatpush1.msra.mxu0 0.0
    %3113 = vmatprep.subr.mxu0 0.0
    %3114 = vmatpush1.msra.mxu0 0.0
    %3115 = vmatprep.subr.mxu0 0.0
    %3116 = vmatpush1.msra.mxu0 0.0
    %3117 = vmatprep.subr.mxu0 0.0
    %3118 = vmatpush1.msra.mxu0 0.0
    %3119 = vmatprep.subr.mxu0 0.0
    %3120 = vmatpush1.msra.mxu0 0.0
    %3121 = vmatprep.subr.mxu0 0.0
    %3122 = vmatpush1.msra.mxu0 0.0
    %3123 = vmatprep.subr.mxu0 0.0
    %3124 = vmatpush1.msra.mxu0 0.0
    %3125 = vmatprep.subr.mxu0 0.0
    %3126 = vmatpush1.msra.mxu0 0.0
    %3127 = vmatprep.mubr.f32.mxu0 0.0
    %3128 = vmatmul.mubr.f32.gmra.mrb[0].mxu0 %v3061
    %v3129 = vpop.f32.mrb[0].mxu0
    %v3130 = vadd.f32 0.0, %v3129
    %v3131 = vpop.f32.mrb[0].mxu0
    %3132 = vdwg.mxu0
    %v3133 = vmul.f32 %v2171, %v3130
    %v3134 = vmul.f32 %v2172, %v3130
    %v3135 = vmul.f32 %v2173, %v3130
    %v3136 = vmul.f32 %v2174, %v3130
    %v3137 = vmul.f32 %v2175, %v3130
    %v3138 = vmul.f32 %v2176, %v3130
    %v3139 = vmul.f32 %v2177, %v3130
    %v3140 = vmul.f32 %v2178, %v3130
    %v3141 = vsel %vm295, %v3133, 0.0
    %3142 = vadd.xlane.f32.xlu0 %v3141
    %v3143 = vpop.xlane.xlu0 %3142
    %v3144 = vsel %vm295, %v3134, 0.0
    %3145 = vadd.xlane.f32.xlu0 %v3144
    %v3146 = vpop.xlane.xlu0 %3145
    %v3147 = vsel %vm295, %v3135, 0.0
    %3148 = vadd.xlane.f32.xlu0 %v3147
    %v3149 = vpop.xlane.xlu0 %3148
    %v3150 = vsel %vm295, %v3136, 0.0
    %3151 = vadd.xlane.f32.xlu0 %v3150
    %v3152 = vpop.xlane.xlu0 %3151
    %v3153 = vsel %vm295, %v3137, 0.0
    %3154 = vadd.xlane.f32.xlu0 %v3153
    %v3155 = vpop.xlane.xlu0 %3154
    %v3156 = vsel %vm295, %v3138, 0.0
    %3157 = vadd.xlane.f32.xlu0 %v3156
    %v3158 = vpop.xlane.xlu0 %3157
    %v3159 = vsel %vm295, %v3139, 0.0
    %3160 = vadd.xlane.f32.xlu0 %v3159
    %v3161 = vpop.xlane.xlu0 %3160
    %v3162 = vsel %vm295, %v3140, 0.0
    %3163 = vadd.xlane.f32.xlu0 %v3162
    %v3164 = vpop.xlane.xlu0 %3163
    %3166 = vrot.lane.b32.xlu0 %v3130, 112
    %v3167 = vpop.permute.xlu0 %3166
    %v3169 = vmul.f32 %v2179, %v3167
    %v3170 = vmul.f32 %v2180, %v3167
    %v3171 = vmul.f32 %v2181, %v3167
    %v3172 = vmul.f32 %v2182, %v3167
    %v3173 = vmul.f32 %v2183, %v3167
    %v3174 = vmul.f32 %v2184, %v3167
    %v3175 = vmul.f32 %v2185, %v3167
    %v3176 = vmul.f32 %v2186, %v3167
    %v3177 = vsel %vm295, %v3169, 0.0
    %3178 = vadd.xlane.f32.xlu0 %v3177
    %v3179 = vpop.xlane.xlu0 %3178
    %v3180 = vsel %vm295, %v3170, 0.0
    %3181 = vadd.xlane.f32.xlu0 %v3180
    %v3182 = vpop.xlane.xlu0 %3181
    %v3183 = vsel %vm295, %v3171, 0.0
    %3184 = vadd.xlane.f32.xlu0 %v3183
    %v3185 = vpop.xlane.xlu0 %3184
    %v3186 = vsel %vm295, %v3172, 0.0
    %3187 = vadd.xlane.f32.xlu0 %v3186
    %v3188 = vpop.xlane.xlu0 %3187
    %v3189 = vsel %vm295, %v3173, 0.0
    %3190 = vadd.xlane.f32.xlu0 %v3189
    %v3191 = vpop.xlane.xlu0 %3190
    %v3192 = vsel %vm295, %v3174, 0.0
    %3193 = vadd.xlane.f32.xlu0 %v3192
    %v3194 = vpop.xlane.xlu0 %3193
    %v3195 = vsel %vm295, %v3175, 0.0
    %3196 = vadd.xlane.f32.xlu0 %v3195
    %v3197 = vpop.xlane.xlu0 %3196
    %v3198 = vsel %vm295, %v3176, 0.0
    %3199 = vadd.xlane.f32.xlu0 %v3198
    %v3200 = vpop.xlane.xlu0 %3199
    %v3201 = vadd.f32 %v3143, %v3179
    %v3202 = vadd.f32 %v3146, %v3182
    %v3203 = vadd.f32 %v3149, %v3185
    %v3204 = vadd.f32 %v3152, %v3188
    %v3205 = vadd.f32 %v3155, %v3191
    %v3206 = vadd.f32 %v3158, %v3194
    %v3207 = vadd.f32 %v3161, %v3197
    %v3208 = vadd.f32 %v3164, %v3200
    %v3209 = vsel %vm2518, %v3201, -inf
    %v3210 = vsel %vm2518, %v3202, -inf
    %v3211 = vsel %vm2518, %v3203, -inf
    %v3212 = vsel %vm2518, %v3204, -inf
    %v3213 = vsel %vm2518, %v3205, -inf
    %v3214 = vmax.f32 %v3209, %v3213
    %v3215 = vsel %vm2518, %v3206, -inf
    %v3216 = vmax.f32 %v3210, %v3215
    %v3217 = vsel %vm2518, %v3207, -inf
    %v3218 = vmax.f32 %v3211, %v3217
    %v3219 = vsel %vm2518, %v3208, -inf
    %v3220 = vmax.f32 %v3212, %v3219
    %v3221 = vmax.f32 %v3214, %v3216
    %v3222 = vmax.f32 %v3218, %v3220
    %v3223 = vmax.f32 %v3221, %v3222
    %v3224 = vsub.f32 %v3201, %v3223
    %v3225 = vsub.f32 %v3202, %v3223
    %v3226 = vsub.f32 %v3203, %v3223
    %v3227 = vsub.f32 %v3204, %v3223
    %v3228 = vsub.f32 %v3205, %v3223
    %v3229 = vsub.f32 %v3206, %v3223
    %v3230 = vsub.f32 %v3207, %v3223
    %v3231 = vsub.f32 %v3208, %v3223
    %v3232 = vmul.f32 %v3224, 1.442695
    %v3233 = vpow.pop %v3232
    %v3234 = vmul.f32 %v3225, 1.442695
    %v3235 = vpow.pop %v3234
    %v3236 = vmul.f32 %v3226, 1.442695
    %v3237 = vpow.pop %v3236
    %v3238 = vmul.f32 %v3227, 1.442695
    %v3239 = vpow.pop %v3238
    %v3240 = vmul.f32 %v3228, 1.442695
    %v3241 = vpow.pop %v3240
    %v3242 = vmul.f32 %v3229, 1.442695
    %v3243 = vpow.pop %v3242
    %v3244 = vmul.f32 %v3230, 1.442695
    %v3245 = vpow.pop %v3244
    %v3246 = vmul.f32 %v3231, 1.442695
    %v3247 = vpow.pop %v3246
    %v3248 = vsel %vm2518, %v3233, 0.0
    %v3249 = vsel %vm2518, %v3235, 0.0
    %v3250 = vadd.f32 %v3248, %v3249
    %v3251 = vsel %vm2518, %v3237, 0.0
    %v3252 = vadd.f32 %v3250, %v3251
    %v3253 = vsel %vm2518, %v3239, 0.0
    %v3254 = vadd.f32 %v3252, %v3253
    %v3255 = vsel %vm2518, %v3241, 0.0
    %v3256 = vadd.f32 %v3254, %v3255
    %v3257 = vsel %vm2518, %v3243, 0.0
    %v3258 = vadd.f32 %v3256, %v3257
    %v3259 = vsel %vm2518, %v3245, 0.0
    %v3260 = vadd.f32 %v3258, %v3259
    %v3261 = vsel %vm2518, %v3247, 0.0
    %v3262 = vadd.f32 %v3260, %v3261
    %v3263 = vrcp.pop %v3262
    %v3264 = vmul.f32 %v3233, %v3263
    %v3265 = vmul.f32 %v3235, %v3263
    %v3266 = vmul.f32 %v3237, %v3263
    %v3267 = vmul.f32 %v3239, %v3263
    %v3268 = vmul.f32 %v3241, %v3263
    %v3269 = vmul.f32 %v3243, %v3263
    %v3270 = vmul.f32 %v3245, %v3263
    %v3271 = vmul.f32 %v3247, %v3263
    %v3272 = vmul.f32 %v3264, %v2171
    %v3273 = vmul.f32 %v3265, %v2172
    %v3274 = vmul.f32 %v3266, %v2173
    %v3275 = vmul.f32 %v3267, %v2174
    %v3276 = vmul.f32 %v3268, %v2175
    %v3277 = vmul.f32 %v3269, %v2176
    %v3278 = vmul.f32 %v3270, %v2177
    %v3279 = vmul.f32 %v3271, %v2178
    %v3280 = vsel %vm295, %v3272, 0.0
    %v3281 = vsel %vm295, %v3273, 0.0
    %v3282 = vadd.f32 %v3280, %v3281
    %v3283 = vsel %vm295, %v3274, 0.0
    %v3284 = vadd.f32 %v3282, %v3283
    %v3285 = vsel %vm295, %v3275, 0.0
    %v3286 = vadd.f32 %v3284, %v3285
    %v3287 = vsel %vm295, %v3276, 0.0
    %v3288 = vadd.f32 %v3286, %v3287
    %v3289 = vsel %vm295, %v3277, 0.0
    %v3290 = vadd.f32 %v3288, %v3289
    %v3291 = vsel %vm295, %v3278, 0.0
    %v3292 = vadd.f32 %v3290, %v3291
    %v3293 = vsel %vm295, %v3279, 0.0
    %v3294 = vadd.f32 %v3292, %v3293
    %v3295 = vmul.f32 %v3264, %v2179
    %v3296 = vmul.f32 %v3265, %v2180
    %v3297 = vmul.f32 %v3266, %v2181
    %v3298 = vmul.f32 %v3267, %v2182
    %v3299 = vmul.f32 %v3268, %v2183
    %v3300 = vmul.f32 %v3269, %v2184
    %v3301 = vmul.f32 %v3270, %v2185
    %v3302 = vmul.f32 %v3271, %v2186
    %v3303 = vsel %vm295, %v3295, 0.0
    %v3304 = vsel %vm295, %v3296, 0.0
    %v3305 = vadd.f32 %v3303, %v3304
    %v3306 = vsel %vm295, %v3297, 0.0
    %v3307 = vadd.f32 %v3305, %v3306
    %v3308 = vsel %vm295, %v3298, 0.0
    %v3309 = vadd.f32 %v3307, %v3308
    %v3310 = vsel %vm295, %v3299, 0.0
    %v3311 = vadd.f32 %v3309, %v3310
    %v3312 = vsel %vm295, %v3300, 0.0
    %v3313 = vadd.f32 %v3311, %v3312
    %v3314 = vsel %vm295, %v3301, 0.0
    %v3315 = vadd.f32 %v3313, %v3314
    %v3316 = vsel %vm295, %v3302, 0.0
    %v3317 = vadd.f32 %v3315, %v3316
    %v3319 = vsel %vm2628, %v3294, 0
    %3321 = vmatprep.subr.mxu0 0.0
    %3322 = vmatpush1.msra.mxu0 %v96
    %3323 = vmatprep.subr.mxu0 0.0
    %3324 = vmatpush1.msra.mxu0 %v97
    %3325 = vmatprep.subr.mxu0 0.0
    %3326 = vmatpush1.msra.mxu0 0.0
    %3327 = vmatprep.subr.mxu0 0.0
    %3328 = vmatpush1.msra.mxu0 0.0
    %3329 = vmatprep.subr.mxu0 0.0
    %3330 = vmatpush1.msra.mxu0 0.0
    %3331 = vmatprep.subr.mxu0 0.0
    %3332 = vmatpush1.msra.mxu0 0.0
    %3333 = vmatprep.subr.mxu0 0.0
    %3334 = vmatpush1.msra.mxu0 0.0
    %3335 = vmatprep.subr.mxu0 0.0
    %3336 = vmatpush1.msra.mxu0 0.0
    %3337 = vmatprep.subr.mxu0 0.0
    %3338 = vmatpush1.msra.mxu0 0.0
    %3339 = vmatprep.subr.mxu0 0.0
    %3340 = vmatpush1.msra.mxu0 0.0
    %3341 = vmatprep.subr.mxu0 0.0
    %3342 = vmatpush1.msra.mxu0 0.0
    %3343 = vmatprep.subr.mxu0 0.0
    %3344 = vmatpush1.msra.mxu0 0.0
    %3345 = vmatprep.subr.mxu0 0.0
    %3346 = vmatpush1.msra.mxu0 0.0
    %3347 = vmatprep.subr.mxu0 0.0
    %3348 = vmatpush1.msra.mxu0 0.0
    %3349 = vmatprep.subr.mxu0 0.0
    %3350 = vmatpush1.msra.mxu0 0.0
    %3351 = vmatprep.subr.mxu0 0.0
    %3352 = vmatpush1.msra.mxu0 0.0
    %3353 = vmatprep.subr.mxu0 0.0
    %3354 = vmatpush1.msra.mxu0 0.0
    %3355 = vmatprep.subr.mxu0 0.0
    %3356 = vmatpush1.msra.mxu0 0.0
    %3357 = vmatprep.subr.mxu0 0.0
    %3358 = vmatpush1.msra.mxu0 0.0
    %3359 = vmatprep.subr.mxu0 0.0
    %3360 = vmatpush1.msra.mxu0 0.0
    %3361 = vmatprep.subr.mxu0 0.0
    %3362 = vmatpush1.msra.mxu0 0.0
    %3363 = vmatprep.subr.mxu0 0.0
    %3364 = vmatpush1.msra.mxu0 0.0
    %3365 = vmatprep.subr.mxu0 0.0
    %3366 = vmatpush1.msra.mxu0 0.0
    %3367 = vmatprep.subr.mxu0 0.0
    %3368 = vmatpush1.msra.mxu0 0.0
    %3369 = vmatprep.subr.mxu0 0.0
    %3370 = vmatpush1.msra.mxu0 0.0
    %3371 = vmatprep.subr.mxu0 0.0
    %3372 = vmatpush1.msra.mxu0 0.0
    %3373 = vmatprep.subr.mxu0 0.0
    %3374 = vmatpush1.msra.mxu0 0.0
    %3375 = vmatprep.subr.mxu0 0.0
    %3376 = vmatpush1.msra.mxu0 0.0
    %3377 = vmatprep.subr.mxu0 0.0
    %3378 = vmatpush1.msra.mxu0 0.0
    %3379 = vmatprep.subr.mxu0 0.0
    %3380 = vmatpush1.msra.mxu0 0.0
    %3381 = vmatprep.subr.mxu0 0.0
    %3382 = vmatpush1.msra.mxu0 0.0
    %3383 = vmatprep.subr.mxu0 0.0
    %3384 = vmatpush1.msra.mxu0 0.0
    %3385 = vmatprep.mubr.f32.mxu0 0.0
    %3386 = vmatmul.mubr.f32.gmra.mrb[0].mxu0 %v3319
    %v3387 = vpop.f32.mrb[0].mxu0
    %v3388 = vadd.f32 0.0, %v3387
    %v3389 = vpop.f32.mrb[0].mxu0
    %3390 = vdwg.mxu0
    %3392 = vrot.lane.b32.xlu0 %v3388, 32
    %v3393 = vpop.permute.xlu0 %3392
    %v3395 = vadd.f32 %v3130, %v3393
    %v3397 = vsel %vm2628, %v3317, 0
    %3399 = vmatprep.subr.mxu0 0.0
    %3400 = vmatpush1.msra.mxu0 %v98
    %3401 = vmatprep.subr.mxu0 0.0
    %3402 = vmatpush1.msra.mxu0 %v99
    %3403 = vmatprep.subr.mxu0 0.0
    %3404 = vmatpush1.msra.mxu0 0.0
    %3405 = vmatprep.subr.mxu0 0.0
    %3406 = vmatpush1.msra.mxu0 0.0
    %3407 = vmatprep.subr.mxu0 0.0
    %3408 = vmatpush1.msra.mxu0 0.0
    %3409 = vmatprep.subr.mxu0 0.0
    %3410 = vmatpush1.msra.mxu0 0.0
    %3411 = vmatprep.subr.mxu0 0.0
    %3412 = vmatpush1.msra.mxu0 0.0
    %3413 = vmatprep.subr.mxu0 0.0
    %3414 = vmatpush1.msra.mxu0 0.0
    %3415 = vmatprep.subr.mxu0 0.0
    %3416 = vmatpush1.msra.mxu0 0.0
    %3417 = vmatprep.subr.mxu0 0.0
    %3418 = vmatpush1.msra.mxu0 0.0
    %3419 = vmatprep.subr.mxu0 0.0
    %3420 = vmatpush1.msra.mxu0 0.0
    %3421 = vmatprep.subr.mxu0 0.0
    %3422 = vmatpush1.msra.mxu0 0.0
    %3423 = vmatprep.subr.mxu0 0.0
    %3424 = vmatpush1.msra.mxu0 0.0
    %3425 = vmatprep.subr.mxu0 0.0
    %3426 = vmatpush1.msra.mxu0 0.0
    %3427 = vmatprep.subr.mxu0 0.0
    %3428 = vmatpush1.msra.mxu0 0.0
    %3429 = vmatprep.subr.mxu0 0.0
    %3430 = vmatpush1.msra.mxu0 0.0
    %3431 = vmatprep.subr.mxu0 0.0
    %3432 = vmatpush1.msra.mxu0 0.0
    %3433 = vmatprep.subr.mxu0 0.0
    %3434 = vmatpush1.msra.mxu0 0.0
    %3435 = vmatprep.subr.mxu0 0.0
    %3436 = vmatpush1.msra.mxu0 0.0
    %3437 = vmatprep.subr.mxu0 0.0
    %3438 = vmatpush1.msra.mxu0 0.0
    %3439 = vmatprep.subr.mxu0 0.0
    %3440 = vmatpush1.msra.mxu0 0.0
    %3441 = vmatprep.subr.mxu0 0.0
    %3442 = vmatpush1.msra.mxu0 0.0
    %3443 = vmatprep.subr.mxu0 0.0
    %3444 = vmatpush1.msra.mxu0 0.0
    %3445 = vmatprep.subr.mxu0 0.0
    %3446 = vmatpush1.msra.mxu0 0.0
    %3447 = vmatprep.subr.mxu0 0.0
    %3448 = vmatpush1.msra.mxu0 0.0
    %3449 = vmatprep.subr.mxu0 0.0
    %3450 = vmatpush1.msra.mxu0 0.0
    %3451 = vmatprep.subr.mxu0 0.0
    %3452 = vmatpush1.msra.mxu0 0.0
    %3453 = vmatprep.subr.mxu0 0.0
    %3454 = vmatpush1.msra.mxu0 0.0
    %3455 = vmatprep.subr.mxu0 0.0
    %3456 = vmatpush1.msra.mxu0 0.0
    %3457 = vmatprep.subr.mxu0 0.0
    %3458 = vmatpush1.msra.mxu0 0.0
    %3459 = vmatprep.subr.mxu0 0.0
    %3460 = vmatpush1.msra.mxu0 0.0
    %3461 = vmatprep.subr.mxu0 0.0
    %3462 = vmatpush1.msra.mxu0 0.0
    %3463 = vmatprep.mubr.f32.mxu0 0.0
    %3464 = vmatmul.mubr.f32.gmra.mrb[0].mxu0 %v3397
    %v3465 = vpop.f32.mrb[0].mxu0
    %v3466 = vadd.f32 0.0, %v3465
    %v3467 = vpop.f32.mrb[0].mxu0
    %3468 = vdwg.mxu0
    %3470 = vrot.lane.b32.xlu0 %v3466, 32
    %v3471 = vpop.permute.xlu0 %3470
    %v3473 = vadd.f32 %v3395, %v3471
    %v3474 = vadd.f32 %v3473, %v2791
    %v3475 = vtanh.pop %v3474
    %3477 = vrot.lane.b32.xlu0 %v3475, 96
    %v3478 = vpop.permute.xlu0 %3477
    %v3479 = vsel %vm114, %v3478, 0
    %3481 = vmatprep.subr.mxu0 0.0
    %3482 = vmatpush1.msra.mxu0 %v101
    %3483 = vmatprep.subr.mxu0 0.0
    %3484 = vmatpush1.msra.mxu0 %v102
    %3485 = vmatprep.subr.mxu0 0.0
    %3486 = vmatpush1.msra.mxu0 %v103
    %3487 = vmatprep.subr.mxu0 0.0
    %3488 = vmatpush1.msra.mxu0 %v104
    %3489 = vmatprep.subr.mxu0 0.0
    %3490 = vmatpush1.msra.mxu0 0.0
    %3491 = vmatprep.subr.mxu0 0.0
    %3492 = vmatpush1.msra.mxu0 0.0
    %3493 = vmatprep.subr.mxu0 0.0
    %3494 = vmatpush1.msra.mxu0 0.0
    %3495 = vmatprep.subr.mxu0 0.0
    %3496 = vmatpush1.msra.mxu0 0.0
    %3497 = vmatprep.subr.mxu0 0.0
    %3498 = vmatpush1.msra.mxu0 0.0
    %3499 = vmatprep.subr.mxu0 0.0
    %3500 = vmatpush1.msra.mxu0 0.0
    %3501 = vmatprep.subr.mxu0 0.0
    %3502 = vmatpush1.msra.mxu0 0.0
    %3503 = vmatprep.subr.mxu0 0.0
    %3504 = vmatpush1.msra.mxu0 0.0
    %3505 = vmatprep.subr.mxu0 0.0
    %3506 = vmatpush1.msra.mxu0 0.0
    %3507 = vmatprep.subr.mxu0 0.0
    %3508 = vmatpush1.msra.mxu0 0.0
    %3509 = vmatprep.subr.mxu0 0.0
    %3510 = vmatpush1.msra.mxu0 0.0
    %3511 = vmatprep.subr.mxu0 0.0
    %3512 = vmatpush1.msra.mxu0 0.0
    %3513 = vmatprep.subr.mxu0 0.0
    %3514 = vmatpush1.msra.mxu0 0.0
    %3515 = vmatprep.subr.mxu0 0.0
    %3516 = vmatpush1.msra.mxu0 0.0
    %3517 = vmatprep.subr.mxu0 0.0
    %3518 = vmatpush1.msra.mxu0 0.0
    %3519 = vmatprep.subr.mxu0 0.0
    %3520 = vmatpush1.msra.mxu0 0.0
    %3521 = vmatprep.subr.mxu0 0.0
    %3522 = vmatpush1.msra.mxu0 0.0
    %3523 = vmatprep.subr.mxu0 0.0
    %3524 = vmatpush1.msra.mxu0 0.0
    %3525 = vmatprep.subr.mxu0 0.0
    %3526 = vmatpush1.msra.mxu0 0.0
    %3527 = vmatprep.subr.mxu0 0.0
    %3528 = vmatpush1.msra.mxu0 0.0
    %3529 = vmatprep.subr.mxu0 0.0
    %3530 = vmatpush1.msra.mxu0 0.0
    %3531 = vmatprep.subr.mxu0 0.0
    %3532 = vmatpush1.msra.mxu0 0.0
    %3533 = vmatprep.subr.mxu0 0.0
    %3534 = vmatpush1.msra.mxu0 0.0
    %3535 = vmatprep.subr.mxu0 0.0
    %3536 = vmatpush1.msra.mxu0 0.0
    %3537 = vmatprep.subr.mxu0 0.0
    %3538 = vmatpush1.msra.mxu0 0.0
    %3539 = vmatprep.subr.mxu0 0.0
    %3540 = vmatpush1.msra.mxu0 0.0
    %3541 = vmatprep.subr.mxu0 0.0
    %3542 = vmatpush1.msra.mxu0 0.0
    %3543 = vmatprep.subr.mxu0 0.0
    %3544 = vmatpush1.msra.mxu0 0.0
    %3545 = vmatprep.mubr.f32.mxu0 0.0
    %3546 = vmatmul.mubr.f32.gmra.mrb[0].mxu0 %v3479
    %v3547 = vpop.f32.mrb[0].mxu0
    %v3548 = vadd.f32 %v2799, %v3547
    %v3549 = vpop.f32.mrb[0].mxu0
    %3550 = vdwg.mxu0
    %v3551 = vsel %vm2876, %v3548, -inf
    %3552 = vmax.xlane.f32.xlu0 %v3551
    %v3553 = vpop.xlane.xlu0 %3552
    %v3554 = vsub.f32 %v3548, %v3553
    %v3555 = vmul.f32 %v3554, 1.442695
    %v3556 = vpow.pop %v3555
    %v3557 = vsel %vm2876, %v3556, 0.0
    %3558 = vadd.xlane.f32.xlu0 %v3557
    %v3559 = vpop.xlane.xlu0 %3558
    %v3560 = vrcp.pop %v3559
    %v3561 = vmul.f32 %v3556, %v3560
    %s3562 = scalar_lea.vmem [#allocation4], 2
    %3563 = vst.msk [vmem:[%s3562] sm:$0x3] %vm2876, %v3561
    %s3564 = scalar_lea.vmem %s1, 4
    %v3565 = vld [vmem:[%s3564] sm:$0x3]
    %3566 = vmatprep.subr.mxu0 0.0
    %3567 = vmatpush1.msra.mxu0 %v83
    %3568 = vmatprep.subr.mxu0 0.0
    %3569 = vmatpush1.msra.mxu0 %v84
    %3570 = vmatprep.subr.mxu0 0.0
    %3571 = vmatpush1.msra.mxu0 %v85
    %3572 = vmatprep.subr.mxu0 0.0
    %3573 = vmatpush1.msra.mxu0 %v86
    %3574 = vmatprep.subr.mxu0 0.0
    %3575 = vmatpush1.msra.mxu0 0.0
    %3576 = vmatprep.subr.mxu0 0.0
    %3577 = vmatpush1.msra.mxu0 0.0
    %3578 = vmatprep.subr.mxu0 0.0
    %3579 = vmatpush1.msra.mxu0 0.0
    %3580 = vmatprep.subr.mxu0 0.0
    %3581 = vmatpush1.msra.mxu0 0.0
    %3582 = vmatprep.subr.mxu0 0.0
    %3583 = vmatpush1.msra.mxu0 0.0
    %3584 = vmatprep.subr.mxu0 0.0
    %3585 = vmatpush1.msra.mxu0 0.0
    %3586 = vmatprep.subr.mxu0 0.0
    %3587 = vmatpush1.msra.mxu0 0.0
    %3588 = vmatprep.subr.mxu0 0.0
    %3589 = vmatpush1.msra.mxu0 0.0
    %3590 = vmatprep.subr.mxu0 0.0
    %3591 = vmatpush1.msra.mxu0 0.0
    %3592 = vmatprep.subr.mxu0 0.0
    %3593 = vmatpush1.msra.mxu0 0.0
    %3594 = vmatprep.subr.mxu0 0.0
    %3595 = vmatpush1.msra.mxu0 0.0
    %3596 = vmatprep.subr.mxu0 0.0
    %3597 = vmatpush1.msra.mxu0 0.0
    %3598 = vmatprep.subr.mxu0 0.0
    %3599 = vmatpush1.msra.mxu0 0.0
    %3600 = vmatprep.subr.mxu0 0.0
    %3601 = vmatpush1.msra.mxu0 0.0
    %3602 = vmatprep.subr.mxu0 0.0
    %3603 = vmatpush1.msra.mxu0 0.0
    %3604 = vmatprep.subr.mxu0 0.0
    %3605 = vmatpush1.msra.mxu0 0.0
    %3606 = vmatprep.subr.mxu0 0.0
    %3607 = vmatpush1.msra.mxu0 0.0
    %3608 = vmatprep.subr.mxu0 0.0
    %3609 = vmatpush1.msra.mxu0 0.0
    %3610 = vmatprep.subr.mxu0 0.0
    %3611 = vmatpush1.msra.mxu0 0.0
    %3612 = vmatprep.subr.mxu0 0.0
    %3613 = vmatpush1.msra.mxu0 0.0
    %3614 = vmatprep.subr.mxu0 0.0
    %3615 = vmatpush1.msra.mxu0 0.0
    %3616 = vmatprep.subr.mxu0 0.0
    %3617 = vmatpush1.msra.mxu0 0.0
    %3618 = vmatprep.subr.mxu0 0.0
    %3619 = vmatpush1.msra.mxu0 0.0
    %3620 = vmatprep.subr.mxu0 0.0
    %3621 = vmatpush1.msra.mxu0 0.0
    %3622 = vmatprep.subr.mxu0 0.0
    %3623 = vmatpush1.msra.mxu0 0.0
    %3624 = vmatprep.subr.mxu0 0.0
    %3625 = vmatpush1.msra.mxu0 0.0
    %3626 = vmatprep.subr.mxu0 0.0
    %3627 = vmatpush1.msra.mxu0 0.0
    %3628 = vmatprep.subr.mxu0 0.0
    %3629 = vmatpush1.msra.mxu0 0.0
    %3630 = vmatprep.mubr.f32.mxu0 0.0
    %3631 = vmatmul.mubr.f32.gmra.mrb[0].mxu0 %v3479
    %v3632 = vpop.f32.mrb[0].mxu0
    %v3633 = vadd.f32 0.0, %v3632
    %v3634 = vpop.f32.mrb[0].mxu0
    %3635 = vdwg.mxu0
    %v3636 = vadd.f32 %v3565, %v3633
    %3637 = vmatprep.subr.mxu0 0.0
    %3638 = vmatpush1.msra.mxu0 %v87
    %3639 = vmatprep.subr.mxu0 0.0
    %3640 = vmatpush1.msra.mxu0 %v88
    %3641 = vmatprep.subr.mxu0 0.0
    %3642 = vmatpush1.msra.mxu0 %v89
    %3643 = vmatprep.subr.mxu0 0.0
    %3644 = vmatpush1.msra.mxu0 %v90
    %3645 = vmatprep.subr.mxu0 0.0
    %3646 = vmatpush1.msra.mxu0 0.0
    %3647 = vmatprep.subr.mxu0 0.0
    %3648 = vmatpush1.msra.mxu0 0.0
    %3649 = vmatprep.subr.mxu0 0.0
    %3650 = vmatpush1.msra.mxu0 0.0
    %3651 = vmatprep.subr.mxu0 0.0
    %3652 = vmatpush1.msra.mxu0 0.0
    %3653 = vmatprep.subr.mxu0 0.0
    %3654 = vmatpush1.msra.mxu0 0.0
    %3655 = vmatprep.subr.mxu0 0.0
    %3656 = vmatpush1.msra.mxu0 0.0
    %3657 = vmatprep.subr.mxu0 0.0
    %3658 = vmatpush1.msra.mxu0 0.0
    %3659 = vmatprep.subr.mxu0 0.0
    %3660 = vmatpush1.msra.mxu0 0.0
    %3661 = vmatprep.subr.mxu0 0.0
    %3662 = vmatpush1.msra.mxu0 0.0
    %3663 = vmatprep.subr.mxu0 0.0
    %3664 = vmatpush1.msra.mxu0 0.0
    %3665 = vmatprep.subr.mxu0 0.0
    %3666 = vmatpush1.msra.mxu0 0.0
    %3667 = vmatprep.subr.mxu0 0.0
    %3668 = vmatpush1.msra.mxu0 0.0
    %3669 = vmatprep.subr.mxu0 0.0
    %3670 = vmatpush1.msra.mxu0 0.0
    %3671 = vmatprep.subr.mxu0 0.0
    %3672 = vmatpush1.msra.mxu0 0.0
    %3673 = vmatprep.subr.mxu0 0.0
    %3674 = vmatpush1.msra.mxu0 0.0
    %3675 = vmatprep.subr.mxu0 0.0
    %3676 = vmatpush1.msra.mxu0 0.0
    %3677 = vmatprep.subr.mxu0 0.0
    %3678 = vmatpush1.msra.mxu0 0.0
    %3679 = vmatprep.subr.mxu0 0.0
    %3680 = vmatpush1.msra.mxu0 0.0
    %3681 = vmatprep.subr.mxu0 0.0
    %3682 = vmatpush1.msra.mxu0 0.0
    %3683 = vmatprep.subr.mxu0 0.0
    %3684 = vmatpush1.msra.mxu0 0.0
    %3685 = vmatprep.subr.mxu0 0.0
    %3686 = vmatpush1.msra.mxu0 0.0
    %3687 = vmatprep.subr.mxu0 0.0
    %3688 = vmatpush1.msra.mxu0 0.0
    %3689 = vmatprep.subr.mxu0 0.0
    %3690 = vmatpush1.msra.mxu0 0.0
    %3691 = vmatprep.subr.mxu0 0.0
    %3692 = vmatpush1.msra.mxu0 0.0
    %3693 = vmatprep.subr.mxu0 0.0
    %3694 = vmatpush1.msra.mxu0 0.0
    %3695 = vmatprep.subr.mxu0 0.0
    %3696 = vmatpush1.msra.mxu0 0.0
    %3697 = vmatprep.subr.mxu0 0.0
    %3698 = vmatpush1.msra.mxu0 0.0
    %3699 = vmatprep.subr.mxu0 0.0
    %3700 = vmatpush1.msra.mxu0 0.0
    %3701 = vmatprep.mubr.f32.mxu0 0.0
    %3702 = vmatmul.mubr.f32.gmra.mrb[0].mxu0 %v3061
    %v3703 = vpop.f32.mrb[0].mxu0
    %v3704 = vadd.f32 %v2263, %v3703
    %v3705 = vpop.f32.mrb[0].mxu0
    %3706 = vdwg.mxu0
    %v3707 = vadd.f32 %v3636, %v3704
    %v3708 = vxor.u32 %v3707, 2147483648
    %v3709 = vmul.f32 %v3708, 1.442695
    %v3710 = vpow.pop %v3709
    %v3711 = vadd.f32 %v3710, 1.0
    %v3712 = vrcp.pop %v3711
    %v3713 = vmul.f32 1.0, %v3712
    %3715 = vrot.lane.b32.xlu0 %v3704, 64
    %v3716 = vpop.permute.xlu0 %3715
    %v3718 = vmul.f32 %v3713, %v3716
    %3720 = vrot.lane.b32.xlu0 %v3718, 64
    %v3721 = vpop.permute.xlu0 %3720
    %v3723 = vadd.f32 %v3636, %v3721
    %v3724 = vtanh.pop %v3723
    %v3725 = vsub.f32 1.0, %v3713
    %3727 = vrot.lane.b32.xlu0 %v3724, 96
    %v3728 = vpop.permute.xlu0 %3727
    %v3730 = vmul.f32 %v3725, %v3728
    %v3731 = vmul.f32 %v3713, %v3057
    %v3732 = vadd.f32 %v3730, %v3731
    %3734 = vrot.lane.b32.xlu0 %v3732, 96
    %v3735 = vpop.permute.xlu0 %3734
    %v3736 = vsel %vm114, %v3735, 0
    %3738 = vmatprep.subr.mxu0 0.0
    %3739 = vmatpush1.msra.mxu0 %v92
    %3740 = vmatprep.subr.mxu0 0.0
    %3741 = vmatpush1.msra.mxu0 %v93
    %3742 = vmatprep.subr.mxu0 0.0
    %3743 = vmatpush1.msra.mxu0 %v94
    %3744 = vmatprep.subr.mxu0 0.0
    %3745 = vmatpush1.msra.mxu0 %v95
    %3746 = vmatprep.subr.mxu0 0.0
    %3747 = vmatpush1.msra.mxu0 0.0
    %3748 = vmatprep.subr.mxu0 0.0
    %3749 = vmatpush1.msra.mxu0 0.0
    %3750 = vmatprep.subr.mxu0 0.0
    %3751 = vmatpush1.msra.mxu0 0.0
    %3752 = vmatprep.subr.mxu0 0.0
    %3753 = vmatpush1.msra.mxu0 0.0
    %3754 = vmatprep.subr.mxu0 0.0
    %3755 = vmatpush1.msra.mxu0 0.0
    %3756 = vmatprep.subr.mxu0 0.0
    %3757 = vmatpush1.msra.mxu0 0.0
    %3758 = vmatprep.subr.mxu0 0.0
    %3759 = vmatpush1.msra.mxu0 0.0
    %3760 = vmatprep.subr.mxu0 0.0
    %3761 = vmatpush1.msra.mxu0 0.0
    %3762 = vmatprep.subr.mxu0 0.0
    %3763 = vmatpush1.msra.mxu0 0.0
    %3764 = vmatprep.subr.mxu0 0.0
    %3765 = vmatpush1.msra.mxu0 0.0
    %3766 = vmatprep.subr.mxu0 0.0
    %3767 = vmatpush1.msra.mxu0 0.0
    %3768 = vmatprep.subr.mxu0 0.0
    %3769 = vmatpush1.msra.mxu0 0.0
    %3770 = vmatprep.subr.mxu0 0.0
    %3771 = vmatpush1.msra.mxu0 0.0
    %3772 = vmatprep.subr.mxu0 0.0
    %3773 = vmatpush1.msra.mxu0 0.0
    %3774 = vmatprep.subr.mxu0 0.0
    %3775 = vmatpush1.msra.mxu0 0.0
    %3776 = vmatprep.subr.mxu0 0.0
    %3777 = vmatpush1.msra.mxu0 0.0
    %3778 = vmatprep.subr.mxu0 0.0
    %3779 = vmatpush1.msra.mxu0 0.0
    %3780 = vmatprep.subr.mxu0 0.0
    %3781 = vmatpush1.msra.mxu0 0.0
    %3782 = vmatprep.subr.mxu0 0.0
    %3783 = vmatpush1.msra.mxu0 0.0
    %3784 = vmatprep.subr.mxu0 0.0
    %3785 = vmatpush1.msra.mxu0 0.0
    %3786 = vmatprep.subr.mxu0 0.0
    %3787 = vmatpush1.msra.mxu0 0.0
    %3788 = vmatprep.subr.mxu0 0.0
    %3789 = vmatpush1.msra.mxu0 0.0
    %3790 = vmatprep.subr.mxu0 0.0
    %3791 = vmatpush1.msra.mxu0 0.0
    %3792 = vmatprep.subr.mxu0 0.0
    %3793 = vmatpush1.msra.mxu0 0.0
    %3794 = vmatprep.subr.mxu0 0.0
    %3795 = vmatpush1.msra.mxu0 0.0
    %3796 = vmatprep.subr.mxu0 0.0
    %3797 = vmatpush1.msra.mxu0 0.0
    %3798 = vmatprep.subr.mxu0 0.0
    %3799 = vmatpush1.msra.mxu0 0.0
    %3800 = vmatprep.subr.mxu0 0.0
    %3801 = vmatpush1.msra.mxu0 0.0
    %3802 = vmatprep.mubr.f32.mxu0 0.0
    %3803 = vmatmul.mubr.f32.gmra.mrb[0].mxu0 %v3736
    %v3804 = vpop.f32.mrb[0].mxu0
    %v3805 = vadd.f32 0.0, %v3804
    %v3806 = vpop.f32.mrb[0].mxu0
    %3807 = vdwg.mxu0
    %v3808 = vmul.f32 %v2171, %v3805
    %v3809 = vmul.f32 %v2172, %v3805
    %v3810 = vmul.f32 %v2173, %v3805
    %v3811 = vmul.f32 %v2174, %v3805
    %v3812 = vmul.f32 %v2175, %v3805
    %v3813 = vmul.f32 %v2176, %v3805
    %v3814 = vmul.f32 %v2177, %v3805
    %v3815 = vmul.f32 %v2178, %v3805
    %v3816 = vsel %vm295, %v3808, 0.0
    %3817 = vadd.xlane.f32.xlu0 %v3816
    %v3818 = vpop.xlane.xlu0 %3817
    %v3819 = vsel %vm295, %v3809, 0.0
    %3820 = vadd.xlane.f32.xlu0 %v3819
    %v3821 = vpop.xlane.xlu0 %3820
    %v3822 = vsel %vm295, %v3810, 0.0
    %3823 = vadd.xlane.f32.xlu0 %v3822
    %v3824 = vpop.xlane.xlu0 %3823
    %v3825 = vsel %vm295, %v3811, 0.0
    %3826 = vadd.xlane.f32.xlu0 %v3825
    %v3827 = vpop.xlane.xlu0 %3826
    %v3828 = vsel %vm295, %v3812, 0.0
    %3829 = vadd.xlane.f32.xlu0 %v3828
    %v3830 = vpop.xlane.xlu0 %3829
    %v3831 = vsel %vm295, %v3813, 0.0
    %3832 = vadd.xlane.f32.xlu0 %v3831
    %v3833 = vpop.xlane.xlu0 %3832
    %v3834 = vsel %vm295, %v3814, 0.0
    %3835 = vadd.xlane.f32.xlu0 %v3834
    %v3836 = vpop.xlane.xlu0 %3835
    %v3837 = vsel %vm295, %v3815, 0.0
    %3838 = vadd.xlane.f32.xlu0 %v3837
    %v3839 = vpop.xlane.xlu0 %3838
    %3841 = vrot.lane.b32.xlu0 %v3805, 112
    %v3842 = vpop.permute.xlu0 %3841
    %v3844 = vmul.f32 %v2179, %v3842
    %v3845 = vmul.f32 %v2180, %v3842
    %v3846 = vmul.f32 %v2181, %v3842
    %v3847 = vmul.f32 %v2182, %v3842
    %v3848 = vmul.f32 %v2183, %v3842
    %v3849 = vmul.f32 %v2184, %v3842
    %v3850 = vmul.f32 %v2185, %v3842
    %v3851 = vmul.f32 %v2186, %v3842
    %v3852 = vsel %vm295, %v3844, 0.0
    %3853 = vadd.xlane.f32.xlu0 %v3852
    %v3854 = vpop.xlane.xlu0 %3853
    %v3855 = vsel %vm295, %v3845, 0.0
    %3856 = vadd.xlane.f32.xlu0 %v3855
    %v3857 = vpop.xlane.xlu0 %3856
    %v3858 = vsel %vm295, %v3846, 0.0
    %3859 = vadd.xlane.f32.xlu0 %v3858
    %v3860 = vpop.xlane.xlu0 %3859
    %v3861 = vsel %vm295, %v3847, 0.0
    %3862 = vadd.xlane.f32.xlu0 %v3861
    %v3863 = vpop.xlane.xlu0 %3862
    %v3864 = vsel %vm295, %v3848, 0.0
    %3865 = vadd.xlane.f32.xlu0 %v3864
    %v3866 = vpop.xlane.xlu0 %3865
    %v3867 = vsel %vm295, %v3849, 0.0
    %3868 = vadd.xlane.f32.xlu0 %v3867
    %v3869 = vpop.xlane.xlu0 %3868
    %v3870 = vsel %vm295, %v3850, 0.0
    %3871 = vadd.xlane.f32.xlu0 %v3870
    %v3872 = vpop.xlane.xlu0 %3871
    %v3873 = vsel %vm295, %v3851, 0.0
    %3874 = vadd.xlane.f32.xlu0 %v3873
    %v3875 = vpop.xlane.xlu0 %3874
    %v3876 = vadd.f32 %v3818, %v3854
    %v3877 = vadd.f32 %v3821, %v3857
    %v3878 = vadd.f32 %v3824, %v3860
    %v3879 = vadd.f32 %v3827, %v3863
    %v3880 = vadd.f32 %v3830, %v3866
    %v3881 = vadd.f32 %v3833, %v3869
    %v3882 = vadd.f32 %v3836, %v3872
    %v3883 = vadd.f32 %v3839, %v3875
    %v3884 = vsel %vm2518, %v3876, -inf
    %v3885 = vsel %vm2518, %v3877, -inf
    %v3886 = vsel %vm2518, %v3878, -inf
    %v3887 = vsel %vm2518, %v3879, -inf
    %v3888 = vsel %vm2518, %v3880, -inf
    %v3889 = vmax.f32 %v3884, %v3888
    %v3890 = vsel %vm2518, %v3881, -inf
    %v3891 = vmax.f32 %v3885, %v3890
    %v3892 = vsel %vm2518, %v3882, -inf
    %v3893 = vmax.f32 %v3886, %v3892
    %v3894 = vsel %vm2518, %v3883, -inf
    %v3895 = vmax.f32 %v3887, %v3894
    %v3896 = vmax.f32 %v3889, %v3891
    %v3897 = vmax.f32 %v3893, %v3895
    %v3898 = vmax.f32 %v3896, %v3897
    %v3899 = vsub.f32 %v3876, %v3898
    %v3900 = vsub.f32 %v3877, %v3898
    %v3901 = vsub.f32 %v3878, %v3898
    %v3902 = vsub.f32 %v3879, %v3898
    %v3903 = vsub.f32 %v3880, %v3898
    %v3904 = vsub.f32 %v3881, %v3898
    %v3905 = vsub.f32 %v3882, %v3898
    %v3906 = vsub.f32 %v3883, %v3898
    %v3907 = vmul.f32 %v3899, 1.442695
    %v3908 = vpow.pop %v3907
    %v3909 = vmul.f32 %v3900, 1.442695
    %v3910 = vpow.pop %v3909
    %v3911 = vmul.f32 %v3901, 1.442695
    %v3912 = vpow.pop %v3911
    %v3913 = vmul.f32 %v3902, 1.442695
    %v3914 = vpow.pop %v3913
    %v3915 = vmul.f32 %v3903, 1.442695
    %v3916 = vpow.pop %v3915
    %v3917 = vmul.f32 %v3904, 1.442695
    %v3918 = vpow.pop %v3917
    %v3919 = vmul.f32 %v3905, 1.442695
    %v3920 = vpow.pop %v3919
    %v3921 = vmul.f32 %v3906, 1.442695
    %v3922 = vpow.pop %v3921
    %v3923 = vsel %vm2518, %v3908, 0.0
    %v3924 = vsel %vm2518, %v3910, 0.0
    %v3925 = vadd.f32 %v3923, %v3924
    %v3926 = vsel %vm2518, %v3912, 0.0
    %v3927 = vadd.f32 %v3925, %v3926
    %v3928 = vsel %vm2518, %v3914, 0.0
    %v3929 = vadd.f32 %v3927, %v3928
    %v3930 = vsel %vm2518, %v3916, 0.0
    %v3931 = vadd.f32 %v3929, %v3930
    %v3932 = vsel %vm2518, %v3918, 0.0
    %v3933 = vadd.f32 %v3931, %v3932
    %v3934 = vsel %vm2518, %v3920, 0.0
    %v3935 = vadd.f32 %v3933, %v3934
    %v3936 = vsel %vm2518, %v3922, 0.0
    %v3937 = vadd.f32 %v3935, %v3936
    %v3938 = vrcp.pop %v3937
    %v3939 = vmul.f32 %v3908, %v3938
    %v3940 = vmul.f32 %v3910, %v3938
    %v3941 = vmul.f32 %v3912, %v3938
    %v3942 = vmul.f32 %v3914, %v3938
    %v3943 = vmul.f32 %v3916, %v3938
    %v3944 = vmul.f32 %v3918, %v3938
    %v3945 = vmul.f32 %v3920, %v3938
    %v3946 = vmul.f32 %v3922, %v3938
    %v3947 = vmul.f32 %v3939, %v2171
    %v3948 = vmul.f32 %v3940, %v2172
    %v3949 = vmul.f32 %v3941, %v2173
    %v3950 = vmul.f32 %v3942, %v2174
    %v3951 = vmul.f32 %v3943, %v2175
    %v3952 = vmul.f32 %v3944, %v2176
    %v3953 = vmul.f32 %v3945, %v2177
    %v3954 = vmul.f32 %v3946, %v2178
    %v3955 = vsel %vm295, %v3947, 0.0
    %v3956 = vsel %vm295, %v3948, 0.0
    %v3957 = vadd.f32 %v3955, %v3956
    %v3958 = vsel %vm295, %v3949, 0.0
    %v3959 = vadd.f32 %v3957, %v3958
    %v3960 = vsel %vm295, %v3950, 0.0
    %v3961 = vadd.f32 %v3959, %v3960
    %v3962 = vsel %vm295, %v3951, 0.0
    %v3963 = vadd.f32 %v3961, %v3962
    %v3964 = vsel %vm295, %v3952, 0.0
    %v3965 = vadd.f32 %v3963, %v3964
    %v3966 = vsel %vm295, %v3953, 0.0
    %v3967 = vadd.f32 %v3965, %v3966
    %v3968 = vsel %vm295, %v3954, 0.0
    %v3969 = vadd.f32 %v3967, %v3968
    %v3970 = vmul.f32 %v3939, %v2179
    %v3971 = vmul.f32 %v3940, %v2180
    %v3972 = vmul.f32 %v3941, %v2181
    %v3973 = vmul.f32 %v3942, %v2182
    %v3974 = vmul.f32 %v3943, %v2183
    %v3975 = vmul.f32 %v3944, %v2184
    %v3976 = vmul.f32 %v3945, %v2185
    %v3977 = vmul.f32 %v3946, %v2186
    %v3978 = vsel %vm295, %v3970, 0.0
    %v3979 = vsel %vm295, %v3971, 0.0
    %v3980 = vadd.f32 %v3978, %v3979
    %v3981 = vsel %vm295, %v3972, 0.0
    %v3982 = vadd.f32 %v3980, %v3981
    %v3983 = vsel %vm295, %v3973, 0.0
    %v3984 = vadd.f32 %v3982, %v3983
    %v3985 = vsel %vm295, %v3974, 0.0
    %v3986 = vadd.f32 %v3984, %v3985
    %v3987 = vsel %vm295, %v3975, 0.0
    %v3988 = vadd.f32 %v3986, %v3987
    %v3989 = vsel %vm295, %v3976, 0.0
    %v3990 = vadd.f32 %v3988, %v3989
    %v3991 = vsel %vm295, %v3977, 0.0
    %v3992 = vadd.f32 %v3990, %v3991
    %v3994 = vsel %vm2628, %v3969, 0
    %3996 = vmatprep.subr.mxu0 0.0
    %3997 = vmatpush1.msra.mxu0 %v96
    %3998 = vmatprep.subr.mxu0 0.0
    %3999 = vmatpush1.msra.mxu0 %v97
    %4000 = vmatprep.subr.mxu0 0.0
    %4001 = vmatpush1.msra.mxu0 0.0
    %4002 = vmatprep.subr.mxu0 0.0
    %4003 = vmatpush1.msra.mxu0 0.0
    %4004 = vmatprep.subr.mxu0 0.0
    %4005 = vmatpush1.msra.mxu0 0.0
    %4006 = vmatprep.subr.mxu0 0.0
    %4007 = vmatpush1.msra.mxu0 0.0
    %4008 = vmatprep.subr.mxu0 0.0
    %4009 = vmatpush1.msra.mxu0 0.0
    %4010 = vmatprep.subr.mxu0 0.0
    %4011 = vmatpush1.msra.mxu0 0.0
    %4012 = vmatprep.subr.mxu0 0.0
    %4013 = vmatpush1.msra.mxu0 0.0
    %4014 = vmatprep.subr.mxu0 0.0
    %4015 = vmatpush1.msra.mxu0 0.0
    %4016 = vmatprep.subr.mxu0 0.0
    %4017 = vmatpush1.msra.mxu0 0.0
    %4018 = vmatprep.subr.mxu0 0.0
    %4019 = vmatpush1.msra.mxu0 0.0
    %4020 = vmatprep.subr.mxu0 0.0
    %4021 = vmatpush1.msra.mxu0 0.0
    %4022 = vmatprep.subr.mxu0 0.0
    %4023 = vmatpush1.msra.mxu0 0.0
    %4024 = vmatprep.subr.mxu0 0.0
    %4025 = vmatpush1.msra.mxu0 0.0
    %4026 = vmatprep.subr.mxu0 0.0
    %4027 = vmatpush1.msra.mxu0 0.0
    %4028 = vmatprep.subr.mxu0 0.0
    %4029 = vmatpush1.msra.mxu0 0.0
    %4030 = vmatprep.subr.mxu0 0.0
    %4031 = vmatpush1.msra.mxu0 0.0
    %4032 = vmatprep.subr.mxu0 0.0
    %4033 = vmatpush1.msra.mxu0 0.0
    %4034 = vmatprep.subr.mxu0 0.0
    %4035 = vmatpush1.msra.mxu0 0.0
    %4036 = vmatprep.subr.mxu0 0.0
    %4037 = vmatpush1.msra.mxu0 0.0
    %4038 = vmatprep.subr.mxu0 0.0
    %4039 = vmatpush1.msra.mxu0 0.0
    %4040 = vmatprep.subr.mxu0 0.0
    %4041 = vmatpush1.msra.mxu0 0.0
    %4042 = vmatprep.subr.mxu0 0.0
    %4043 = vmatpush1.msra.mxu0 0.0
    %4044 = vmatprep.subr.mxu0 0.0
    %4045 = vmatpush1.msra.mxu0 0.0
    %4046 = vmatprep.subr.mxu0 0.0
    %4047 = vmatpush1.msra.mxu0 0.0
    %4048 = vmatprep.subr.mxu0 0.0
    %4049 = vmatpush1.msra.mxu0 0.0
    %4050 = vmatprep.subr.mxu0 0.0
    %4051 = vmatpush1.msra.mxu0 0.0
    %4052 = vmatprep.subr.mxu0 0.0
    %4053 = vmatpush1.msra.mxu0 0.0
    %4054 = vmatprep.subr.mxu0 0.0
    %4055 = vmatpush1.msra.mxu0 0.0
    %4056 = vmatprep.subr.mxu0 0.0
    %4057 = vmatpush1.msra.mxu0 0.0
    %4058 = vmatprep.subr.mxu0 0.0
    %4059 = vmatpush1.msra.mxu0 0.0
    %4060 = vmatprep.mubr.f32.mxu0 0.0
    %4061 = vmatmul.mubr.f32.gmra.mrb[0].mxu0 %v3994
    %v4062 = vpop.f32.mrb[0].mxu0
    %v4063 = vadd.f32 0.0, %v4062
    %v4064 = vpop.f32.mrb[0].mxu0
    %4065 = vdwg.mxu0
    %4067 = vrot.lane.b32.xlu0 %v4063, 32
    %v4068 = vpop.permute.xlu0 %4067
    %v4070 = vadd.f32 %v3805, %v4068
    %v4072 = vsel %vm2628, %v3992, 0
    %4074 = vmatprep.subr.mxu0 0.0
    %4075 = vmatpush1.msra.mxu0 %v98
    %4076 = vmatprep.subr.mxu0 0.0
    %4077 = vmatpush1.msra.mxu0 %v99
    %4078 = vmatprep.subr.mxu0 0.0
    %4079 = vmatpush1.msra.mxu0 0.0
    %4080 = vmatprep.subr.mxu0 0.0
    %4081 = vmatpush1.msra.mxu0 0.0
    %4082 = vmatprep.subr.mxu0 0.0
    %4083 = vmatpush1.msra.mxu0 0.0
    %4084 = vmatprep.subr.mxu0 0.0
    %4085 = vmatpush1.msra.mxu0 0.0
    %4086 = vmatprep.subr.mxu0 0.0
    %4087 = vmatpush1.msra.mxu0 0.0
    %4088 = vmatprep.subr.mxu0 0.0
    %4089 = vmatpush1.msra.mxu0 0.0
    %4090 = vmatprep.subr.mxu0 0.0
    %4091 = vmatpush1.msra.mxu0 0.0
    %4092 = vmatprep.subr.mxu0 0.0
    %4093 = vmatpush1.msra.mxu0 0.0
    %4094 = vmatprep.subr.mxu0 0.0
    %4095 = vmatpush1.msra.mxu0 0.0
    %4096 = vmatprep.subr.mxu0 0.0
    %4097 = vmatpush1.msra.mxu0 0.0
    %4098 = vmatprep.subr.mxu0 0.0
    %4099 = vmatpush1.msra.mxu0 0.0
    %4100 = vmatprep.subr.mxu0 0.0
    %4101 = vmatpush1.msra.mxu0 0.0
    %4102 = vmatprep.subr.mxu0 0.0
    %4103 = vmatpush1.msra.mxu0 0.0
    %4104 = vmatprep.subr.mxu0 0.0
    %4105 = vmatpush1.msra.mxu0 0.0
    %4106 = vmatprep.subr.mxu0 0.0
    %4107 = vmatpush1.msra.mxu0 0.0
    %4108 = vmatprep.subr.mxu0 0.0
    %4109 = vmatpush1.msra.mxu0 0.0
    %4110 = vmatprep.subr.mxu0 0.0
    %4111 = vmatpush1.msra.mxu0 0.0
    %4112 = vmatprep.subr.mxu0 0.0
    %4113 = vmatpush1.msra.mxu0 0.0
    %4114 = vmatprep.subr.mxu0 0.0
    %4115 = vmatpush1.msra.mxu0 0.0
    %4116 = vmatprep.subr.mxu0 0.0
    %4117 = vmatpush1.msra.mxu0 0.0
    %4118 = vmatprep.subr.mxu0 0.0
    %4119 = vmatpush1.msra.mxu0 0.0
    %4120 = vmatprep.subr.mxu0 0.0
    %4121 = vmatpush1.msra.mxu0 0.0
    %4122 = vmatprep.subr.mxu0 0.0
    %4123 = vmatpush1.msra.mxu0 0.0
    %4124 = vmatprep.subr.mxu0 0.0
    %4125 = vmatpush1.msra.mxu0 0.0
    %4126 = vmatprep.subr.mxu0 0.0
    %4127 = vmatpush1.msra.mxu0 0.0
    %4128 = vmatprep.subr.mxu0 0.0
    %4129 = vmatpush1.msra.mxu0 0.0
    %4130 = vmatprep.subr.mxu0 0.0
    %4131 = vmatpush1.msra.mxu0 0.0
    %4132 = vmatprep.subr.mxu0 0.0
    %4133 = vmatpush1.msra.mxu0 0.0
    %4134 = vmatprep.subr.mxu0 0.0
    %4135 = vmatpush1.msra.mxu0 0.0
    %4136 = vmatprep.subr.mxu0 0.0
    %4137 = vmatpush1.msra.mxu0 0.0
    %4138 = vmatprep.mubr.f32.mxu0 0.0
    %4139 = vmatmul.mubr.f32.gmra.mrb[0].mxu0 %v4072
    %v4140 = vpop.f32.mrb[0].mxu0
    %v4141 = vadd.f32 0.0, %v4140
    %v4142 = vpop.f32.mrb[0].mxu0
    %4143 = vdwg.mxu0
    %4145 = vrot.lane.b32.xlu0 %v4141, 32
    %v4146 = vpop.permute.xlu0 %4145
    %v4148 = vadd.f32 %v4070, %v4146
    %v4149 = vadd.f32 %v4148, %v2791
    %v4150 = vtanh.pop %v4149
    %4152 = vrot.lane.b32.xlu0 %v4150, 96
    %v4153 = vpop.permute.xlu0 %4152
    %v4154 = vsel %vm114, %v4153, 0
    %4156 = vmatprep.subr.mxu0 0.0
    %4157 = vmatpush1.msra.mxu0 %v101
    %4158 = vmatprep.subr.mxu0 0.0
    %4159 = vmatpush1.msra.mxu0 %v102
    %4160 = vmatprep.subr.mxu0 0.0
    %4161 = vmatpush1.msra.mxu0 %v103
    %4162 = vmatprep.subr.mxu0 0.0
    %4163 = vmatpush1.msra.mxu0 %v104
    %4164 = vmatprep.subr.mxu0 0.0
    %4165 = vmatpush1.msra.mxu0 0.0
    %4166 = vmatprep.subr.mxu0 0.0
    %4167 = vmatpush1.msra.mxu0 0.0
    %4168 = vmatprep.subr.mxu0 0.0
    %4169 = vmatpush1.msra.mxu0 0.0
    %4170 = vmatprep.subr.mxu0 0.0
    %4171 = vmatpush1.msra.mxu0 0.0
    %4172 = vmatprep.subr.mxu0 0.0
    %4173 = vmatpush1.msra.mxu0 0.0
    %4174 = vmatprep.subr.mxu0 0.0
    %4175 = vmatpush1.msra.mxu0 0.0
    %4176 = vmatprep.subr.mxu0 0.0
    %4177 = vmatpush1.msra.mxu0 0.0
    %4178 = vmatprep.subr.mxu0 0.0
    %4179 = vmatpush1.msra.mxu0 0.0
    %4180 = vmatprep.subr.mxu0 0.0
    %4181 = vmatpush1.msra.mxu0 0.0
    %4182 = vmatprep.subr.mxu0 0.0
    %4183 = vmatpush1.msra.mxu0 0.0
    %4184 = vmatprep.subr.mxu0 0.0
    %4185 = vmatpush1.msra.mxu0 0.0
    %4186 = vmatprep.subr.mxu0 0.0
    %4187 = vmatpush1.msra.mxu0 0.0
    %4188 = vmatprep.subr.mxu0 0.0
    %4189 = vmatpush1.msra.mxu0 0.0
    %4190 = vmatprep.subr.mxu0 0.0
    %4191 = vmatpush1.msra.mxu0 0.0
    %4192 = vmatprep.subr.mxu0 0.0
    %4193 = vmatpush1.msra.mxu0 0.0
    %4194 = vmatprep.subr.mxu0 0.0
    %4195 = vmatpush1.msra.mxu0 0.0
    %4196 = vmatprep.subr.mxu0 0.0
    %4197 = vmatpush1.msra.mxu0 0.0
    %4198 = vmatprep.subr.mxu0 0.0
    %4199 = vmatpush1.msra.mxu0 0.0
    %4200 = vmatprep.subr.mxu0 0.0
    %4201 = vmatpush1.msra.mxu0 0.0
    %4202 = vmatprep.subr.mxu0 0.0
    %4203 = vmatpush1.msra.mxu0 0.0
    %4204 = vmatprep.subr.mxu0 0.0
    %4205 = vmatpush1.msra.mxu0 0.0
    %4206 = vmatprep.subr.mxu0 0.0
    %4207 = vmatpush1.msra.mxu0 0.0
    %4208 = vmatprep.subr.mxu0 0.0
    %4209 = vmatpush1.msra.mxu0 0.0
    %4210 = vmatprep.subr.mxu0 0.0
    %4211 = vmatpush1.msra.mxu0 0.0
    %4212 = vmatprep.subr.mxu0 0.0
    %4213 = vmatpush1.msra.mxu0 0.0
    %4214 = vmatprep.subr.mxu0 0.0
    %4215 = vmatpush1.msra.mxu0 0.0
    %4216 = vmatprep.subr.mxu0 0.0
    %4217 = vmatpush1.msra.mxu0 0.0
    %4218 = vmatprep.subr.mxu0 0.0
    %4219 = vmatpush1.msra.mxu0 0.0
    %4220 = vmatprep.mubr.f32.mxu0 0.0
    %4221 = vmatmul.mubr.f32.gmra.mrb[0].mxu0 %v4154
    %v4222 = vpop.f32.mrb[0].mxu0
    %v4223 = vadd.f32 %v2799, %v4222
    %v4224 = vpop.f32.mrb[0].mxu0
    %4225 = vdwg.mxu0
    %v4226 = vsel %vm2876, %v4223, -inf
    %4227 = vmax.xlane.f32.xlu0 %v4226
    %v4228 = vpop.xlane.xlu0 %4227
    %v4229 = vsub.f32 %v4223, %v4228
    %v4230 = vmul.f32 %v4229, 1.442695
    %v4231 = vpow.pop %v4230
    %v4232 = vsel %vm2876, %v4231, 0.0
    %4233 = vadd.xlane.f32.xlu0 %v4232
    %v4234 = vpop.xlane.xlu0 %4233
    %v4235 = vrcp.pop %v4234
    %v4236 = vmul.f32 %v4231, %v4235
    %s4237 = scalar_lea.vmem [#allocation4], 4
    %4238 = vst.msk [vmem:[%s4237] sm:$0x3] %vm2876, %v4236
    %s4239 = scalar_lea.vmem %s1, 6
    %v4240 = vld [vmem:[%s4239] sm:$0x3]
    %4241 = vmatprep.subr.mxu0 0.0
    %4242 = vmatpush1.msra.mxu0 %v83
    %4243 = vmatprep.subr.mxu0 0.0
    %4244 = vmatpush1.msra.mxu0 %v84
    %4245 = vmatprep.subr.mxu0 0.0
    %4246 = vmatpush1.msra.mxu0 %v85
    %4247 = vmatprep.subr.mxu0 0.0
    %4248 = vmatpush1.msra.mxu0 %v86
    %4249 = vmatprep.subr.mxu0 0.0
    %4250 = vmatpush1.msra.mxu0 0.0
    %4251 = vmatprep.subr.mxu0 0.0
    %4252 = vmatpush1.msra.mxu0 0.0
    %4253 = vmatprep.subr.mxu0 0.0
    %4254 = vmatpush1.msra.mxu0 0.0
    %4255 = vmatprep.subr.mxu0 0.0
    %4256 = vmatpush1.msra.mxu0 0.0
    %4257 = vmatprep.subr.mxu0 0.0
    %4258 = vmatpush1.msra.mxu0 0.0
    %4259 = vmatprep.subr.mxu0 0.0
    %4260 = vmatpush1.msra.mxu0 0.0
    %4261 = vmatprep.subr.mxu0 0.0
    %4262 = vmatpush1.msra.mxu0 0.0
    %4263 = vmatprep.subr.mxu0 0.0
    %4264 = vmatpush1.msra.mxu0 0.0
    %4265 = vmatprep.subr.mxu0 0.0
    %4266 = vmatpush1.msra.mxu0 0.0
    %4267 = vmatprep.subr.mxu0 0.0
    %4268 = vmatpush1.msra.mxu0 0.0
    %4269 = vmatprep.subr.mxu0 0.0
    %4270 = vmatpush1.msra.mxu0 0.0
    %4271 = vmatprep.subr.mxu0 0.0
    %4272 = vmatpush1.msra.mxu0 0.0
    %4273 = vmatprep.subr.mxu0 0.0
    %4274 = vmatpush1.msra.mxu0 0.0
    %4275 = vmatprep.subr.mxu0 0.0
    %4276 = vmatpush1.msra.mxu0 0.0
    %4277 = vmatprep.subr.mxu0 0.0
    %4278 = vmatpush1.msra.mxu0 0.0
    %4279 = vmatprep.subr.mxu0 0.0
    %4280 = vmatpush1.msra.mxu0 0.0
    %4281 = vmatprep.subr.mxu0 0.0
    %4282 = vmatpush1.msra.mxu0 0.0
    %4283 = vmatprep.subr.mxu0 0.0
    %4284 = vmatpush1.msra.mxu0 0.0
    %4285 = vmatprep.subr.mxu0 0.0
    %4286 = vmatpush1.msra.mxu0 0.0
    %4287 = vmatprep.subr.mxu0 0.0
    %4288 = vmatpush1.msra.mxu0 0.0
    %4289 = vmatprep.subr.mxu0 0.0
    %4290 = vmatpush1.msra.mxu0 0.0
    %4291 = vmatprep.subr.mxu0 0.0
    %4292 = vmatpush1.msra.mxu0 0.0
    %4293 = vmatprep.subr.mxu0 0.0
    %4294 = vmatpush1.msra.mxu0 0.0
    %4295 = vmatprep.subr.mxu0 0.0
    %4296 = vmatpush1.msra.mxu0 0.0
    %4297 = vmatprep.subr.mxu0 0.0
    %4298 = vmatpush1.msra.mxu0 0.0
    %4299 = vmatprep.subr.mxu0 0.0
    %4300 = vmatpush1.msra.mxu0 0.0
    %4301 = vmatprep.subr.mxu0 0.0
    %4302 = vmatpush1.msra.mxu0 0.0
    %4303 = vmatprep.subr.mxu0 0.0
    %4304 = vmatpush1.msra.mxu0 0.0
    %4305 = vmatprep.mubr.f32.mxu0 0.0
    %4306 = vmatmul.mubr.f32.gmra.mrb[0].mxu0 %v4154
    %v4307 = vpop.f32.mrb[0].mxu0
    %v4308 = vadd.f32 0.0, %v4307
    %v4309 = vpop.f32.mrb[0].mxu0
    %4310 = vdwg.mxu0
    %v4311 = vadd.f32 %v4240, %v4308
    %4312 = vmatprep.subr.mxu0 0.0
    %4313 = vmatpush1.msra.mxu0 %v87
    %4314 = vmatprep.subr.mxu0 0.0
    %4315 = vmatpush1.msra.mxu0 %v88
    %4316 = vmatprep.subr.mxu0 0.0
    %4317 = vmatpush1.msra.mxu0 %v89
    %4318 = vmatprep.subr.mxu0 0.0
    %4319 = vmatpush1.msra.mxu0 %v90
    %4320 = vmatprep.subr.mxu0 0.0
    %4321 = vmatpush1.msra.mxu0 0.0
    %4322 = vmatprep.subr.mxu0 0.0
    %4323 = vmatpush1.msra.mxu0 0.0
    %4324 = vmatprep.subr.mxu0 0.0
    %4325 = vmatpush1.msra.mxu0 0.0
    %4326 = vmatprep.subr.mxu0 0.0
    %4327 = vmatpush1.msra.mxu0 0.0
    %4328 = vmatprep.subr.mxu0 0.0
    %4329 = vmatpush1.msra.mxu0 0.0
    %4330 = vmatprep.subr.mxu0 0.0
    %4331 = vmatpush1.msra.mxu0 0.0
    %4332 = vmatprep.subr.mxu0 0.0
    %4333 = vmatpush1.msra.mxu0 0.0
    %4334 = vmatprep.subr.mxu0 0.0
    %4335 = vmatpush1.msra.mxu0 0.0
    %4336 = vmatprep.subr.mxu0 0.0
    %4337 = vmatpush1.msra.mxu0 0.0
    %4338 = vmatprep.subr.mxu0 0.0
    %4339 = vmatpush1.msra.mxu0 0.0
    %4340 = vmatprep.subr.mxu0 0.0
    %4341 = vmatpush1.msra.mxu0 0.0
    %4342 = vmatprep.subr.mxu0 0.0
    %4343 = vmatpush1.msra.mxu0 0.0
    %4344 = vmatprep.subr.mxu0 0.0
    %4345 = vmatpush1.msra.mxu0 0.0
    %4346 = vmatprep.subr.mxu0 0.0
    %4347 = vmatpush1.msra.mxu0 0.0
    %4348 = vmatprep.subr.mxu0 0.0
    %4349 = vmatpush1.msra.mxu0 0.0
    %4350 = vmatprep.subr.mxu0 0.0
    %4351 = vmatpush1.msra.mxu0 0.0
    %4352 = vmatprep.subr.mxu0 0.0
    %4353 = vmatpush1.msra.mxu0 0.0
    %4354 = vmatprep.subr.mxu0 0.0
    %4355 = vmatpush1.msra.mxu0 0.0
    %4356 = vmatprep.subr.mxu0 0.0
    %4357 = vmatpush1.msra.mxu0 0.0
    %4358 = vmatprep.subr.mxu0 0.0
    %4359 = vmatpush1.msra.mxu0 0.0
    %4360 = vmatprep.subr.mxu0 0.0
    %4361 = vmatpush1.msra.mxu0 0.0
    %4362 = vmatprep.subr.mxu0 0.0
    %4363 = vmatpush1.msra.mxu0 0.0
    %4364 = vmatprep.subr.mxu0 0.0
    %4365 = vmatpush1.msra.mxu0 0.0
    %4366 = vmatprep.subr.mxu0 0.0
    %4367 = vmatpush1.msra.mxu0 0.0
    %4368 = vmatprep.subr.mxu0 0.0
    %4369 = vmatpush1.msra.mxu0 0.0
    %4370 = vmatprep.subr.mxu0 0.0
    %4371 = vmatpush1.msra.mxu0 0.0
    %4372 = vmatprep.subr.mxu0 0.0
    %4373 = vmatpush1.msra.mxu0 0.0
    %4374 = vmatprep.subr.mxu0 0.0
    %4375 = vmatpush1.msra.mxu0 0.0
    %4376 = vmatprep.mubr.f32.mxu0 0.0
    %4377 = vmatmul.mubr.f32.gmra.mrb[0].mxu0 %v3736
    %v4378 = vpop.f32.mrb[0].mxu0
    %v4379 = vadd.f32 %v2263, %v4378
    %v4380 = vpop.f32.mrb[0].mxu0
    %4381 = vdwg.mxu0
    %v4382 = vadd.f32 %v4311, %v4379
    %v4383 = vxor.u32 %v4382, 2147483648
    %v4384 = vmul.f32 %v4383, 1.442695
    %v4385 = vpow.pop %v4384
    %v4386 = vadd.f32 %v4385, 1.0
    %v4387 = vrcp.pop %v4386
    %v4388 = vmul.f32 1.0, %v4387
    %4390 = vrot.lane.b32.xlu0 %v4379, 64
    %v4391 = vpop.permute.xlu0 %4390
    %v4393 = vmul.f32 %v4388, %v4391
    %4395 = vrot.lane.b32.xlu0 %v4393, 64
    %v4396 = vpop.permute.xlu0 %4395
    %v4398 = vadd.f32 %v4311, %v4396
    %v4399 = vtanh.pop %v4398
    %v4400 = vsub.f32 1.0, %v4388
    %4402 = vrot.lane.b32.xlu0 %v4399, 96
    %v4403 = vpop.permute.xlu0 %4402
    %v4405 = vmul.f32 %v4400, %v4403
    %v4406 = vmul.f32 %v4388, %v3732
    %v4407 = vadd.f32 %v4405, %v4406
    %4409 = vrot.lane.b32.xlu0 %v4407, 96
    %v4410 = vpop.permute.xlu0 %4409
    %v4411 = vsel %vm114, %v4410, 0
    %4413 = vmatprep.subr.mxu0 0.0
    %4414 = vmatpush1.msra.mxu0 %v92
    %4415 = vmatprep.subr.mxu0 0.0
    %4416 = vmatpush1.msra.mxu0 %v93
    %4417 = vmatprep.subr.mxu0 0.0
    %4418 = vmatpush1.msra.mxu0 %v94
    %4419 = vmatprep.subr.mxu0 0.0
    %4420 = vmatpush1.msra.mxu0 %v95
    %4421 = vmatprep.subr.mxu0 0.0
    %4422 = vmatpush1.msra.mxu0 0.0
    %4423 = vmatprep.subr.mxu0 0.0
    %4424 = vmatpush1.msra.mxu0 0.0
    %4425 = vmatprep.subr.mxu0 0.0
    %4426 = vmatpush1.msra.mxu0 0.0
    %4427 = vmatprep.subr.mxu0 0.0
    %4428 = vmatpush1.msra.mxu0 0.0
    %4429 = vmatprep.subr.mxu0 0.0
    %4430 = vmatpush1.msra.mxu0 0.0
    %4431 = vmatprep.subr.mxu0 0.0
    %4432 = vmatpush1.msra.mxu0 0.0
    %4433 = vmatprep.subr.mxu0 0.0
    %4434 = vmatpush1.msra.mxu0 0.0
    %4435 = vmatprep.subr.mxu0 0.0
    %4436 = vmatpush1.msra.mxu0 0.0
    %4437 = vmatprep.subr.mxu0 0.0
    %4438 = vmatpush1.msra.mxu0 0.0
    %4439 = vmatprep.subr.mxu0 0.0
    %4440 = vmatpush1.msra.mxu0 0.0
    %4441 = vmatprep.subr.mxu0 0.0
    %4442 = vmatpush1.msra.mxu0 0.0
    %4443 = vmatprep.subr.mxu0 0.0
    %4444 = vmatpush1.msra.mxu0 0.0
    %4445 = vmatprep.subr.mxu0 0.0
    %4446 = vmatpush1.msra.mxu0 0.0
    %4447 = vmatprep.subr.mxu0 0.0
    %4448 = vmatpush1.msra.mxu0 0.0
    %4449 = vmatprep.subr.mxu0 0.0
    %4450 = vmatpush1.msra.mxu0 0.0
    %4451 = vmatprep.subr.mxu0 0.0
    %4452 = vmatpush1.msra.mxu0 0.0
    %4453 = vmatprep.subr.mxu0 0.0
    %4454 = vmatpush1.msra.mxu0 0.0
    %4455 = vmatprep.subr.mxu0 0.0
    %4456 = vmatpush1.msra.mxu0 0.0
    %4457 = vmatprep.subr.mxu0 0.0
    %4458 = vmatpush1.msra.mxu0 0.0
    %4459 = vmatprep.subr.mxu0 0.0
    %4460 = vmatpush1.msra.mxu0 0.0
    %4461 = vmatprep.subr.mxu0 0.0
    %4462 = vmatpush1.msra.mxu0 0.0
    %4463 = vmatprep.subr.mxu0 0.0
    %4464 = vmatpush1.msra.mxu0 0.0
    %4465 = vmatprep.subr.mxu0 0.0
    %4466 = vmatpush1.msra.mxu0 0.0
    %4467 = vmatprep.subr.mxu0 0.0
    %4468 = vmatpush1.msra.mxu0 0.0
    %4469 = vmatprep.subr.mxu0 0.0
    %4470 = vmatpush1.msra.mxu0 0.0
    %4471 = vmatprep.subr.mxu0 0.0
    %4472 = vmatpush1.msra.mxu0 0.0
    %4473 = vmatprep.subr.mxu0 0.0
    %4474 = vmatpush1.msra.mxu0 0.0
    %4475 = vmatprep.subr.mxu0 0.0
    %4476 = vmatpush1.msra.mxu0 0.0
    %4477 = vmatprep.mubr.f32.mxu0 0.0
    %4478 = vmatmul.mubr.f32.gmra.mrb[0].mxu0 %v4411
    %v4479 = vpop.f32.mrb[0].mxu0
    %v4480 = vadd.f32 0.0, %v4479
    %v4481 = vpop.f32.mrb[0].mxu0
    %4482 = vdwg.mxu0
    %v4483 = vmul.f32 %v2171, %v4480
    %v4484 = vmul.f32 %v2172, %v4480
    %v4485 = vmul.f32 %v2173, %v4480
    %v4486 = vmul.f32 %v2174, %v4480
    %v4487 = vmul.f32 %v2175, %v4480
    %v4488 = vmul.f32 %v2176, %v4480
    %v4489 = vmul.f32 %v2177, %v4480
    %v4490 = vmul.f32 %v2178, %v4480
    %v4491 = vsel %vm295, %v4483, 0.0
    %4492 = vadd.xlane.f32.xlu0 %v4491
    %v4493 = vpop.xlane.xlu0 %4492
    %v4494 = vsel %vm295, %v4484, 0.0
    %4495 = vadd.xlane.f32.xlu0 %v4494
    %v4496 = vpop.xlane.xlu0 %4495
    %v4497 = vsel %vm295, %v4485, 0.0
    %4498 = vadd.xlane.f32.xlu0 %v4497
    %v4499 = vpop.xlane.xlu0 %4498
    %v4500 = vsel %vm295, %v4486, 0.0
    %4501 = vadd.xlane.f32.xlu0 %v4500
    %v4502 = vpop.xlane.xlu0 %4501
    %v4503 = vsel %vm295, %v4487, 0.0
    %4504 = vadd.xlane.f32.xlu0 %v4503
    %v4505 = vpop.xlane.xlu0 %4504
    %v4506 = vsel %vm295, %v4488, 0.0
    %4507 = vadd.xlane.f32.xlu0 %v4506
    %v4508 = vpop.xlane.xlu0 %4507
    %v4509 = vsel %vm295, %v4489, 0.0
    %4510 = vadd.xlane.f32.xlu0 %v4509
    %v4511 = vpop.xlane.xlu0 %4510
    %v4512 = vsel %vm295, %v4490, 0.0
    %4513 = vadd.xlane.f32.xlu0 %v4512
    %v4514 = vpop.xlane.xlu0 %4513
    %4516 = vrot.lane.b32.xlu0 %v4480, 112
    %v4517 = vpop.permute.xlu0 %4516
    %v4519 = vmul.f32 %v2179, %v4517
    %v4520 = vmul.f32 %v2180, %v4517
    %v4521 = vmul.f32 %v2181, %v4517
    %v4522 = vmul.f32 %v2182, %v4517
    %v4523 = vmul.f32 %v2183, %v4517
    %v4524 = vmul.f32 %v2184, %v4517
    %v4525 = vmul.f32 %v2185, %v4517
    %v4526 = vmul.f32 %v2186, %v4517
    %v4527 = vsel %vm295, %v4519, 0.0
    %4528 = vadd.xlane.f32.xlu0 %v4527
    %v4529 = vpop.xlane.xlu0 %4528
    %v4530 = vsel %vm295, %v4520, 0.0
    %4531 = vadd.xlane.f32.xlu0 %v4530
    %v4532 = vpop.xlane.xlu0 %4531
    %v4533 = vsel %vm295, %v4521, 0.0
    %4534 = vadd.xlane.f32.xlu0 %v4533
    %v4535 = vpop.xlane.xlu0 %4534
    %v4536 = vsel %vm295, %v4522, 0.0
    %4537 = vadd.xlane.f32.xlu0 %v4536
    %v4538 = vpop.xlane.xlu0 %4537
    %v4539 = vsel %vm295, %v4523, 0.0
    %4540 = vadd.xlane.f32.xlu0 %v4539
    %v4541 = vpop.xlane.xlu0 %4540
    %v4542 = vsel %vm295, %v4524, 0.0
    %4543 = vadd.xlane.f32.xlu0 %v4542
    %v4544 = vpop.xlane.xlu0 %4543
    %v4545 = vsel %vm295, %v4525, 0.0
    %4546 = vadd.xlane.f32.xlu0 %v4545
    %v4547 = vpop.xlane.xlu0 %4546
    %v4548 = vsel %vm295, %v4526, 0.0
    %4549 = vadd.xlane.f32.xlu0 %v4548
    %v4550 = vpop.xlane.xlu0 %4549
    %v4551 = vadd.f32 %v4493, %v4529
    %v4552 = vadd.f32 %v4496, %v4532
    %v4553 = vadd.f32 %v4499, %v4535
    %v4554 = vadd.f32 %v4502, %v4538
    %v4555 = vadd.f32 %v4505, %v4541
    %v4556 = vadd.f32 %v4508, %v4544
    %v4557 = vadd.f32 %v4511, %v4547
    %v4558 = vadd.f32 %v4514, %v4550
    %v4559 = vsel %vm2518, %v4551, -inf
    %v4560 = vsel %vm2518, %v4552, -inf
    %v4561 = vsel %vm2518, %v4553, -inf
    %v4562 = vsel %vm2518, %v4554, -inf
    %v4563 = vsel %vm2518, %v4555, -inf
    %v4564 = vmax.f32 %v4559, %v4563
    %v4565 = vsel %vm2518, %v4556, -inf
    %v4566 = vmax.f32 %v4560, %v4565
    %v4567 = vsel %vm2518, %v4557, -inf
    %v4568 = vmax.f32 %v4561, %v4567
    %v4569 = vsel %vm2518, %v4558, -inf
    %v4570 = vmax.f32 %v4562, %v4569
    %v4571 = vmax.f32 %v4564, %v4566
    %v4572 = vmax.f32 %v4568, %v4570
    %v4573 = vmax.f32 %v4571, %v4572
    %v4574 = vsub.f32 %v4551, %v4573
    %v4575 = vsub.f32 %v4552, %v4573
    %v4576 = vsub.f32 %v4553, %v4573
    %v4577 = vsub.f32 %v4554, %v4573
    %v4578 = vsub.f32 %v4555, %v4573
    %v4579 = vsub.f32 %v4556, %v4573
    %v4580 = vsub.f32 %v4557, %v4573
    %v4581 = vsub.f32 %v4558, %v4573
    %v4582 = vmul.f32 %v4574, 1.442695
    %v4583 = vpow.pop %v4582
    %v4584 = vmul.f32 %v4575, 1.442695
    %v4585 = vpow.pop %v4584
    %v4586 = vmul.f32 %v4576, 1.442695
    %v4587 = vpow.pop %v4586
    %v4588 = vmul.f32 %v4577, 1.442695
    %v4589 = vpow.pop %v4588
    %v4590 = vmul.f32 %v4578, 1.442695
    %v4591 = vpow.pop %v4590
    %v4592 = vmul.f32 %v4579, 1.442695
    %v4593 = vpow.pop %v4592
    %v4594 = vmul.f32 %v4580, 1.442695
    %v4595 = vpow.pop %v4594
    %v4596 = vmul.f32 %v4581, 1.442695
    %v4597 = vpow.pop %v4596
    %v4598 = vsel %vm2518, %v4583, 0.0
    %v4599 = vsel %vm2518, %v4585, 0.0
    %v4600 = vadd.f32 %v4598, %v4599
    %v4601 = vsel %vm2518, %v4587, 0.0
    %v4602 = vadd.f32 %v4600, %v4601
    %v4603 = vsel %vm2518, %v4589, 0.0
    %v4604 = vadd.f32 %v4602, %v4603
    %v4605 = vsel %vm2518, %v4591, 0.0
    %v4606 = vadd.f32 %v4604, %v4605
    %v4607 = vsel %vm2518, %v4593, 0.0
    %v4608 = vadd.f32 %v4606, %v4607
    %v4609 = vsel %vm2518, %v4595, 0.0
    %v4610 = vadd.f32 %v4608, %v4609
    %v4611 = vsel %vm2518, %v4597, 0.0
    %v4612 = vadd.f32 %v4610, %v4611
    %v4613 = vrcp.pop %v4612
    %v4614 = vmul.f32 %v4583, %v4613
    %v4615 = vmul.f32 %v4585, %v4613
    %v4616 = vmul.f32 %v4587, %v4613
    %v4617 = vmul.f32 %v4589, %v4613
    %v4618 = vmul.f32 %v4591, %v4613
    %v4619 = vmul.f32 %v4593, %v4613
    %v4620 = vmul.f32 %v4595, %v4613
    %v4621 = vmul.f32 %v4597, %v4613
    %v4622 = vmul.f32 %v4614, %v2171
    %v4623 = vmul.f32 %v4615, %v2172
    %v4624 = vmul.f32 %v4616, %v2173
    %v4625 = vmul.f32 %v4617, %v2174
    %v4626 = vmul.f32 %v4618, %v2175
    %v4627 = vmul.f32 %v4619, %v2176
    %v4628 = vmul.f32 %v4620, %v2177
    %v4629 = vmul.f32 %v4621, %v2178
    %v4630 = vsel %vm295, %v4622, 0.0
    %v4631 = vsel %vm295, %v4623, 0.0
    %v4632 = vadd.f32 %v4630, %v4631
    %v4633 = vsel %vm295, %v4624, 0.0
    %v4634 = vadd.f32 %v4632, %v4633
    %v4635 = vsel %vm295, %v4625, 0.0
    %v4636 = vadd.f32 %v4634, %v4635
    %v4637 = vsel %vm295, %v4626, 0.0
    %v4638 = vadd.f32 %v4636, %v4637
    %v4639 = vsel %vm295, %v4627, 0.0
    %v4640 = vadd.f32 %v4638, %v4639
    %v4641 = vsel %vm295, %v4628, 0.0
    %v4642 = vadd.f32 %v4640, %v4641
    %v4643 = vsel %vm295, %v4629, 0.0
    %v4644 = vadd.f32 %v4642, %v4643
    %v4645 = vmul.f32 %v4614, %v2179
    %v4646 = vmul.f32 %v4615, %v2180
    %v4647 = vmul.f32 %v4616, %v2181
    %v4648 = vmul.f32 %v4617, %v2182
    %v4649 = vmul.f32 %v4618, %v2183
    %v4650 = vmul.f32 %v4619, %v2184
    %v4651 = vmul.f32 %v4620, %v2185
    %v4652 = vmul.f32 %v4621, %v2186
    %v4653 = vsel %vm295, %v4645, 0.0
    %v4654 = vsel %vm295, %v4646, 0.0
    %v4655 = vadd.f32 %v4653, %v4654
    %v4656 = vsel %vm295, %v4647, 0.0
    %v4657 = vadd.f32 %v4655, %v4656
    %v4658 = vsel %vm295, %v4648, 0.0
    %v4659 = vadd.f32 %v4657, %v4658
    %v4660 = vsel %vm295, %v4649, 0.0
    %v4661 = vadd.f32 %v4659, %v4660
    %v4662 = vsel %vm295, %v4650, 0.0
    %v4663 = vadd.f32 %v4661, %v4662
    %v4664 = vsel %vm295, %v4651, 0.0
    %v4665 = vadd.f32 %v4663, %v4664
    %v4666 = vsel %vm295, %v4652, 0.0
    %v4667 = vadd.f32 %v4665, %v4666
    %v4669 = vsel %vm2628, %v4644, 0
    %4671 = vmatprep.subr.mxu0 0.0
    %4672 = vmatpush1.msra.mxu0 %v96
    %4673 = vmatprep.subr.mxu0 0.0
    %4674 = vmatpush1.msra.mxu0 %v97
    %4675 = vmatprep.subr.mxu0 0.0
    %4676 = vmatpush1.msra.mxu0 0.0
    %4677 = vmatprep.subr.mxu0 0.0
    %4678 = vmatpush1.msra.mxu0 0.0
    %4679 = vmatprep.subr.mxu0 0.0
    %4680 = vmatpush1.msra.mxu0 0.0
    %4681 = vmatprep.subr.mxu0 0.0
    %4682 = vmatpush1.msra.mxu0 0.0
    %4683 = vmatprep.subr.mxu0 0.0
    %4684 = vmatpush1.msra.mxu0 0.0
    %4685 = vmatprep.subr.mxu0 0.0
    %4686 = vmatpush1.msra.mxu0 0.0
    %4687 = vmatprep.subr.mxu0 0.0
    %4688 = vmatpush1.msra.mxu0 0.0
    %4689 = vmatprep.subr.mxu0 0.0
    %4690 = vmatpush1.msra.mxu0 0.0
    %4691 = vmatprep.subr.mxu0 0.0
    %4692 = vmatpush1.msra.mxu0 0.0
    %4693 = vmatprep.subr.mxu0 0.0
    %4694 = vmatpush1.msra.mxu0 0.0
    %4695 = vmatprep.subr.mxu0 0.0
    %4696 = vmatpush1.msra.mxu0 0.0
    %4697 = vmatprep.subr.mxu0 0.0
    %4698 = vmatpush1.msra.mxu0 0.0
    %4699 = vmatprep.subr.mxu0 0.0
    %4700 = vmatpush1.msra.mxu0 0.0
    %4701 = vmatprep.subr.mxu0 0.0
    %4702 = vmatpush1.msra.mxu0 0.0
    %4703 = vmatprep.subr.mxu0 0.0
    %4704 = vmatpush1.msra.mxu0 0.0
    %4705 = vmatprep.subr.mxu0 0.0
    %4706 = vmatpush1.msra.mxu0 0.0
    %4707 = vmatprep.subr.mxu0 0.0
    %4708 = vmatpush1.msra.mxu0 0.0
    %4709 = vmatprep.subr.mxu0 0.0
    %4710 = vmatpush1.msra.mxu0 0.0
    %4711 = vmatprep.subr.mxu0 0.0
    %4712 = vmatpush1.msra.mxu0 0.0
    %4713 = vmatprep.subr.mxu0 0.0
    %4714 = vmatpush1.msra.mxu0 0.0
    %4715 = vmatprep.subr.mxu0 0.0
    %4716 = vmatpush1.msra.mxu0 0.0
    %4717 = vmatprep.subr.mxu0 0.0
    %4718 = vmatpush1.msra.mxu0 0.0
    %4719 = vmatprep.subr.mxu0 0.0
    %4720 = vmatpush1.msra.mxu0 0.0
    %4721 = vmatprep.subr.mxu0 0.0
    %4722 = vmatpush1.msra.mxu0 0.0
    %4723 = vmatprep.subr.mxu0 0.0
    %4724 = vmatpush1.msra.mxu0 0.0
    %4725 = vmatprep.subr.mxu0 0.0
    %4726 = vmatpush1.msra.mxu0 0.0
    %4727 = vmatprep.subr.mxu0 0.0
    %4728 = vmatpush1.msra.mxu0 0.0
    %4729 = vmatprep.subr.mxu0 0.0
    %4730 = vmatpush1.msra.mxu0 0.0
    %4731 = vmatprep.subr.mxu0 0.0
    %4732 = vmatpush1.msra.mxu0 0.0
    %4733 = vmatprep.subr.mxu0 0.0
    %4734 = vmatpush1.msra.mxu0 0.0
    %4735 = vmatprep.mubr.f32.mxu0 0.0
    %4736 = vmatmul.mubr.f32.gmra.mrb[0].mxu0 %v4669
    %v4737 = vpop.f32.mrb[0].mxu0
    %v4738 = vadd.f32 0.0, %v4737
    %v4739 = vpop.f32.mrb[0].mxu0
    %4740 = vdwg.mxu0
    %4742 = vrot.lane.b32.xlu0 %v4738, 32
    %v4743 = vpop.permute.xlu0 %4742
    %v4745 = vadd.f32 %v4480, %v4743
    %v4747 = vsel %vm2628, %v4667, 0
    %4749 = vmatprep.subr.mxu0 0.0
    %4750 = vmatpush1.msra.mxu0 %v98
    %4751 = vmatprep.subr.mxu0 0.0
    %4752 = vmatpush1.msra.mxu0 %v99
    %4753 = vmatprep.subr.mxu0 0.0
    %4754 = vmatpush1.msra.mxu0 0.0
    %4755 = vmatprep.subr.mxu0 0.0
    %4756 = vmatpush1.msra.mxu0 0.0
    %4757 = vmatprep.subr.mxu0 0.0
    %4758 = vmatpush1.msra.mxu0 0.0
    %4759 = vmatprep.subr.mxu0 0.0
    %4760 = vmatpush1.msra.mxu0 0.0
    %4761 = vmatprep.subr.mxu0 0.0
    %4762 = vmatpush1.msra.mxu0 0.0
    %4763 = vmatprep.subr.mxu0 0.0
    %4764 = vmatpush1.msra.mxu0 0.0
    %4765 = vmatprep.subr.mxu0 0.0
    %4766 = vmatpush1.msra.mxu0 0.0
    %4767 = vmatprep.subr.mxu0 0.0
    %4768 = vmatpush1.msra.mxu0 0.0
    %4769 = vmatprep.subr.mxu0 0.0
    %4770 = vmatpush1.msra.mxu0 0.0
    %4771 = vmatprep.subr.mxu0 0.0
    %4772 = vmatpush1.msra.mxu0 0.0
    %4773 = vmatprep.subr.mxu0 0.0
    %4774 = vmatpush1.msra.mxu0 0.0
    %4775 = vmatprep.subr.mxu0 0.0
    %4776 = vmatpush1.msra.mxu0 0.0
    %4777 = vmatprep.subr.mxu0 0.0
    %4778 = vmatpush1.msra.mxu0 0.0
    %4779 = vmatprep.subr.mxu0 0.0
    %4780 = vmatpush1.msra.mxu0 0.0
    %4781 = vmatprep.subr.mxu0 0.0
    %4782 = vmatpush1.msra.mxu0 0.0
    %4783 = vmatprep.subr.mxu0 0.0
    %4784 = vmatpush1.msra.mxu0 0.0
    %4785 = vmatprep.subr.mxu0 0.0
    %4786 = vmatpush1.msra.mxu0 0.0
    %4787 = vmatprep.subr.mxu0 0.0
    %4788 = vmatpush1.msra.mxu0 0.0
    %4789 = vmatprep.subr.mxu0 0.0
    %4790 = vmatpush1.msra.mxu0 0.0
    %4791 = vmatprep.subr.mxu0 0.0
    %4792 = vmatpush1.msra.mxu0 0.0
    %4793 = vmatprep.subr.mxu0 0.0
    %4794 = vmatpush1.msra.mxu0 0.0
    %4795 = vmatprep.subr.mxu0 0.0
    %4796 = vmatpush1.msra.mxu0 0.0
    %4797 = vmatprep.subr.mxu0 0.0
    %4798 = vmatpush1.msra.mxu0 0.0
    %4799 = vmatprep.subr.mxu0 0.0
    %4800 = vmatpush1.msra.mxu0 0.0
    %4801 = vmatprep.subr.mxu0 0.0
    %4802 = vmatpush1.msra.mxu0 0.0
    %4803 = vmatprep.subr.mxu0 0.0
    %4804 = vmatpush1.msra.mxu0 0.0
    %4805 = vmatprep.subr.mxu0 0.0
    %4806 = vmatpush1.msra.mxu0 0.0
    %4807 = vmatprep.subr.mxu0 0.0
    %4808 = vmatpush1.msra.mxu0 0.0
    %4809 = vmatprep.subr.mxu0 0.0
    %4810 = vmatpush1.msra.mxu0 0.0
    %4811 = vmatprep.subr.mxu0 0.0
    %4812 = vmatpush1.msra.mxu0 0.0
    %4813 = vmatprep.mubr.f32.mxu0 0.0
    %4814 = vmatmul.mubr.f32.gmra.mrb[0].mxu0 %v4747
    %v4815 = vpop.f32.mrb[0].mxu0
    %v4816 = vadd.f32 0.0, %v4815
    %v4817 = vpop.f32.mrb[0].mxu0
    %4818 = vdwg.mxu0
    %4820 = vrot.lane.b32.xlu0 %v4816, 32
    %v4821 = vpop.permute.xlu0 %4820
    %v4823 = vadd.f32 %v4745, %v4821
    %v4824 = vadd.f32 %v4823, %v2791
    %v4825 = vtanh.pop %v4824
    %4827 = vrot.lane.b32.xlu0 %v4825, 96
    %v4828 = vpop.permute.xlu0 %4827
    %v4829 = vsel %vm114, %v4828, 0
    %4831 = vmatprep.subr.mxu0 0.0
    %4832 = vmatpush1.msra.mxu0 %v101
    %4833 = vmatprep.subr.mxu0 0.0
    %4834 = vmatpush1.msra.mxu0 %v102
    %4835 = vmatprep.subr.mxu0 0.0
    %4836 = vmatpush1.msra.mxu0 %v103
    %4837 = vmatprep.subr.mxu0 0.0
    %4838 = vmatpush1.msra.mxu0 %v104
    %4839 = vmatprep.subr.mxu0 0.0
    %4840 = vmatpush1.msra.mxu0 0.0
    %4841 = vmatprep.subr.mxu0 0.0
    %4842 = vmatpush1.msra.mxu0 0.0
    %4843 = vmatprep.subr.mxu0 0.0
    %4844 = vmatpush1.msra.mxu0 0.0
    %4845 = vmatprep.subr.mxu0 0.0
    %4846 = vmatpush1.msra.mxu0 0.0
    %4847 = vmatprep.subr.mxu0 0.0
    %4848 = vmatpush1.msra.mxu0 0.0
    %4849 = vmatprep.subr.mxu0 0.0
    %4850 = vmatpush1.msra.mxu0 0.0
    %4851 = vmatprep.subr.mxu0 0.0
    %4852 = vmatpush1.msra.mxu0 0.0
    %4853 = vmatprep.subr.mxu0 0.0
    %4854 = vmatpush1.msra.mxu0 0.0
    %4855 = vmatprep.subr.mxu0 0.0
    %4856 = vmatpush1.msra.mxu0 0.0
    %4857 = vmatprep.subr.mxu0 0.0
    %4858 = vmatpush1.msra.mxu0 0.0
    %4859 = vmatprep.subr.mxu0 0.0
    %4860 = vmatpush1.msra.mxu0 0.0
    %4861 = vmatprep.subr.mxu0 0.0
    %4862 = vmatpush1.msra.mxu0 0.0
    %4863 = vmatprep.subr.mxu0 0.0
    %4864 = vmatpush1.msra.mxu0 0.0
    %4865 = vmatprep.subr.mxu0 0.0
    %4866 = vmatpush1.msra.mxu0 0.0
    %4867 = vmatprep.subr.mxu0 0.0
    %4868 = vmatpush1.msra.mxu0 0.0
    %4869 = vmatprep.subr.mxu0 0.0
    %4870 = vmatpush1.msra.mxu0 0.0
    %4871 = vmatprep.subr.mxu0 0.0
    %4872 = vmatpush1.msra.mxu0 0.0
    %4873 = vmatprep.subr.mxu0 0.0
    %4874 = vmatpush1.msra.mxu0 0.0
    %4875 = vmatprep.subr.mxu0 0.0
    %4876 = vmatpush1.msra.mxu0 0.0
    %4877 = vmatprep.subr.mxu0 0.0
    %4878 = vmatpush1.msra.mxu0 0.0
    %4879 = vmatprep.subr.mxu0 0.0
    %4880 = vmatpush1.msra.mxu0 0.0
    %4881 = vmatprep.subr.mxu0 0.0
    %4882 = vmatpush1.msra.mxu0 0.0
    %4883 = vmatprep.subr.mxu0 0.0
    %4884 = vmatpush1.msra.mxu0 0.0
    %4885 = vmatprep.subr.mxu0 0.0
    %4886 = vmatpush1.msra.mxu0 0.0
    %4887 = vmatprep.subr.mxu0 0.0
    %4888 = vmatpush1.msra.mxu0 0.0
    %4889 = vmatprep.subr.mxu0 0.0
    %4890 = vmatpush1.msra.mxu0 0.0
    %4891 = vmatprep.subr.mxu0 0.0
    %4892 = vmatpush1.msra.mxu0 0.0
    %4893 = vmatprep.subr.mxu0 0.0
    %4894 = vmatpush1.msra.mxu0 0.0
    %4895 = vmatprep.mubr.f32.mxu0 0.0
    %4896 = vmatmul.mubr.f32.gmra.mrb[0].mxu0 %v4829
    %v4897 = vpop.f32.mrb[0].mxu0
    %v4898 = vadd.f32 %v2799, %v4897
    %v4899 = vpop.f32.mrb[0].mxu0
    %4900 = vdwg.mxu0
    %v4901 = vsel %vm2876, %v4898, -inf
    %4902 = vmax.xlane.f32.xlu0 %v4901
    %v4903 = vpop.xlane.xlu0 %4902
    %v4904 = vsub.f32 %v4898, %v4903
    %v4905 = vmul.f32 %v4904, 1.442695
    %v4906 = vpow.pop %v4905
    %v4907 = vsel %vm2876, %v4906, 0.0
    %4908 = vadd.xlane.f32.xlu0 %v4907
    %v4909 = vpop.xlane.xlu0 %4908
    %v4910 = vrcp.pop %v4909
    %v4911 = vmul.f32 %v4906, %v4910
    %s4912 = scalar_lea.vmem [#allocation4], 6
    %4913 = vst.msk [vmem:[%s4912] sm:$0x3] %vm2876, %v4911
    %s4914 = scalar_lea.vmem %s1, 8
    %v4915 = vld [vmem:[%s4914] sm:$0x3]
    %4916 = vmatprep.subr.mxu0 0.0
    %4917 = vmatpush1.msra.mxu0 %v83
    %4918 = vmatprep.subr.mxu0 0.0
    %4919 = vmatpush1.msra.mxu0 %v84
    %4920 = vmatprep.subr.mxu0 0.0
    %4921 = vmatpush1.msra.mxu0 %v85
    %4922 = vmatprep.subr.mxu0 0.0
    %4923 = vmatpush1.msra.mxu0 %v86
    %4924 = vmatprep.subr.mxu0 0.0
    %4925 = vmatpush1.msra.mxu0 0.0
    %4926 = vmatprep.subr.mxu0 0.0
    %4927 = vmatpush1.msra.mxu0 0.0
    %4928 = vmatprep.subr.mxu0 0.0
    %4929 = vmatpush1.msra.mxu0 0.0
    %4930 = vmatprep.subr.mxu0 0.0
    %4931 = vmatpush1.msra.mxu0 0.0
    %4932 = vmatprep.subr.mxu0 0.0
    %4933 = vmatpush1.msra.mxu0 0.0
    %4934 = vmatprep.subr.mxu0 0.0
    %4935 = vmatpush1.msra.mxu0 0.0
    %4936 = vmatprep.subr.mxu0 0.0
    %4937 = vmatpush1.msra.mxu0 0.0
    %4938 = vmatprep.subr.mxu0 0.0
    %4939 = vmatpush1.msra.mxu0 0.0
    %4940 = vmatprep.subr.mxu0 0.0
    %4941 = vmatpush1.msra.mxu0 0.0
    %4942 = vmatprep.subr.mxu0 0.0
    %4943 = vmatpush1.msra.mxu0 0.0
    %4944 = vmatprep.subr.mxu0 0.0
    %4945 = vmatpush1.msra.mxu0 0.0
    %4946 = vmatprep.subr.mxu0 0.0
    %4947 = vmatpush1.msra.mxu0 0.0
    %4948 = vmatprep.subr.mxu0 0.0
    %4949 = vmatpush1.msra.mxu0 0.0
    %4950 = vmatprep.subr.mxu0 0.0
    %4951 = vmatpush1.msra.mxu0 0.0
    %4952 = vmatprep.subr.mxu0 0.0
    %4953 = vmatpush1.msra.mxu0 0.0
    %4954 = vmatprep.subr.mxu0 0.0
    %4955 = vmatpush1.msra.mxu0 0.0
    %4956 = vmatprep.subr.mxu0 0.0
    %4957 = vmatpush1.msra.mxu0 0.0
    %4958 = vmatprep.subr.mxu0 0.0
    %4959 = vmatpush1.msra.mxu0 0.0
    %4960 = vmatprep.subr.mxu0 0.0
    %4961 = vmatpush1.msra.mxu0 0.0
    %4962 = vmatprep.subr.mxu0 0.0
    %4963 = vmatpush1.msra.mxu0 0.0
    %4964 = vmatprep.subr.mxu0 0.0
    %4965 = vmatpush1.msra.mxu0 0.0
    %4966 = vmatprep.subr.mxu0 0.0
    %4967 = vmatpush1.msra.mxu0 0.0
    %4968 = vmatprep.subr.mxu0 0.0
    %4969 = vmatpush1.msra.mxu0 0.0
    %4970 = vmatprep.subr.mxu0 0.0
    %4971 = vmatpush1.msra.mxu0 0.0
    %4972 = vmatprep.subr.mxu0 0.0
    %4973 = vmatpush1.msra.mxu0 0.0
    %4974 = vmatprep.subr.mxu0 0.0
    %4975 = vmatpush1.msra.mxu0 0.0
    %4976 = vmatprep.subr.mxu0 0.0
    %4977 = vmatpush1.msra.mxu0 0.0
    %4978 = vmatprep.subr.mxu0 0.0
    %4979 = vmatpush1.msra.mxu0 0.0
    %4980 = vmatprep.mubr.f32.mxu0 0.0
    %4981 = vmatmul.mubr.f32.gmra.mrb[0].mxu0 %v4829
    %v4982 = vpop.f32.mrb[0].mxu0
    %v4983 = vadd.f32 0.0, %v4982
    %v4984 = vpop.f32.mrb[0].mxu0
    %4985 = vdwg.mxu0
    %v4986 = vadd.f32 %v4915, %v4983
    %4987 = vmatprep.subr.mxu0 0.0
    %4988 = vmatpush1.msra.mxu0 %v87
    %4989 = vmatprep.subr.mxu0 0.0
    %4990 = vmatpush1.msra.mxu0 %v88
    %4991 = vmatprep.subr.mxu0 0.0
    %4992 = vmatpush1.msra.mxu0 %v89
    %4993 = vmatprep.subr.mxu0 0.0
    %4994 = vmatpush1.msra.mxu0 %v90
    %4995 = vmatprep.subr.mxu0 0.0
    %4996 = vmatpush1.msra.mxu0 0.0
    %4997 = vmatprep.subr.mxu0 0.0
    %4998 = vmatpush1.msra.mxu0 0.0
    %4999 = vmatprep.subr.mxu0 0.0
    %5000 = vmatpush1.msra.mxu0 0.0
    %5001 = vmatprep.subr.mxu0 0.0
    %5002 = vmatpush1.msra.mxu0 0.0
    %5003 = vmatprep.subr.mxu0 0.0
    %5004 = vmatpush1.msra.mxu0 0.0
    %5005 = vmatprep.subr.mxu0 0.0
    %5006 = vmatpush1.msra.mxu0 0.0
    %5007 = vmatprep.subr.mxu0 0.0
    %5008 = vmatpush1.msra.mxu0 0.0
    %5009 = vmatprep.subr.mxu0 0.0
    %5010 = vmatpush1.msra.mxu0 0.0
    %5011 = vmatprep.subr.mxu0 0.0
    %5012 = vmatpush1.msra.mxu0 0.0
    %5013 = vmatprep.subr.mxu0 0.0
    %5014 = vmatpush1.msra.mxu0 0.0
    %5015 = vmatprep.subr.mxu0 0.0
    %5016 = vmatpush1.msra.mxu0 0.0
    %5017 = vmatprep.subr.mxu0 0.0
    %5018 = vmatpush1.msra.mxu0 0.0
    %5019 = vmatprep.subr.mxu0 0.0
    %5020 = vmatpush1.msra.mxu0 0.0
    %5021 = vmatprep.subr.mxu0 0.0
    %5022 = vmatpush1.msra.mxu0 0.0
    %5023 = vmatprep.subr.mxu0 0.0
    %5024 = vmatpush1.msra.mxu0 0.0
    %5025 = vmatprep.subr.mxu0 0.0
    %5026 = vmatpush1.msra.mxu0 0.0
    %5027 = vmatprep.subr.mxu0 0.0
    %5028 = vmatpush1.msra.mxu0 0.0
    %5029 = vmatprep.subr.mxu0 0.0
    %5030 = vmatpush1.msra.mxu0 0.0
    %5031 = vmatprep.subr.mxu0 0.0
    %5032 = vmatpush1.msra.mxu0 0.0
    %5033 = vmatprep.subr.mxu0 0.0
    %5034 = vmatpush1.msra.mxu0 0.0
    %5035 = vmatprep.subr.mxu0 0.0
    %5036 = vmatpush1.msra.mxu0 0.0
    %5037 = vmatprep.subr.mxu0 0.0
    %5038 = vmatpush1.msra.mxu0 0.0
    %5039 = vmatprep.subr.mxu0 0.0
    %5040 = vmatpush1.msra.mxu0 0.0
    %5041 = vmatprep.subr.mxu0 0.0
    %5042 = vmatpush1.msra.mxu0 0.0
    %5043 = vmatprep.subr.mxu0 0.0
    %5044 = vmatpush1.msra.mxu0 0.0
    %5045 = vmatprep.subr.mxu0 0.0
    %5046 = vmatpush1.msra.mxu0 0.0
    %5047 = vmatprep.subr.mxu0 0.0
    %5048 = vmatpush1.msra.mxu0 0.0
    %5049 = vmatprep.subr.mxu0 0.0
    %5050 = vmatpush1.msra.mxu0 0.0
    %5051 = vmatprep.mubr.f32.mxu0 0.0
    %5052 = vmatmul.mubr.f32.gmra.mrb[0].mxu0 %v4411
    %v5053 = vpop.f32.mrb[0].mxu0
    %v5054 = vadd.f32 %v2263, %v5053
    %v5055 = vpop.f32.mrb[0].mxu0
    %5056 = vdwg.mxu0
    %v5057 = vadd.f32 %v4986, %v5054
    %v5058 = vxor.u32 %v5057, 2147483648
    %v5059 = vmul.f32 %v5058, 1.442695
    %v5060 = vpow.pop %v5059
    %v5061 = vadd.f32 %v5060, 1.0
    %v5062 = vrcp.pop %v5061
    %v5063 = vmul.f32 1.0, %v5062
    %5065 = vrot.lane.b32.xlu0 %v5054, 64
    %v5066 = vpop.permute.xlu0 %5065
    %v5068 = vmul.f32 %v5063, %v5066
    %5070 = vrot.lane.b32.xlu0 %v5068, 64
    %v5071 = vpop.permute.xlu0 %5070
    %v5073 = vadd.f32 %v4986, %v5071
    %v5074 = vtanh.pop %v5073
    %v5075 = vsub.f32 1.0, %v5063
    %5077 = vrot.lane.b32.xlu0 %v5074, 96
    %v5078 = vpop.permute.xlu0 %5077
    %v5080 = vmul.f32 %v5075, %v5078
    %v5081 = vmul.f32 %v5063, %v4407
    %v5082 = vadd.f32 %v5080, %v5081
    %5084 = vrot.lane.b32.xlu0 %v5082, 96
    %v5085 = vpop.permute.xlu0 %5084
    %v5086 = vsel %vm114, %v5085, 0
    %5088 = vmatprep.subr.mxu0 0.0
    %5089 = vmatpush1.msra.mxu0 %v92
    %5090 = vmatprep.subr.mxu0 0.0
    %5091 = vmatpush1.msra.mxu0 %v93
    %5092 = vmatprep.subr.mxu0 0.0
    %5093 = vmatpush1.msra.mxu0 %v94
    %5094 = vmatprep.subr.mxu0 0.0
    %5095 = vmatpush1.msra.mxu0 %v95
    %5096 = vmatprep.subr.mxu0 0.0
    %5097 = vmatpush1.msra.mxu0 0.0
    %5098 = vmatprep.subr.mxu0 0.0
    %5099 = vmatpush1.msra.mxu0 0.0
    %5100 = vmatprep.subr.mxu0 0.0
    %5101 = vmatpush1.msra.mxu0 0.0
    %5102 = vmatprep.subr.mxu0 0.0
    %5103 = vmatpush1.msra.mxu0 0.0
    %5104 = vmatprep.subr.mxu0 0.0
    %5105 = vmatpush1.msra.mxu0 0.0
    %5106 = vmatprep.subr.mxu0 0.0
    %5107 = vmatpush1.msra.mxu0 0.0
    %5108 = vmatprep.subr.mxu0 0.0
    %5109 = vmatpush1.msra.mxu0 0.0
    %5110 = vmatprep.subr.mxu0 0.0
    %5111 = vmatpush1.msra.mxu0 0.0
    %5112 = vmatprep.subr.mxu0 0.0
    %5113 = vmatpush1.msra.mxu0 0.0
    %5114 = vmatprep.subr.mxu0 0.0
    %5115 = vmatpush1.msra.mxu0 0.0
    %5116 = vmatprep.subr.mxu0 0.0
    %5117 = vmatpush1.msra.mxu0 0.0
    %5118 = vmatprep.subr.mxu0 0.0
    %5119 = vmatpush1.msra.mxu0 0.0
    %5120 = vmatprep.subr.mxu0 0.0
    %5121 = vmatpush1.msra.mxu0 0.0
    %5122 = vmatprep.subr.mxu0 0.0
    %5123 = vmatpush1.msra.mxu0 0.0
    %5124 = vmatprep.subr.mxu0 0.0
    %5125 = vmatpush1.msra.mxu0 0.0
    %5126 = vmatprep.subr.mxu0 0.0
    %5127 = vmatpush1.msra.mxu0 0.0
    %5128 = vmatprep.subr.mxu0 0.0
    %5129 = vmatpush1.msra.mxu0 0.0
    %5130 = vmatprep.subr.mxu0 0.0
    %5131 = vmatpush1.msra.mxu0 0.0
    %5132 = vmatprep.subr.mxu0 0.0
    %5133 = vmatpush1.msra.mxu0 0.0
    %5134 = vmatprep.subr.mxu0 0.0
    %5135 = vmatpush1.msra.mxu0 0.0
    %5136 = vmatprep.subr.mxu0 0.0
    %5137 = vmatpush1.msra.mxu0 0.0
    %5138 = vmatprep.subr.mxu0 0.0
    %5139 = vmatpush1.msra.mxu0 0.0
    %5140 = vmatprep.subr.mxu0 0.0
    %5141 = vmatpush1.msra.mxu0 0.0
    %5142 = vmatprep.subr.mxu0 0.0
    %5143 = vmatpush1.msra.mxu0 0.0
    %5144 = vmatprep.subr.mxu0 0.0
    %5145 = vmatpush1.msra.mxu0 0.0
    %5146 = vmatprep.subr.mxu0 0.0
    %5147 = vmatpush1.msra.mxu0 0.0
    %5148 = vmatprep.subr.mxu0 0.0
    %5149 = vmatpush1.msra.mxu0 0.0
    %5150 = vmatprep.subr.mxu0 0.0
    %5151 = vmatpush1.msra.mxu0 0.0
    %5152 = vmatprep.mubr.f32.mxu0 0.0
    %5153 = vmatmul.mubr.f32.gmra.mrb[0].mxu0 %v5086
    %v5154 = vpop.f32.mrb[0].mxu0
    %v5155 = vadd.f32 0.0, %v5154
    %v5156 = vpop.f32.mrb[0].mxu0
    %5157 = vdwg.mxu0
    %v5158 = vmul.f32 %v2171, %v5155
    %v5159 = vmul.f32 %v2172, %v5155
    %v5160 = vmul.f32 %v2173, %v5155
    %v5161 = vmul.f32 %v2174, %v5155
    %v5162 = vmul.f32 %v2175, %v5155
    %v5163 = vmul.f32 %v2176, %v5155
    %v5164 = vmul.f32 %v2177, %v5155
    %v5165 = vmul.f32 %v2178, %v5155
    %v5166 = vsel %vm295, %v5158, 0.0
    %5167 = vadd.xlane.f32.xlu0 %v5166
    %v5168 = vpop.xlane.xlu0 %5167
    %v5169 = vsel %vm295, %v5159, 0.0
    %5170 = vadd.xlane.f32.xlu0 %v5169
    %v5171 = vpop.xlane.xlu0 %5170
    %v5172 = vsel %vm295, %v5160, 0.0
    %5173 = vadd.xlane.f32.xlu0 %v5172
    %v5174 = vpop.xlane.xlu0 %5173
    %v5175 = vsel %vm295, %v5161, 0.0
    %5176 = vadd.xlane.f32.xlu0 %v5175
    %v5177 = vpop.xlane.xlu0 %5176
    %v5178 = vsel %vm295, %v5162, 0.0
    %5179 = vadd.xlane.f32.xlu0 %v5178
    %v5180 = vpop.xlane.xlu0 %5179
    %v5181 = vsel %vm295, %v5163, 0.0
    %5182 = vadd.xlane.f32.xlu0 %v5181
    %v5183 = vpop.xlane.xlu0 %5182
    %v5184 = vsel %vm295, %v5164, 0.0
    %5185 = vadd.xlane.f32.xlu0 %v5184
    %v5186 = vpop.xlane.xlu0 %5185
    %v5187 = vsel %vm295, %v5165, 0.0
    %5188 = vadd.xlane.f32.xlu0 %v5187
    %v5189 = vpop.xlane.xlu0 %5188
    %5191 = vrot.lane.b32.xlu0 %v5155, 112
    %v5192 = vpop.permute.xlu0 %5191
    %v5194 = vmul.f32 %v2179, %v5192
    %v5195 = vmul.f32 %v2180, %v5192
    %v5196 = vmul.f32 %v2181, %v5192
    %v5197 = vmul.f32 %v2182, %v5192
    %v5198 = vmul.f32 %v2183, %v5192
    %v5199 = vmul.f32 %v2184, %v5192
    %v5200 = vmul.f32 %v2185, %v5192
    %v5201 = vmul.f32 %v2186, %v5192
    %v5202 = vsel %vm295, %v5194, 0.0
    %5203 = vadd.xlane.f32.xlu0 %v5202
    %v5204 = vpop.xlane.xlu0 %5203
    %v5205 = vsel %vm295, %v5195, 0.0
    %5206 = vadd.xlane.f32.xlu0 %v5205
    %v5207 = vpop.xlane.xlu0 %5206
    %v5208 = vsel %vm295, %v5196, 0.0
    %5209 = vadd.xlane.f32.xlu0 %v5208
    %v5210 = vpop.xlane.xlu0 %5209
    %v5211 = vsel %vm295, %v5197, 0.0
    %5212 = vadd.xlane.f32.xlu0 %v5211
    %v5213 = vpop.xlane.xlu0 %5212
    %v5214 = vsel %vm295, %v5198, 0.0
    %5215 = vadd.xlane.f32.xlu0 %v5214
    %v5216 = vpop.xlane.xlu0 %5215
    %v5217 = vsel %vm295, %v5199, 0.0
    %5218 = vadd.xlane.f32.xlu0 %v5217
    %v5219 = vpop.xlane.xlu0 %5218
    %v5220 = vsel %vm295, %v5200, 0.0
    %5221 = vadd.xlane.f32.xlu0 %v5220
    %v5222 = vpop.xlane.xlu0 %5221
    %v5223 = vsel %vm295, %v5201, 0.0
    %5224 = vadd.xlane.f32.xlu0 %v5223
    %v5225 = vpop.xlane.xlu0 %5224
    %v5226 = vadd.f32 %v5168, %v5204
    %v5227 = vadd.f32 %v5171, %v5207
    %v5228 = vadd.f32 %v5174, %v5210
    %v5229 = vadd.f32 %v5177, %v5213
    %v5230 = vadd.f32 %v5180, %v5216
    %v5231 = vadd.f32 %v5183, %v5219
    %v5232 = vadd.f32 %v5186, %v5222
    %v5233 = vadd.f32 %v5189, %v5225
    %v5234 = vsel %vm2518, %v5226, -inf
    %v5235 = vsel %vm2518, %v5227, -inf
    %v5236 = vsel %vm2518, %v5228, -inf
    %v5237 = vsel %vm2518, %v5229, -inf
    %v5238 = vsel %vm2518, %v5230, -inf
    %v5239 = vmax.f32 %v5234, %v5238
    %v5240 = vsel %vm2518, %v5231, -inf
    %v5241 = vmax.f32 %v5235, %v5240
    %v5242 = vsel %vm2518, %v5232, -inf
    %v5243 = vmax.f32 %v5236, %v5242
    %v5244 = vsel %vm2518, %v5233, -inf
    %v5245 = vmax.f32 %v5237, %v5244
    %v5246 = vmax.f32 %v5239, %v5241
    %v5247 = vmax.f32 %v5243, %v5245
    %v5248 = vmax.f32 %v5246, %v5247
    %v5249 = vsub.f32 %v5226, %v5248
    %v5250 = vsub.f32 %v5227, %v5248
    %v5251 = vsub.f32 %v5228, %v5248
    %v5252 = vsub.f32 %v5229, %v5248
    %v5253 = vsub.f32 %v5230, %v5248
    %v5254 = vsub.f32 %v5231, %v5248
    %v5255 = vsub.f32 %v5232, %v5248
    %v5256 = vsub.f32 %v5233, %v5248
    %v5257 = vmul.f32 %v5249, 1.442695
    %v5258 = vpow.pop %v5257
    %v5259 = vmul.f32 %v5250, 1.442695
    %v5260 = vpow.pop %v5259
    %v5261 = vmul.f32 %v5251, 1.442695
    %v5262 = vpow.pop %v5261
    %v5263 = vmul.f32 %v5252, 1.442695
    %v5264 = vpow.pop %v5263
    %v5265 = vmul.f32 %v5253, 1.442695
    %v5266 = vpow.pop %v5265
    %v5267 = vmul.f32 %v5254, 1.442695
    %v5268 = vpow.pop %v5267
    %v5269 = vmul.f32 %v5255, 1.442695
    %v5270 = vpow.pop %v5269
    %v5271 = vmul.f32 %v5256, 1.442695
    %v5272 = vpow.pop %v5271
    %v5273 = vsel %vm2518, %v5258, 0.0
    %v5274 = vsel %vm2518, %v5260, 0.0
    %v5275 = vadd.f32 %v5273, %v5274
    %v5276 = vsel %vm2518, %v5262, 0.0
    %v5277 = vadd.f32 %v5275, %v5276
    %v5278 = vsel %vm2518, %v5264, 0.0
    %v5279 = vadd.f32 %v5277, %v5278
    %v5280 = vsel %vm2518, %v5266, 0.0
    %v5281 = vadd.f32 %v5279, %v5280
    %v5282 = vsel %vm2518, %v5268, 0.0
    %v5283 = vadd.f32 %v5281, %v5282
    %v5284 = vsel %vm2518, %v5270, 0.0
    %v5285 = vadd.f32 %v5283, %v5284
    %v5286 = vsel %vm2518, %v5272, 0.0
    %v5287 = vadd.f32 %v5285, %v5286
    %v5288 = vrcp.pop %v5287
    %v5289 = vmul.f32 %v5258, %v5288
    %v5290 = vmul.f32 %v5260, %v5288
    %v5291 = vmul.f32 %v5262, %v5288
    %v5292 = vmul.f32 %v5264, %v5288
    %v5293 = vmul.f32 %v5266, %v5288
    %v5294 = vmul.f32 %v5268, %v5288
    %v5295 = vmul.f32 %v5270, %v5288
    %v5296 = vmul.f32 %v5272, %v5288
    %v5297 = vmul.f32 %v5289, %v2171
    %v5298 = vmul.f32 %v5290, %v2172
    %v5299 = vmul.f32 %v5291, %v2173
    %v5300 = vmul.f32 %v5292, %v2174
    %v5301 = vmul.f32 %v5293, %v2175
    %v5302 = vmul.f32 %v5294, %v2176
    %v5303 = vmul.f32 %v5295, %v2177
    %v5304 = vmul.f32 %v5296, %v2178
    %v5305 = vsel %vm295, %v5297, 0.0
    %v5306 = vsel %vm295, %v5298, 0.0
    %v5307 = vadd.f32 %v5305, %v5306
    %v5308 = vsel %vm295, %v5299, 0.0
    %v5309 = vadd.f32 %v5307, %v5308
    %v5310 = vsel %vm295, %v5300, 0.0
    %v5311 = vadd.f32 %v5309, %v5310
    %v5312 = vsel %vm295, %v5301, 0.0
    %v5313 = vadd.f32 %v5311, %v5312
    %v5314 = vsel %vm295, %v5302, 0.0
    %v5315 = vadd.f32 %v5313, %v5314
    %v5316 = vsel %vm295, %v5303, 0.0
    %v5317 = vadd.f32 %v5315, %v5316
    %v5318 = vsel %vm295, %v5304, 0.0
    %v5319 = vadd.f32 %v5317, %v5318
    %v5320 = vmul.f32 %v5289, %v2179
    %v5321 = vmul.f32 %v5290, %v2180
    %v5322 = vmul.f32 %v5291, %v2181
    %v5323 = vmul.f32 %v5292, %v2182
    %v5324 = vmul.f32 %v5293, %v2183
    %v5325 = vmul.f32 %v5294, %v2184
    %v5326 = vmul.f32 %v5295, %v2185
    %v5327 = vmul.f32 %v5296, %v2186
    %v5328 = vsel %vm295, %v5320, 0.0
    %v5329 = vsel %vm295, %v5321, 0.0
    %v5330 = vadd.f32 %v5328, %v5329
    %v5331 = vsel %vm295, %v5322, 0.0
    %v5332 = vadd.f32 %v5330, %v5331
    %v5333 = vsel %vm295, %v5323, 0.0
    %v5334 = vadd.f32 %v5332, %v5333
    %v5335 = vsel %vm295, %v5324, 0.0
    %v5336 = vadd.f32 %v5334, %v5335
    %v5337 = vsel %vm295, %v5325, 0.0
    %v5338 = vadd.f32 %v5336, %v5337
    %v5339 = vsel %vm295, %v5326, 0.0
    %v5340 = vadd.f32 %v5338, %v5339
    %v5341 = vsel %vm295, %v5327, 0.0
    %v5342 = vadd.f32 %v5340, %v5341
    %v5344 = vsel %vm2628, %v5319, 0
    %5346 = vmatprep.subr.mxu0 0.0
    %5347 = vmatpush1.msra.mxu0 %v96
    %5348 = vmatprep.subr.mxu0 0.0
    %5349 = vmatpush1.msra.mxu0 %v97
    %5350 = vmatprep.subr.mxu0 0.0
    %5351 = vmatpush1.msra.mxu0 0.0
    %5352 = vmatprep.subr.mxu0 0.0
    %5353 = vmatpush1.msra.mxu0 0.0
    %5354 = vmatprep.subr.mxu0 0.0
    %5355 = vmatpush1.msra.mxu0 0.0
    %5356 = vmatprep.subr.mxu0 0.0
    %5357 = vmatpush1.msra.mxu0 0.0
    %5358 = vmatprep.subr.mxu0 0.0
    %5359 = vmatpush1.msra.mxu0 0.0
    %5360 = vmatprep.subr.mxu0 0.0
    %5361 = vmatpush1.msra.mxu0 0.0
    %5362 = vmatprep.subr.mxu0 0.0
    %5363 = vmatpush1.msra.mxu0 0.0
    %5364 = vmatprep.subr.mxu0 0.0
    %5365 = vmatpush1.msra.mxu0 0.0
    %5366 = vmatprep.subr.mxu0 0.0
    %5367 = vmatpush1.msra.mxu0 0.0
    %5368 = vmatprep.subr.mxu0 0.0
    %5369 = vmatpush1.msra.mxu0 0.0
    %5370 = vmatprep.subr.mxu0 0.0
    %5371 = vmatpush1.msra.mxu0 0.0
    %5372 = vmatprep.subr.mxu0 0.0
    %5373 = vmatpush1.msra.mxu0 0.0
    %5374 = vmatprep.subr.mxu0 0.0
    %5375 = vmatpush1.msra.mxu0 0.0
    %5376 = vmatprep.subr.mxu0 0.0
    %5377 = vmatpush1.msra.mxu0 0.0
    %5378 = vmatprep.subr.mxu0 0.0
    %5379 = vmatpush1.msra.mxu0 0.0
    %5380 = vmatprep.subr.mxu0 0.0
    %5381 = vmatpush1.msra.mxu0 0.0
    %5382 = vmatprep.subr.mxu0 0.0
    %5383 = vmatpush1.msra.mxu0 0.0
    %5384 = vmatprep.subr.mxu0 0.0
    %5385 = vmatpush1.msra.mxu0 0.0
    %5386 = vmatprep.subr.mxu0 0.0
    %5387 = vmatpush1.msra.mxu0 0.0
    %5388 = vmatprep.subr.mxu0 0.0
    %5389 = vmatpush1.msra.mxu0 0.0
    %5390 = vmatprep.subr.mxu0 0.0
    %5391 = vmatpush1.msra.mxu0 0.0
    %5392 = vmatprep.subr.mxu0 0.0
    %5393 = vmatpush1.msra.mxu0 0.0
    %5394 = vmatprep.subr.mxu0 0.0
    %5395 = vmatpush1.msra.mxu0 0.0
    %5396 = vmatprep.subr.mxu0 0.0
    %5397 = vmatpush1.msra.mxu0 0.0
    %5398 = vmatprep.subr.mxu0 0.0
    %5399 = vmatpush1.msra.mxu0 0.0
    %5400 = vmatprep.subr.mxu0 0.0
    %5401 = vmatpush1.msra.mxu0 0.0
    %5402 = vmatprep.subr.mxu0 0.0
    %5403 = vmatpush1.msra.mxu0 0.0
    %5404 = vmatprep.subr.mxu0 0.0
    %5405 = vmatpush1.msra.mxu0 0.0
    %5406 = vmatprep.subr.mxu0 0.0
    %5407 = vmatpush1.msra.mxu0 0.0
    %5408 = vmatprep.subr.mxu0 0.0
    %5409 = vmatpush1.msra.mxu0 0.0
    %5410 = vmatprep.mubr.f32.mxu0 0.0
    %5411 = vmatmul.mubr.f32.gmra.mrb[0].mxu0 %v5344
    %v5412 = vpop.f32.mrb[0].mxu0
    %v5413 = vadd.f32 0.0, %v5412
    %v5414 = vpop.f32.mrb[0].mxu0
    %5415 = vdwg.mxu0
    %5417 = vrot.lane.b32.xlu0 %v5413, 32
    %v5418 = vpop.permute.xlu0 %5417
    %v5420 = vadd.f32 %v5155, %v5418
    %v5422 = vsel %vm2628, %v5342, 0
    %5424 = vmatprep.subr.mxu0 0.0
    %5425 = vmatpush1.msra.mxu0 %v98
    %5426 = vmatprep.subr.mxu0 0.0
    %5427 = vmatpush1.msra.mxu0 %v99
    %5428 = vmatprep.subr.mxu0 0.0
    %5429 = vmatpush1.msra.mxu0 0.0
    %5430 = vmatprep.subr.mxu0 0.0
    %5431 = vmatpush1.msra.mxu0 0.0
    %5432 = vmatprep.subr.mxu0 0.0
    %5433 = vmatpush1.msra.mxu0 0.0
    %5434 = vmatprep.subr.mxu0 0.0
    %5435 = vmatpush1.msra.mxu0 0.0
    %5436 = vmatprep.subr.mxu0 0.0
    %5437 = vmatpush1.msra.mxu0 0.0
    %5438 = vmatprep.subr.mxu0 0.0
    %5439 = vmatpush1.msra.mxu0 0.0
    %5440 = vmatprep.subr.mxu0 0.0
    %5441 = vmatpush1.msra.mxu0 0.0
    %5442 = vmatprep.subr.mxu0 0.0
    %5443 = vmatpush1.msra.mxu0 0.0
    %5444 = vmatprep.subr.mxu0 0.0
    %5445 = vmatpush1.msra.mxu0 0.0
    %5446 = vmatprep.subr.mxu0 0.0
    %5447 = vmatpush1.msra.mxu0 0.0
    %5448 = vmatprep.subr.mxu0 0.0
    %5449 = vmatpush1.msra.mxu0 0.0
    %5450 = vmatprep.subr.mxu0 0.0
    %5451 = vmatpush1.msra.mxu0 0.0
    %5452 = vmatprep.subr.mxu0 0.0
    %5453 = vmatpush1.msra.mxu0 0.0
    %5454 = vmatprep.subr.mxu0 0.0
    %5455 = vmatpush1.msra.mxu0 0.0
    %5456 = vmatprep.subr.mxu0 0.0
    %5457 = vmatpush1.msra.mxu0 0.0
    %5458 = vmatprep.subr.mxu0 0.0
    %5459 = vmatpush1.msra.mxu0 0.0
    %5460 = vmatprep.subr.mxu0 0.0
    %5461 = vmatpush1.msra.mxu0 0.0
    %5462 = vmatprep.subr.mxu0 0.0
    %5463 = vmatpush1.msra.mxu0 0.0
    %5464 = vmatprep.subr.mxu0 0.0
    %5465 = vmatpush1.msra.mxu0 0.0
    %5466 = vmatprep.subr.mxu0 0.0
    %5467 = vmatpush1.msra.mxu0 0.0
    %5468 = vmatprep.subr.mxu0 0.0
    %5469 = vmatpush1.msra.mxu0 0.0
    %5470 = vmatprep.subr.mxu0 0.0
    %5471 = vmatpush1.msra.mxu0 0.0
    %5472 = vmatprep.subr.mxu0 0.0
    %5473 = vmatpush1.msra.mxu0 0.0
    %5474 = vmatprep.subr.mxu0 0.0
    %5475 = vmatpush1.msra.mxu0 0.0
    %5476 = vmatprep.subr.mxu0 0.0
    %5477 = vmatpush1.msra.mxu0 0.0
    %5478 = vmatprep.subr.mxu0 0.0
    %5479 = vmatpush1.msra.mxu0 0.0
    %5480 = vmatprep.subr.mxu0 0.0
    %5481 = vmatpush1.msra.mxu0 0.0
    %5482 = vmatprep.subr.mxu0 0.0
    %5483 = vmatpush1.msra.mxu0 0.0
    %5484 = vmatprep.subr.mxu0 0.0
    %5485 = vmatpush1.msra.mxu0 0.0
    %5486 = vmatprep.subr.mxu0 0.0
    %5487 = vmatpush1.msra.mxu0 0.0
    %5488 = vmatprep.mubr.f32.mxu0 0.0
    %5489 = vmatmul.mubr.f32.gmra.mrb[0].mxu0 %v5422
    %v5490 = vpop.f32.mrb[0].mxu0
    %v5491 = vadd.f32 0.0, %v5490
    %v5492 = vpop.f32.mrb[0].mxu0
    %5493 = vdwg.mxu0
    %5495 = vrot.lane.b32.xlu0 %v5491, 32
    %v5496 = vpop.permute.xlu0 %5495
    %v5498 = vadd.f32 %v5420, %v5496
    %v5499 = vadd.f32 %v5498, %v2791
    %v5500 = vtanh.pop %v5499
    %5502 = vrot.lane.b32.xlu0 %v5500, 96
    %v5503 = vpop.permute.xlu0 %5502
    %v5504 = vsel %vm114, %v5503, 0
    %5506 = vmatprep.subr.mxu0 0.0
    %5507 = vmatpush1.msra.mxu0 %v101
    %5508 = vmatprep.subr.mxu0 0.0
    %5509 = vmatpush1.msra.mxu0 %v102
    %5510 = vmatprep.subr.mxu0 0.0
    %5511 = vmatpush1.msra.mxu0 %v103
    %5512 = vmatprep.subr.mxu0 0.0
    %5513 = vmatpush1.msra.mxu0 %v104
    %5514 = vmatprep.subr.mxu0 0.0
    %5515 = vmatpush1.msra.mxu0 0.0
    %5516 = vmatprep.subr.mxu0 0.0
    %5517 = vmatpush1.msra.mxu0 0.0
    %5518 = vmatprep.subr.mxu0 0.0
    %5519 = vmatpush1.msra.mxu0 0.0
    %5520 = vmatprep.subr.mxu0 0.0
    %5521 = vmatpush1.msra.mxu0 0.0
    %5522 = vmatprep.subr.mxu0 0.0
    %5523 = vmatpush1.msra.mxu0 0.0
    %5524 = vmatprep.subr.mxu0 0.0
    %5525 = vmatpush1.msra.mxu0 0.0
    %5526 = vmatprep.subr.mxu0 0.0
    %5527 = vmatpush1.msra.mxu0 0.0
    %5528 = vmatprep.subr.mxu0 0.0
    %5529 = vmatpush1.msra.mxu0 0.0
    %5530 = vmatprep.subr.mxu0 0.0
    %5531 = vmatpush1.msra.mxu0 0.0
    %5532 = vmatprep.subr.mxu0 0.0
    %5533 = vmatpush1.msra.mxu0 0.0
    %5534 = vmatprep.subr.mxu0 0.0
    %5535 = vmatpush1.msra.mxu0 0.0
    %5536 = vmatprep.subr.mxu0 0.0
    %5537 = vmatpush1.msra.mxu0 0.0
    %5538 = vmatprep.subr.mxu0 0.0
    %5539 = vmatpush1.msra.mxu0 0.0
    %5540 = vmatprep.subr.mxu0 0.0
    %5541 = vmatpush1.msra.mxu0 0.0
    %5542 = vmatprep.subr.mxu0 0.0
    %5543 = vmatpush1.msra.mxu0 0.0
    %5544 = vmatprep.subr.mxu0 0.0
    %5545 = vmatpush1.msra.mxu0 0.0
    %5546 = vmatprep.subr.mxu0 0.0
    %5547 = vmatpush1.msra.mxu0 0.0
    %5548 = vmatprep.subr.mxu0 0.0
    %5549 = vmatpush1.msra.mxu0 0.0
    %5550 = vmatprep.subr.mxu0 0.0
    %5551 = vmatpush1.msra.mxu0 0.0
    %5552 = vmatprep.subr.mxu0 0.0
    %5553 = vmatpush1.msra.mxu0 0.0
    %5554 = vmatprep.subr.mxu0 0.0
    %5555 = vmatpush1.msra.mxu0 0.0
    %5556 = vmatprep.subr.mxu0 0.0
    %5557 = vmatpush1.msra.mxu0 0.0
    %5558 = vmatprep.subr.mxu0 0.0
    %5559 = vmatpush1.msra.mxu0 0.0
    %5560 = vmatprep.subr.mxu0 0.0
    %5561 = vmatpush1.msra.mxu0 0.0
    %5562 = vmatprep.subr.mxu0 0.0
    %5563 = vmatpush1.msra.mxu0 0.0
    %5564 = vmatprep.subr.mxu0 0.0
    %5565 = vmatpush1.msra.mxu0 0.0
    %5566 = vmatprep.subr.mxu0 0.0
    %5567 = vmatpush1.msra.mxu0 0.0
    %5568 = vmatprep.subr.mxu0 0.0
    %5569 = vmatpush1.msra.mxu0 0.0
    %5570 = vmatprep.mubr.f32.mxu0 0.0
    %5571 = vmatmul.mubr.f32.gmra.mrb[0].mxu0 %v5504
    %v5572 = vpop.f32.mrb[0].mxu0
    %v5573 = vadd.f32 %v2799, %v5572
    %v5574 = vpop.f32.mrb[0].mxu0
    %5575 = vdwg.mxu0
    %v5576 = vsel %vm2876, %v5573, -inf
    %5577 = vmax.xlane.f32.xlu0 %v5576
    %v5578 = vpop.xlane.xlu0 %5577
    %v5579 = vsub.f32 %v5573, %v5578
    %v5580 = vmul.f32 %v5579, 1.442695
    %v5581 = vpow.pop %v5580
    %v5582 = vsel %vm2876, %v5581, 0.0
    %5583 = vadd.xlane.f32.xlu0 %v5582
    %v5584 = vpop.xlane.xlu0 %5583
    %v5585 = vrcp.pop %v5584
    %v5586 = vmul.f32 %v5581, %v5585
    %s5587 = scalar_lea.vmem [#allocation4], 8
    %5588 = vst.msk [vmem:[%s5587] sm:$0x3] %vm2876, %v5586
    %s5589 = scalar_lea.vmem %s1, 10
    %v5590 = vld [vmem:[%s5589] sm:$0x3]
    %5591 = vmatprep.subr.mxu0 0.0
    %5592 = vmatpush1.msra.mxu0 %v83
    %5593 = vmatprep.subr.mxu0 0.0
    %5594 = vmatpush1.msra.mxu0 %v84
    %5595 = vmatprep.subr.mxu0 0.0
    %5596 = vmatpush1.msra.mxu0 %v85
    %5597 = vmatprep.subr.mxu0 0.0
    %5598 = vmatpush1.msra.mxu0 %v86
    %5599 = vmatprep.subr.mxu0 0.0
    %5600 = vmatpush1.msra.mxu0 0.0
    %5601 = vmatprep.subr.mxu0 0.0
    %5602 = vmatpush1.msra.mxu0 0.0
    %5603 = vmatprep.subr.mxu0 0.0
    %5604 = vmatpush1.msra.mxu0 0.0
    %5605 = vmatprep.subr.mxu0 0.0
    %5606 = vmatpush1.msra.mxu0 0.0
    %5607 = vmatprep.subr.mxu0 0.0
    %5608 = vmatpush1.msra.mxu0 0.0
    %5609 = vmatprep.subr.mxu0 0.0
    %5610 = vmatpush1.msra.mxu0 0.0
    %5611 = vmatprep.subr.mxu0 0.0
    %5612 = vmatpush1.msra.mxu0 0.0
    %5613 = vmatprep.subr.mxu0 0.0
    %5614 = vmatpush1.msra.mxu0 0.0
    %5615 = vmatprep.subr.mxu0 0.0
    %5616 = vmatpush1.msra.mxu0 0.0
    %5617 = vmatprep.subr.mxu0 0.0
    %5618 = vmatpush1.msra.mxu0 0.0
    %5619 = vmatprep.subr.mxu0 0.0
    %5620 = vmatpush1.msra.mxu0 0.0
    %5621 = vmatprep.subr.mxu0 0.0
    %5622 = vmatpush1.msra.mxu0 0.0
    %5623 = vmatprep.subr.mxu0 0.0
    %5624 = vmatpush1.msra.mxu0 0.0
    %5625 = vmatprep.subr.mxu0 0.0
    %5626 = vmatpush1.msra.mxu0 0.0
    %5627 = vmatprep.subr.mxu0 0.0
    %5628 = vmatpush1.msra.mxu0 0.0
    %5629 = vmatprep.subr.mxu0 0.0
    %5630 = vmatpush1.msra.mxu0 0.0
    %5631 = vmatprep.subr.mxu0 0.0
    %5632 = vmatpush1.msra.mxu0 0.0
    %5633 = vmatprep.subr.mxu0 0.0
    %5634 = vmatpush1.msra.mxu0 0.0
    %5635 = vmatprep.subr.mxu0 0.0
    %5636 = vmatpush1.msra.mxu0 0.0
    %5637 = vmatprep.subr.mxu0 0.0
    %5638 = vmatpush1.msra.mxu0 0.0
    %5639 = vmatprep.subr.mxu0 0.0
    %5640 = vmatpush1.msra.mxu0 0.0
    %5641 = vmatprep.subr.mxu0 0.0
    %5642 = vmatpush1.msra.mxu0 0.0
    %5643 = vmatprep.subr.mxu0 0.0
    %5644 = vmatpush1.msra.mxu0 0.0
    %5645 = vmatprep.subr.mxu0 0.0
    %5646 = vmatpush1.msra.mxu0 0.0
    %5647 = vmatprep.subr.mxu0 0.0
    %5648 = vmatpush1.msra.mxu0 0.0
    %5649 = vmatprep.subr.mxu0 0.0
    %5650 = vmatpush1.msra.mxu0 0.0
    %5651 = vmatprep.subr.mxu0 0.0
    %5652 = vmatpush1.msra.mxu0 0.0
    %5653 = vmatprep.subr.mxu0 0.0
    %5654 = vmatpush1.msra.mxu0 0.0
    %5655 = vmatprep.mubr.f32.mxu0 0.0
    %5656 = vmatmul.mubr.f32.gmra.mrb[0].mxu0 %v5504
    %v5657 = vpop.f32.mrb[0].mxu0
    %v5658 = vadd.f32 0.0, %v5657
    %v5659 = vpop.f32.mrb[0].mxu0
    %5660 = vdwg.mxu0
    %v5661 = vadd.f32 %v5590, %v5658
    %5662 = vmatprep.subr.mxu0 0.0
    %5663 = vmatpush1.msra.mxu0 %v87
    %5664 = vmatprep.subr.mxu0 0.0
    %5665 = vmatpush1.msra.mxu0 %v88
    %5666 = vmatprep.subr.mxu0 0.0
    %5667 = vmatpush1.msra.mxu0 %v89
    %5668 = vmatprep.subr.mxu0 0.0
    %5669 = vmatpush1.msra.mxu0 %v90
    %5670 = vmatprep.subr.mxu0 0.0
    %5671 = vmatpush1.msra.mxu0 0.0
    %5672 = vmatprep.subr.mxu0 0.0
    %5673 = vmatpush1.msra.mxu0 0.0
    %5674 = vmatprep.subr.mxu0 0.0
    %5675 = vmatpush1.msra.mxu0 0.0
    %5676 = vmatprep.subr.mxu0 0.0
    %5677 = vmatpush1.msra.mxu0 0.0
    %5678 = vmatprep.subr.mxu0 0.0
    %5679 = vmatpush1.msra.mxu0 0.0
    %5680 = vmatprep.subr.mxu0 0.0
    %5681 = vmatpush1.msra.mxu0 0.0
    %5682 = vmatprep.subr.mxu0 0.0
    %5683 = vmatpush1.msra.mxu0 0.0
    %5684 = vmatprep.subr.mxu0 0.0
    %5685 = vmatpush1.msra.mxu0 0.0
    %5686 = vmatprep.subr.mxu0 0.0
    %5687 = vmatpush1.msra.mxu0 0.0
    %5688 = vmatprep.subr.mxu0 0.0
    %5689 = vmatpush1.msra.mxu0 0.0
    %5690 = vmatprep.subr.mxu0 0.0
    %5691 = vmatpush1.msra.mxu0 0.0
    %5692 = vmatprep.subr.mxu0 0.0
    %5693 = vmatpush1.msra.mxu0 0.0
    %5694 = vmatprep.subr.mxu0 0.0
    %5695 = vmatpush1.msra.mxu0 0.0
    %5696 = vmatprep.subr.mxu0 0.0
    %5697 = vmatpush1.msra.mxu0 0.0
    %5698 = vmatprep.subr.mxu0 0.0
    %5699 = vmatpush1.msra.mxu0 0.0
    %5700 = vmatprep.subr.mxu0 0.0
    %5701 = vmatpush1.msra.mxu0 0.0
    %5702 = vmatprep.subr.mxu0 0.0
    %5703 = vmatpush1.msra.mxu0 0.0
    %5704 = vmatprep.subr.mxu0 0.0
    %5705 = vmatpush1.msra.mxu0 0.0
    %5706 = vmatprep.subr.mxu0 0.0
    %5707 = vmatpush1.msra.mxu0 0.0
    %5708 = vmatprep.subr.mxu0 0.0
    %5709 = vmatpush1.msra.mxu0 0.0
    %5710 = vmatprep.subr.mxu0 0.0
    %5711 = vmatpush1.msra.mxu0 0.0
    %5712 = vmatprep.subr.mxu0 0.0
    %5713 = vmatpush1.msra.mxu0 0.0
    %5714 = vmatprep.subr.mxu0 0.0
    %5715 = vmatpush1.msra.mxu0 0.0
    %5716 = vmatprep.subr.mxu0 0.0
    %5717 = vmatpush1.msra.mxu0 0.0
    %5718 = vmatprep.subr.mxu0 0.0
    %5719 = vmatpush1.msra.mxu0 0.0
    %5720 = vmatprep.subr.mxu0 0.0
    %5721 = vmatpush1.msra.mxu0 0.0
    %5722 = vmatprep.subr.mxu0 0.0
    %5723 = vmatpush1.msra.mxu0 0.0
    %5724 = vmatprep.subr.mxu0 0.0
    %5725 = vmatpush1.msra.mxu0 0.0
    %5726 = vmatprep.mubr.f32.mxu0 0.0
    %5727 = vmatmul.mubr.f32.gmra.mrb[0].mxu0 %v5086
    %v5728 = vpop.f32.mrb[0].mxu0
    %v5729 = vadd.f32 %v2263, %v5728
    %v5730 = vpop.f32.mrb[0].mxu0
    %5731 = vdwg.mxu0
    %v5732 = vadd.f32 %v5661, %v5729
    %v5733 = vxor.u32 %v5732, 2147483648
    %v5734 = vmul.f32 %v5733, 1.442695
    %v5735 = vpow.pop %v5734
    %v5736 = vadd.f32 %v5735, 1.0
    %v5737 = vrcp.pop %v5736
    %v5738 = vmul.f32 1.0, %v5737
    %5740 = vrot.lane.b32.xlu0 %v5729, 64
    %v5741 = vpop.permute.xlu0 %5740
    %v5743 = vmul.f32 %v5738, %v5741
    %5745 = vrot.lane.b32.xlu0 %v5743, 64
    %v5746 = vpop.permute.xlu0 %5745
    %v5748 = vadd.f32 %v5661, %v5746
    %v5749 = vtanh.pop %v5748
    %v5750 = vsub.f32 1.0, %v5738
    %5752 = vrot.lane.b32.xlu0 %v5749, 96
    %v5753 = vpop.permute.xlu0 %5752
    %v5755 = vmul.f32 %v5750, %v5753
    %v5756 = vmul.f32 %v5738, %v5082
    %v5757 = vadd.f32 %v5755, %v5756
    %5759 = vrot.lane.b32.xlu0 %v5757, 96
    %v5760 = vpop.permute.xlu0 %5759
    %v5761 = vsel %vm114, %v5760, 0
    %5763 = vmatprep.subr.mxu0 0.0
    %5764 = vmatpush1.msra.mxu0 %v92
    %5765 = vmatprep.subr.mxu0 0.0
    %5766 = vmatpush1.msra.mxu0 %v93
    %5767 = vmatprep.subr.mxu0 0.0
    %5768 = vmatpush1.msra.mxu0 %v94
    %5769 = vmatprep.subr.mxu0 0.0
    %5770 = vmatpush1.msra.mxu0 %v95
    %5771 = vmatprep.subr.mxu0 0.0
    %5772 = vmatpush1.msra.mxu0 0.0
    %5773 = vmatprep.subr.mxu0 0.0
    %5774 = vmatpush1.msra.mxu0 0.0
    %5775 = vmatprep.subr.mxu0 0.0
    %5776 = vmatpush1.msra.mxu0 0.0
    %5777 = vmatprep.subr.mxu0 0.0
    %5778 = vmatpush1.msra.mxu0 0.0
    %5779 = vmatprep.subr.mxu0 0.0
    %5780 = vmatpush1.msra.mxu0 0.0
    %5781 = vmatprep.subr.mxu0 0.0
    %5782 = vmatpush1.msra.mxu0 0.0
    %5783 = vmatprep.subr.mxu0 0.0
    %5784 = vmatpush1.msra.mxu0 0.0
    %5785 = vmatprep.subr.mxu0 0.0
    %5786 = vmatpush1.msra.mxu0 0.0
    %5787 = vmatprep.subr.mxu0 0.0
    %5788 = vmatpush1.msra.mxu0 0.0
    %5789 = vmatprep.subr.mxu0 0.0
    %5790 = vmatpush1.msra.mxu0 0.0
    %5791 = vmatprep.subr.mxu0 0.0
    %5792 = vmatpush1.msra.mxu0 0.0
    %5793 = vmatprep.subr.mxu0 0.0
    %5794 = vmatpush1.msra.mxu0 0.0
    %5795 = vmatprep.subr.mxu0 0.0
    %5796 = vmatpush1.msra.mxu0 0.0
    %5797 = vmatprep.subr.mxu0 0.0
    %5798 = vmatpush1.msra.mxu0 0.0
    %5799 = vmatprep.subr.mxu0 0.0
    %5800 = vmatpush1.msra.mxu0 0.0
    %5801 = vmatprep.subr.mxu0 0.0
    %5802 = vmatpush1.msra.mxu0 0.0
    %5803 = vmatprep.subr.mxu0 0.0
    %5804 = vmatpush1.msra.mxu0 0.0
    %5805 = vmatprep.subr.mxu0 0.0
    %5806 = vmatpush1.msra.mxu0 0.0
    %5807 = vmatprep.subr.mxu0 0.0
    %5808 = vmatpush1.msra.mxu0 0.0
    %5809 = vmatprep.subr.mxu0 0.0
    %5810 = vmatpush1.msra.mxu0 0.0
    %5811 = vmatprep.subr.mxu0 0.0
    %5812 = vmatpush1.msra.mxu0 0.0
    %5813 = vmatprep.subr.mxu0 0.0
    %5814 = vmatpush1.msra.mxu0 0.0
    %5815 = vmatprep.subr.mxu0 0.0
    %5816 = vmatpush1.msra.mxu0 0.0
    %5817 = vmatprep.subr.mxu0 0.0
    %5818 = vmatpush1.msra.mxu0 0.0
    %5819 = vmatprep.subr.mxu0 0.0
    %5820 = vmatpush1.msra.mxu0 0.0
    %5821 = vmatprep.subr.mxu0 0.0
    %5822 = vmatpush1.msra.mxu0 0.0
    %5823 = vmatprep.subr.mxu0 0.0
    %5824 = vmatpush1.msra.mxu0 0.0
    %5825 = vmatprep.subr.mxu0 0.0
    %5826 = vmatpush1.msra.mxu0 0.0
    %5827 = vmatprep.mubr.f32.mxu0 0.0
    %5828 = vmatmul.mubr.f32.gmra.mrb[0].mxu0 %v5761
    %v5829 = vpop.f32.mrb[0].mxu0
    %v5830 = vadd.f32 0.0, %v5829
    %v5831 = vpop.f32.mrb[0].mxu0
    %5832 = vdwg.mxu0
    %v5833 = vmul.f32 %v2171, %v5830
    %v5834 = vmul.f32 %v2172, %v5830
    %v5835 = vmul.f32 %v2173, %v5830
    %v5836 = vmul.f32 %v2174, %v5830
    %v5837 = vmul.f32 %v2175, %v5830
    %v5838 = vmul.f32 %v2176, %v5830
    %v5839 = vmul.f32 %v2177, %v5830
    %v5840 = vmul.f32 %v2178, %v5830
    %v5841 = vsel %vm295, %v5833, 0.0
    %5842 = vadd.xlane.f32.xlu0 %v5841
    %v5843 = vpop.xlane.xlu0 %5842
    %v5844 = vsel %vm295, %v5834, 0.0
    %5845 = vadd.xlane.f32.xlu0 %v5844
    %v5846 = vpop.xlane.xlu0 %5845
    %v5847 = vsel %vm295, %v5835, 0.0
    %5848 = vadd.xlane.f32.xlu0 %v5847
    %v5849 = vpop.xlane.xlu0 %5848
    %v5850 = vsel %vm295, %v5836, 0.0
    %5851 = vadd.xlane.f32.xlu0 %v5850
    %v5852 = vpop.xlane.xlu0 %5851
    %v5853 = vsel %vm295, %v5837, 0.0
    %5854 = vadd.xlane.f32.xlu0 %v5853
    %v5855 = vpop.xlane.xlu0 %5854
    %v5856 = vsel %vm295, %v5838, 0.0
    %5857 = vadd.xlane.f32.xlu0 %v5856
    %v5858 = vpop.xlane.xlu0 %5857
    %v5859 = vsel %vm295, %v5839, 0.0
    %5860 = vadd.xlane.f32.xlu0 %v5859
    %v5861 = vpop.xlane.xlu0 %5860
    %v5862 = vsel %vm295, %v5840, 0.0
    %5863 = vadd.xlane.f32.xlu0 %v5862
    %v5864 = vpop.xlane.xlu0 %5863
    %5866 = vrot.lane.b32.xlu0 %v5830, 112
    %v5867 = vpop.permute.xlu0 %5866
    %v5869 = vmul.f32 %v2179, %v5867
    %v5870 = vmul.f32 %v2180, %v5867
    %v5871 = vmul.f32 %v2181, %v5867
    %v5872 = vmul.f32 %v2182, %v5867
    %v5873 = vmul.f32 %v2183, %v5867
    %v5874 = vmul.f32 %v2184, %v5867
    %v5875 = vmul.f32 %v2185, %v5867
    %v5876 = vmul.f32 %v2186, %v5867
    %v5877 = vsel %vm295, %v5869, 0.0
    %5878 = vadd.xlane.f32.xlu0 %v5877
    %v5879 = vpop.xlane.xlu0 %5878
    %v5880 = vsel %vm295, %v5870, 0.0
    %5881 = vadd.xlane.f32.xlu0 %v5880
    %v5882 = vpop.xlane.xlu0 %5881
    %v5883 = vsel %vm295, %v5871, 0.0
    %5884 = vadd.xlane.f32.xlu0 %v5883
    %v5885 = vpop.xlane.xlu0 %5884
    %v5886 = vsel %vm295, %v5872, 0.0
    %5887 = vadd.xlane.f32.xlu0 %v5886
    %v5888 = vpop.xlane.xlu0 %5887
    %v5889 = vsel %vm295, %v5873, 0.0
    %5890 = vadd.xlane.f32.xlu0 %v5889
    %v5891 = vpop.xlane.xlu0 %5890
    %v5892 = vsel %vm295, %v5874, 0.0
    %5893 = vadd.xlane.f32.xlu0 %v5892
    %v5894 = vpop.xlane.xlu0 %5893
    %v5895 = vsel %vm295, %v5875, 0.0
    %5896 = vadd.xlane.f32.xlu0 %v5895
    %v5897 = vpop.xlane.xlu0 %5896
    %v5898 = vsel %vm295, %v5876, 0.0
    %5899 = vadd.xlane.f32.xlu0 %v5898
    %v5900 = vpop.xlane.xlu0 %5899
    %v5901 = vadd.f32 %v5843, %v5879
    %v5902 = vadd.f32 %v5846, %v5882
    %v5903 = vadd.f32 %v5849, %v5885
    %v5904 = vadd.f32 %v5852, %v5888
    %v5905 = vadd.f32 %v5855, %v5891
    %v5906 = vadd.f32 %v5858, %v5894
    %v5907 = vadd.f32 %v5861, %v5897
    %v5908 = vadd.f32 %v5864, %v5900
    %v5909 = vsel %vm2518, %v5901, -inf
    %v5910 = vsel %vm2518, %v5902, -inf
    %v5911 = vsel %vm2518, %v5903, -inf
    %v5912 = vsel %vm2518, %v5904, -inf
    %v5913 = vsel %vm2518, %v5905, -inf
    %v5914 = vmax.f32 %v5909, %v5913
    %v5915 = vsel %vm2518, %v5906, -inf
    %v5916 = vmax.f32 %v5910, %v5915
    %v5917 = vsel %vm2518, %v5907, -inf
    %v5918 = vmax.f32 %v5911, %v5917
    %v5919 = vsel %vm2518, %v5908, -inf
    %v5920 = vmax.f32 %v5912, %v5919
    %v5921 = vmax.f32 %v5914, %v5916
    %v5922 = vmax.f32 %v5918, %v5920
    %v5923 = vmax.f32 %v5921, %v5922
    %v5924 = vsub.f32 %v5901, %v5923
    %v5925 = vsub.f32 %v5902, %v5923
    %v5926 = vsub.f32 %v5903, %v5923
    %v5927 = vsub.f32 %v5904, %v5923
    %v5928 = vsub.f32 %v5905, %v5923
    %v5929 = vsub.f32 %v5906, %v5923
    %v5930 = vsub.f32 %v5907, %v5923
    %v5931 = vsub.f32 %v5908, %v5923
    %v5932 = vmul.f32 %v5924, 1.442695
    %v5933 = vpow.pop %v5932
    %v5934 = vmul.f32 %v5925, 1.442695
    %v5935 = vpow.pop %v5934
    %v5936 = vmul.f32 %v5926, 1.442695
    %v5937 = vpow.pop %v5936
    %v5938 = vmul.f32 %v5927, 1.442695
    %v5939 = vpow.pop %v5938
    %v5940 = vmul.f32 %v5928, 1.442695
    %v5941 = vpow.pop %v5940
    %v5942 = vmul.f32 %v5929, 1.442695
    %v5943 = vpow.pop %v5942
    %v5944 = vmul.f32 %v5930, 1.442695
    %v5945 = vpow.pop %v5944
    %v5946 = vmul.f32 %v5931, 1.442695
    %v5947 = vpow.pop %v5946
    %v5948 = vsel %vm2518, %v5933, 0.0
    %v5949 = vsel %vm2518, %v5935, 0.0
    %v5950 = vadd.f32 %v5948, %v5949
    %v5951 = vsel %vm2518, %v5937, 0.0
    %v5952 = vadd.f32 %v5950, %v5951
    %v5953 = vsel %vm2518, %v5939, 0.0
    %v5954 = vadd.f32 %v5952, %v5953
    %v5955 = vsel %vm2518, %v5941, 0.0
    %v5956 = vadd.f32 %v5954, %v5955
    %v5957 = vsel %vm2518, %v5943, 0.0
    %v5958 = vadd.f32 %v5956, %v5957
    %v5959 = vsel %vm2518, %v5945, 0.0
    %v5960 = vadd.f32 %v5958, %v5959
    %v5961 = vsel %vm2518, %v5947, 0.0
    %v5962 = vadd.f32 %v5960, %v5961
    %v5963 = vrcp.pop %v5962
    %v5964 = vmul.f32 %v5933, %v5963
    %v5965 = vmul.f32 %v5935, %v5963
    %v5966 = vmul.f32 %v5937, %v5963
    %v5967 = vmul.f32 %v5939, %v5963
    %v5968 = vmul.f32 %v5941, %v5963
    %v5969 = vmul.f32 %v5943, %v5963
    %v5970 = vmul.f32 %v5945, %v5963
    %v5971 = vmul.f32 %v5947, %v5963
    %v5972 = vmul.f32 %v5964, %v2171
    %v5973 = vmul.f32 %v5965, %v2172
    %v5974 = vmul.f32 %v5966, %v2173
    %v5975 = vmul.f32 %v5967, %v2174
    %v5976 = vmul.f32 %v5968, %v2175
    %v5977 = vmul.f32 %v5969, %v2176
    %v5978 = vmul.f32 %v5970, %v2177
    %v5979 = vmul.f32 %v5971, %v2178
    %v5980 = vsel %vm295, %v5972, 0.0
    %v5981 = vsel %vm295, %v5973, 0.0
    %v5982 = vadd.f32 %v5980, %v5981
    %v5983 = vsel %vm295, %v5974, 0.0
    %v5984 = vadd.f32 %v5982, %v5983
    %v5985 = vsel %vm295, %v5975, 0.0
    %v5986 = vadd.f32 %v5984, %v5985
    %v5987 = vsel %vm295, %v5976, 0.0
    %v5988 = vadd.f32 %v5986, %v5987
    %v5989 = vsel %vm295, %v5977, 0.0
    %v5990 = vadd.f32 %v5988, %v5989
    %v5991 = vsel %vm295, %v5978, 0.0
    %v5992 = vadd.f32 %v5990, %v5991
    %v5993 = vsel %vm295, %v5979, 0.0
    %v5994 = vadd.f32 %v5992, %v5993
    %v5995 = vmul.f32 %v5964, %v2179
    %v5996 = vmul.f32 %v5965, %v2180
    %v5997 = vmul.f32 %v5966, %v2181
    %v5998 = vmul.f32 %v5967, %v2182
    %v5999 = vmul.f32 %v5968, %v2183
    %v6000 = vmul.f32 %v5969, %v2184
    %v6001 = vmul.f32 %v5970, %v2185
    %v6002 = vmul.f32 %v5971, %v2186
    %v6003 = vsel %vm295, %v5995, 0.0
    %v6004 = vsel %vm295, %v5996, 0.0
    %v6005 = vadd.f32 %v6003, %v6004
    %v6006 = vsel %vm295, %v5997, 0.0
    %v6007 = vadd.f32 %v6005, %v6006
    %v6008 = vsel %vm295, %v5998, 0.0
    %v6009 = vadd.f32 %v6007, %v6008
    %v6010 = vsel %vm295, %v5999, 0.0
    %v6011 = vadd.f32 %v6009, %v6010
    %v6012 = vsel %vm295, %v6000, 0.0
    %v6013 = vadd.f32 %v6011, %v6012
    %v6014 = vsel %vm295, %v6001, 0.0
    %v6015 = vadd.f32 %v6013, %v6014
    %v6016 = vsel %vm295, %v6002, 0.0
    %v6017 = vadd.f32 %v6015, %v6016
    %v6019 = vsel %vm2628, %v5994, 0
    %6021 = vmatprep.subr.mxu0 0.0
    %6022 = vmatpush1.msra.mxu0 %v96
    %6023 = vmatprep.subr.mxu0 0.0
    %6024 = vmatpush1.msra.mxu0 %v97
    %6025 = vmatprep.subr.mxu0 0.0
    %6026 = vmatpush1.msra.mxu0 0.0
    %6027 = vmatprep.subr.mxu0 0.0
    %6028 = vmatpush1.msra.mxu0 0.0
    %6029 = vmatprep.subr.mxu0 0.0
    %6030 = vmatpush1.msra.mxu0 0.0
    %6031 = vmatprep.subr.mxu0 0.0
    %6032 = vmatpush1.msra.mxu0 0.0
    %6033 = vmatprep.subr.mxu0 0.0
    %6034 = vmatpush1.msra.mxu0 0.0
    %6035 = vmatprep.subr.mxu0 0.0
    %6036 = vmatpush1.msra.mxu0 0.0
    %6037 = vmatprep.subr.mxu0 0.0
    %6038 = vmatpush1.msra.mxu0 0.0
    %6039 = vmatprep.subr.mxu0 0.0
    %6040 = vmatpush1.msra.mxu0 0.0
    %6041 = vmatprep.subr.mxu0 0.0
    %6042 = vmatpush1.msra.mxu0 0.0
    %6043 = vmatprep.subr.mxu0 0.0
    %6044 = vmatpush1.msra.mxu0 0.0
    %6045 = vmatprep.subr.mxu0 0.0
    %6046 = vmatpush1.msra.mxu0 0.0
    %6047 = vmatprep.subr.mxu0 0.0
    %6048 = vmatpush1.msra.mxu0 0.0
    %6049 = vmatprep.subr.mxu0 0.0
    %6050 = vmatpush1.msra.mxu0 0.0
    %6051 = vmatprep.subr.mxu0 0.0
    %6052 = vmatpush1.msra.mxu0 0.0
    %6053 = vmatprep.subr.mxu0 0.0
    %6054 = vmatpush1.msra.mxu0 0.0
    %6055 = vmatprep.subr.mxu0 0.0
    %6056 = vmatpush1.msra.mxu0 0.0
    %6057 = vmatprep.subr.mxu0 0.0
    %6058 = vmatpush1.msra.mxu0 0.0
    %6059 = vmatprep.subr.mxu0 0.0
    %6060 = vmatpush1.msra.mxu0 0.0
    %6061 = vmatprep.subr.mxu0 0.0
    %6062 = vmatpush1.msra.mxu0 0.0
    %6063 = vmatprep.subr.mxu0 0.0
    %6064 = vmatpush1.msra.mxu0 0.0
    %6065 = vmatprep.subr.mxu0 0.0
    %6066 = vmatpush1.msra.mxu0 0.0
    %6067 = vmatprep.subr.mxu0 0.0
    %6068 = vmatpush1.msra.mxu0 0.0
    %6069 = vmatprep.subr.mxu0 0.0
    %6070 = vmatpush1.msra.mxu0 0.0
    %6071 = vmatprep.subr.mxu0 0.0
    %6072 = vmatpush1.msra.mxu0 0.0
    %6073 = vmatprep.subr.mxu0 0.0
    %6074 = vmatpush1.msra.mxu0 0.0
    %6075 = vmatprep.subr.mxu0 0.0
    %6076 = vmatpush1.msra.mxu0 0.0
    %6077 = vmatprep.subr.mxu0 0.0
    %6078 = vmatpush1.msra.mxu0 0.0
    %6079 = vmatprep.subr.mxu0 0.0
    %6080 = vmatpush1.msra.mxu0 0.0
    %6081 = vmatprep.subr.mxu0 0.0
    %6082 = vmatpush1.msra.mxu0 0.0
    %6083 = vmatprep.subr.mxu0 0.0
    %6084 = vmatpush1.msra.mxu0 0.0
    %6085 = vmatprep.mubr.f32.mxu0 0.0
    %6086 = vmatmul.mubr.f32.gmra.mrb[0].mxu0 %v6019
    %v6087 = vpop.f32.mrb[0].mxu0
    %v6088 = vadd.f32 0.0, %v6087
    %v6089 = vpop.f32.mrb[0].mxu0
    %6090 = vdwg.mxu0
    %6092 = vrot.lane.b32.xlu0 %v6088, 32
    %v6093 = vpop.permute.xlu0 %6092
    %v6095 = vadd.f32 %v5830, %v6093
    %v6097 = vsel %vm2628, %v6017, 0
    %6099 = vmatprep.subr.mxu0 0.0
    %6100 = vmatpush1.msra.mxu0 %v98
    %6101 = vmatprep.subr.mxu0 0.0
    %6102 = vmatpush1.msra.mxu0 %v99
    %6103 = vmatprep.subr.mxu0 0.0
    %6104 = vmatpush1.msra.mxu0 0.0
    %6105 = vmatprep.subr.mxu0 0.0
    %6106 = vmatpush1.msra.mxu0 0.0
    %6107 = vmatprep.subr.mxu0 0.0
    %6108 = vmatpush1.msra.mxu0 0.0
    %6109 = vmatprep.subr.mxu0 0.0
    %6110 = vmatpush1.msra.mxu0 0.0
    %6111 = vmatprep.subr.mxu0 0.0
    %6112 = vmatpush1.msra.mxu0 0.0
    %6113 = vmatprep.subr.mxu0 0.0
    %6114 = vmatpush1.msra.mxu0 0.0
    %6115 = vmatprep.subr.mxu0 0.0
    %6116 = vmatpush1.msra.mxu0 0.0
    %6117 = vmatprep.subr.mxu0 0.0
    %6118 = vmatpush1.msra.mxu0 0.0
    %6119 = vmatprep.subr.mxu0 0.0
    %6120 = vmatpush1.msra.mxu0 0.0
    %6121 = vmatprep.subr.mxu0 0.0
    %6122 = vmatpush1.msra.mxu0 0.0
    %6123 = vmatprep.subr.mxu0 0.0
    %6124 = vmatpush1.msra.mxu0 0.0
    %6125 = vmatprep.subr.mxu0 0.0
    %6126 = vmatpush1.msra.mxu0 0.0
    %6127 = vmatprep.subr.mxu0 0.0
    %6128 = vmatpush1.msra.mxu0 0.0
    %6129 = vmatprep.subr.mxu0 0.0
    %6130 = vmatpush1.msra.mxu0 0.0
    %6131 = vmatprep.subr.mxu0 0.0
    %6132 = vmatpush1.msra.mxu0 0.0
    %6133 = vmatprep.subr.mxu0 0.0
    %6134 = vmatpush1.msra.mxu0 0.0
    %6135 = vmatprep.subr.mxu0 0.0
    %6136 = vmatpush1.msra.mxu0 0.0
    %6137 = vmatprep.subr.mxu0 0.0
    %6138 = vmatpush1.msra.mxu0 0.0
    %6139 = vmatprep.subr.mxu0 0.0
    %6140 = vmatpush1.msra.mxu0 0.0
    %6141 = vmatprep.subr.mxu0 0.0
    %6142 = vmatpush1.msra.mxu0 0.0
    %6143 = vmatprep.subr.mxu0 0.0
    %6144 = vmatpush1.msra.mxu0 0.0
    %6145 = vmatprep.subr.mxu0 0.0
    %6146 = vmatpush1.msra.mxu0 0.0
    %6147 = vmatprep.subr.mxu0 0.0
    %6148 = vmatpush1.msra.mxu0 0.0
    %6149 = vmatprep.subr.mxu0 0.0
    %6150 = vmatpush1.msra.mxu0 0.0
    %6151 = vmatprep.subr.mxu0 0.0
    %6152 = vmatpush1.msra.mxu0 0.0
    %6153 = vmatprep.subr.mxu0 0.0
    %6154 = vmatpush1.msra.mxu0 0.0
    %6155 = vmatprep.subr.mxu0 0.0
    %6156 = vmatpush1.msra.mxu0 0.0
    %6157 = vmatprep.subr.mxu0 0.0
    %6158 = vmatpush1.msra.mxu0 0.0
    %6159 = vmatprep.subr.mxu0 0.0
    %6160 = vmatpush1.msra.mxu0 0.0
    %6161 = vmatprep.subr.mxu0 0.0
    %6162 = vmatpush1.msra.mxu0 0.0
    %6163 = vmatprep.mubr.f32.mxu0 0.0
    %6164 = vmatmul.mubr.f32.gmra.mrb[0].mxu0 %v6097
    %v6165 = vpop.f32.mrb[0].mxu0
    %v6166 = vadd.f32 0.0, %v6165
    %v6167 = vpop.f32.mrb[0].mxu0
    %6168 = vdwg.mxu0
    %6170 = vrot.lane.b32.xlu0 %v6166, 32
    %v6171 = vpop.permute.xlu0 %6170
    %v6173 = vadd.f32 %v6095, %v6171
    %v6174 = vadd.f32 %v6173, %v2791
    %v6175 = vtanh.pop %v6174
    %6177 = vrot.lane.b32.xlu0 %v6175, 96
    %v6178 = vpop.permute.xlu0 %6177
    %v6179 = vsel %vm114, %v6178, 0
    %6181 = vmatprep.subr.mxu0 0.0
    %6182 = vmatpush1.msra.mxu0 %v101
    %6183 = vmatprep.subr.mxu0 0.0
    %6184 = vmatpush1.msra.mxu0 %v102
    %6185 = vmatprep.subr.mxu0 0.0
    %6186 = vmatpush1.msra.mxu0 %v103
    %6187 = vmatprep.subr.mxu0 0.0
    %6188 = vmatpush1.msra.mxu0 %v104
    %6189 = vmatprep.subr.mxu0 0.0
    %6190 = vmatpush1.msra.mxu0 0.0
    %6191 = vmatprep.subr.mxu0 0.0
    %6192 = vmatpush1.msra.mxu0 0.0
    %6193 = vmatprep.subr.mxu0 0.0
    %6194 = vmatpush1.msra.mxu0 0.0
    %6195 = vmatprep.subr.mxu0 0.0
    %6196 = vmatpush1.msra.mxu0 0.0
    %6197 = vmatprep.subr.mxu0 0.0
    %6198 = vmatpush1.msra.mxu0 0.0
    %6199 = vmatprep.subr.mxu0 0.0
    %6200 = vmatpush1.msra.mxu0 0.0
    %6201 = vmatprep.subr.mxu0 0.0
    %6202 = vmatpush1.msra.mxu0 0.0
    %6203 = vmatprep.subr.mxu0 0.0
    %6204 = vmatpush1.msra.mxu0 0.0
    %6205 = vmatprep.subr.mxu0 0.0
    %6206 = vmatpush1.msra.mxu0 0.0
    %6207 = vmatprep.subr.mxu0 0.0
    %6208 = vmatpush1.msra.mxu0 0.0
    %6209 = vmatprep.subr.mxu0 0.0
    %6210 = vmatpush1.msra.mxu0 0.0
    %6211 = vmatprep.subr.mxu0 0.0
    %6212 = vmatpush1.msra.mxu0 0.0
    %6213 = vmatprep.subr.mxu0 0.0
    %6214 = vmatpush1.msra.mxu0 0.0
    %6215 = vmatprep.subr.mxu0 0.0
    %6216 = vmatpush1.msra.mxu0 0.0
    %6217 = vmatprep.subr.mxu0 0.0
    %6218 = vmatpush1.msra.mxu0 0.0
    %6219 = vmatprep.subr.mxu0 0.0
    %6220 = vmatpush1.msra.mxu0 0.0
    %6221 = vmatprep.subr.mxu0 0.0
    %6222 = vmatpush1.msra.mxu0 0.0
    %6223 = vmatprep.subr.mxu0 0.0
    %6224 = vmatpush1.msra.mxu0 0.0
    %6225 = vmatprep.subr.mxu0 0.0
    %6226 = vmatpush1.msra.mxu0 0.0
    %6227 = vmatprep.subr.mxu0 0.0
    %6228 = vmatpush1.msra.mxu0 0.0
    %6229 = vmatprep.subr.mxu0 0.0
    %6230 = vmatpush1.msra.mxu0 0.0
    %6231 = vmatprep.subr.mxu0 0.0
    %6232 = vmatpush1.msra.mxu0 0.0
    %6233 = vmatprep.subr.mxu0 0.0
    %6234 = vmatpush1.msra.mxu0 0.0
    %6235 = vmatprep.subr.mxu0 0.0
    %6236 = vmatpush1.msra.mxu0 0.0
    %6237 = vmatprep.subr.mxu0 0.0
    %6238 = vmatpush1.msra.mxu0 0.0
    %6239 = vmatprep.subr.mxu0 0.0
    %6240 = vmatpush1.msra.mxu0 0.0
    %6241 = vmatprep.subr.mxu0 0.0
    %6242 = vmatpush1.msra.mxu0 0.0
    %6243 = vmatprep.subr.mxu0 0.0
    %6244 = vmatpush1.msra.mxu0 0.0
    %6245 = vmatprep.mubr.f32.mxu0 0.0
    %6246 = vmatmul.mubr.f32.gmra.mrb[0].mxu0 %v6179
    %v6247 = vpop.f32.mrb[0].mxu0
    %v6248 = vadd.f32 %v2799, %v6247
    %v6249 = vpop.f32.mrb[0].mxu0
    %6250 = vdwg.mxu0
    %v6251 = vsel %vm2876, %v6248, -inf
    %6252 = vmax.xlane.f32.xlu0 %v6251
    %v6253 = vpop.xlane.xlu0 %6252
    %v6254 = vsub.f32 %v6248, %v6253
    %v6255 = vmul.f32 %v6254, 1.442695
    %v6256 = vpow.pop %v6255
    %v6257 = vsel %vm2876, %v6256, 0.0
    %6258 = vadd.xlane.f32.xlu0 %v6257
    %v6259 = vpop.xlane.xlu0 %6258
    %v6260 = vrcp.pop %v6259
    %v6261 = vmul.f32 %v6256, %v6260
    %s6262 = scalar_lea.vmem [#allocation4], 10
    %6263 = vst.msk [vmem:[%s6262] sm:$0x3] %vm2876, %v6261
    // Predicated region
    $region78: #{hred_forward.1} parent=1 // pred_check
      _
    $region79: #{hred_forward.1} parent=1 // pred_check_branch
      %6265 = sbr.rel (0) target = $region81
    $region80: #{hred_forward.1} parent=1 // pred_region
      %s6267 = ssub.s32 192, 192
      %6268 = vsyncadd [#allocation5], %s6267
      %s6269 = sshll.u32 [#allocation4], 4
      %s6270 = int_to_ptr.vmem [resolvable:$true] %s6269
      %6275 = dma.vmem_to_hbm [thread:$0]  %s6270, 192, %s19, [#allocation5], 32, 32, 2
    $region81: #{hred_forward.1} parent=1 // pred_fallthru
      _
    // Predicated region
    $region82: #{hred_forward.1} parent=1 // pred_check
      _
    $region83: #{hred_forward.1} parent=1 // pred_check_branch
      %6277 = sbr.rel (0) target = $region85
    $region84: #{hred_forward.1} parent=1 // pred_region
      %6278 = dma.done [#allocation5], 192
    $region85: #{hred_forward.1} parent=1 // pred_fallthru
      _
    %6279 = vsyncpa [#allocation5], 1

</llo_original>
